<compile_context>
chip_gen: v7x
topology: tpu7x:2x2x1
jax: 0.10.0
libtpu: 0.0.40
codegen_flags: <defaults>
</compile_context>

<pallas_src>
import jax
import jax.numpy as jnp
from jax import lax
from jax.experimental import pallas as pl
from jax.experimental.pallas import tpu as pltpu
import numpy as np

EPS = 1e-5


# ---------------------------------------------------------------------------
# Fused kernel factory (all shape / stride / branch decisions are static)
# ---------------------------------------------------------------------------
def _make_fused_kernel(stride, equal_in_out, B, H, W, Cin, Cmid, Cout, Ho, Wo):
    f32, bf16 = jnp.float32, jnp.bfloat16
    M = B * Ho * Wo
    if stride == 1:
        Hp, Wp, Cp = H + 2, W + 2, Cin
    else:
        # Width space-to-depth layout for the padded activation: padded column
        # c = 2*q + parity, with parity folded into the channel axis
        # ([0:Cin] = parity 0, [Cin:2Cin] = parity 1).
        Hp, Wp, Cp = H + 2, W // 2 + 1, 2 * Cin

    def kernel(*refs):
        it = iter(refs)
        x_ref = next(it)
        s1_ref = next(it)
        sh1_ref = next(it)
        w1_ref = next(it)
        s2_ref = next(it)
        sh2_ref = next(it)
        w2_ref = next(it)
        ws_ref = None if equal_in_out else next(it)
        o_ref = next(it)
        ap_ref = next(it)      # (B, Hp, Wp, Cp)        bf16, padded relu(bn1(x))
        hp_ref = next(it)      # (B, Ho+2, Wo+2, Cmid)  bf16, padded relu(bn2(conv1))

        # ---- zero ONLY the 1-wide borders (interior fully rewritten below) ----
        ap_ref[:, 0:1, :, :] = jnp.zeros((B, 1, Wp, Cp), bf16)
        ap_ref[:, Hp - 1:Hp, :, :] = jnp.zeros((B, 1, Wp, Cp), bf16)
        ap_ref[:, :, 0:1, :] = jnp.zeros((B, Hp, 1, Cp), bf16)
        ap_ref[:, :, Wp - 1:Wp, :] = jnp.zeros((B, Hp, 1, Cp), bf16)

        # ---- a = relu(bn1(x)) : f32 VPU math, stored bf16 ----------------------
        a = jnp.maximum(x_ref[...].astype(f32) * s1_ref[...] + sh1_ref[...], 0.0)
        a = a.astype(bf16)
        if stride == 1:
            ap_ref[:, 1:H + 1, 1:W + 1, :] = a
        else:
            W2 = W // 2
            # even x-columns (chan block [0:Cin])   -> padded parity 1, q = w/2
            ap_ref[:, 1:H + 1, 0:W2, Cin:2 * Cin] = a[:, :, :, 0:Cin]
            # odd  x-columns (chan block [Cin:2C])  -> padded parity 0, q = (w+1)/2
            ap_ref[:, 1:H + 1, 1:W2 + 1, 0:Cin] = a[:, :, :, Cin:2 * Cin]

        def conv1_tap(kh, kw):
            """(M, Cin) bf16 slab of relu(bn1(x)) for tap (kh, kw) at the conv1
            stride.  Static slices only - no strided ref indexing."""
            if stride == 1:
                t = ap_ref[:, kh:kh + Ho, kw:kw + Wo, :]
            else:
                q0, par = kw // 2, kw % 2
                t = ap_ref[:, kh:kh + 2 * Ho, q0:q0 + Wo,
                           par * Cin:(par + 1) * Cin]
                # keep rows kh, kh+2, ... (major-dim reshape: address math only)
                t = t.reshape(B, Ho, 2, Wo, Cin)[:, :, 0]
            return t.reshape(M, Cin)

        # ---- conv1: 9 accumulating MXU dots (K = Cin each) ---------------------
        h = None
        for k in range(9):
            kh, kw = divmod(k, 3)
            d = jnp.dot(conv1_tap(kh, kw), w1_ref[k], preferred_element_type=f32)
            h = d if h is None else h + d

        # ---- bn2 + relu (f32 VPU) ----------------------------------------------
        h = jnp.maximum(h * s2_ref[...] + sh2_ref[...], 0.0)
        # TODO(synk): F.dropout skipped - droprate=0.0 default and eval mode.

        # ---- conv2: 9 accumulating MXU dots (K = Cmid each) --------------------
        hp_ref[:, 0:1, :, :] = jnp.zeros((B, 1, Wo + 2, Cmid), bf16)
        hp_ref[:, Ho + 1:Ho + 2, :, :] = jnp.zeros((B, 1, Wo + 2, Cmid), bf16)
        hp_ref[:, :, 0:1, :] = jnp.zeros((B, Ho + 2, 1, Cmid), bf16)
        hp_ref[:, :, Wo + 1:Wo + 2, :] = jnp.zeros((B, Ho + 2, 1, Cmid), bf16)
        hp_ref[:, 1:Ho + 1, 1:Wo + 1, :] = h.reshape(B, Ho, Wo, Cmid).astype(bf16)

        acc = None
        for k in range(9):
            kh, kw = divmod(k, 3)
            t = hp_ref[:, kh:kh + Ho, kw:kw + Wo, :].reshape(M, Cmid)
            d = jnp.dot(t, w2_ref[k], preferred_element_type=f32)
            acc = d if acc is None else acc + d

        # ---- shortcut ------------------------------------------------------------
        if equal_in_out:
            # identity shortcut (module guarantees stride == 1 here); re-read x at
            # the use site so its live range does not span the two conv loops.
            acc = acc + x_ref[...].astype(f32).reshape(M, Cout)
        else:
            # convShortcut(relu(bn1(x))), 1x1 stride s == matmul on the centre-tap
            # slab of the padded activation (no extra sampling work).
            acc = acc + jnp.dot(conv1_tap(1, 1), ws_ref[...],
                                preferred_element_type=f32)

        o_ref[...] = acc.reshape(B, Ho, Wo, Cout)

    return kernel


# ---------------------------------------------------------------------------
# Batch blocking: fill the MXU M dim and amortise per-grid-step overhead while
# staying inside a conservative VMEM budget (valid for v5e/v6e/v7x).
# ---------------------------------------------------------------------------
def _pick_batch_block(N, H, W, Cin, Cmid, Cout, Ho, Wo):
    VMEM_BUDGET = 20 * 1024 * 1024     # < vmem_limit_bytes below, with headroom
    ACC_BUDGET = 1536 * 1024           # bound f32 accumulator footprint (spills)

    def vmem_bytes(b):
        x_blk = b * H * W * Cin * 2                 # bf16 input block
        o_blk = b * Ho * Wo * Cout * 4              # f32 output block
        ap = b * (H + 2) * (W + 2) * Cin * 2        # padded relu(bn1(x)) scratch
        hp = b * (Ho + 2) * (Wo + 2) * Cmid * 2     # padded relu(bn2(.)) scratch
        acc = b * Ho * Wo * (Cmid + Cout) * 4       # live f32 accumulators
        return 2 * (x_blk + o_blk) + ap + hp + acc  # in/out are double-buffered

    desired = min(8, max(1, -(-512 // (Ho * Wo))))  # target M = B*Ho*Wo >= ~512
    best = 1
    for b in range(1, N + 1):
        if N % b:
            continue
        if b > desired:
            break
        if vmem_bytes(b) > VMEM_BUDGET:
            break
        if b * Ho * Wo * max(Cmid, Cout) * 4 > ACC_BUDGET:
            break
        best = b
    return best


# ---------------------------------------------------------------------------
# BasicBlock forward - NHWC native entry point (no layout transposes)
# ---------------------------------------------------------------------------
def basic_block_forward_nhwc(x, p, stride, equal_in_out):
    N, H, W, Cin = x.shape
    Cmid = p["w1"].shape[-1]
    Cout = p["w2"].shape[-1]

    if stride not in (1, 2):
        raise ValueError("only stride 1 or 2 supported")
    if equal_in_out and (stride != 1 or Cin != Cout):
        raise ValueError("identity shortcut requires stride == 1 and Cin == Cout "
                         "(matches the PyTorch module)")
    if stride == 2 and (H % 2 or W % 2):
        raise ValueError("stride-2 path requires even H, W")

    Ho = (H + stride - 1) // stride
    Wo = (W + stride - 1) // stride

    # Fold eval-mode BatchNorm into per-channel scale/shift (f32 VPU epilogue).
    s1 = (p["g1"] / jnp.sqrt(p["v1"] + EPS)).astype(jnp.float32)
    sh1 = (p["b1"] - p["m1"] * s1).astype(jnp.float32)
    s2 = (p["g2"] / jnp.sqrt(p["v2"] + EPS)).astype(jnp.float32)
    sh2 = (p["b2"] - p["m2"] * s2).astype(jnp.float32)

    # Tap-major weight layout (9, Ci, Co): each tap's weight load is aligned.
    w1 = p["w1"].reshape(9, Cin, Cmid).astype(jnp.bfloat16)
    w2 = p["w2"].reshape(9, Cmid, Cout).astype(jnp.bfloat16)

    # bf16 at the boundary (halves input HBM traffic); f32 math in-kernel.
    xb = x.astype(jnp.bfloat16)
    if stride == 1:
        x_in, Wx, Cx = xb, W, Cin
        s1v, sh1v = s1, sh1
    else:
        # Free width-space-to-depth view (pure reshape of row-major NHWC data):
        # channel blocks [0:Cin] = even columns, [Cin:2Cin] = odd columns.
        x_in, Wx, Cx = xb.reshape(N, H, W // 2, 2 * Cin), W // 2, 2 * Cin
        s1v, sh1v = jnp.tile(s1, 2), jnp.tile(sh1, 2)

    B = _pick_batch_block(N, H, W, Cin, Cmid, Cout, Ho, Wo)
    grid = (N // B,)

    args = [x_in, s1v[None, :], sh1v[None, :], w1, s2[None, :], sh2[None, :], w2]
    in_specs = [
        pl.BlockSpec((B, H, Wx, Cx), lambda n: (n, 0, 0, 0)),
        pl.BlockSpec((1, Cx), lambda n: (0, 0)),
        pl.BlockSpec((1, Cx), lambda n: (0, 0)),
        pl.BlockSpec((9, Cin, Cmid), lambda n: (0, 0, 0)),
        pl.BlockSpec((1, Cmid), lambda n: (0, 0)),
        pl.BlockSpec((1, Cmid), lambda n: (0, 0)),
        pl.BlockSpec((9, Cmid, Cout), lambda n: (0, 0, 0)),
    ]
    if not equal_in_out:
        ws = p["ws"].reshape(Cin, Cout).astype(jnp.bfloat16)
        args.append(ws)
        in_specs.append(pl.BlockSpec((Cin, Cout), lambda n: (0, 0)))

    if stride == 1:
        ap_shape = (B, H + 2, W + 2, Cin)
    else:
        ap_shape = (B, H + 2, W // 2 + 1, 2 * Cin)
    scratch_shapes = [
        pltpu.VMEM(ap_shape, jnp.bfloat16),                     # padded a
        pltpu.VMEM((B, Ho + 2, Wo + 2, Cmid), jnp.bfloat16),    # padded h
    ]

    kernel = _make_fused_kernel(stride, equal_in_out, B, H, W,
                                Cin, Cmid, Cout, Ho, Wo)
    y = pl.pallas_call(
        kernel,
        out_shape=jax.ShapeDtypeStruct((N, Ho, Wo, Cout), jnp.float32),
        grid=grid,
        in_specs=in_specs,
        out_specs=pl.BlockSpec((B, Ho, Wo, Cout), lambda n: (n, 0, 0, 0)),
        scratch_shapes=scratch_shapes,
        compiler_params=pltpu.CompilerParams(
            dimension_semantics=("parallel",),      # v7x: shard batch over 2 TCs
            vmem_limit_bytes=32 * 1024 * 1024),
    )(*args)
    return y


def basic_block_forward_nchw(x_nchw, p, stride, equal_in_out):
    """Drop-in NCHW adapter.  Prefer the NHWC entry point: each transpose here
    is a full extra HBM read+write of the activation."""
    x = jnp.transpose(x_nchw, (0, 2, 3, 1))
    y = basic_block_forward_nhwc(x, p, stride, equal_in_out)
    return jnp.transpose(y, (0, 3, 1, 2))


# ---------------------------------------------------------------------------
# Plain-JAX f32 reference (NHWC) for the correctness check
# ---------------------------------------------------------------------------
def reference_forward_nhwc(x, p, stride, equal_in_out):
    dn = ("NHWC", "HWIO", "NHWC")

    def bn(z, g, b, m, v):
        s = g / jnp.sqrt(v + EPS)
        return z * s + (b - m * s)

    a = jax.nn.relu(bn(x, p["g1"], p["b1"], p["m1"], p["v1"]))
    h = lax.conv_general_dilated(a, p["w1"], (stride, stride), ((1, 1), (1, 1)),
                                 dimension_numbers=dn)
    h = jax.nn.relu(bn(h, p["g2"], p["b2"], p["m2"], p["v2"]))
    out = lax.conv_general_dilated(h, p["w2"], (1, 1), ((1, 1), (1, 1)),
                                   dimension_numbers=dn)
    if equal_in_out:
        sc = x
    else:
        sc = lax.conv_general_dilated(a, p["ws"], (stride, stride),
                                      ((0, 0), (0, 0)), dimension_numbers=dn)
    return sc + out


# ---------------------------------------------------------------------------
# Deterministic parameter init (shapes per nn.Module __init__; HWIO weights)
# ---------------------------------------------------------------------------
def init_params(key, cin, cout):
    ks = jax.random.split(key, 11)
    f32 = jnp.float32
    return dict(
        g1=1.0 + 0.1 * jax.random.normal(ks[0], (cin,), f32),
        b1=0.1 * jax.random.normal(ks[1], (cin,), f32),
        m1=0.05 * jax.random.normal(ks[2], (cin,), f32),
        v1=1.0 + 0.1 * jax.random.uniform(ks[3], (cin,), f32),
        g2=1.0 + 0.1 * jax.random.normal(ks[4], (cout,), f32),
        b2=0.1 * jax.random.normal(ks[5], (cout,), f32),
        m2=0.05 * jax.random.normal(ks[6], (cout,), f32),
        v2=1.0 + 0.1 * jax.random.uniform(ks[7], (cout,), f32),
        w1=0.3 * jax.random.normal(ks[8], (3, 3, cin, cout), f32),   # HWIO
        w2=0.3 * jax.random.normal(ks[9], (3, 3, cout, cout), f32),  # HWIO
        ws=0.3 * jax.random.normal(ks[10], (1, 1, cin, cout), f32),  # HWIO 1x1
    )


if __name__ == "__main__":
    key = jax.random.PRNGKey(0)
    k_x1, k_p1, k_x2, k_p2 = jax.random.split(key, 4)

    # Tolerances sized for bf16 MXU operands (f32 accumulation) through two
    # stacked 3x3 convolutions, compared against a pure-f32 reference.
    RTOL, ATOL = 3e-2, 1.5e-1

    # Case 1: downsampling block (in != out planes, stride 2, convShortcut).
    N, H, W, Cin, Cout, stride = 2, 16, 16, 4, 8, 2
    x1 = jax.random.normal(k_x1, (N, H, W, Cin), jnp.float32)
    p1 = init_params(k_p1, Cin, Cout)
    y1 = basic_block_forward_nhwc(x1, p1, stride, equal_in_out=False)
    jax.block_until_ready(y1)
    r1 = reference_forward_nhwc(x1, p1, stride, equal_in_out=False)
    assert y1.shape == (N, H // stride, W // stride, Cout)
    np.testing.assert_allclose(np.asarray(y1), np.asarray(r1), rtol=RTOL, atol=ATOL)

    # Case 2: identity-shortcut block (in == out planes, stride 1).
    x2 = jax.random.normal(k_x2, (N, H // 2, W // 2, Cout), jnp.float32)
    p2 = init_params(k_p2, Cout, Cout)
    y2 = basic_block_forward_nhwc(x2, p2, 1, equal_in_out=True)
    jax.block_until_ready(y2)
    r2 = reference_forward_nhwc(x2, p2, 1, equal_in_out=True)
    assert y2.shape == x2.shape
    np.testing.assert_allclose(np.asarray(y2), np.asarray(r2), rtol=RTOL, atol=ATOL)

    print("KERNEL_OK")
</pallas_src>

<mosaic_0001>
module attributes {stable_mosaic.version = 11 : i64} {
  func.func @kernel(%arg0: i32, %arg1: memref<2x16x8x8xbf16, #tpu.memory_space<vmem>>, %arg2: memref<1x8xf32, #tpu.memory_space<vmem>>, %arg3: memref<1x8xf32, #tpu.memory_space<vmem>>, %arg4: memref<9x4x8xbf16, #tpu.memory_space<vmem>>, %arg5: memref<1x8xf32, #tpu.memory_space<vmem>>, %arg6: memref<1x8xf32, #tpu.memory_space<vmem>>, %arg7: memref<9x8x8xbf16, #tpu.memory_space<vmem>>, %arg8: memref<4x8xbf16, #tpu.memory_space<vmem>>, %arg9: memref<2x8x8x8xf32, #tpu.memory_space<vmem>>, %arg10: memref<2x18x9x8xbf16, #tpu.memory_space<vmem>>, %arg11: memref<2x10x10x8xbf16, #tpu.memory_space<vmem>>) attributes {dimension_semantics = [#tpu.dimension_semantics<parallel>], iteration_bounds = array<i64: 1>, scalar_prefetch = 0 : i64, scratch_operands = 2 : i64, tpu.core_type = #tpu.core_type<tc>, window_params = [{transform_indices = @transform_0, window_bounds = array<i64: 2, 16, 8, 8>}, {pipeline_mode = #tpu.pipeline_mode<synchronous>, transform_indices = @transform_1, window_bounds = array<i64: 1, 8>}, {pipeline_mode = #tpu.pipeline_mode<synchronous>, transform_indices = @transform_2, window_bounds = array<i64: 1, 8>}, {pipeline_mode = #tpu.pipeline_mode<synchronous>, transform_indices = @transform_3, window_bounds = array<i64: 9, 4, 8>}, {pipeline_mode = #tpu.pipeline_mode<synchronous>, transform_indices = @transform_4, window_bounds = array<i64: 1, 8>}, {pipeline_mode = #tpu.pipeline_mode<synchronous>, transform_indices = @transform_5, window_bounds = array<i64: 1, 8>}, {pipeline_mode = #tpu.pipeline_mode<synchronous>, transform_indices = @transform_6, window_bounds = array<i64: 9, 8, 8>}, {pipeline_mode = #tpu.pipeline_mode<synchronous>, transform_indices = @transform_7, window_bounds = array<i64: 4, 8>}, {transform_indices = @transform_8, window_bounds = array<i64: 2, 8, 8, 8>}]} {
    %cst = arith.constant 0.000000e+00 : bf16
    %0 = vector.broadcast %cst : bf16 to vector<2x1x9x8xbf16>
    %c0 = arith.constant 0 : index
    %c0_0 = arith.constant 0 : index
    %c0_1 = arith.constant 0 : index
    %c0_2 = arith.constant 0 : index
    %1 = vector.load %arg10[%c0, %c0_0, %c0_1, %c0_2] : memref<2x18x9x8xbf16, #tpu.memory_space<vmem>>, vector<2x1x9x8xbf16>
    tpu.vector_store %arg10[%c0, %c0_0, %c0_1, %c0_2], %0 {strides = array<i32>} : memref<2x18x9x8xbf16, #tpu.memory_space<vmem>>, vector<2x1x9x8xbf16>,
    %cst_3 = arith.constant 0.000000e+00 : bf16
    %2 = vector.broadcast %cst_3 : bf16 to vector<2x1x9x8xbf16>
    %c0_4 = arith.constant 0 : index
    %c17 = arith.constant 17 : index
    %c0_5 = arith.constant 0 : index
    %c0_6 = arith.constant 0 : index
    %3 = vector.load %arg10[%c0_4, %c17, %c0_5, %c0_6] : memref<2x18x9x8xbf16, #tpu.memory_space<vmem>>, vector<2x1x9x8xbf16>
    tpu.vector_store %arg10[%c0_4, %c17, %c0_5, %c0_6], %2 {strides = array<i32>} : memref<2x18x9x8xbf16, #tpu.memory_space<vmem>>, vector<2x1x9x8xbf16>,
    %cst_7 = arith.constant 0.000000e+00 : bf16
    %4 = vector.broadcast %cst_7 : bf16 to vector<2x18x1x8xbf16>
    %c0_8 = arith.constant 0 : index
    %c0_9 = arith.constant 0 : index
    %c0_10 = arith.constant 0 : index
    %c0_11 = arith.constant 0 : index
    %5 = vector.load %arg10[%c0_8, %c0_9, %c0_10, %c0_11] : memref<2x18x9x8xbf16, #tpu.memory_space<vmem>>, vector<2x18x1x8xbf16>
    tpu.vector_store %arg10[%c0_8, %c0_9, %c0_10, %c0_11], %4 {strides = array<i32>} : memref<2x18x9x8xbf16, #tpu.memory_space<vmem>>, vector<2x18x1x8xbf16>,
    %cst_12 = arith.constant 0.000000e+00 : bf16
    %6 = vector.broadcast %cst_12 : bf16 to vector<2x18x1x8xbf16>
    %c0_13 = arith.constant 0 : index
    %c0_14 = arith.constant 0 : index
    %c8 = arith.constant 8 : index
    %c0_15 = arith.constant 0 : index
    %7 = vector.load %arg10[%c0_13, %c0_14, %c8, %c0_15] : memref<2x18x9x8xbf16, #tpu.memory_space<vmem>>, vector<2x18x1x8xbf16>
    tpu.vector_store %arg10[%c0_13, %c0_14, %c8, %c0_15], %6 {strides = array<i32>} : memref<2x18x9x8xbf16, #tpu.memory_space<vmem>>, vector<2x18x1x8xbf16>,
    %c0_16 = arith.constant 0 : index
    %c0_17 = arith.constant 0 : index
    %c0_18 = arith.constant 0 : index
    %c0_19 = arith.constant 0 : index
    %8 = vector.load %arg1[%c0_16, %c0_17, %c0_18, %c0_19] : memref<2x16x8x8xbf16, #tpu.memory_space<vmem>>, vector<2x16x8x8xbf16>
    %9 = arith.extf %8 : vector<2x16x8x8xbf16> to vector<2x16x8x8xf32>
    %c0_20 = arith.constant 0 : index
    %c0_21 = arith.constant 0 : index
    %10 = vector.load %arg2[%c0_20, %c0_21] : memref<1x8xf32, #tpu.memory_space<vmem>>, vector<1x8xf32>
    %11 = vector.shape_cast %10 : vector<1x8xf32> to vector<1x1x1x8xf32>
    %12 = vector.broadcast %11 : vector<1x1x1x8xf32> to vector<2x16x8x8xf32>
    %13 = arith.mulf %9, %12 : vector<2x16x8x8xf32>
    %c0_22 = arith.constant 0 : index
    %c0_23 = arith.constant 0 : index
    %14 = vector.load %arg3[%c0_22, %c0_23] : memref<1x8xf32, #tpu.memory_space<vmem>>, vector<1x8xf32>
    %15 = vector.shape_cast %14 : vector<1x8xf32> to vector<1x1x1x8xf32>
    %16 = vector.broadcast %15 : vector<1x1x1x8xf32> to vector<2x16x8x8xf32>
    %17 = arith.addf %13, %16 : vector<2x16x8x8xf32>
    %cst_24 = arith.constant 0.000000e+00 : f32
    %18 = vector.broadcast %cst_24 : f32 to vector<2x16x8x8xf32>
    %19 = arith.maximumf %17, %18 : vector<2x16x8x8xf32>
    %20 = arith.truncf %19 : vector<2x16x8x8xf32> to vector<2x16x8x8xbf16>
    %21 = vector.extract_strided_slice %20 {offsets = [0, 0, 0, 0], sizes = [2, 16, 8, 4], strides = [1, 1, 1, 1]} : vector<2x16x8x8xbf16> to vector<2x16x8x4xbf16>
    %c0_25 = arith.constant 0 : index
    %c1 = arith.constant 1 : index
    %c0_26 = arith.constant 0 : index
    %c4 = arith.constant 4 : index
    %22 = vector.load %arg10[%c0_25, %c1, %c0_26, %c4] : memref<2x18x9x8xbf16, #tpu.memory_space<vmem>>, vector<2x16x8x4xbf16>
    tpu.vector_store %arg10[%c0_25, %c1, %c0_26, %c4], %21 {strides = array<i32>} : memref<2x18x9x8xbf16, #tpu.memory_space<vmem>>, vector<2x16x8x4xbf16>,
    %23 = vector.extract_strided_slice %20 {offsets = [0, 0, 0, 4], sizes = [2, 16, 8, 4], strides = [1, 1, 1, 1]} : vector<2x16x8x8xbf16> to vector<2x16x8x4xbf16>
    %c0_27 = arith.constant 0 : index
    %c1_28 = arith.constant 1 : index
    %c1_29 = arith.constant 1 : index
    %c0_30 = arith.constant 0 : index
    %24 = vector.load %arg10[%c0_27, %c1_28, %c1_29, %c0_30] : memref<2x18x9x8xbf16, #tpu.memory_space<vmem>>, vector<2x16x8x4xbf16>
    tpu.vector_store %arg10[%c0_27, %c1_28, %c1_29, %c0_30], %23 {strides = array<i32>} : memref<2x18x9x8xbf16, #tpu.memory_space<vmem>>, vector<2x16x8x4xbf16>,
    %c0_31 = arith.constant 0 : index
    %c0_32 = arith.constant 0 : index
    %c0_33 = arith.constant 0 : index
    %c0_34 = arith.constant 0 : index
    %25 = vector.load %arg10[%c0_31, %c0_32, %c0_33, %c0_34] : memref<2x18x9x8xbf16, #tpu.memory_space<vmem>>, vector<2x16x8x4xbf16>
    %26 = vector.shape_cast %25 : vector<2x16x8x4xbf16> to vector<2x8x2x8x4xbf16>
    %27 = vector.extract_strided_slice %26 {offsets = [0, 0, 0, 0, 0], sizes = [2, 8, 1, 8, 4], strides = [1, 1, 1, 1, 1]} : vector<2x8x2x8x4xbf16> to vector<2x8x1x8x4xbf16>
    %28 = vector.shape_cast %27 : vector<2x8x1x8x4xbf16> to vector<2x8x8x4xbf16>
    %29 = vector.shape_cast %28 : vector<2x8x8x4xbf16> to vector<128x4xbf16>
    %c0_35 = arith.constant 0 : index
    %c0_36 = arith.constant 0 : index
    %c0_37 = arith.constant 0 : index
    %30 = vector.load %arg4[%c0_35, %c0_36, %c0_37] : memref<9x4x8xbf16, #tpu.memory_space<vmem>>, vector<1x4x8xbf16>
    %31 = vector.shape_cast %30 : vector<1x4x8xbf16> to vector<4x8xbf16>
    %cst_38 = arith.constant dense<0.000000e+00> : vector<128x8xf32>
    %32 = tpu.matmul %29, %31, %cst_38 {dimension_numbers = #tpu.dot_dimension_numbers<[1], [0], [0], [1], [0, 0, 1, 1], [], []>} : vector<128x4xbf16>, vector<4x8xbf16>, vector<128x8xf32> -> vector<128x8xf32>
    %c0_39 = arith.constant 0 : index
    %c0_40 = arith.constant 0 : index
    %c0_41 = arith.constant 0 : index
    %c4_42 = arith.constant 4 : index
    %33 = vector.load %arg10[%c0_39, %c0_40, %c0_41, %c4_42] : memref<2x18x9x8xbf16, #tpu.memory_space<vmem>>, vector<2x16x8x4xbf16>
    %34 = vector.shape_cast %33 : vector<2x16x8x4xbf16> to vector<2x8x2x8x4xbf16>
    %35 = vector.extract_strided_slice %34 {offsets = [0, 0, 0, 0, 0], sizes = [2, 8, 1, 8, 4], strides = [1, 1, 1, 1, 1]} : vector<2x8x2x8x4xbf16> to vector<2x8x1x8x4xbf16>
    %36 = vector.shape_cast %35 : vector<2x8x1x8x4xbf16> to vector<2x8x8x4xbf16>
    %37 = vector.shape_cast %36 : vector<2x8x8x4xbf16> to vector<128x4xbf16>
    %c1_43 = arith.constant 1 : index
    %c0_44 = arith.constant 0 : index
    %c0_45 = arith.constant 0 : index
    %38 = vector.load %arg4[%c1_43, %c0_44, %c0_45] : memref<9x4x8xbf16, #tpu.memory_space<vmem>>, vector<1x4x8xbf16>
    %39 = vector.shape_cast %38 : vector<1x4x8xbf16> to vector<4x8xbf16>
    %cst_46 = arith.constant dense<0.000000e+00> : vector<128x8xf32>
    %40 = tpu.matmul %37, %39, %cst_46 {dimension_numbers = #tpu.dot_dimension_numbers<[1], [0], [0], [1], [0, 0, 1, 1], [], []>} : vector<128x4xbf16>, vector<4x8xbf16>, vector<128x8xf32> -> vector<128x8xf32>
    %41 = arith.addf %32, %40 : vector<128x8xf32>
    %c0_47 = arith.constant 0 : index
    %c0_48 = arith.constant 0 : index
    %c1_49 = arith.constant 1 : index
    %c0_50 = arith.constant 0 : index
    %42 = vector.load %arg10[%c0_47, %c0_48, %c1_49, %c0_50] : memref<2x18x9x8xbf16, #tpu.memory_space<vmem>>, vector<2x16x8x4xbf16>
    %43 = vector.shape_cast %42 : vector<2x16x8x4xbf16> to vector<2x8x2x8x4xbf16>
    %44 = vector.extract_strided_slice %43 {offsets = [0, 0, 0, 0, 0], sizes = [2, 8, 1, 8, 4], strides = [1, 1, 1, 1, 1]} : vector<2x8x2x8x4xbf16> to vector<2x8x1x8x4xbf16>
    %45 = vector.shape_cast %44 : vector<2x8x1x8x4xbf16> to vector<2x8x8x4xbf16>
    %46 = vector.shape_cast %45 : vector<2x8x8x4xbf16> to vector<128x4xbf16>
    %c2 = arith.constant 2 : index
    %c0_51 = arith.constant 0 : index
    %c0_52 = arith.constant 0 : index
    %47 = vector.load %arg4[%c2, %c0_51, %c0_52] : memref<9x4x8xbf16, #tpu.memory_space<vmem>>, vector<1x4x8xbf16>
    %48 = vector.shape_cast %47 : vector<1x4x8xbf16> to vector<4x8xbf16>
    %cst_53 = arith.constant dense<0.000000e+00> : vector<128x8xf32>
    %49 = tpu.matmul %46, %48, %cst_53 {dimension_numbers = #tpu.dot_dimension_numbers<[1], [0], [0], [1], [0, 0, 1, 1], [], []>} : vector<128x4xbf16>, vector<4x8xbf16>, vector<128x8xf32> -> vector<128x8xf32>
    %50 = arith.addf %41, %49 : vector<128x8xf32>
    %c0_54 = arith.constant 0 : index
    %c1_55 = arith.constant 1 : index
    %c0_56 = arith.constant 0 : index
    %c0_57 = arith.constant 0 : index
    %51 = vector.load %arg10[%c0_54, %c1_55, %c0_56, %c0_57] : memref<2x18x9x8xbf16, #tpu.memory_space<vmem>>, vector<2x16x8x4xbf16>
    %52 = vector.shape_cast %51 : vector<2x16x8x4xbf16> to vector<2x8x2x8x4xbf16>
    %53 = vector.extract_strided_slice %52 {offsets = [0, 0, 0, 0, 0], sizes = [2, 8, 1, 8, 4], strides = [1, 1, 1, 1, 1]} : vector<2x8x2x8x4xbf16> to vector<2x8x1x8x4xbf16>
    %54 = vector.shape_cast %53 : vector<2x8x1x8x4xbf16> to vector<2x8x8x4xbf16>
    %55 = vector.shape_cast %54 : vector<2x8x8x4xbf16> to vector<128x4xbf16>
    %c3 = arith.constant 3 : index
    %c0_58 = arith.constant 0 : index
    %c0_59 = arith.constant 0 : index
    %56 = vector.load %arg4[%c3, %c0_58, %c0_59] : memref<9x4x8xbf16, #tpu.memory_space<vmem>>, vector<1x4x8xbf16>
    %57 = vector.shape_cast %56 : vector<1x4x8xbf16> to vector<4x8xbf16>
    %cst_60 = arith.constant dense<0.000000e+00> : vector<128x8xf32>
    %58 = tpu.matmul %55, %57, %cst_60 {dimension_numbers = #tpu.dot_dimension_numbers<[1], [0], [0], [1], [0, 0, 1, 1], [], []>} : vector<128x4xbf16>, vector<4x8xbf16>, vector<128x8xf32> -> vector<128x8xf32>
    %59 = arith.addf %50, %58 : vector<128x8xf32>
    %c0_61 = arith.constant 0 : index
    %c1_62 = arith.constant 1 : index
    %c0_63 = arith.constant 0 : index
    %c4_64 = arith.constant 4 : index
    %60 = vector.load %arg10[%c0_61, %c1_62, %c0_63, %c4_64] : memref<2x18x9x8xbf16, #tpu.memory_space<vmem>>, vector<2x16x8x4xbf16>
    %61 = vector.shape_cast %60 : vector<2x16x8x4xbf16> to vector<2x8x2x8x4xbf16>
    %62 = vector.extract_strided_slice %61 {offsets = [0, 0, 0, 0, 0], sizes = [2, 8, 1, 8, 4], strides = [1, 1, 1, 1, 1]} : vector<2x8x2x8x4xbf16> to vector<2x8x1x8x4xbf16>
    %63 = vector.shape_cast %62 : vector<2x8x1x8x4xbf16> to vector<2x8x8x4xbf16>
    %64 = vector.shape_cast %63 : vector<2x8x8x4xbf16> to vector<128x4xbf16>
    %c4_65 = arith.constant 4 : index
    %c0_66 = arith.constant 0 : index
    %c0_67 = arith.constant 0 : index
    %65 = vector.load %arg4[%c4_65, %c0_66, %c0_67] : memref<9x4x8xbf16, #tpu.memory_space<vmem>>, vector<1x4x8xbf16>
    %66 = vector.shape_cast %65 : vector<1x4x8xbf16> to vector<4x8xbf16>
    %cst_68 = arith.constant dense<0.000000e+00> : vector<128x8xf32>
    %67 = tpu.matmul %64, %66, %cst_68 {dimension_numbers = #tpu.dot_dimension_numbers<[1], [0], [0], [1], [0, 0, 1, 1], [], []>} : vector<128x4xbf16>, vector<4x8xbf16>, vector<128x8xf32> -> vector<128x8xf32>
    %68 = arith.addf %59, %67 : vector<128x8xf32>
    %c0_69 = arith.constant 0 : index
    %c1_70 = arith.constant 1 : index
    %c1_71 = arith.constant 1 : index
    %c0_72 = arith.constant 0 : index
    %69 = vector.load %arg10[%c0_69, %c1_70, %c1_71, %c0_72] : memref<2x18x9x8xbf16, #tpu.memory_space<vmem>>, vector<2x16x8x4xbf16>
    %70 = vector.shape_cast %69 : vector<2x16x8x4xbf16> to vector<2x8x2x8x4xbf16>
    %71 = vector.extract_strided_slice %70 {offsets = [0, 0, 0, 0, 0], sizes = [2, 8, 1, 8, 4], strides = [1, 1, 1, 1, 1]} : vector<2x8x2x8x4xbf16> to vector<2x8x1x8x4xbf16>
    %72 = vector.shape_cast %71 : vector<2x8x1x8x4xbf16> to vector<2x8x8x4xbf16>
    %73 = vector.shape_cast %72 : vector<2x8x8x4xbf16> to vector<128x4xbf16>
    %c5 = arith.constant 5 : index
    %c0_73 = arith.constant 0 : index
    %c0_74 = arith.constant 0 : index
    %74 = vector.load %arg4[%c5, %c0_73, %c0_74] : memref<9x4x8xbf16, #tpu.memory_space<vmem>>, vector<1x4x8xbf16>
    %75 = vector.shape_cast %74 : vector<1x4x8xbf16> to vector<4x8xbf16>
    %cst_75 = arith.constant dense<0.000000e+00> : vector<128x8xf32>
    %76 = tpu.matmul %73, %75, %cst_75 {dimension_numbers = #tpu.dot_dimension_numbers<[1], [0], [0], [1], [0, 0, 1, 1], [], []>} : vector<128x4xbf16>, vector<4x8xbf16>, vector<128x8xf32> -> vector<128x8xf32>
    %77 = arith.addf %68, %76 : vector<128x8xf32>
    %c0_76 = arith.constant 0 : index
    %c2_77 = arith.constant 2 : index
    %c0_78 = arith.constant 0 : index
    %c0_79 = arith.constant 0 : index
    %78 = vector.load %arg10[%c0_76, %c2_77, %c0_78, %c0_79] : memref<2x18x9x8xbf16, #tpu.memory_space<vmem>>, vector<2x16x8x4xbf16>
    %79 = vector.shape_cast %78 : vector<2x16x8x4xbf16> to vector<2x8x2x8x4xbf16>
    %80 = vector.extract_strided_slice %79 {offsets = [0, 0, 0, 0, 0], sizes = [2, 8, 1, 8, 4], strides = [1, 1, 1, 1, 1]} : vector<2x8x2x8x4xbf16> to vector<2x8x1x8x4xbf16>
    %81 = vector.shape_cast %80 : vector<2x8x1x8x4xbf16> to vector<2x8x8x4xbf16>
    %82 = vector.shape_cast %81 : vector<2x8x8x4xbf16> to vector<128x4xbf16>
    %c6 = arith.constant 6 : index
    %c0_80 = arith.constant 0 : index
    %c0_81 = arith.constant 0 : index
    %83 = vector.load %arg4[%c6, %c0_80, %c0_81] : memref<9x4x8xbf16, #tpu.memory_space<vmem>>, vector<1x4x8xbf16>
    %84 = vector.shape_cast %83 : vector<1x4x8xbf16> to vector<4x8xbf16>
    %cst_82 = arith.constant dense<0.000000e+00> : vector<128x8xf32>
    %85 = tpu.matmul %82, %84, %cst_82 {dimension_numbers = #tpu.dot_dimension_numbers<[1], [0], [0], [1], [0, 0, 1, 1], [], []>} : vector<128x4xbf16>, vector<4x8xbf16>, vector<128x8xf32> -> vector<128x8xf32>
    %86 = arith.addf %77, %85 : vector<128x8xf32>
    %c0_83 = arith.constant 0 : index
    %c2_84 = arith.constant 2 : index
    %c0_85 = arith.constant 0 : index
    %c4_86 = arith.constant 4 : index
    %87 = vector.load %arg10[%c0_83, %c2_84, %c0_85, %c4_86] : memref<2x18x9x8xbf16, #tpu.memory_space<vmem>>, vector<2x16x8x4xbf16>
    %88 = vector.shape_cast %87 : vector<2x16x8x4xbf16> to vector<2x8x2x8x4xbf16>
    %89 = vector.extract_strided_slice %88 {offsets = [0, 0, 0, 0, 0], sizes = [2, 8, 1, 8, 4], strides = [1, 1, 1, 1, 1]} : vector<2x8x2x8x4xbf16> to vector<2x8x1x8x4xbf16>
    %90 = vector.shape_cast %89 : vector<2x8x1x8x4xbf16> to vector<2x8x8x4xbf16>
    %91 = vector.shape_cast %90 : vector<2x8x8x4xbf16> to vector<128x4xbf16>
    %c7 = arith.constant 7 : index
    %c0_87 = arith.constant 0 : index
    %c0_88 = arith.constant 0 : index
    %92 = vector.load %arg4[%c7, %c0_87, %c0_88] : memref<9x4x8xbf16, #tpu.memory_space<vmem>>, vector<1x4x8xbf16>
    %93 = vector.shape_cast %92 : vector<1x4x8xbf16> to vector<4x8xbf16>
    %cst_89 = arith.constant dense<0.000000e+00> : vector<128x8xf32>
    %94 = tpu.matmul %91, %93, %cst_89 {dimension_numbers = #tpu.dot_dimension_numbers<[1], [0], [0], [1], [0, 0, 1, 1], [], []>} : vector<128x4xbf16>, vector<4x8xbf16>, vector<128x8xf32> -> vector<128x8xf32>
    %95 = arith.addf %86, %94 : vector<128x8xf32>
    %c0_90 = arith.constant 0 : index
    %c2_91 = arith.constant 2 : index
    %c1_92 = arith.constant 1 : index
    %c0_93 = arith.constant 0 : index
    %96 = vector.load %arg10[%c0_90, %c2_91, %c1_92, %c0_93] : memref<2x18x9x8xbf16, #tpu.memory_space<vmem>>, vector<2x16x8x4xbf16>
    %97 = vector.shape_cast %96 : vector<2x16x8x4xbf16> to vector<2x8x2x8x4xbf16>
    %98 = vector.extract_strided_slice %97 {offsets = [0, 0, 0, 0, 0], sizes = [2, 8, 1, 8, 4], strides = [1, 1, 1, 1, 1]} : vector<2x8x2x8x4xbf16> to vector<2x8x1x8x4xbf16>
    %99 = vector.shape_cast %98 : vector<2x8x1x8x4xbf16> to vector<2x8x8x4xbf16>
    %100 = vector.shape_cast %99 : vector<2x8x8x4xbf16> to vector<128x4xbf16>
    %c8_94 = arith.constant 8 : index
    %c0_95 = arith.constant 0 : index
    %c0_96 = arith.constant 0 : index
    %101 = vector.load %arg4[%c8_94, %c0_95, %c0_96] : memref<9x4x8xbf16, #tpu.memory_space<vmem>>, vector<1x4x8xbf16>
    %102 = vector.shape_cast %101 : vector<1x4x8xbf16> to vector<4x8xbf16>
    %cst_97 = arith.constant dense<0.000000e+00> : vector<128x8xf32>
    %103 = tpu.matmul %100, %102, %cst_97 {dimension_numbers = #tpu.dot_dimension_numbers<[1], [0], [0], [1], [0, 0, 1, 1], [], []>} : vector<128x4xbf16>, vector<4x8xbf16>, vector<128x8xf32> -> vector<128x8xf32>
    %104 = arith.addf %95, %103 : vector<128x8xf32>
    %c0_98 = arith.constant 0 : index
    %c0_99 = arith.constant 0 : index
    %105 = vector.load %arg5[%c0_98, %c0_99] : memref<1x8xf32, #tpu.memory_space<vmem>>, vector<1x8xf32>
    %106 = vector.broadcast %105 : vector<1x8xf32> to vector<128x8xf32>
    %107 = arith.mulf %104, %106 : vector<128x8xf32>
    %c0_100 = arith.constant 0 : index
    %c0_101 = arith.constant 0 : index
    %108 = vector.load %arg6[%c0_100, %c0_101] : memref<1x8xf32, #tpu.memory_space<vmem>>, vector<1x8xf32>
    %109 = vector.broadcast %108 : vector<1x8xf32> to vector<128x8xf32>
    %110 = arith.addf %107, %109 : vector<128x8xf32>
    %cst_102 = arith.constant 0.000000e+00 : f32
    %111 = vector.broadcast %cst_102 : f32 to vector<128x8xf32>
    %112 = arith.maximumf %110, %111 : vector<128x8xf32>
    %cst_103 = arith.constant 0.000000e+00 : bf16
    %113 = vector.broadcast %cst_103 : bf16 to vector<2x1x10x8xbf16>
    %c0_104 = arith.constant 0 : index
    %c0_105 = arith.constant 0 : index
    %c0_106 = arith.constant 0 : index
    %c0_107 = arith.constant 0 : index
    %114 = vector.load %arg11[%c0_104, %c0_105, %c0_106, %c0_107] : memref<2x10x10x8xbf16, #tpu.memory_space<vmem>>, vector<2x1x10x8xbf16>
    tpu.vector_store %arg11[%c0_104, %c0_105, %c0_106, %c0_107], %113 {strides = array<i32>} : memref<2x10x10x8xbf16, #tpu.memory_space<vmem>>, vector<2x1x10x8xbf16>,
    %cst_108 = arith.constant 0.000000e+00 : bf16
    %115 = vector.broadcast %cst_108 : bf16 to vector<2x1x10x8xbf16>
    %c0_109 = arith.constant 0 : index
    %c9 = arith.constant 9 : index
    %c0_110 = arith.constant 0 : index
    %c0_111 = arith.constant 0 : index
    %116 = vector.load %arg11[%c0_109, %c9, %c0_110, %c0_111] : memref<2x10x10x8xbf16, #tpu.memory_space<vmem>>, vector<2x1x10x8xbf16>
    tpu.vector_store %arg11[%c0_109, %c9, %c0_110, %c0_111], %115 {strides = array<i32>} : memref<2x10x10x8xbf16, #tpu.memory_space<vmem>>, vector<2x1x10x8xbf16>,
    %cst_112 = arith.constant 0.000000e+00 : bf16
    %117 = vector.broadcast %cst_112 : bf16 to vector<2x10x1x8xbf16>
    %c0_113 = arith.constant 0 : index
    %c0_114 = arith.constant 0 : index
    %c0_115 = arith.constant 0 : index
    %c0_116 = arith.constant 0 : index
    %118 = vector.load %arg11[%c0_113, %c0_114, %c0_115, %c0_116] : memref<2x10x10x8xbf16, #tpu.memory_space<vmem>>, vector<2x10x1x8xbf16>
    tpu.vector_store %arg11[%c0_113, %c0_114, %c0_115, %c0_116], %117 {strides = array<i32>} : memref<2x10x10x8xbf16, #tpu.memory_space<vmem>>, vector<2x10x1x8xbf16>,
    %cst_117 = arith.constant 0.000000e+00 : bf16
    %119 = vector.broadcast %cst_117 : bf16 to vector<2x10x1x8xbf16>
    %c0_118 = arith.constant 0 : index
    %c0_119 = arith.constant 0 : index
    %c9_120 = arith.constant 9 : index
    %c0_121 = arith.constant 0 : index
    %120 = vector.load %arg11[%c0_118, %c0_119, %c9_120, %c0_121] : memref<2x10x10x8xbf16, #tpu.memory_space<vmem>>, vector<2x10x1x8xbf16>
    tpu.vector_store %arg11[%c0_118, %c0_119, %c9_120, %c0_121], %119 {strides = array<i32>} : memref<2x10x10x8xbf16, #tpu.memory_space<vmem>>, vector<2x10x1x8xbf16>,
    %121 = vector.shape_cast %112 : vector<128x8xf32> to vector<2x8x8x8xf32>
    %122 = arith.truncf %121 : vector<2x8x8x8xf32> to vector<2x8x8x8xbf16>
    %c0_122 = arith.constant 0 : index
    %c1_123 = arith.constant 1 : index
    %c1_124 = arith.constant 1 : index
    %c0_125 = arith.constant 0 : index
    %123 = vector.load %arg11[%c0_122, %c1_123, %c1_124, %c0_125] : memref<2x10x10x8xbf16, #tpu.memory_space<vmem>>, vector<2x8x8x8xbf16>
    tpu.vector_store %arg11[%c0_122, %c1_123, %c1_124, %c0_125], %122 {strides = array<i32>} : memref<2x10x10x8xbf16, #tpu.memory_space<vmem>>, vector<2x8x8x8xbf16>,
    %c0_126 = arith.constant 0 : index
    %c0_127 = arith.constant 0 : index
    %c0_128 = arith.constant 0 : index
    %c0_129 = arith.constant 0 : index
    %124 = vector.load %arg11[%c0_126, %c0_127, %c0_128, %c0_129] : memref<2x10x10x8xbf16, #tpu.memory_space<vmem>>, vector<2x8x8x8xbf16>
    %125 = vector.shape_cast %124 : vector<2x8x8x8xbf16> to vector<128x8xbf16>
    %c0_130 = arith.constant 0 : index
    %c0_131 = arith.constant 0 : index
    %c0_132 = arith.constant 0 : index
    %126 = vector.load %arg7[%c0_130, %c0_131, %c0_132] : memref<9x8x8xbf16, #tpu.memory_space<vmem>>, vector<1x8x8xbf16>
    %127 = vector.shape_cast %126 : vector<1x8x8xbf16> to vector<8x8xbf16>
    %cst_133 = arith.constant dense<0.000000e+00> : vector<128x8xf32>
    %128 = tpu.matmul %125, %127, %cst_133 {dimension_numbers = #tpu.dot_dimension_numbers<[1], [0], [0], [1], [0, 0, 1, 1], [], []>} : vector<128x8xbf16>, vector<8x8xbf16>, vector<128x8xf32> -> vector<128x8xf32>
    %c0_134 = arith.constant 0 : index
    %c0_135 = arith.constant 0 : index
    %c1_136 = arith.constant 1 : index
    %c0_137 = arith.constant 0 : index
    %129 = vector.load %arg11[%c0_134, %c0_135, %c1_136, %c0_137] : memref<2x10x10x8xbf16, #tpu.memory_space<vmem>>, vector<2x8x8x8xbf16>
    %130 = vector.shape_cast %129 : vector<2x8x8x8xbf16> to vector<128x8xbf16>
    %c1_138 = arith.constant 1 : index
    %c0_139 = arith.constant 0 : index
    %c0_140 = arith.constant 0 : index
    %131 = vector.load %arg7[%c1_138, %c0_139, %c0_140] : memref<9x8x8xbf16, #tpu.memory_space<vmem>>, vector<1x8x8xbf16>
    %132 = vector.shape_cast %131 : vector<1x8x8xbf16> to vector<8x8xbf16>
    %cst_141 = arith.constant dense<0.000000e+00> : vector<128x8xf32>
    %133 = tpu.matmul %130, %132, %cst_141 {dimension_numbers = #tpu.dot_dimension_numbers<[1], [0], [0], [1], [0, 0, 1, 1], [], []>} : vector<128x8xbf16>, vector<8x8xbf16>, vector<128x8xf32> -> vector<128x8xf32>
    %134 = arith.addf %128, %133 : vector<128x8xf32>
    %c0_142 = arith.constant 0 : index
    %c0_143 = arith.constant 0 : index
    %c2_144 = arith.constant 2 : index
    %c0_145 = arith.constant 0 : index
    %135 = vector.load %arg11[%c0_142, %c0_143, %c2_144, %c0_145] : memref<2x10x10x8xbf16, #tpu.memory_space<vmem>>, vector<2x8x8x8xbf16>
    %136 = vector.shape_cast %135 : vector<2x8x8x8xbf16> to vector<128x8xbf16>
    %c2_146 = arith.constant 2 : index
    %c0_147 = arith.constant 0 : index
    %c0_148 = arith.constant 0 : index
    %137 = vector.load %arg7[%c2_146, %c0_147, %c0_148] : memref<9x8x8xbf16, #tpu.memory_space<vmem>>, vector<1x8x8xbf16>
    %138 = vector.shape_cast %137 : vector<1x8x8xbf16> to vector<8x8xbf16>
    %cst_149 = arith.constant dense<0.000000e+00> : vector<128x8xf32>
    %139 = tpu.matmul %136, %138, %cst_149 {dimension_numbers = #tpu.dot_dimension_numbers<[1], [0], [0], [1], [0, 0, 1, 1], [], []>} : vector<128x8xbf16>, vector<8x8xbf16>, vector<128x8xf32> -> vector<128x8xf32>
    %140 = arith.addf %134, %139 : vector<128x8xf32>
    %c0_150 = arith.constant 0 : index
    %c1_151 = arith.constant 1 : index
    %c0_152 = arith.constant 0 : index
    %c0_153 = arith.constant 0 : index
    %141 = vector.load %arg11[%c0_150, %c1_151, %c0_152, %c0_153] : memref<2x10x10x8xbf16, #tpu.memory_space<vmem>>, vector<2x8x8x8xbf16>
    %142 = vector.shape_cast %141 : vector<2x8x8x8xbf16> to vector<128x8xbf16>
    %c3_154 = arith.constant 3 : index
    %c0_155 = arith.constant 0 : index
    %c0_156 = arith.constant 0 : index
    %143 = vector.load %arg7[%c3_154, %c0_155, %c0_156] : memref<9x8x8xbf16, #tpu.memory_space<vmem>>, vector<1x8x8xbf16>
    %144 = vector.shape_cast %143 : vector<1x8x8xbf16> to vector<8x8xbf16>
    %cst_157 = arith.constant dense<0.000000e+00> : vector<128x8xf32>
    %145 = tpu.matmul %142, %144, %cst_157 {dimension_numbers = #tpu.dot_dimension_numbers<[1], [0], [0], [1], [0, 0, 1, 1], [], []>} : vector<128x8xbf16>, vector<8x8xbf16>, vector<128x8xf32> -> vector<128x8xf32>
    %146 = arith.addf %140, %145 : vector<128x8xf32>
    %c0_158 = arith.constant 0 : index
    %c1_159 = arith.constant 1 : index
    %c1_160 = arith.constant 1 : index
    %c0_161 = arith.constant 0 : index
    %147 = vector.load %arg11[%c0_158, %c1_159, %c1_160, %c0_161] : memref<2x10x10x8xbf16, #tpu.memory_space<vmem>>, vector<2x8x8x8xbf16>
    %148 = vector.shape_cast %147 : vector<2x8x8x8xbf16> to vector<128x8xbf16>
    %c4_162 = arith.constant 4 : index
    %c0_163 = arith.constant 0 : index
    %c0_164 = arith.constant 0 : index
    %149 = vector.load %arg7[%c4_162, %c0_163, %c0_164] : memref<9x8x8xbf16, #tpu.memory_space<vmem>>, vector<1x8x8xbf16>
    %150 = vector.shape_cast %149 : vector<1x8x8xbf16> to vector<8x8xbf16>
    %cst_165 = arith.constant dense<0.000000e+00> : vector<128x8xf32>
    %151 = tpu.matmul %148, %150, %cst_165 {dimension_numbers = #tpu.dot_dimension_numbers<[1], [0], [0], [1], [0, 0, 1, 1], [], []>} : vector<128x8xbf16>, vector<8x8xbf16>, vector<128x8xf32> -> vector<128x8xf32>
    %152 = arith.addf %146, %151 : vector<128x8xf32>
    %c0_166 = arith.constant 0 : index
    %c1_167 = arith.constant 1 : index
    %c2_168 = arith.constant 2 : index
    %c0_169 = arith.constant 0 : index
    %153 = vector.load %arg11[%c0_166, %c1_167, %c2_168, %c0_169] : memref<2x10x10x8xbf16, #tpu.memory_space<vmem>>, vector<2x8x8x8xbf16>
    %154 = vector.shape_cast %153 : vector<2x8x8x8xbf16> to vector<128x8xbf16>
    %c5_170 = arith.constant 5 : index
    %c0_171 = arith.constant 0 : index
    %c0_172 = arith.constant 0 : index
    %155 = vector.load %arg7[%c5_170, %c0_171, %c0_172] : memref<9x8x8xbf16, #tpu.memory_space<vmem>>, vector<1x8x8xbf16>
    %156 = vector.shape_cast %155 : vector<1x8x8xbf16> to vector<8x8xbf16>
    %cst_173 = arith.constant dense<0.000000e+00> : vector<128x8xf32>
    %157 = tpu.matmul %154, %156, %cst_173 {dimension_numbers = #tpu.dot_dimension_numbers<[1], [0], [0], [1], [0, 0, 1, 1], [], []>} : vector<128x8xbf16>, vector<8x8xbf16>, vector<128x8xf32> -> vector<128x8xf32>
    %158 = arith.addf %152, %157 : vector<128x8xf32>
    %c0_174 = arith.constant 0 : index
    %c2_175 = arith.constant 2 : index
    %c0_176 = arith.constant 0 : index
    %c0_177 = arith.constant 0 : index
    %159 = vector.load %arg11[%c0_174, %c2_175, %c0_176, %c0_177] : memref<2x10x10x8xbf16, #tpu.memory_space<vmem>>, vector<2x8x8x8xbf16>
    %160 = vector.shape_cast %159 : vector<2x8x8x8xbf16> to vector<128x8xbf16>
    %c6_178 = arith.constant 6 : index
    %c0_179 = arith.constant 0 : index
    %c0_180 = arith.constant 0 : index
    %161 = vector.load %arg7[%c6_178, %c0_179, %c0_180] : memref<9x8x8xbf16, #tpu.memory_space<vmem>>, vector<1x8x8xbf16>
    %162 = vector.shape_cast %161 : vector<1x8x8xbf16> to vector<8x8xbf16>
    %cst_181 = arith.constant dense<0.000000e+00> : vector<128x8xf32>
    %163 = tpu.matmul %160, %162, %cst_181 {dimension_numbers = #tpu.dot_dimension_numbers<[1], [0], [0], [1], [0, 0, 1, 1], [], []>} : vector<128x8xbf16>, vector<8x8xbf16>, vector<128x8xf32> -> vector<128x8xf32>
    %164 = arith.addf %158, %163 : vector<128x8xf32>
    %c0_182 = arith.constant 0 : index
    %c2_183 = arith.constant 2 : index
    %c1_184 = arith.constant 1 : index
    %c0_185 = arith.constant 0 : index
    %165 = vector.load %arg11[%c0_182, %c2_183, %c1_184, %c0_185] : memref<2x10x10x8xbf16, #tpu.memory_space<vmem>>, vector<2x8x8x8xbf16>
    %166 = vector.shape_cast %165 : vector<2x8x8x8xbf16> to vector<128x8xbf16>
    %c7_186 = arith.constant 7 : index
    %c0_187 = arith.constant 0 : index
    %c0_188 = arith.constant 0 : index
    %167 = vector.load %arg7[%c7_186, %c0_187, %c0_188] : memref<9x8x8xbf16, #tpu.memory_space<vmem>>, vector<1x8x8xbf16>
    %168 = vector.shape_cast %167 : vector<1x8x8xbf16> to vector<8x8xbf16>
    %cst_189 = arith.constant dense<0.000000e+00> : vector<128x8xf32>
    %169 = tpu.matmul %166, %168, %cst_189 {dimension_numbers = #tpu.dot_dimension_numbers<[1], [0], [0], [1], [0, 0, 1, 1], [], []>} : vector<128x8xbf16>, vector<8x8xbf16>, vector<128x8xf32> -> vector<128x8xf32>
    %170 = arith.addf %164, %169 : vector<128x8xf32>
    %c0_190 = arith.constant 0 : index
    %c2_191 = arith.constant 2 : index
    %c2_192 = arith.constant 2 : index
    %c0_193 = arith.constant 0 : index
    %171 = vector.load %arg11[%c0_190, %c2_191, %c2_192, %c0_193] : memref<2x10x10x8xbf16, #tpu.memory_space<vmem>>, vector<2x8x8x8xbf16>
    %172 = vector.shape_cast %171 : vector<2x8x8x8xbf16> to vector<128x8xbf16>
    %c8_194 = arith.constant 8 : index
    %c0_195 = arith.constant 0 : index
    %c0_196 = arith.constant 0 : index
    %173 = vector.load %arg7[%c8_194, %c0_195, %c0_196] : memref<9x8x8xbf16, #tpu.memory_space<vmem>>, vector<1x8x8xbf16>
    %174 = vector.shape_cast %173 : vector<1x8x8xbf16> to vector<8x8xbf16>
    %cst_197 = arith.constant dense<0.000000e+00> : vector<128x8xf32>
    %175 = tpu.matmul %172, %174, %cst_197 {dimension_numbers = #tpu.dot_dimension_numbers<[1], [0], [0], [1], [0, 0, 1, 1], [], []>} : vector<128x8xbf16>, vector<8x8xbf16>, vector<128x8xf32> -> vector<128x8xf32>
    %176 = arith.addf %170, %175 : vector<128x8xf32>
    %c0_198 = arith.constant 0 : index
    %c1_199 = arith.constant 1 : index
    %c0_200 = arith.constant 0 : index
    %c4_201 = arith.constant 4 : index
    %177 = vector.load %arg10[%c0_198, %c1_199, %c0_200, %c4_201] : memref<2x18x9x8xbf16, #tpu.memory_space<vmem>>, vector<2x16x8x4xbf16>
    %178 = vector.shape_cast %177 : vector<2x16x8x4xbf16> to vector<2x8x2x8x4xbf16>
    %179 = vector.extract_strided_slice %178 {offsets = [0, 0, 0, 0, 0], sizes = [2, 8, 1, 8, 4], strides = [1, 1, 1, 1, 1]} : vector<2x8x2x8x4xbf16> to vector<2x8x1x8x4xbf16>
    %180 = vector.shape_cast %179 : vector<2x8x1x8x4xbf16> to vector<2x8x8x4xbf16>
    %181 = vector.shape_cast %180 : vector<2x8x8x4xbf16> to vector<128x4xbf16>
    %c0_202 = arith.constant 0 : index
    %c0_203 = arith.constant 0 : index
    %182 = vector.load %arg8[%c0_202, %c0_203] : memref<4x8xbf16, #tpu.memory_space<vmem>>, vector<4x8xbf16>
    %cst_204 = arith.constant dense<0.000000e+00> : vector<128x8xf32>
    %183 = tpu.matmul %181, %182, %cst_204 {dimension_numbers = #tpu.dot_dimension_numbers<[1], [0], [0], [1], [0, 0, 1, 1], [], []>} : vector<128x4xbf16>, vector<4x8xbf16>, vector<128x8xf32> -> vector<128x8xf32>
    %184 = arith.addf %176, %183 : vector<128x8xf32>
    %185 = vector.shape_cast %184 : vector<128x8xf32> to vector<2x8x8x8xf32>
    %c0_205 = arith.constant 0 : index
    %c0_206 = arith.constant 0 : index
    %c0_207 = arith.constant 0 : index
    %c0_208 = arith.constant 0 : index
    %186 = vector.load %arg9[%c0_205, %c0_206, %c0_207, %c0_208] : memref<2x8x8x8xf32, #tpu.memory_space<vmem>>, vector<2x8x8x8xf32>
    tpu.vector_store %arg9[%c0_205, %c0_206, %c0_207, %c0_208], %185 {strides = array<i32>} : memref<2x8x8x8xf32, #tpu.memory_space<vmem>>, vector<2x8x8x8xf32>,
    return
  }
  func.func @transform_0(%arg0: i32) -> (i32, i32, i32, i32) {
    %c0_i32 = arith.constant 0 : i32
    %c0_i32_0 = arith.constant 0 : i32
    %c0_i32_1 = arith.constant 0 : i32
    %c0_i32_2 = arith.constant 0 : i32
    return %arg0, %c0_i32, %c0_i32_0, %c0_i32_1 : i32, i32, i32, i32
  }
  func.func @transform_1(%arg0: i32) -> (i32, i32) {
    %c0_i32 = arith.constant 0 : i32
    %c0_i32_0 = arith.constant 0 : i32
    %c0_i32_1 = arith.constant 0 : i32
    return %c0_i32, %c0_i32_0 : i32, i32
  }
  func.func @transform_2(%arg0: i32) -> (i32, i32) {
    %c0_i32 = arith.constant 0 : i32
    %c0_i32_0 = arith.constant 0 : i32
    %c0_i32_1 = arith.constant 0 : i32
    return %c0_i32, %c0_i32_0 : i32, i32
  }
  func.func @transform_3(%arg0: i32) -> (i32, i32, i32) {
    %c0_i32 = arith.constant 0 : i32
    %c0_i32_0 = arith.constant 0 : i32
    %c0_i32_1 = arith.constant 0 : i32
    %c0_i32_2 = arith.constant 0 : i32
    return %c0_i32, %c0_i32_0, %c0_i32_1 : i32, i32, i32
  }
  func.func @transform_4(%arg0: i32) -> (i32, i32) {
    %c0_i32 = arith.constant 0 : i32
    %c0_i32_0 = arith.constant 0 : i32
    %c0_i32_1 = arith.constant 0 : i32
    return %c0_i32, %c0_i32_0 : i32, i32
  }
  func.func @transform_5(%arg0: i32) -> (i32, i32) {
    %c0_i32 = arith.constant 0 : i32
    %c0_i32_0 = arith.constant 0 : i32
    %c0_i32_1 = arith.constant 0 : i32
    return %c0_i32, %c0_i32_0 : i32, i32
  }
  func.func @transform_6(%arg0: i32) -> (i32, i32, i32) {
    %c0_i32 = arith.constant 0 : i32
    %c0_i32_0 = arith.constant 0 : i32
    %c0_i32_1 = arith.constant 0 : i32
    %c0_i32_2 = arith.constant 0 : i32
    return %c0_i32, %c0_i32_0, %c0_i32_1 : i32, i32, i32
  }
  func.func @transform_7(%arg0: i32) -> (i32, i32) {
    %c0_i32 = arith.constant 0 : i32
    %c0_i32_0 = arith.constant 0 : i32
    %c0_i32_1 = arith.constant 0 : i32
    return %c0_i32, %c0_i32_0 : i32, i32
  }
  func.func @transform_8(%arg0: i32) -> (i32, i32, i32, i32) {
    %c0_i32 = arith.constant 0 : i32
    %c0_i32_0 = arith.constant 0 : i32
    %c0_i32_1 = arith.constant 0 : i32
    %c0_i32_2 = arith.constant 0 : i32
    return %arg0, %c0_i32, %c0_i32_0, %c0_i32_1 : i32, i32, i32, i32
  }
}

</mosaic_0001>

<llo_original>
// kernel: tpu_custom_call.1
$region0: #{tpu_custom_call.1}
  #allocation0 [shape = 'u32[]', space=smem, size = 0x4, offset = 0x4, fixed_abs, tag = 'smem constant byte address 0x4 - core index']
  #allocation1 [shape = 'u32[144,128]{1,0:T(1,128)}', space=vmem, size = 0x12000, scoped, tag = 'internal scratch']
  #allocation2 [shape = 'bf16[2,18,9,8]{3,2,1,0:T(8,128)(2,1)}', space=vmem, size = 0x24000, scoped, tag = 'scratch operand']
  #allocation3 [shape = 'bf16[2,10,10,8]{3,2,1,0:T(8,128)(2,1)}', space=vmem, size = 0x14000, scoped, tag = 'scratch operand']
  %s0 = inlined_call_operand.vmem [shape: bf16[2,16,8,8], index: 0, kind: input, shape index: {}]
  %s1 = inlined_call_operand.vmem [shape: f32[1,8], index: 1, kind: input, shape index: {}]
  %s2 = inlined_call_operand.vmem [shape: f32[1,8], index: 2, kind: input, shape index: {}]
  %s3 = inlined_call_operand.vmem [shape: bf16[9,4,8], index: 3, kind: input, shape index: {}]
  %s4 = inlined_call_operand.vmem [shape: f32[1,8], index: 4, kind: input, shape index: {}]
  %s5 = inlined_call_operand.vmem [shape: f32[1,8], index: 5, kind: input, shape index: {}]
  %s6 = inlined_call_operand.vmem [shape: bf16[9,8,8], index: 6, kind: input, shape index: {}]
  %s7 = inlined_call_operand.vmem [shape: bf16[4,8], index: 7, kind: input, shape index: {}]
  %s8 = inlined_call_operand.hbm [shape: f32[2,8,8,8], index: 8, kind: output, shape index: {}]
  %s9 = sld [smem:[#allocation0]]
  $region42: #{tpu_custom_call.1} parent=0
    _
  %s11 = ssub.s32 1, %s9
  %s12 = scalar_select 0, %s11, %s9
  $region1: #{tpu_custom_call.1} parent=0
    #allocation4 [shape = 'u8[65536]{0}', space=vmem, size = 0x10000, scoped, tag = 'output window, operand 0, single buffered']
    #allocation5 [shape = 's32[1]{0}', space=sflag, size = 0x4, scoped, tag = 'scoped memory for tpu_custom_call.1']
    %13 = vsyncpa [#allocation5], 0
    // Predicated region
    $region2: #{tpu_custom_call.1} parent=1 // pred_check
      _
    $region3: #{tpu_custom_call.1} parent=1 // pred_check_branch
      %15 = sbr.rel (0) target = $region5
    $region4: #{tpu_custom_call.1} parent=1 // pred_region
      _
    $region5: #{tpu_custom_call.1} parent=1 // pred_fallthru
      _
    // Predicated region
    $region6: #{tpu_custom_call.1} parent=1 // pred_check
      _
    $region7: #{tpu_custom_call.1} parent=1 // pred_check_branch
      %17 = sbr.rel (0) target = $region9
    $region8: #{tpu_custom_call.1} parent=1 // pred_region
      _
    $region9: #{tpu_custom_call.1} parent=1 // pred_fallthru
      _
    // Predicated region
    $region10: #{tpu_custom_call.1} parent=1 // pred_check
      _
    $region11: #{tpu_custom_call.1} parent=1 // pred_check_branch
      %19 = sbr.rel (0) target = $region13
    $region12: #{tpu_custom_call.1} parent=1 // pred_region
      _
    $region13: #{tpu_custom_call.1} parent=1 // pred_fallthru
      _
    // Predicated region
    $region14: #{tpu_custom_call.1} parent=1 // pred_check
      _
    $region15: #{tpu_custom_call.1} parent=1 // pred_check_branch
      %21 = sbr.rel (0) target = $region17
    $region16: #{tpu_custom_call.1} parent=1 // pred_region
      _
    $region17: #{tpu_custom_call.1} parent=1 // pred_fallthru
      _
    // Predicated region
    $region18: #{tpu_custom_call.1} parent=1 // pred_check
      _
    $region19: #{tpu_custom_call.1} parent=1 // pred_check_branch
      %23 = sbr.rel (0) target = $region21
    $region20: #{tpu_custom_call.1} parent=1 // pred_region
      _
    $region21: #{tpu_custom_call.1} parent=1 // pred_fallthru
      _
    // Predicated region
    $region22: #{tpu_custom_call.1} parent=1 // pred_check
      _
    $region23: #{tpu_custom_call.1} parent=1 // pred_check_branch
      %25 = sbr.rel (0) target = $region25
    $region24: #{tpu_custom_call.1} parent=1 // pred_region
      _
    $region25: #{tpu_custom_call.1} parent=1 // pred_fallthru
      _
    // Predicated region
    $region26: #{tpu_custom_call.1} parent=1 // pred_check
      _
    $region27: #{tpu_custom_call.1} parent=1 // pred_check_branch
      %27 = sbr.rel (0) target = $region29
    $region28: #{tpu_custom_call.1} parent=1 // pred_region
      _
    $region29: #{tpu_custom_call.1} parent=1 // pred_fallthru
      _
    // Predicated region
    $region30: #{tpu_custom_call.1} parent=1 // pred_check
      _
    $region31: #{tpu_custom_call.1} parent=1 // pred_check_branch
      %29 = sbr.rel (0) target = $region33
    $region32: #{tpu_custom_call.1} parent=1 // pred_region
      _
    $region33: #{tpu_custom_call.1} parent=1 // pred_fallthru
      _
    %vm31 = vcmask 60416
    %32 = vst.msk [vmem:[#allocation2] sm:$0xf] %vm31, 0
    %vm33 = vcmask 57344
    %vm34 = vsmask.f32 256
    %vm35 = vmand %vm33, %vm34
    %v36 = vld [vmem:[#allocation2 + $0x4] sm:$0x1]
    %v37 = vsel %vm35, 0, %v36
    %38 = vst [vmem:[#allocation2 + $0x4] sm:$0x1] %v37
    %39 = vst.msk [vmem:[#allocation2 + $0x90] sm:$0xf] %vm31, 0
    %v40 = vld [vmem:[#allocation2 + $0x94] sm:$0x1]
    %v41 = vsel %vm35, 0, %v40
    %42 = vst [vmem:[#allocation2 + $0x94] sm:$0x1] %v41
    %s43 = scalar_lea.vmem [#allocation2], 136
    %44 = vst.msk [vmem:[%s43] sm:$0xf] %vm31, 0
    %v45 = vld [vmem:[%s43 + $0x4] sm:$0x1]
    %v46 = vsel %vm35, 0, %v45
    %47 = vst [vmem:[%s43 + $0x4] sm:$0x1] %v46
    %48 = vst.msk [vmem:[%s43 + $0x90] sm:$0xf] %vm31, 0
    %v49 = vld [vmem:[%s43 + $0x94] sm:$0x1]
    %v50 = vsel %vm35, 0, %v49
    %51 = vst [vmem:[%s43 + $0x94] sm:$0x1] %v50
    %v52 = vld [vmem:[#allocation2] sm:$0x1]
    %v53 = vsel %vm35, 0, %v52
    %54 = vst [vmem:[#allocation2] sm:$0x1] %v53
    %v55 = vld [vmem:[#allocation2 + $0x8] sm:$0x1]
    %v56 = vsel %vm35, 0, %v55
    %57 = vst [vmem:[#allocation2 + $0x8] sm:$0x1] %v56
    %v58 = vld [vmem:[#allocation2 + $0x10] sm:$0x1]
    %v59 = vsel %vm35, 0, %v58
    %60 = vst [vmem:[#allocation2 + $0x10] sm:$0x1] %v59
    %v61 = vld [vmem:[#allocation2 + $0x18] sm:$0x1]
    %v62 = vsel %vm35, 0, %v61
    %63 = vst [vmem:[#allocation2 + $0x18] sm:$0x1] %v62
    %v64 = vld [vmem:[#allocation2 + $0x20] sm:$0x1]
    %v65 = vsel %vm35, 0, %v64
    %66 = vst [vmem:[#allocation2 + $0x20] sm:$0x1] %v65
    %v67 = vld [vmem:[#allocation2 + $0x28] sm:$0x1]
    %v68 = vsel %vm35, 0, %v67
    %69 = vst [vmem:[#allocation2 + $0x28] sm:$0x1] %v68
    %v70 = vld [vmem:[#allocation2 + $0x30] sm:$0x1]
    %v71 = vsel %vm35, 0, %v70
    %72 = vst [vmem:[#allocation2 + $0x30] sm:$0x1] %v71
    %v73 = vld [vmem:[#allocation2 + $0x38] sm:$0x1]
    %v74 = vsel %vm35, 0, %v73
    %75 = vst [vmem:[#allocation2 + $0x38] sm:$0x1] %v74
    %v76 = vld [vmem:[#allocation2 + $0x40] sm:$0x1]
    %v77 = vsel %vm35, 0, %v76
    %78 = vst [vmem:[#allocation2 + $0x40] sm:$0x1] %v77
    %v79 = vld [vmem:[#allocation2 + $0x48] sm:$0x1]
    %v80 = vsel %vm35, 0, %v79
    %81 = vst [vmem:[#allocation2 + $0x48] sm:$0x1] %v80
    %v82 = vld [vmem:[#allocation2 + $0x50] sm:$0x1]
    %v83 = vsel %vm35, 0, %v82
    %84 = vst [vmem:[#allocation2 + $0x50] sm:$0x1] %v83
    %v85 = vld [vmem:[#allocation2 + $0x58] sm:$0x1]
    %v86 = vsel %vm35, 0, %v85
    %87 = vst [vmem:[#allocation2 + $0x58] sm:$0x1] %v86
    %v88 = vld [vmem:[#allocation2 + $0x60] sm:$0x1]
    %v89 = vsel %vm35, 0, %v88
    %90 = vst [vmem:[#allocation2 + $0x60] sm:$0x1] %v89
    %v91 = vld [vmem:[#allocation2 + $0x68] sm:$0x1]
    %v92 = vsel %vm35, 0, %v91
    %93 = vst [vmem:[#allocation2 + $0x68] sm:$0x1] %v92
    %v94 = vld [vmem:[#allocation2 + $0x70] sm:$0x1]
    %v95 = vsel %vm35, 0, %v94
    %96 = vst [vmem:[#allocation2 + $0x70] sm:$0x1] %v95
    %v97 = vld [vmem:[#allocation2 + $0x78] sm:$0x1]
    %v98 = vsel %vm35, 0, %v97
    %99 = vst [vmem:[#allocation2 + $0x78] sm:$0x1] %v98
    %v100 = vld [vmem:[#allocation2 + $0x80] sm:$0x1]
    %v101 = vsel %vm35, 0, %v100
    %102 = vst [vmem:[#allocation2 + $0x80] sm:$0x1] %v101
    %v103 = vld [vmem:[#allocation2 + $0x88] sm:$0x1]
    %v104 = vsel %vm35, 0, %v103
    %105 = vst [vmem:[#allocation2 + $0x88] sm:$0x1] %v104
    %v106 = vld [vmem:[#allocation2 + $0x90] sm:$0x1]
    %v107 = vsel %vm35, 0, %v106
    %108 = vst [vmem:[#allocation2 + $0x90] sm:$0x1] %v107
    %v109 = vld [vmem:[#allocation2 + $0x98] sm:$0x1]
    %v110 = vsel %vm35, 0, %v109
    %111 = vst [vmem:[#allocation2 + $0x98] sm:$0x1] %v110
    %v112 = vld [vmem:[#allocation2 + $0xa0] sm:$0x1]
    %v113 = vsel %vm35, 0, %v112
    %114 = vst [vmem:[#allocation2 + $0xa0] sm:$0x1] %v113
    %v115 = vld [vmem:[#allocation2 + $0xa8] sm:$0x1]
    %v116 = vsel %vm35, 0, %v115
    %117 = vst [vmem:[#allocation2 + $0xa8] sm:$0x1] %v116
    %v118 = vld [vmem:[#allocation2 + $0xb0] sm:$0x1]
    %v119 = vsel %vm35, 0, %v118
    %120 = vst [vmem:[#allocation2 + $0xb0] sm:$0x1] %v119
    %v121 = vld [vmem:[#allocation2 + $0xb8] sm:$0x1]
    %v122 = vsel %vm35, 0, %v121
    %123 = vst [vmem:[#allocation2 + $0xb8] sm:$0x1] %v122
    %v124 = vld [vmem:[#allocation2 + $0xc0] sm:$0x1]
    %v125 = vsel %vm35, 0, %v124
    %126 = vst [vmem:[#allocation2 + $0xc0] sm:$0x1] %v125
    %v127 = vld [vmem:[#allocation2 + $0xc8] sm:$0x1]
    %v128 = vsel %vm35, 0, %v127
    %129 = vst [vmem:[#allocation2 + $0xc8] sm:$0x1] %v128
    %v130 = vld [vmem:[#allocation2 + $0xd0] sm:$0x1]
    %v131 = vsel %vm35, 0, %v130
    %132 = vst [vmem:[#allocation2 + $0xd0] sm:$0x1] %v131
    %v133 = vld [vmem:[#allocation2 + $0xd8] sm:$0x1]
    %v134 = vsel %vm35, 0, %v133
    %135 = vst [vmem:[#allocation2 + $0xd8] sm:$0x1] %v134
    %v136 = vld [vmem:[#allocation2 + $0xe0] sm:$0x1]
    %v137 = vsel %vm35, 0, %v136
    %138 = vst [vmem:[#allocation2 + $0xe0] sm:$0x1] %v137
    %v139 = vld [vmem:[#allocation2 + $0xe8] sm:$0x1]
    %v140 = vsel %vm35, 0, %v139
    %141 = vst [vmem:[#allocation2 + $0xe8] sm:$0x1] %v140
    %v142 = vld [vmem:[#allocation2 + $0xf0] sm:$0x1]
    %v143 = vsel %vm35, 0, %v142
    %144 = vst [vmem:[#allocation2 + $0xf0] sm:$0x1] %v143
    %v145 = vld [vmem:[#allocation2 + $0xf8] sm:$0x1]
    %v146 = vsel %vm35, 0, %v145
    %147 = vst [vmem:[#allocation2 + $0xf8] sm:$0x1] %v146
    %v148 = vld [vmem:[#allocation2 + $0x100] sm:$0x1]
    %v149 = vsel %vm35, 0, %v148
    %150 = vst [vmem:[#allocation2 + $0x100] sm:$0x1] %v149
    %v151 = vld [vmem:[#allocation2 + $0x108] sm:$0x1]
    %v152 = vsel %vm35, 0, %v151
    %153 = vst [vmem:[#allocation2 + $0x108] sm:$0x1] %v152
    %v154 = vld [vmem:[#allocation2 + $0x110] sm:$0x1]
    %v155 = vsel %vm35, 0, %v154
    %156 = vst [vmem:[#allocation2 + $0x110] sm:$0x1] %v155
    %v157 = vld [vmem:[#allocation2 + $0x118] sm:$0x1]
    %v158 = vsel %vm35, 0, %v157
    %159 = vst [vmem:[#allocation2 + $0x118] sm:$0x1] %v158
    %v160 = vld [vmem:[#allocation2 + $0x4] sm:$0x1]
    %v161 = vsel %vm35, 0, %v160
    %162 = vst [vmem:[#allocation2 + $0x4] sm:$0x1] %v161
    %v163 = vld [vmem:[#allocation2 + $0xc] sm:$0x1]
    %v164 = vsel %vm35, 0, %v163
    %165 = vst [vmem:[#allocation2 + $0xc] sm:$0x1] %v164
    %v166 = vld [vmem:[#allocation2 + $0x14] sm:$0x1]
    %v167 = vsel %vm35, 0, %v166
    %168 = vst [vmem:[#allocation2 + $0x14] sm:$0x1] %v167
    %v169 = vld [vmem:[#allocation2 + $0x1c] sm:$0x1]
    %v170 = vsel %vm35, 0, %v169
    %171 = vst [vmem:[#allocation2 + $0x1c] sm:$0x1] %v170
    %v172 = vld [vmem:[#allocation2 + $0x24] sm:$0x1]
    %v173 = vsel %vm35, 0, %v172
    %174 = vst [vmem:[#allocation2 + $0x24] sm:$0x1] %v173
    %v175 = vld [vmem:[#allocation2 + $0x2c] sm:$0x1]
    %v176 = vsel %vm35, 0, %v175
    %177 = vst [vmem:[#allocation2 + $0x2c] sm:$0x1] %v176
    %v178 = vld [vmem:[#allocation2 + $0x34] sm:$0x1]
    %v179 = vsel %vm35, 0, %v178
    %180 = vst [vmem:[#allocation2 + $0x34] sm:$0x1] %v179
    %v181 = vld [vmem:[#allocation2 + $0x3c] sm:$0x1]
    %v182 = vsel %vm35, 0, %v181
    %183 = vst [vmem:[#allocation2 + $0x3c] sm:$0x1] %v182
    %v184 = vld [vmem:[#allocation2 + $0x44] sm:$0x1]
    %v185 = vsel %vm35, 0, %v184
    %186 = vst [vmem:[#allocation2 + $0x44] sm:$0x1] %v185
    %v187 = vld [vmem:[#allocation2 + $0x4c] sm:$0x1]
    %v188 = vsel %vm35, 0, %v187
    %189 = vst [vmem:[#allocation2 + $0x4c] sm:$0x1] %v188
    %v190 = vld [vmem:[#allocation2 + $0x54] sm:$0x1]
    %v191 = vsel %vm35, 0, %v190
    %192 = vst [vmem:[#allocation2 + $0x54] sm:$0x1] %v191
    %v193 = vld [vmem:[#allocation2 + $0x5c] sm:$0x1]
    %v194 = vsel %vm35, 0, %v193
    %195 = vst [vmem:[#allocation2 + $0x5c] sm:$0x1] %v194
    %v196 = vld [vmem:[#allocation2 + $0x64] sm:$0x1]
    %v197 = vsel %vm35, 0, %v196
    %198 = vst [vmem:[#allocation2 + $0x64] sm:$0x1] %v197
    %v199 = vld [vmem:[#allocation2 + $0x6c] sm:$0x1]
    %v200 = vsel %vm35, 0, %v199
    %201 = vst [vmem:[#allocation2 + $0x6c] sm:$0x1] %v200
    %v202 = vld [vmem:[#allocation2 + $0x74] sm:$0x1]
    %v203 = vsel %vm35, 0, %v202
    %204 = vst [vmem:[#allocation2 + $0x74] sm:$0x1] %v203
    %v205 = vld [vmem:[#allocation2 + $0x7c] sm:$0x1]
    %v206 = vsel %vm35, 0, %v205
    %207 = vst [vmem:[#allocation2 + $0x7c] sm:$0x1] %v206
    %v208 = vld [vmem:[#allocation2 + $0x84] sm:$0x1]
    %v209 = vsel %vm35, 0, %v208
    %210 = vst [vmem:[#allocation2 + $0x84] sm:$0x1] %v209
    %v211 = vld [vmem:[#allocation2 + $0x8c] sm:$0x1]
    %v212 = vsel %vm35, 0, %v211
    %213 = vst [vmem:[#allocation2 + $0x8c] sm:$0x1] %v212
    %v214 = vld [vmem:[#allocation2 + $0x94] sm:$0x1]
    %v215 = vsel %vm35, 0, %v214
    %216 = vst [vmem:[#allocation2 + $0x94] sm:$0x1] %v215
    %v217 = vld [vmem:[#allocation2 + $0x9c] sm:$0x1]
    %v218 = vsel %vm35, 0, %v217
    %219 = vst [vmem:[#allocation2 + $0x9c] sm:$0x1] %v218
    %v220 = vld [vmem:[#allocation2 + $0xa4] sm:$0x1]
    %v221 = vsel %vm35, 0, %v220
    %222 = vst [vmem:[#allocation2 + $0xa4] sm:$0x1] %v221
    %v223 = vld [vmem:[#allocation2 + $0xac] sm:$0x1]
    %v224 = vsel %vm35, 0, %v223
    %225 = vst [vmem:[#allocation2 + $0xac] sm:$0x1] %v224
    %v226 = vld [vmem:[#allocation2 + $0xb4] sm:$0x1]
    %v227 = vsel %vm35, 0, %v226
    %228 = vst [vmem:[#allocation2 + $0xb4] sm:$0x1] %v227
    %v229 = vld [vmem:[#allocation2 + $0xbc] sm:$0x1]
    %v230 = vsel %vm35, 0, %v229
    %231 = vst [vmem:[#allocation2 + $0xbc] sm:$0x1] %v230
    %v232 = vld [vmem:[#allocation2 + $0xc4] sm:$0x1]
    %v233 = vsel %vm35, 0, %v232
    %234 = vst [vmem:[#allocation2 + $0xc4] sm:$0x1] %v233
    %v235 = vld [vmem:[#allocation2 + $0xcc] sm:$0x1]
    %v236 = vsel %vm35, 0, %v235
    %237 = vst [vmem:[#allocation2 + $0xcc] sm:$0x1] %v236
    %v238 = vld [vmem:[#allocation2 + $0xd4] sm:$0x1]
    %v239 = vsel %vm35, 0, %v238
    %240 = vst [vmem:[#allocation2 + $0xd4] sm:$0x1] %v239
    %v241 = vld [vmem:[#allocation2 + $0xdc] sm:$0x1]
    %v242 = vsel %vm35, 0, %v241
    %243 = vst [vmem:[#allocation2 + $0xdc] sm:$0x1] %v242
    %v244 = vld [vmem:[#allocation2 + $0xe4] sm:$0x1]
    %v245 = vsel %vm35, 0, %v244
    %246 = vst [vmem:[#allocation2 + $0xe4] sm:$0x1] %v245
    %v247 = vld [vmem:[#allocation2 + $0xec] sm:$0x1]
    %v248 = vsel %vm35, 0, %v247
    %249 = vst [vmem:[#allocation2 + $0xec] sm:$0x1] %v248
    %v250 = vld [vmem:[#allocation2 + $0xf4] sm:$0x1]
    %v251 = vsel %vm35, 0, %v250
    %252 = vst [vmem:[#allocation2 + $0xf4] sm:$0x1] %v251
    %v253 = vld [vmem:[#allocation2 + $0xfc] sm:$0x1]
    %v254 = vsel %vm35, 0, %v253
    %255 = vst [vmem:[#allocation2 + $0xfc] sm:$0x1] %v254
    %v256 = vld [vmem:[#allocation2 + $0x104] sm:$0x1]
    %v257 = vsel %vm35, 0, %v256
    %258 = vst [vmem:[#allocation2 + $0x104] sm:$0x1] %v257
    %v259 = vld [vmem:[#allocation2 + $0x10c] sm:$0x1]
    %v260 = vsel %vm35, 0, %v259
    %261 = vst [vmem:[#allocation2 + $0x10c] sm:$0x1] %v260
    %v262 = vld [vmem:[#allocation2 + $0x114] sm:$0x1]
    %v263 = vsel %vm35, 0, %v262
    %264 = vst [vmem:[#allocation2 + $0x114] sm:$0x1] %v263
    %v265 = vld [vmem:[#allocation2 + $0x11c] sm:$0x1]
    %v266 = vsel %vm35, 0, %v265
    %267 = vst [vmem:[#allocation2 + $0x11c] sm:$0x1] %v266
    %v268 = vld [vmem:[%s0] sm:$0xf]
    %v269 = vld [vmem:[%s0 + $0x4] sm:$0xf]
    %v270 = vld [vmem:[%s0 + $0x8] sm:$0xf]
    %v271 = vld [vmem:[%s0 + $0xc] sm:$0xf]
    %v272 = vld [vmem:[%s0 + $0x10] sm:$0xf]
    %v273 = vld [vmem:[%s0 + $0x14] sm:$0xf]
    %v274 = vld [vmem:[%s0 + $0x18] sm:$0xf]
    %v275 = vld [vmem:[%s0 + $0x1c] sm:$0xf]
    %v276 = vld [vmem:[%s0 + $0x20] sm:$0xf]
    %v277 = vld [vmem:[%s0 + $0x24] sm:$0xf]
    %v278 = vld [vmem:[%s0 + $0x28] sm:$0xf]
    %v279 = vld [vmem:[%s0 + $0x2c] sm:$0xf]
    %v280 = vld [vmem:[%s0 + $0x30] sm:$0xf]
    %v281 = vld [vmem:[%s0 + $0x34] sm:$0xf]
    %v282 = vld [vmem:[%s0 + $0x38] sm:$0xf]
    %v283 = vld [vmem:[%s0 + $0x3c] sm:$0xf]
    %v284 = vld [vmem:[%s0 + $0x40] sm:$0xf]
    %v285 = vld [vmem:[%s0 + $0x44] sm:$0xf]
    %v286 = vld [vmem:[%s0 + $0x48] sm:$0xf]
    %v287 = vld [vmem:[%s0 + $0x4c] sm:$0xf]
    %v288 = vld [vmem:[%s0 + $0x50] sm:$0xf]
    %v289 = vld [vmem:[%s0 + $0x54] sm:$0xf]
    %v290 = vld [vmem:[%s0 + $0x58] sm:$0xf]
    %v291 = vld [vmem:[%s0 + $0x5c] sm:$0xf]
    %v292 = vld [vmem:[%s0 + $0x60] sm:$0xf]
    %v293 = vld [vmem:[%s0 + $0x64] sm:$0xf]
    %v294 = vld [vmem:[%s0 + $0x68] sm:$0xf]
    %v295 = vld [vmem:[%s0 + $0x6c] sm:$0xf]
    %v296 = vld [vmem:[%s0 + $0x70] sm:$0xf]
    %v297 = vld [vmem:[%s0 + $0x74] sm:$0xf]
    %v298 = vld [vmem:[%s0 + $0x78] sm:$0xf]
    %v299 = vld [vmem:[%s0 + $0x7c] sm:$0xf]
    %v300 = vunpack.c.l.bf16 %v268
    %v301 = vunpack.c.l.bf16 %v269
    %v302 = vunpack.c.l.bf16 %v270
    %v303 = vunpack.c.l.bf16 %v271
    %v304 = vunpack.c.l.bf16 %v272
    %v305 = vunpack.c.l.bf16 %v273
    %v306 = vunpack.c.l.bf16 %v274
    %v307 = vunpack.c.l.bf16 %v275
    %v308 = vunpack.c.l.bf16 %v276
    %v309 = vunpack.c.l.bf16 %v277
    %v310 = vunpack.c.l.bf16 %v278
    %v311 = vunpack.c.l.bf16 %v279
    %v312 = vunpack.c.l.bf16 %v280
    %v313 = vunpack.c.l.bf16 %v281
    %v314 = vunpack.c.l.bf16 %v282
    %v315 = vunpack.c.l.bf16 %v283
    %v316 = vunpack.c.l.bf16 %v284
    %v317 = vunpack.c.l.bf16 %v285
    %v318 = vunpack.c.l.bf16 %v286
    %v319 = vunpack.c.l.bf16 %v287
    %v320 = vunpack.c.l.bf16 %v288
    %v321 = vunpack.c.l.bf16 %v289
    %v322 = vunpack.c.l.bf16 %v290
    %v323 = vunpack.c.l.bf16 %v291
    %v324 = vunpack.c.l.bf16 %v292
    %v325 = vunpack.c.l.bf16 %v293
    %v326 = vunpack.c.l.bf16 %v294
    %v327 = vunpack.c.l.bf16 %v295
    %v328 = vunpack.c.l.bf16 %v296
    %v329 = vunpack.c.l.bf16 %v297
    %v330 = vunpack.c.l.bf16 %v298
    %v331 = vunpack.c.l.bf16 %v299
    %v332 = vld [vmem:[%s1] sm:$0x1]
    %v334 = vlaneseq
    %v335 = vshrl.u32 %v334, 7
    %v336 = vsub.s32 0, %v335
    %v337 = vrot.slane %v332, %v336
    %v339 = vmul.f32 %v300, %v337
    %v340 = vmul.f32 %v301, %v337
    %v341 = vmul.f32 %v302, %v337
    %v342 = vmul.f32 %v303, %v337
    %v343 = vmul.f32 %v304, %v337
    %v344 = vmul.f32 %v305, %v337
    %v345 = vmul.f32 %v306, %v337
    %v346 = vmul.f32 %v307, %v337
    %v347 = vmul.f32 %v308, %v337
    %v348 = vmul.f32 %v309, %v337
    %v349 = vmul.f32 %v310, %v337
    %v350 = vmul.f32 %v311, %v337
    %v351 = vmul.f32 %v312, %v337
    %v352 = vmul.f32 %v313, %v337
    %v353 = vmul.f32 %v314, %v337
    %v354 = vmul.f32 %v315, %v337
    %v355 = vmul.f32 %v316, %v337
    %v356 = vmul.f32 %v317, %v337
    %v357 = vmul.f32 %v318, %v337
    %v358 = vmul.f32 %v319, %v337
    %v359 = vmul.f32 %v320, %v337
    %v360 = vmul.f32 %v321, %v337
    %v361 = vmul.f32 %v322, %v337
    %v362 = vmul.f32 %v323, %v337
    %v363 = vmul.f32 %v324, %v337
    %v364 = vmul.f32 %v325, %v337
    %v365 = vmul.f32 %v326, %v337
    %v366 = vmul.f32 %v327, %v337
    %v367 = vmul.f32 %v328, %v337
    %v368 = vmul.f32 %v329, %v337
    %v369 = vmul.f32 %v330, %v337
    %v370 = vmul.f32 %v331, %v337
    %v371 = vld [vmem:[%s2] sm:$0x1]
    %v373 = vlaneseq
    %v374 = vshrl.u32 %v373, 7
    %v375 = vsub.s32 0, %v374
    %v376 = vrot.slane %v371, %v375
    %v378 = vadd.f32 %v339, %v376
    %v379 = vadd.f32 %v340, %v376
    %v380 = vadd.f32 %v341, %v376
    %v381 = vadd.f32 %v342, %v376
    %v382 = vadd.f32 %v343, %v376
    %v383 = vadd.f32 %v344, %v376
    %v384 = vadd.f32 %v345, %v376
    %v385 = vadd.f32 %v346, %v376
    %v386 = vadd.f32 %v347, %v376
    %v387 = vadd.f32 %v348, %v376
    %v388 = vadd.f32 %v349, %v376
    %v389 = vadd.f32 %v350, %v376
    %v390 = vadd.f32 %v351, %v376
    %v391 = vadd.f32 %v352, %v376
    %v392 = vadd.f32 %v353, %v376
    %v393 = vadd.f32 %v354, %v376
    %v394 = vadd.f32 %v355, %v376
    %v395 = vadd.f32 %v356, %v376
    %v396 = vadd.f32 %v357, %v376
    %v397 = vadd.f32 %v358, %v376
    %v398 = vadd.f32 %v359, %v376
    %v399 = vadd.f32 %v360, %v376
    %v400 = vadd.f32 %v361, %v376
    %v401 = vadd.f32 %v362, %v376
    %v402 = vadd.f32 %v363, %v376
    %v403 = vadd.f32 %v364, %v376
    %v404 = vadd.f32 %v365, %v376
    %v405 = vadd.f32 %v366, %v376
    %v406 = vadd.f32 %v367, %v376
    %v407 = vadd.f32 %v368, %v376
    %v408 = vadd.f32 %v369, %v376
    %v409 = vadd.f32 %v370, %v376
    %v410 = vmax.f32 %v378, 0.0
    %v411 = vmax.f32 %v379, 0.0
    %v412 = vmax.f32 %v380, 0.0
    %v413 = vmax.f32 %v381, 0.0
    %v414 = vmax.f32 %v382, 0.0
    %v415 = vmax.f32 %v383, 0.0
    %v416 = vmax.f32 %v384, 0.0
    %v417 = vmax.f32 %v385, 0.0
    %v418 = vmax.f32 %v386, 0.0
    %v419 = vmax.f32 %v387, 0.0
    %v420 = vmax.f32 %v388, 0.0
    %v421 = vmax.f32 %v389, 0.0
    %v422 = vmax.f32 %v390, 0.0
    %v423 = vmax.f32 %v391, 0.0
    %v424 = vmax.f32 %v392, 0.0
    %v425 = vmax.f32 %v393, 0.0
    %v426 = vmax.f32 %v394, 0.0
    %v427 = vmax.f32 %v395, 0.0
    %v428 = vmax.f32 %v396, 0.0
    %v429 = vmax.f32 %v397, 0.0
    %v430 = vmax.f32 %v398, 0.0
    %v431 = vmax.f32 %v399, 0.0
    %v432 = vmax.f32 %v400, 0.0
    %v433 = vmax.f32 %v401, 0.0
    %v434 = vmax.f32 %v402, 0.0
    %v435 = vmax.f32 %v403, 0.0
    %v436 = vmax.f32 %v404, 0.0
    %v437 = vmax.f32 %v405, 0.0
    %v438 = vmax.f32 %v406, 0.0
    %v439 = vmax.f32 %v407, 0.0
    %v440 = vmax.f32 %v408, 0.0
    %v441 = vmax.f32 %v409, 0.0
    %v442 = vpack.c.bf16 %v410, %v410
    %v443 = vpack.c.bf16 %v411, %v411
    %v444 = vpack.c.bf16 %v412, %v412
    %v445 = vpack.c.bf16 %v413, %v413
    %v446 = vpack.c.bf16 %v414, %v414
    %v447 = vpack.c.bf16 %v415, %v415
    %v448 = vpack.c.bf16 %v416, %v416
    %v449 = vpack.c.bf16 %v417, %v417
    %v450 = vpack.c.bf16 %v418, %v418
    %v451 = vpack.c.bf16 %v419, %v419
    %v452 = vpack.c.bf16 %v420, %v420
    %v453 = vpack.c.bf16 %v421, %v421
    %v454 = vpack.c.bf16 %v422, %v422
    %v455 = vpack.c.bf16 %v423, %v423
    %v456 = vpack.c.bf16 %v424, %v424
    %v457 = vpack.c.bf16 %v425, %v425
    %v458 = vpack.c.bf16 %v426, %v426
    %v459 = vpack.c.bf16 %v427, %v427
    %v460 = vpack.c.bf16 %v428, %v428
    %v461 = vpack.c.bf16 %v429, %v429
    %v462 = vpack.c.bf16 %v430, %v430
    %v463 = vpack.c.bf16 %v431, %v431
    %v464 = vpack.c.bf16 %v432, %v432
    %v465 = vpack.c.bf16 %v433, %v433
    %v466 = vpack.c.bf16 %v434, %v434
    %v467 = vpack.c.bf16 %v435, %v435
    %v468 = vpack.c.bf16 %v436, %v436
    %v469 = vpack.c.bf16 %v437, %v437
    %v470 = vpack.c.bf16 %v438, %v438
    %v471 = vpack.c.bf16 %v439, %v439
    %v472 = vpack.c.bf16 %v440, %v440
    %v473 = vpack.c.bf16 %v441, %v441
    %v506 = vunpack.c.l.b16 %v442
    %v507 = vunpack.c.l.b16 %v443
    %v508 = vunpack.c.l.b16 %v444
    %v509 = vunpack.c.l.b16 %v445
    %v510 = vunpack.c.l.b16 %v446
    %v511 = vunpack.c.l.b16 %v447
    %v512 = vunpack.c.l.b16 %v448
    %v513 = vunpack.c.l.b16 %v449
    %v514 = vunpack.c.l.b16 %v450
    %v515 = vunpack.c.l.b16 %v451
    %v516 = vunpack.c.l.b16 %v452
    %v517 = vunpack.c.l.b16 %v453
    %v518 = vunpack.c.l.b16 %v454
    %v519 = vunpack.c.l.b16 %v455
    %v520 = vunpack.c.l.b16 %v456
    %v521 = vunpack.c.l.b16 %v457
    %v522 = vunpack.c.l.b16 %v458
    %v523 = vunpack.c.l.b16 %v459
    %v524 = vunpack.c.l.b16 %v460
    %v525 = vunpack.c.l.b16 %v461
    %v526 = vunpack.c.l.b16 %v462
    %v527 = vunpack.c.l.b16 %v463
    %v528 = vunpack.c.l.b16 %v464
    %v529 = vunpack.c.l.b16 %v465
    %v530 = vunpack.c.l.b16 %v466
    %v531 = vunpack.c.l.b16 %v467
    %v532 = vunpack.c.l.b16 %v468
    %v533 = vunpack.c.l.b16 %v469
    %v534 = vunpack.c.l.b16 %v470
    %v535 = vunpack.c.l.b16 %v471
    %v536 = vunpack.c.l.b16 %v472
    %v537 = vunpack.c.l.b16 %v473
    %v538 = vpack.c.b16 %v506, %v506
    %v539 = vpack.c.b16 %v507, %v507
    %v540 = vpack.c.b16 %v508, %v508
    %v541 = vpack.c.b16 %v509, %v509
    %v542 = vpack.c.b16 %v510, %v510
    %v543 = vpack.c.b16 %v511, %v511
    %v544 = vpack.c.b16 %v512, %v512
    %v545 = vpack.c.b16 %v513, %v513
    %v546 = vpack.c.b16 %v514, %v514
    %v547 = vpack.c.b16 %v515, %v515
    %v548 = vpack.c.b16 %v516, %v516
    %v549 = vpack.c.b16 %v517, %v517
    %v550 = vpack.c.b16 %v518, %v518
    %v551 = vpack.c.b16 %v519, %v519
    %v552 = vpack.c.b16 %v520, %v520
    %v553 = vpack.c.b16 %v521, %v521
    %v554 = vpack.c.b16 %v522, %v522
    %v555 = vpack.c.b16 %v523, %v523
    %v556 = vpack.c.b16 %v524, %v524
    %v557 = vpack.c.b16 %v525, %v525
    %v558 = vpack.c.b16 %v526, %v526
    %v559 = vpack.c.b16 %v527, %v527
    %v560 = vpack.c.b16 %v528, %v528
    %v561 = vpack.c.b16 %v529, %v529
    %v562 = vpack.c.b16 %v530, %v530
    %v563 = vpack.c.b16 %v531, %v531
    %v564 = vpack.c.b16 %v532, %v532
    %v565 = vpack.c.b16 %v533, %v533
    %v566 = vpack.c.b16 %v534, %v534
    %v567 = vpack.c.b16 %v535, %v535
    %v568 = vpack.c.b16 %v536, %v536
    %v569 = vpack.c.b16 %v537, %v537
    %570 = vrot.lane.b32.xlu0 %v538, 4
    %v571 = vpop.permute.xlu0 %570
    %572 = vrot.lane.b32.xlu0 %v539, 4
    %v573 = vpop.permute.xlu0 %572
    %574 = vrot.lane.b32.xlu0 %v540, 4
    %v575 = vpop.permute.xlu0 %574
    %576 = vrot.lane.b32.xlu0 %v541, 4
    %v577 = vpop.permute.xlu0 %576
    %578 = vrot.lane.b32.xlu0 %v542, 4
    %v579 = vpop.permute.xlu0 %578
    %580 = vrot.lane.b32.xlu0 %v543, 4
    %v581 = vpop.permute.xlu0 %580
    %582 = vrot.lane.b32.xlu0 %v544, 4
    %v583 = vpop.permute.xlu0 %582
    %584 = vrot.lane.b32.xlu0 %v545, 4
    %v585 = vpop.permute.xlu0 %584
    %586 = vrot.lane.b32.xlu0 %v546, 4
    %v587 = vpop.permute.xlu0 %586
    %588 = vrot.lane.b32.xlu0 %v547, 4
    %v589 = vpop.permute.xlu0 %588
    %590 = vrot.lane.b32.xlu0 %v548, 4
    %v591 = vpop.permute.xlu0 %590
    %592 = vrot.lane.b32.xlu0 %v549, 4
    %v593 = vpop.permute.xlu0 %592
    %594 = vrot.lane.b32.xlu0 %v550, 4
    %v595 = vpop.permute.xlu0 %594
    %596 = vrot.lane.b32.xlu0 %v551, 4
    %v597 = vpop.permute.xlu0 %596
    %598 = vrot.lane.b32.xlu0 %v552, 4
    %v599 = vpop.permute.xlu0 %598
    %600 = vrot.lane.b32.xlu0 %v553, 4
    %v601 = vpop.permute.xlu0 %600
    %602 = vrot.lane.b32.xlu0 %v554, 4
    %v603 = vpop.permute.xlu0 %602
    %604 = vrot.lane.b32.xlu0 %v555, 4
    %v605 = vpop.permute.xlu0 %604
    %606 = vrot.lane.b32.xlu0 %v556, 4
    %v607 = vpop.permute.xlu0 %606
    %608 = vrot.lane.b32.xlu0 %v557, 4
    %v609 = vpop.permute.xlu0 %608
    %610 = vrot.lane.b32.xlu0 %v558, 4
    %v611 = vpop.permute.xlu0 %610
    %612 = vrot.lane.b32.xlu0 %v559, 4
    %v613 = vpop.permute.xlu0 %612
    %614 = vrot.lane.b32.xlu0 %v560, 4
    %v615 = vpop.permute.xlu0 %614
    %616 = vrot.lane.b32.xlu0 %v561, 4
    %v617 = vpop.permute.xlu0 %616
    %618 = vrot.lane.b32.xlu0 %v562, 4
    %v619 = vpop.permute.xlu0 %618
    %620 = vrot.lane.b32.xlu0 %v563, 4
    %v621 = vpop.permute.xlu0 %620
    %622 = vrot.lane.b32.xlu0 %v564, 4
    %v623 = vpop.permute.xlu0 %622
    %624 = vrot.lane.b32.xlu0 %v565, 4
    %v625 = vpop.permute.xlu0 %624
    %626 = vrot.lane.b32.xlu0 %v566, 4
    %v627 = vpop.permute.xlu0 %626
    %628 = vrot.lane.b32.xlu0 %v567, 4
    %v629 = vpop.permute.xlu0 %628
    %630 = vrot.lane.b32.xlu0 %v568, 4
    %v631 = vpop.permute.xlu0 %630
    %632 = vrot.lane.b32.xlu0 %v569, 4
    %v633 = vpop.permute.xlu0 %632
    %s666 = scalar_lea.vmem [#allocation2], 8
    %vm667 = vcmask 60448
    %668 = vst.msk [vmem:[%s666] sm:$0xf] %vm667, %v571
    %669 = vst.msk [vmem:[%s666 + $0x8] sm:$0xf] %vm667, %v573
    %670 = vst.msk [vmem:[%s666 + $0x10] sm:$0xf] %vm667, %v575
    %671 = vst.msk [vmem:[%s666 + $0x18] sm:$0xf] %vm667, %v577
    %672 = vst.msk [vmem:[%s666 + $0x20] sm:$0xf] %vm667, %v579
    %673 = vst.msk [vmem:[%s666 + $0x28] sm:$0xf] %vm667, %v581
    %674 = vst.msk [vmem:[%s666 + $0x30] sm:$0xf] %vm667, %v583
    %675 = vst.msk [vmem:[%s666 + $0x38] sm:$0xf] %vm667, %v585
    %676 = vst.msk [vmem:[%s666 + $0x40] sm:$0xf] %vm667, %v587
    %677 = vst.msk [vmem:[%s666 + $0x48] sm:$0xf] %vm667, %v589
    %678 = vst.msk [vmem:[%s666 + $0x50] sm:$0xf] %vm667, %v591
    %679 = vst.msk [vmem:[%s666 + $0x58] sm:$0xf] %vm667, %v593
    %680 = vst.msk [vmem:[%s666 + $0x60] sm:$0xf] %vm667, %v595
    %681 = vst.msk [vmem:[%s666 + $0x68] sm:$0xf] %vm667, %v597
    %682 = vst.msk [vmem:[%s666 + $0x70] sm:$0xf] %vm667, %v599
    %683 = vst.msk [vmem:[%s666 + $0x78] sm:$0xf] %vm667, %v601
    %684 = vst.msk [vmem:[%s666 + $0x90] sm:$0xf] %vm667, %v603
    %685 = vst.msk [vmem:[%s666 + $0x98] sm:$0xf] %vm667, %v605
    %686 = vst.msk [vmem:[%s666 + $0xa0] sm:$0xf] %vm667, %v607
    %687 = vst.msk [vmem:[%s666 + $0xa8] sm:$0xf] %vm667, %v609
    %688 = vst.msk [vmem:[%s666 + $0xb0] sm:$0xf] %vm667, %v611
    %689 = vst.msk [vmem:[%s666 + $0xb8] sm:$0xf] %vm667, %v613
    %690 = vst.msk [vmem:[%s666 + $0xc0] sm:$0xf] %vm667, %v615
    %691 = vst.msk [vmem:[%s666 + $0xc8] sm:$0xf] %vm667, %v617
    %692 = vst.msk [vmem:[%s666 + $0xd0] sm:$0xf] %vm667, %v619
    %693 = vst.msk [vmem:[%s666 + $0xd8] sm:$0xf] %vm667, %v621
    %694 = vst.msk [vmem:[%s666 + $0xe0] sm:$0xf] %vm667, %v623
    %695 = vst.msk [vmem:[%s666 + $0xe8] sm:$0xf] %vm667, %v625
    %696 = vst.msk [vmem:[%s666 + $0xf0] sm:$0xf] %vm667, %v627
    %697 = vst.msk [vmem:[%s666 + $0xf8] sm:$0xf] %vm667, %v629
    %698 = vst.msk [vmem:[%s666 + $0x100] sm:$0xf] %vm667, %v631
    %699 = vst.msk [vmem:[%s666 + $0x108] sm:$0xf] %vm667, %v633
    %v701 = vshrl.u32 %v538, 16
    %v703 = vrot.slane %v701, 7
    %v704 = vshll.u32 %v538, 16
    %v706 = vor.u32 %v703, %v704
    %v707 = vrot.slane %v703, 4
    %v709 = vshrl.u32 %v539, 16
    %v711 = vrot.slane %v709, 7
    %v712 = vshll.u32 %v539, 16
    %v714 = vor.u32 %v711, %v712
    %v715 = vrot.slane %v711, 4
    %v717 = vshrl.u32 %v540, 16
    %v719 = vrot.slane %v717, 7
    %v720 = vshll.u32 %v540, 16
    %v722 = vor.u32 %v719, %v720
    %v723 = vrot.slane %v719, 4
    %v725 = vshrl.u32 %v541, 16
    %v727 = vrot.slane %v725, 7
    %v728 = vshll.u32 %v541, 16
    %v730 = vor.u32 %v727, %v728
    %v731 = vrot.slane %v727, 4
    %v733 = vshrl.u32 %v542, 16
    %v735 = vrot.slane %v733, 7
    %v736 = vshll.u32 %v542, 16
    %v738 = vor.u32 %v735, %v736
    %v739 = vrot.slane %v735, 4
    %v741 = vshrl.u32 %v543, 16
    %v743 = vrot.slane %v741, 7
    %v744 = vshll.u32 %v543, 16
    %v746 = vor.u32 %v743, %v744
    %v747 = vrot.slane %v743, 4
    %v749 = vshrl.u32 %v544, 16
    %v751 = vrot.slane %v749, 7
    %v752 = vshll.u32 %v544, 16
    %v754 = vor.u32 %v751, %v752
    %v755 = vrot.slane %v751, 4
    %v757 = vshrl.u32 %v545, 16
    %v759 = vrot.slane %v757, 7
    %v760 = vshll.u32 %v545, 16
    %v762 = vor.u32 %v759, %v760
    %v763 = vrot.slane %v759, 4
    %v765 = vshrl.u32 %v546, 16
    %v767 = vrot.slane %v765, 7
    %v768 = vshll.u32 %v546, 16
    %v770 = vor.u32 %v767, %v768
    %v771 = vrot.slane %v767, 4
    %v773 = vshrl.u32 %v547, 16
    %v775 = vrot.slane %v773, 7
    %v776 = vshll.u32 %v547, 16
    %v778 = vor.u32 %v775, %v776
    %v779 = vrot.slane %v775, 4
    %v781 = vshrl.u32 %v548, 16
    %v783 = vrot.slane %v781, 7
    %v784 = vshll.u32 %v548, 16
    %v786 = vor.u32 %v783, %v784
    %v787 = vrot.slane %v783, 4
    %v789 = vshrl.u32 %v549, 16
    %v791 = vrot.slane %v789, 7
    %v792 = vshll.u32 %v549, 16
    %v794 = vor.u32 %v791, %v792
    %v795 = vrot.slane %v791, 4
    %v797 = vshrl.u32 %v550, 16
    %v799 = vrot.slane %v797, 7
    %v800 = vshll.u32 %v550, 16
    %v802 = vor.u32 %v799, %v800
    %v803 = vrot.slane %v799, 4
    %v805 = vshrl.u32 %v551, 16
    %v807 = vrot.slane %v805, 7
    %v808 = vshll.u32 %v551, 16
    %v810 = vor.u32 %v807, %v808
    %v811 = vrot.slane %v807, 4
    %v813 = vshrl.u32 %v552, 16
    %v815 = vrot.slane %v813, 7
    %v816 = vshll.u32 %v552, 16
    %v818 = vor.u32 %v815, %v816
    %v819 = vrot.slane %v815, 4
    %v821 = vshrl.u32 %v553, 16
    %v823 = vrot.slane %v821, 7
    %v824 = vshll.u32 %v553, 16
    %v826 = vor.u32 %v823, %v824
    %v827 = vrot.slane %v823, 4
    %v829 = vshrl.u32 %v554, 16
    %v831 = vrot.slane %v829, 7
    %v832 = vshll.u32 %v554, 16
    %v834 = vor.u32 %v831, %v832
    %v835 = vrot.slane %v831, 4
    %v837 = vshrl.u32 %v555, 16
    %v839 = vrot.slane %v837, 7
    %v840 = vshll.u32 %v555, 16
    %v842 = vor.u32 %v839, %v840
    %v843 = vrot.slane %v839, 4
    %v845 = vshrl.u32 %v556, 16
    %v847 = vrot.slane %v845, 7
    %v848 = vshll.u32 %v556, 16
    %v850 = vor.u32 %v847, %v848
    %v851 = vrot.slane %v847, 4
    %v853 = vshrl.u32 %v557, 16
    %v855 = vrot.slane %v853, 7
    %v856 = vshll.u32 %v557, 16
    %v858 = vor.u32 %v855, %v856
    %v859 = vrot.slane %v855, 4
    %v861 = vshrl.u32 %v558, 16
    %v863 = vrot.slane %v861, 7
    %v864 = vshll.u32 %v558, 16
    %v866 = vor.u32 %v863, %v864
    %v867 = vrot.slane %v863, 4
    %v869 = vshrl.u32 %v559, 16
    %v871 = vrot.slane %v869, 7
    %v872 = vshll.u32 %v559, 16
    %v874 = vor.u32 %v871, %v872
    %v875 = vrot.slane %v871, 4
    %v877 = vshrl.u32 %v560, 16
    %v879 = vrot.slane %v877, 7
    %v880 = vshll.u32 %v560, 16
    %v882 = vor.u32 %v879, %v880
    %v883 = vrot.slane %v879, 4
    %v885 = vshrl.u32 %v561, 16
    %v887 = vrot.slane %v885, 7
    %v888 = vshll.u32 %v561, 16
    %v890 = vor.u32 %v887, %v888
    %v891 = vrot.slane %v887, 4
    %v893 = vshrl.u32 %v562, 16
    %v895 = vrot.slane %v893, 7
    %v896 = vshll.u32 %v562, 16
    %v898 = vor.u32 %v895, %v896
    %v899 = vrot.slane %v895, 4
    %v901 = vshrl.u32 %v563, 16
    %v903 = vrot.slane %v901, 7
    %v904 = vshll.u32 %v563, 16
    %v906 = vor.u32 %v903, %v904
    %v907 = vrot.slane %v903, 4
    %v909 = vshrl.u32 %v564, 16
    %v911 = vrot.slane %v909, 7
    %v912 = vshll.u32 %v564, 16
    %v914 = vor.u32 %v911, %v912
    %v915 = vrot.slane %v911, 4
    %v917 = vshrl.u32 %v565, 16
    %v919 = vrot.slane %v917, 7
    %v920 = vshll.u32 %v565, 16
    %v922 = vor.u32 %v919, %v920
    %v923 = vrot.slane %v919, 4
    %v925 = vshrl.u32 %v566, 16
    %v927 = vrot.slane %v925, 7
    %v928 = vshll.u32 %v566, 16
    %v930 = vor.u32 %v927, %v928
    %v931 = vrot.slane %v927, 4
    %v933 = vshrl.u32 %v567, 16
    %v935 = vrot.slane %v933, 7
    %v936 = vshll.u32 %v567, 16
    %v938 = vor.u32 %v935, %v936
    %v939 = vrot.slane %v935, 4
    %v941 = vshrl.u32 %v568, 16
    %v943 = vrot.slane %v941, 7
    %v944 = vshll.u32 %v568, 16
    %v946 = vor.u32 %v943, %v944
    %v947 = vrot.slane %v943, 4
    %v949 = vshrl.u32 %v569, 16
    %v951 = vrot.slane %v949, 7
    %v952 = vshll.u32 %v569, 16
    %v954 = vor.u32 %v951, %v952
    %v955 = vrot.slane %v951, 4
    %956 = vrot.lane.b32.xlu0 %v706, 124
    %v957 = vpop.permute.xlu0 %956
    %958 = vrot.lane.b32.xlu0 %v707, 124
    %v959 = vpop.permute.xlu0 %958
    %960 = vrot.lane.b32.xlu0 %v714, 124
    %v961 = vpop.permute.xlu0 %960
    %962 = vrot.lane.b32.xlu0 %v715, 124
    %v963 = vpop.permute.xlu0 %962
    %964 = vrot.lane.b32.xlu0 %v722, 124
    %v965 = vpop.permute.xlu0 %964
    %966 = vrot.lane.b32.xlu0 %v723, 124
    %v967 = vpop.permute.xlu0 %966
    %968 = vrot.lane.b32.xlu0 %v730, 124
    %v969 = vpop.permute.xlu0 %968
    %970 = vrot.lane.b32.xlu0 %v731, 124
    %v971 = vpop.permute.xlu0 %970
    %972 = vrot.lane.b32.xlu0 %v738, 124
    %v973 = vpop.permute.xlu0 %972
    %974 = vrot.lane.b32.xlu0 %v739, 124
    %v975 = vpop.permute.xlu0 %974
    %976 = vrot.lane.b32.xlu0 %v746, 124
    %v977 = vpop.permute.xlu0 %976
    %978 = vrot.lane.b32.xlu0 %v747, 124
    %v979 = vpop.permute.xlu0 %978
    %980 = vrot.lane.b32.xlu0 %v754, 124
    %v981 = vpop.permute.xlu0 %980
    %982 = vrot.lane.b32.xlu0 %v755, 124
    %v983 = vpop.permute.xlu0 %982
    %984 = vrot.lane.b32.xlu0 %v762, 124
    %v985 = vpop.permute.xlu0 %984
    %986 = vrot.lane.b32.xlu0 %v763, 124
    %v987 = vpop.permute.xlu0 %986
    %988 = vrot.lane.b32.xlu0 %v770, 124
    %v989 = vpop.permute.xlu0 %988
    %990 = vrot.lane.b32.xlu0 %v771, 124
    %v991 = vpop.permute.xlu0 %990
    %992 = vrot.lane.b32.xlu0 %v778, 124
    %v993 = vpop.permute.xlu0 %992
    %994 = vrot.lane.b32.xlu0 %v779, 124
    %v995 = vpop.permute.xlu0 %994
    %996 = vrot.lane.b32.xlu0 %v786, 124
    %v997 = vpop.permute.xlu0 %996
    %998 = vrot.lane.b32.xlu0 %v787, 124
    %v999 = vpop.permute.xlu0 %998
    %1000 = vrot.lane.b32.xlu0 %v794, 124
    %v1001 = vpop.permute.xlu0 %1000
    %1002 = vrot.lane.b32.xlu0 %v795, 124
    %v1003 = vpop.permute.xlu0 %1002
    %1004 = vrot.lane.b32.xlu0 %v802, 124
    %v1005 = vpop.permute.xlu0 %1004
    %1006 = vrot.lane.b32.xlu0 %v803, 124
    %v1007 = vpop.permute.xlu0 %1006
    %1008 = vrot.lane.b32.xlu0 %v810, 124
    %v1009 = vpop.permute.xlu0 %1008
    %1010 = vrot.lane.b32.xlu0 %v811, 124
    %v1011 = vpop.permute.xlu0 %1010
    %1012 = vrot.lane.b32.xlu0 %v818, 124
    %v1013 = vpop.permute.xlu0 %1012
    %1014 = vrot.lane.b32.xlu0 %v819, 124
    %v1015 = vpop.permute.xlu0 %1014
    %1016 = vrot.lane.b32.xlu0 %v826, 124
    %v1017 = vpop.permute.xlu0 %1016
    %1018 = vrot.lane.b32.xlu0 %v827, 124
    %v1019 = vpop.permute.xlu0 %1018
    %1020 = vrot.lane.b32.xlu0 %v834, 124
    %v1021 = vpop.permute.xlu0 %1020
    %1022 = vrot.lane.b32.xlu0 %v835, 124
    %v1023 = vpop.permute.xlu0 %1022
    %1024 = vrot.lane.b32.xlu0 %v842, 124
    %v1025 = vpop.permute.xlu0 %1024
    %1026 = vrot.lane.b32.xlu0 %v843, 124
    %v1027 = vpop.permute.xlu0 %1026
    %1028 = vrot.lane.b32.xlu0 %v850, 124
    %v1029 = vpop.permute.xlu0 %1028
    %1030 = vrot.lane.b32.xlu0 %v851, 124
    %v1031 = vpop.permute.xlu0 %1030
    %1032 = vrot.lane.b32.xlu0 %v858, 124
    %v1033 = vpop.permute.xlu0 %1032
    %1034 = vrot.lane.b32.xlu0 %v859, 124
    %v1035 = vpop.permute.xlu0 %1034
    %1036 = vrot.lane.b32.xlu0 %v866, 124
    %v1037 = vpop.permute.xlu0 %1036
    %1038 = vrot.lane.b32.xlu0 %v867, 124
    %v1039 = vpop.permute.xlu0 %1038
    %1040 = vrot.lane.b32.xlu0 %v874, 124
    %v1041 = vpop.permute.xlu0 %1040
    %1042 = vrot.lane.b32.xlu0 %v875, 124
    %v1043 = vpop.permute.xlu0 %1042
    %1044 = vrot.lane.b32.xlu0 %v882, 124
    %v1045 = vpop.permute.xlu0 %1044
    %1046 = vrot.lane.b32.xlu0 %v883, 124
    %v1047 = vpop.permute.xlu0 %1046
    %1048 = vrot.lane.b32.xlu0 %v890, 124
    %v1049 = vpop.permute.xlu0 %1048
    %1050 = vrot.lane.b32.xlu0 %v891, 124
    %v1051 = vpop.permute.xlu0 %1050
    %1052 = vrot.lane.b32.xlu0 %v898, 124
    %v1053 = vpop.permute.xlu0 %1052
    %1054 = vrot.lane.b32.xlu0 %v899, 124
    %v1055 = vpop.permute.xlu0 %1054
    %1056 = vrot.lane.b32.xlu0 %v906, 124
    %v1057 = vpop.permute.xlu0 %1056
    %1058 = vrot.lane.b32.xlu0 %v907, 124
    %v1059 = vpop.permute.xlu0 %1058
    %1060 = vrot.lane.b32.xlu0 %v914, 124
    %v1061 = vpop.permute.xlu0 %1060
    %1062 = vrot.lane.b32.xlu0 %v915, 124
    %v1063 = vpop.permute.xlu0 %1062
    %1064 = vrot.lane.b32.xlu0 %v922, 124
    %v1065 = vpop.permute.xlu0 %1064
    %1066 = vrot.lane.b32.xlu0 %v923, 124
    %v1067 = vpop.permute.xlu0 %1066
    %1068 = vrot.lane.b32.xlu0 %v930, 124
    %v1069 = vpop.permute.xlu0 %1068
    %1070 = vrot.lane.b32.xlu0 %v931, 124
    %v1071 = vpop.permute.xlu0 %1070
    %1072 = vrot.lane.b32.xlu0 %v938, 124
    %v1073 = vpop.permute.xlu0 %1072
    %1074 = vrot.lane.b32.xlu0 %v939, 124
    %v1075 = vpop.permute.xlu0 %1074
    %1076 = vrot.lane.b32.xlu0 %v946, 124
    %v1077 = vpop.permute.xlu0 %1076
    %1078 = vrot.lane.b32.xlu0 %v947, 124
    %v1079 = vpop.permute.xlu0 %1078
    %1080 = vrot.lane.b32.xlu0 %v954, 124
    %v1081 = vpop.permute.xlu0 %1080
    %1082 = vrot.lane.b32.xlu0 %v955, 124
    %v1083 = vpop.permute.xlu0 %1082
    %vm1148 = vcmask 27648
    %vm1149 = vsmask.f32 7938
    %vm1150 = vmand %vm1148, %vm1149
    %v1151 = vld [vmem:[%s666] sm:$0xf]
    %v1152 = vsel %vm1150, %v957, %v1151
    %1153 = vst [vmem:[%s666] sm:$0xf] %v1152
    %vm1154 = vcmask 24576
    %vm1155 = vmand %vm1154, %vm34
    %v1156 = vld [vmem:[%s666 + $0x4] sm:$0x1]
    %v1157 = vsel %vm1155, %v959, %v1156
    %1158 = vst [vmem:[%s666 + $0x4] sm:$0x1] %v1157
    %v1159 = vld [vmem:[%s666 + $0x8] sm:$0xf]
    %v1160 = vsel %vm1150, %v961, %v1159
    %1161 = vst [vmem:[%s666 + $0x8] sm:$0xf] %v1160
    %v1162 = vld [vmem:[%s666 + $0xc] sm:$0x1]
    %v1163 = vsel %vm1155, %v963, %v1162
    %1164 = vst [vmem:[%s666 + $0xc] sm:$0x1] %v1163
    %v1165 = vld [vmem:[%s666 + $0x10] sm:$0xf]
    %v1166 = vsel %vm1150, %v965, %v1165
    %1167 = vst [vmem:[%s666 + $0x10] sm:$0xf] %v1166
    %v1168 = vld [vmem:[%s666 + $0x14] sm:$0x1]
    %v1169 = vsel %vm1155, %v967, %v1168
    %1170 = vst [vmem:[%s666 + $0x14] sm:$0x1] %v1169
    %v1171 = vld [vmem:[%s666 + $0x18] sm:$0xf]
    %v1172 = vsel %vm1150, %v969, %v1171
    %1173 = vst [vmem:[%s666 + $0x18] sm:$0xf] %v1172
    %v1174 = vld [vmem:[%s666 + $0x1c] sm:$0x1]
    %v1175 = vsel %vm1155, %v971, %v1174
    %1176 = vst [vmem:[%s666 + $0x1c] sm:$0x1] %v1175
    %v1177 = vld [vmem:[%s666 + $0x20] sm:$0xf]
    %v1178 = vsel %vm1150, %v973, %v1177
    %1179 = vst [vmem:[%s666 + $0x20] sm:$0xf] %v1178
    %v1180 = vld [vmem:[%s666 + $0x24] sm:$0x1]
    %v1181 = vsel %vm1155, %v975, %v1180
    %1182 = vst [vmem:[%s666 + $0x24] sm:$0x1] %v1181
    %v1183 = vld [vmem:[%s666 + $0x28] sm:$0xf]
    %v1184 = vsel %vm1150, %v977, %v1183
    %1185 = vst [vmem:[%s666 + $0x28] sm:$0xf] %v1184
    %v1186 = vld [vmem:[%s666 + $0x2c] sm:$0x1]
    %v1187 = vsel %vm1155, %v979, %v1186
    %1188 = vst [vmem:[%s666 + $0x2c] sm:$0x1] %v1187
    %v1189 = vld [vmem:[%s666 + $0x30] sm:$0xf]
    %v1190 = vsel %vm1150, %v981, %v1189
    %1191 = vst [vmem:[%s666 + $0x30] sm:$0xf] %v1190
    %v1192 = vld [vmem:[%s666 + $0x34] sm:$0x1]
    %v1193 = vsel %vm1155, %v983, %v1192
    %1194 = vst [vmem:[%s666 + $0x34] sm:$0x1] %v1193
    %v1195 = vld [vmem:[%s666 + $0x38] sm:$0xf]
    %v1196 = vsel %vm1150, %v985, %v1195
    %1197 = vst [vmem:[%s666 + $0x38] sm:$0xf] %v1196
    %v1198 = vld [vmem:[%s666 + $0x3c] sm:$0x1]
    %v1199 = vsel %vm1155, %v987, %v1198
    %1200 = vst [vmem:[%s666 + $0x3c] sm:$0x1] %v1199
    %v1201 = vld [vmem:[%s666 + $0x40] sm:$0xf]
    %v1202 = vsel %vm1150, %v989, %v1201
    %1203 = vst [vmem:[%s666 + $0x40] sm:$0xf] %v1202
    %v1204 = vld [vmem:[%s666 + $0x44] sm:$0x1]
    %v1205 = vsel %vm1155, %v991, %v1204
    %1206 = vst [vmem:[%s666 + $0x44] sm:$0x1] %v1205
    %v1207 = vld [vmem:[%s666 + $0x48] sm:$0xf]
    %v1208 = vsel %vm1150, %v993, %v1207
    %1209 = vst [vmem:[%s666 + $0x48] sm:$0xf] %v1208
    %v1210 = vld [vmem:[%s666 + $0x4c] sm:$0x1]
    %v1211 = vsel %vm1155, %v995, %v1210
    %1212 = vst [vmem:[%s666 + $0x4c] sm:$0x1] %v1211
    %v1213 = vld [vmem:[%s666 + $0x50] sm:$0xf]
    %v1214 = vsel %vm1150, %v997, %v1213
    %1215 = vst [vmem:[%s666 + $0x50] sm:$0xf] %v1214
    %v1216 = vld [vmem:[%s666 + $0x54] sm:$0x1]
    %v1217 = vsel %vm1155, %v999, %v1216
    %1218 = vst [vmem:[%s666 + $0x54] sm:$0x1] %v1217
    %v1219 = vld [vmem:[%s666 + $0x58] sm:$0xf]
    %v1220 = vsel %vm1150, %v1001, %v1219
    %1221 = vst [vmem:[%s666 + $0x58] sm:$0xf] %v1220
    %v1222 = vld [vmem:[%s666 + $0x5c] sm:$0x1]
    %v1223 = vsel %vm1155, %v1003, %v1222
    %1224 = vst [vmem:[%s666 + $0x5c] sm:$0x1] %v1223
    %v1225 = vld [vmem:[%s666 + $0x60] sm:$0xf]
    %v1226 = vsel %vm1150, %v1005, %v1225
    %1227 = vst [vmem:[%s666 + $0x60] sm:$0xf] %v1226
    %v1228 = vld [vmem:[%s666 + $0x64] sm:$0x1]
    %v1229 = vsel %vm1155, %v1007, %v1228
    %1230 = vst [vmem:[%s666 + $0x64] sm:$0x1] %v1229
    %v1231 = vld [vmem:[%s666 + $0x68] sm:$0xf]
    %v1232 = vsel %vm1150, %v1009, %v1231
    %1233 = vst [vmem:[%s666 + $0x68] sm:$0xf] %v1232
    %v1234 = vld [vmem:[%s666 + $0x6c] sm:$0x1]
    %v1235 = vsel %vm1155, %v1011, %v1234
    %1236 = vst [vmem:[%s666 + $0x6c] sm:$0x1] %v1235
    %v1237 = vld [vmem:[%s666 + $0x70] sm:$0xf]
    %v1238 = vsel %vm1150, %v1013, %v1237
    %1239 = vst [vmem:[%s666 + $0x70] sm:$0xf] %v1238
    %v1240 = vld [vmem:[%s666 + $0x74] sm:$0x1]
    %v1241 = vsel %vm1155, %v1015, %v1240
    %1242 = vst [vmem:[%s666 + $0x74] sm:$0x1] %v1241
    %v1243 = vld [vmem:[%s666 + $0x78] sm:$0xf]
    %v1244 = vsel %vm1150, %v1017, %v1243
    %1245 = vst [vmem:[%s666 + $0x78] sm:$0xf] %v1244
    %v1246 = vld [vmem:[%s666 + $0x7c] sm:$0x1]
    %v1247 = vsel %vm1155, %v1019, %v1246
    %1248 = vst [vmem:[%s666 + $0x7c] sm:$0x1] %v1247
    %v1249 = vld [vmem:[%s666 + $0x90] sm:$0xf]
    %v1250 = vsel %vm1150, %v1021, %v1249
    %1251 = vst [vmem:[%s666 + $0x90] sm:$0xf] %v1250
    %v1252 = vld [vmem:[%s666 + $0x94] sm:$0x1]
    %v1253 = vsel %vm1155, %v1023, %v1252
    %1254 = vst [vmem:[%s666 + $0x94] sm:$0x1] %v1253
    %v1255 = vld [vmem:[%s666 + $0x98] sm:$0xf]
    %v1256 = vsel %vm1150, %v1025, %v1255
    %1257 = vst [vmem:[%s666 + $0x98] sm:$0xf] %v1256
    %v1258 = vld [vmem:[%s666 + $0x9c] sm:$0x1]
    %v1259 = vsel %vm1155, %v1027, %v1258
    %1260 = vst [vmem:[%s666 + $0x9c] sm:$0x1] %v1259
    %v1261 = vld [vmem:[%s666 + $0xa0] sm:$0xf]
    %v1262 = vsel %vm1150, %v1029, %v1261
    %1263 = vst [vmem:[%s666 + $0xa0] sm:$0xf] %v1262
    %v1264 = vld [vmem:[%s666 + $0xa4] sm:$0x1]
    %v1265 = vsel %vm1155, %v1031, %v1264
    %1266 = vst [vmem:[%s666 + $0xa4] sm:$0x1] %v1265
    %v1267 = vld [vmem:[%s666 + $0xa8] sm:$0xf]
    %v1268 = vsel %vm1150, %v1033, %v1267
    %1269 = vst [vmem:[%s666 + $0xa8] sm:$0xf] %v1268
    %v1270 = vld [vmem:[%s666 + $0xac] sm:$0x1]
    %v1271 = vsel %vm1155, %v1035, %v1270
    %1272 = vst [vmem:[%s666 + $0xac] sm:$0x1] %v1271
    %v1273 = vld [vmem:[%s666 + $0xb0] sm:$0xf]
    %v1274 = vsel %vm1150, %v1037, %v1273
    %1275 = vst [vmem:[%s666 + $0xb0] sm:$0xf] %v1274
    %v1276 = vld [vmem:[%s666 + $0xb4] sm:$0x1]
    %v1277 = vsel %vm1155, %v1039, %v1276
    %1278 = vst [vmem:[%s666 + $0xb4] sm:$0x1] %v1277
    %v1279 = vld [vmem:[%s666 + $0xb8] sm:$0xf]
    %v1280 = vsel %vm1150, %v1041, %v1279
    %1281 = vst [vmem:[%s666 + $0xb8] sm:$0xf] %v1280
    %v1282 = vld [vmem:[%s666 + $0xbc] sm:$0x1]
    %v1283 = vsel %vm1155, %v1043, %v1282
    %1284 = vst [vmem:[%s666 + $0xbc] sm:$0x1] %v1283
    %v1285 = vld [vmem:[%s666 + $0xc0] sm:$0xf]
    %v1286 = vsel %vm1150, %v1045, %v1285
    %1287 = vst [vmem:[%s666 + $0xc0] sm:$0xf] %v1286
    %v1288 = vld [vmem:[%s666 + $0xc4] sm:$0x1]
    %v1289 = vsel %vm1155, %v1047, %v1288
    %1290 = vst [vmem:[%s666 + $0xc4] sm:$0x1] %v1289
    %v1291 = vld [vmem:[%s666 + $0xc8] sm:$0xf]
    %v1292 = vsel %vm1150, %v1049, %v1291
    %1293 = vst [vmem:[%s666 + $0xc8] sm:$0xf] %v1292
    %v1294 = vld [vmem:[%s666 + $0xcc] sm:$0x1]
    %v1295 = vsel %vm1155, %v1051, %v1294
    %1296 = vst [vmem:[%s666 + $0xcc] sm:$0x1] %v1295
    %v1297 = vld [vmem:[%s666 + $0xd0] sm:$0xf]
    %v1298 = vsel %vm1150, %v1053, %v1297
    %1299 = vst [vmem:[%s666 + $0xd0] sm:$0xf] %v1298
    %v1300 = vld [vmem:[%s666 + $0xd4] sm:$0x1]
    %v1301 = vsel %vm1155, %v1055, %v1300
    %1302 = vst [vmem:[%s666 + $0xd4] sm:$0x1] %v1301
    %v1303 = vld [vmem:[%s666 + $0xd8] sm:$0xf]
    %v1304 = vsel %vm1150, %v1057, %v1303
    %1305 = vst [vmem:[%s666 + $0xd8] sm:$0xf] %v1304
    %v1306 = vld [vmem:[%s666 + $0xdc] sm:$0x1]
    %v1307 = vsel %vm1155, %v1059, %v1306
    %1308 = vst [vmem:[%s666 + $0xdc] sm:$0x1] %v1307
    %v1309 = vld [vmem:[%s666 + $0xe0] sm:$0xf]
    %v1310 = vsel %vm1150, %v1061, %v1309
    %1311 = vst [vmem:[%s666 + $0xe0] sm:$0xf] %v1310
    %v1312 = vld [vmem:[%s666 + $0xe4] sm:$0x1]
    %v1313 = vsel %vm1155, %v1063, %v1312
    %1314 = vst [vmem:[%s666 + $0xe4] sm:$0x1] %v1313
    %v1315 = vld [vmem:[%s666 + $0xe8] sm:$0xf]
    %v1316 = vsel %vm1150, %v1065, %v1315
    %1317 = vst [vmem:[%s666 + $0xe8] sm:$0xf] %v1316
    %v1318 = vld [vmem:[%s666 + $0xec] sm:$0x1]
    %v1319 = vsel %vm1155, %v1067, %v1318
    %1320 = vst [vmem:[%s666 + $0xec] sm:$0x1] %v1319
    %v1321 = vld [vmem:[%s666 + $0xf0] sm:$0xf]
    %v1322 = vsel %vm1150, %v1069, %v1321
    %1323 = vst [vmem:[%s666 + $0xf0] sm:$0xf] %v1322
    %v1324 = vld [vmem:[%s666 + $0xf4] sm:$0x1]
    %v1325 = vsel %vm1155, %v1071, %v1324
    %1326 = vst [vmem:[%s666 + $0xf4] sm:$0x1] %v1325
    %v1327 = vld [vmem:[%s666 + $0xf8] sm:$0xf]
    %v1328 = vsel %vm1150, %v1073, %v1327
    %1329 = vst [vmem:[%s666 + $0xf8] sm:$0xf] %v1328
    %v1330 = vld [vmem:[%s666 + $0xfc] sm:$0x1]
    %v1331 = vsel %vm1155, %v1075, %v1330
    %1332 = vst [vmem:[%s666 + $0xfc] sm:$0x1] %v1331
    %v1333 = vld [vmem:[%s666 + $0x100] sm:$0xf]
    %v1334 = vsel %vm1150, %v1077, %v1333
    %1335 = vst [vmem:[%s666 + $0x100] sm:$0xf] %v1334
    %v1336 = vld [vmem:[%s666 + $0x104] sm:$0x1]
    %v1337 = vsel %vm1155, %v1079, %v1336
    %1338 = vst [vmem:[%s666 + $0x104] sm:$0x1] %v1337
    %v1339 = vld [vmem:[%s666 + $0x108] sm:$0xf]
    %v1340 = vsel %vm1150, %v1081, %v1339
    %1341 = vst [vmem:[%s666 + $0x108] sm:$0xf] %v1340
    %v1342 = vld [vmem:[%s666 + $0x10c] sm:$0x1]
    %v1343 = vsel %vm1155, %v1083, %v1342
    %1344 = vst [vmem:[%s666 + $0x10c] sm:$0x1] %v1343
    %v1345 = vld [vmem:[#allocation2] sm:$0xf]
    %v1346 = vld [vmem:[#allocation2 + $0x10] sm:$0xf]
    %v1347 = vld [vmem:[#allocation2 + $0x20] sm:$0xf]
    %v1348 = vld [vmem:[#allocation2 + $0x30] sm:$0xf]
    %v1349 = vld [vmem:[#allocation2 + $0x40] sm:$0xf]
    %v1350 = vld [vmem:[#allocation2 + $0x50] sm:$0xf]
    %v1351 = vld [vmem:[#allocation2 + $0x60] sm:$0xf]
    %v1352 = vld [vmem:[#allocation2 + $0x70] sm:$0xf]
    %v1353 = vld [vmem:[#allocation2 + $0x90] sm:$0xf]
    %v1354 = vld [vmem:[#allocation2 + $0xa0] sm:$0xf]
    %v1355 = vld [vmem:[#allocation2 + $0xb0] sm:$0xf]
    %v1356 = vld [vmem:[#allocation2 + $0xc0] sm:$0xf]
    %v1357 = vld [vmem:[#allocation2 + $0xd0] sm:$0xf]
    %v1358 = vld [vmem:[#allocation2 + $0xe0] sm:$0xf]
    %v1359 = vld [vmem:[#allocation2 + $0xf0] sm:$0xf]
    %v1360 = vld [vmem:[#allocation2 + $0x100] sm:$0xf]
    %v1361 = vld [vmem:[%s3] sm:$0x3]
    %s1362 = scalar_lea.vmem %s3, 2
    %v1363 = vld [vmem:[%s1362] sm:$0x3]
    %v1380 = vunpack.c.l.b16 %v1345
    %v1381 = vunpack.c.l.b16 %v1346
    %v1382 = vunpack.c.l.b16 %v1347
    %v1383 = vunpack.c.l.b16 %v1348
    %v1384 = vunpack.c.l.b16 %v1349
    %v1385 = vunpack.c.l.b16 %v1350
    %v1386 = vunpack.c.l.b16 %v1351
    %v1387 = vunpack.c.l.b16 %v1352
    %v1388 = vunpack.c.l.b16 %v1353
    %v1389 = vunpack.c.l.b16 %v1354
    %v1390 = vunpack.c.l.b16 %v1355
    %v1391 = vunpack.c.l.b16 %v1356
    %v1392 = vunpack.c.l.b16 %v1357
    %v1393 = vunpack.c.l.b16 %v1358
    %v1394 = vunpack.c.l.b16 %v1359
    %v1395 = vunpack.c.l.b16 %v1360
    %v1396 = vpack.c.b16 %v1381, %v1380
    %v1397 = vpack.c.b16 %v1383, %v1382
    %v1398 = vpack.c.b16 %v1385, %v1384
    %v1399 = vpack.c.b16 %v1387, %v1386
    %v1400 = vpack.c.b16 %v1389, %v1388
    %v1401 = vpack.c.b16 %v1391, %v1390
    %v1402 = vpack.c.b16 %v1393, %v1392
    %v1403 = vpack.c.b16 %v1395, %v1394
    %1404 = vrot.lane.b32.xlu0 %v1396, 124
    %v1405 = vpop.permute.xlu0 %1404
    %1406 = vrot.lane.b32.xlu0 %v1397, 124
    %v1407 = vpop.permute.xlu0 %1406
    %1408 = vrot.lane.b32.xlu0 %v1398, 124
    %v1409 = vpop.permute.xlu0 %1408
    %1410 = vrot.lane.b32.xlu0 %v1399, 124
    %v1411 = vpop.permute.xlu0 %1410
    %1412 = vrot.lane.b32.xlu0 %v1400, 124
    %v1413 = vpop.permute.xlu0 %1412
    %1414 = vrot.lane.b32.xlu0 %v1401, 124
    %v1415 = vpop.permute.xlu0 %1414
    %1416 = vrot.lane.b32.xlu0 %v1402, 124
    %v1417 = vpop.permute.xlu0 %1416
    %1418 = vrot.lane.b32.xlu0 %v1403, 124
    %v1419 = vpop.permute.xlu0 %1418
    %vm1420 = vcmask 31744
    %v1422 = vsel %vm1420, %v1405, 0
    %v1425 = vsel %vm1420, %v1407, 0
    %v1428 = vsel %vm1420, %v1409, 0
    %v1431 = vsel %vm1420, %v1411, 0
    %v1434 = vsel %vm1420, %v1413, 0
    %v1437 = vsel %vm1420, %v1415, 0
    %v1440 = vsel %vm1420, %v1417, 0
    %v1443 = vsel %vm1420, %v1419, 0
    %vm1445 = vcmask 1041408
    %v1447 = vsel %vm1445, %v1363, 0
    %1449 = vmatprep.subr.bf16.mxu0 0
    %1450 = vmatpush1.bf16.msra.mxu0 %v1447
    %1451 = vmatprep.subr.bf16.mxu0 0
    %1452 = vmatpush1.bf16.msra.mxu0 0
    %1453 = vmatprep.subr.bf16.mxu0 0
    %1454 = vmatpush1.bf16.msra.mxu0 0
    %1455 = vmatprep.subr.bf16.mxu0 0
    %1456 = vmatpush1.bf16.msra.mxu0 0
    %1457 = vmatprep.subr.bf16.mxu0 0
    %1458 = vmatpush1.bf16.msra.mxu0 0
    %1459 = vmatprep.subr.bf16.mxu0 0
    %1460 = vmatpush1.bf16.msra.mxu0 0
    %1461 = vmatprep.subr.bf16.mxu0 0
    %1462 = vmatpush1.bf16.msra.mxu0 0
    %1463 = vmatprep.subr.bf16.mxu0 0
    %1464 = vmatpush1.bf16.msra.mxu0 0
    %1465 = vmatprep.subr.bf16.mxu0 0
    %1466 = vmatpush1.bf16.msra.mxu0 0
    %1467 = vmatprep.subr.bf16.mxu0 0
    %1468 = vmatpush1.bf16.msra.mxu0 0
    %1469 = vmatprep.subr.bf16.mxu0 0
    %1470 = vmatpush1.bf16.msra.mxu0 0
    %1471 = vmatprep.subr.bf16.mxu0 0
    %1472 = vmatpush1.bf16.msra.mxu0 0
    %1473 = vmatprep.subr.bf16.mxu0 0
    %1474 = vmatpush1.bf16.msra.mxu0 0
    %1475 = vmatprep.subr.bf16.mxu0 0
    %1476 = vmatpush1.bf16.msra.mxu0 0
    %1477 = vmatprep.subr.bf16.mxu0 0
    %1478 = vmatpush1.bf16.msra.mxu0 0
    %1479 = vmatprep.subr.bf16.mxu0 0
    %1480 = vmatpush1.bf16.msra.mxu0 0
    %1481 = vmatprep.mubr.bf16.mxu0 0
    %1482 = vmatmul.mubr.bf16.gmra.mrb[0].mxu0 %v1422
    %v1483 = vpop.f32.mrb[0].mxu0
    %v1484 = vadd.f32 0.0, %v1483
    %v1485 = vpop.f32.mrb[0].mxu0
    %v1486 = vpop.f32.mrb[0].mxu0
    %v1487 = vadd.f32 0.0, %v1486
    %v1488 = vpop.f32.mrb[0].mxu0
    %1489 = vmatprep.mubr.bf16.mxu0 0
    %1490 = vmatmul.mubr.bf16.gmra.mrb[0].mxu0 %v1425
    %v1491 = vpop.f32.mrb[0].mxu0
    %v1492 = vadd.f32 0.0, %v1491
    %v1493 = vpop.f32.mrb[0].mxu0
    %v1494 = vpop.f32.mrb[0].mxu0
    %v1495 = vadd.f32 0.0, %v1494
    %v1496 = vpop.f32.mrb[0].mxu0
    %1497 = vmatprep.mubr.bf16.mxu0 0
    %1498 = vmatmul.mubr.bf16.gmra.mrb[0].mxu0 %v1428
    %v1499 = vpop.f32.mrb[0].mxu0
    %v1500 = vadd.f32 0.0, %v1499
    %v1501 = vpop.f32.mrb[0].mxu0
    %v1502 = vpop.f32.mrb[0].mxu0
    %v1503 = vadd.f32 0.0, %v1502
    %v1504 = vpop.f32.mrb[0].mxu0
    %1505 = vmatprep.mubr.bf16.mxu0 0
    %1506 = vmatmul.mubr.bf16.gmra.mrb[0].mxu0 %v1431
    %v1507 = vpop.f32.mrb[0].mxu0
    %v1508 = vadd.f32 0.0, %v1507
    %v1509 = vpop.f32.mrb[0].mxu0
    %v1510 = vpop.f32.mrb[0].mxu0
    %v1511 = vadd.f32 0.0, %v1510
    %v1512 = vpop.f32.mrb[0].mxu0
    %1513 = vmatprep.mubr.bf16.mxu0 0
    %1514 = vmatmul.mubr.bf16.gmra.mrb[0].mxu0 %v1434
    %v1515 = vpop.f32.mrb[0].mxu0
    %v1516 = vadd.f32 0.0, %v1515
    %v1517 = vpop.f32.mrb[0].mxu0
    %v1518 = vpop.f32.mrb[0].mxu0
    %v1519 = vadd.f32 0.0, %v1518
    %v1520 = vpop.f32.mrb[0].mxu0
    %1521 = vmatprep.mubr.bf16.mxu0 0
    %1522 = vmatmul.mubr.bf16.gmra.mrb[0].mxu0 %v1437
    %v1523 = vpop.f32.mrb[0].mxu0
    %v1524 = vadd.f32 0.0, %v1523
    %v1525 = vpop.f32.mrb[0].mxu0
    %v1526 = vpop.f32.mrb[0].mxu0
    %v1527 = vadd.f32 0.0, %v1526
    %v1528 = vpop.f32.mrb[0].mxu0
    %1529 = vmatprep.mubr.bf16.mxu0 0
    %1530 = vmatmul.mubr.bf16.gmra.mrb[0].mxu0 %v1440
    %v1531 = vpop.f32.mrb[0].mxu0
    %v1532 = vadd.f32 0.0, %v1531
    %v1533 = vpop.f32.mrb[0].mxu0
    %v1534 = vpop.f32.mrb[0].mxu0
    %v1535 = vadd.f32 0.0, %v1534
    %v1536 = vpop.f32.mrb[0].mxu0
    %1537 = vmatprep.mubr.bf16.mxu0 0
    %1538 = vmatmul.mubr.bf16.gmra.mrb[0].mxu0 %v1443
    %v1539 = vpop.f32.mrb[0].mxu0
    %v1540 = vadd.f32 0.0, %v1539
    %v1541 = vpop.f32.mrb[0].mxu0
    %v1542 = vpop.f32.mrb[0].mxu0
    %v1543 = vadd.f32 0.0, %v1542
    %v1544 = vpop.f32.mrb[0].mxu0
    %1545 = vdwg.mxu0
    %v1547 = vsel %vm1420, %v1396, 0
    %v1550 = vsel %vm1420, %v1397, 0
    %v1553 = vsel %vm1420, %v1398, 0
    %v1556 = vsel %vm1420, %v1399, 0
    %v1559 = vsel %vm1420, %v1400, 0
    %v1562 = vsel %vm1420, %v1401, 0
    %v1565 = vsel %vm1420, %v1402, 0
    %v1568 = vsel %vm1420, %v1403, 0
    %v1571 = vsel %vm1445, %v1361, 0
    %1573 = vmatprep.subr.bf16.mxu0 0
    %1574 = vmatpush1.bf16.msra.mxu0 %v1571
    %1575 = vmatprep.subr.bf16.mxu0 0
    %1576 = vmatpush1.bf16.msra.mxu0 0
    %1577 = vmatprep.subr.bf16.mxu0 0
    %1578 = vmatpush1.bf16.msra.mxu0 0
    %1579 = vmatprep.subr.bf16.mxu0 0
    %1580 = vmatpush1.bf16.msra.mxu0 0
    %1581 = vmatprep.subr.bf16.mxu0 0
    %1582 = vmatpush1.bf16.msra.mxu0 0
    %1583 = vmatprep.subr.bf16.mxu0 0
    %1584 = vmatpush1.bf16.msra.mxu0 0
    %1585 = vmatprep.subr.bf16.mxu0 0
    %1586 = vmatpush1.bf16.msra.mxu0 0
    %1587 = vmatprep.subr.bf16.mxu0 0
    %1588 = vmatpush1.bf16.msra.mxu0 0
    %1589 = vmatprep.subr.bf16.mxu0 0
    %1590 = vmatpush1.bf16.msra.mxu0 0
    %1591 = vmatprep.subr.bf16.mxu0 0
    %1592 = vmatpush1.bf16.msra.mxu0 0
    %1593 = vmatprep.subr.bf16.mxu0 0
    %1594 = vmatpush1.bf16.msra.mxu0 0
    %1595 = vmatprep.subr.bf16.mxu0 0
    %1596 = vmatpush1.bf16.msra.mxu0 0
    %1597 = vmatprep.subr.bf16.mxu0 0
    %1598 = vmatpush1.bf16.msra.mxu0 0
    %1599 = vmatprep.subr.bf16.mxu0 0
    %1600 = vmatpush1.bf16.msra.mxu0 0
    %1601 = vmatprep.subr.bf16.mxu0 0
    %1602 = vmatpush1.bf16.msra.mxu0 0
    %1603 = vmatprep.subr.bf16.mxu0 0
    %1604 = vmatpush1.bf16.msra.mxu0 0
    %1605 = vmatprep.mubr.bf16.mxu0 0
    %1606 = vmatmul.mubr.bf16.gmra.mrb[0].mxu0 %v1547
    %v1607 = vpop.f32.mrb[0].mxu0
    %v1608 = vadd.f32 %v1484, %v1607
    %v1609 = vpop.f32.mrb[0].mxu0
    %v1610 = vpop.f32.mrb[0].mxu0
    %v1611 = vadd.f32 %v1487, %v1610
    %v1612 = vpop.f32.mrb[0].mxu0
    %1613 = vmatprep.mubr.bf16.mxu0 0
    %1614 = vmatmul.mubr.bf16.gmra.mrb[0].mxu0 %v1550
    %v1615 = vpop.f32.mrb[0].mxu0
    %v1616 = vadd.f32 %v1492, %v1615
    %v1617 = vpop.f32.mrb[0].mxu0
    %v1618 = vpop.f32.mrb[0].mxu0
    %v1619 = vadd.f32 %v1495, %v1618
    %v1620 = vpop.f32.mrb[0].mxu0
    %1621 = vmatprep.mubr.bf16.mxu0 0
    %1622 = vmatmul.mubr.bf16.gmra.mrb[0].mxu0 %v1553
    %v1623 = vpop.f32.mrb[0].mxu0
    %v1624 = vadd.f32 %v1500, %v1623
    %v1625 = vpop.f32.mrb[0].mxu0
    %v1626 = vpop.f32.mrb[0].mxu0
    %v1627 = vadd.f32 %v1503, %v1626
    %v1628 = vpop.f32.mrb[0].mxu0
    %1629 = vmatprep.mubr.bf16.mxu0 0
    %1630 = vmatmul.mubr.bf16.gmra.mrb[0].mxu0 %v1556
    %v1631 = vpop.f32.mrb[0].mxu0
    %v1632 = vadd.f32 %v1508, %v1631
    %v1633 = vpop.f32.mrb[0].mxu0
    %v1634 = vpop.f32.mrb[0].mxu0
    %v1635 = vadd.f32 %v1511, %v1634
    %v1636 = vpop.f32.mrb[0].mxu0
    %1637 = vmatprep.mubr.bf16.mxu0 0
    %1638 = vmatmul.mubr.bf16.gmra.mrb[0].mxu0 %v1559
    %v1639 = vpop.f32.mrb[0].mxu0
    %v1640 = vadd.f32 %v1516, %v1639
    %v1641 = vpop.f32.mrb[0].mxu0
    %v1642 = vpop.f32.mrb[0].mxu0
    %v1643 = vadd.f32 %v1519, %v1642
    %v1644 = vpop.f32.mrb[0].mxu0
    %1645 = vmatprep.mubr.bf16.mxu0 0
    %1646 = vmatmul.mubr.bf16.gmra.mrb[0].mxu0 %v1562
    %v1647 = vpop.f32.mrb[0].mxu0
    %v1648 = vadd.f32 %v1524, %v1647
    %v1649 = vpop.f32.mrb[0].mxu0
    %v1650 = vpop.f32.mrb[0].mxu0
    %v1651 = vadd.f32 %v1527, %v1650
    %v1652 = vpop.f32.mrb[0].mxu0
    %1653 = vmatprep.mubr.bf16.mxu0 0
    %1654 = vmatmul.mubr.bf16.gmra.mrb[0].mxu0 %v1565
    %v1655 = vpop.f32.mrb[0].mxu0
    %v1656 = vadd.f32 %v1532, %v1655
    %v1657 = vpop.f32.mrb[0].mxu0
    %v1658 = vpop.f32.mrb[0].mxu0
    %v1659 = vadd.f32 %v1535, %v1658
    %v1660 = vpop.f32.mrb[0].mxu0
    %1661 = vmatprep.mubr.bf16.mxu0 0
    %1662 = vmatmul.mubr.bf16.gmra.mrb[0].mxu0 %v1568
    %v1663 = vpop.f32.mrb[0].mxu0
    %v1664 = vadd.f32 %v1540, %v1663
    %v1665 = vpop.f32.mrb[0].mxu0
    %v1666 = vpop.f32.mrb[0].mxu0
    %v1667 = vadd.f32 %v1543, %v1666
    %v1668 = vpop.f32.mrb[0].mxu0
    %1669 = vdwg.mxu0
    %v1670 = vld [vmem:[#allocation2] sm:$0xf]
    %v1671 = vld [vmem:[#allocation2 + $0x4] sm:$0x1]
    %v1672 = vld [vmem:[#allocation2 + $0x10] sm:$0xf]
    %v1673 = vld [vmem:[#allocation2 + $0x14] sm:$0x1]
    %v1674 = vld [vmem:[#allocation2 + $0x20] sm:$0xf]
    %v1675 = vld [vmem:[#allocation2 + $0x24] sm:$0x1]
    %v1676 = vld [vmem:[#allocation2 + $0x30] sm:$0xf]
    %v1677 = vld [vmem:[#allocation2 + $0x34] sm:$0x1]
    %v1678 = vld [vmem:[#allocation2 + $0x40] sm:$0xf]
    %v1679 = vld [vmem:[#allocation2 + $0x44] sm:$0x1]
    %v1680 = vld [vmem:[#allocation2 + $0x50] sm:$0xf]
    %v1681 = vld [vmem:[#allocation2 + $0x54] sm:$0x1]
    %v1682 = vld [vmem:[#allocation2 + $0x60] sm:$0xf]
    %v1683 = vld [vmem:[#allocation2 + $0x64] sm:$0x1]
    %v1684 = vld [vmem:[#allocation2 + $0x70] sm:$0xf]
    %v1685 = vld [vmem:[#allocation2 + $0x74] sm:$0x1]
    %v1686 = vld [vmem:[#allocation2 + $0x90] sm:$0xf]
    %v1687 = vld [vmem:[#allocation2 + $0x94] sm:$0x1]
    %v1688 = vld [vmem:[#allocation2 + $0xa0] sm:$0xf]
    %v1689 = vld [vmem:[#allocation2 + $0xa4] sm:$0x1]
    %v1690 = vld [vmem:[#allocation2 + $0xb0] sm:$0xf]
    %v1691 = vld [vmem:[#allocation2 + $0xb4] sm:$0x1]
    %v1692 = vld [vmem:[#allocation2 + $0xc0] sm:$0xf]
    %v1693 = vld [vmem:[#allocation2 + $0xc4] sm:$0x1]
    %v1694 = vld [vmem:[#allocation2 + $0xd0] sm:$0xf]
    %v1695 = vld [vmem:[#allocation2 + $0xd4] sm:$0x1]
    %v1696 = vld [vmem:[#allocation2 + $0xe0] sm:$0xf]
    %v1697 = vld [vmem:[#allocation2 + $0xe4] sm:$0x1]
    %v1698 = vld [vmem:[#allocation2 + $0xf0] sm:$0xf]
    %v1699 = vld [vmem:[#allocation2 + $0xf4] sm:$0x1]
    %v1700 = vld [vmem:[#allocation2 + $0x100] sm:$0xf]
    %v1701 = vld [vmem:[#allocation2 + $0x104] sm:$0x1]
    %vm1702 = vsmask.f32 3328
    %vm1703 = vsmask.f32 7440
    %vm1704 = vmor %vm1702, %vm1703
    %v1706 = vshrl.u32 %v1670, 16
    %v1708 = vrot.slane %v1706, 4
    %v1709 = vshll.u32 %v1670, 16
    %v1711 = vrot.slane %v1709, 5
    %v1712 = vor.u32 %v1708, %v1711
    %v1713 = vrot.slane %v1712, 4
    %v1715 = vshll.u32 %v1671, 16
    %v1717 = vrot.slane %v1715, 5
    %v1718 = vsel %vm1704, %v1713, %v1717
    %v1720 = vshrl.u32 %v1672, 16
    %v1722 = vrot.slane %v1720, 4
    %v1723 = vshll.u32 %v1672, 16
    %v1725 = vrot.slane %v1723, 5
    %v1726 = vor.u32 %v1722, %v1725
    %v1727 = vrot.slane %v1726, 4
    %v1729 = vshll.u32 %v1673, 16
    %v1731 = vrot.slane %v1729, 5
    %v1732 = vsel %vm1704, %v1727, %v1731
    %v1734 = vshrl.u32 %v1674, 16
    %v1736 = vrot.slane %v1734, 4
    %v1737 = vshll.u32 %v1674, 16
    %v1739 = vrot.slane %v1737, 5
    %v1740 = vor.u32 %v1736, %v1739
    %v1741 = vrot.slane %v1740, 4
    %v1743 = vshll.u32 %v1675, 16
    %v1745 = vrot.slane %v1743, 5
    %v1746 = vsel %vm1704, %v1741, %v1745
    %v1748 = vshrl.u32 %v1676, 16
    %v1750 = vrot.slane %v1748, 4
    %v1751 = vshll.u32 %v1676, 16
    %v1753 = vrot.slane %v1751, 5
    %v1754 = vor.u32 %v1750, %v1753
    %v1755 = vrot.slane %v1754, 4
    %v1757 = vshll.u32 %v1677, 16
    %v1759 = vrot.slane %v1757, 5
    %v1760 = vsel %vm1704, %v1755, %v1759
    %v1762 = vshrl.u32 %v1678, 16
    %v1764 = vrot.slane %v1762, 4
    %v1765 = vshll.u32 %v1678, 16
    %v1767 = vrot.slane %v1765, 5
    %v1768 = vor.u32 %v1764, %v1767
    %v1769 = vrot.slane %v1768, 4
    %v1771 = vshll.u32 %v1679, 16
    %v1773 = vrot.slane %v1771, 5
    %v1774 = vsel %vm1704, %v1769, %v1773
    %v1776 = vshrl.u32 %v1680, 16
    %v1778 = vrot.slane %v1776, 4
    %v1779 = vshll.u32 %v1680, 16
    %v1781 = vrot.slane %v1779, 5
    %v1782 = vor.u32 %v1778, %v1781
    %v1783 = vrot.slane %v1782, 4
    %v1785 = vshll.u32 %v1681, 16
    %v1787 = vrot.slane %v1785, 5
    %v1788 = vsel %vm1704, %v1783, %v1787
    %v1790 = vshrl.u32 %v1682, 16
    %v1792 = vrot.slane %v1790, 4
    %v1793 = vshll.u32 %v1682, 16
    %v1795 = vrot.slane %v1793, 5
    %v1796 = vor.u32 %v1792, %v1795
    %v1797 = vrot.slane %v1796, 4
    %v1799 = vshll.u32 %v1683, 16
    %v1801 = vrot.slane %v1799, 5
    %v1802 = vsel %vm1704, %v1797, %v1801
    %v1804 = vshrl.u32 %v1684, 16
    %v1806 = vrot.slane %v1804, 4
    %v1807 = vshll.u32 %v1684, 16
    %v1809 = vrot.slane %v1807, 5
    %v1810 = vor.u32 %v1806, %v1809
    %v1811 = vrot.slane %v1810, 4
    %v1813 = vshll.u32 %v1685, 16
    %v1815 = vrot.slane %v1813, 5
    %v1816 = vsel %vm1704, %v1811, %v1815
    %v1818 = vshrl.u32 %v1686, 16
    %v1820 = vrot.slane %v1818, 4
    %v1821 = vshll.u32 %v1686, 16
    %v1823 = vrot.slane %v1821, 5
    %v1824 = vor.u32 %v1820, %v1823
    %v1825 = vrot.slane %v1824, 4
    %v1827 = vshll.u32 %v1687, 16
    %v1829 = vrot.slane %v1827, 5
    %v1830 = vsel %vm1704, %v1825, %v1829
    %v1832 = vshrl.u32 %v1688, 16
    %v1834 = vrot.slane %v1832, 4
    %v1835 = vshll.u32 %v1688, 16
    %v1837 = vrot.slane %v1835, 5
    %v1838 = vor.u32 %v1834, %v1837
    %v1839 = vrot.slane %v1838, 4
    %v1841 = vshll.u32 %v1689, 16
    %v1843 = vrot.slane %v1841, 5
    %v1844 = vsel %vm1704, %v1839, %v1843
    %v1846 = vshrl.u32 %v1690, 16
    %v1848 = vrot.slane %v1846, 4
    %v1849 = vshll.u32 %v1690, 16
    %v1851 = vrot.slane %v1849, 5
    %v1852 = vor.u32 %v1848, %v1851
    %v1853 = vrot.slane %v1852, 4
    %v1855 = vshll.u32 %v1691, 16
    %v1857 = vrot.slane %v1855, 5
    %v1858 = vsel %vm1704, %v1853, %v1857
    %v1860 = vshrl.u32 %v1692, 16
    %v1862 = vrot.slane %v1860, 4
    %v1863 = vshll.u32 %v1692, 16
    %v1865 = vrot.slane %v1863, 5
    %v1866 = vor.u32 %v1862, %v1865
    %v1867 = vrot.slane %v1866, 4
    %v1869 = vshll.u32 %v1693, 16
    %v1871 = vrot.slane %v1869, 5
    %v1872 = vsel %vm1704, %v1867, %v1871
    %v1874 = vshrl.u32 %v1694, 16
    %v1876 = vrot.slane %v1874, 4
    %v1877 = vshll.u32 %v1694, 16
    %v1879 = vrot.slane %v1877, 5
    %v1880 = vor.u32 %v1876, %v1879
    %v1881 = vrot.slane %v1880, 4
    %v1883 = vshll.u32 %v1695, 16
    %v1885 = vrot.slane %v1883, 5
    %v1886 = vsel %vm1704, %v1881, %v1885
    %v1888 = vshrl.u32 %v1696, 16
    %v1890 = vrot.slane %v1888, 4
    %v1891 = vshll.u32 %v1696, 16
    %v1893 = vrot.slane %v1891, 5
    %v1894 = vor.u32 %v1890, %v1893
    %v1895 = vrot.slane %v1894, 4
    %v1897 = vshll.u32 %v1697, 16
    %v1899 = vrot.slane %v1897, 5
    %v1900 = vsel %vm1704, %v1895, %v1899
    %v1902 = vshrl.u32 %v1698, 16
    %v1904 = vrot.slane %v1902, 4
    %v1905 = vshll.u32 %v1698, 16
    %v1907 = vrot.slane %v1905, 5
    %v1908 = vor.u32 %v1904, %v1907
    %v1909 = vrot.slane %v1908, 4
    %v1911 = vshll.u32 %v1699, 16
    %v1913 = vrot.slane %v1911, 5
    %v1914 = vsel %vm1704, %v1909, %v1913
    %v1916 = vshrl.u32 %v1700, 16
    %v1918 = vrot.slane %v1916, 4
    %v1919 = vshll.u32 %v1700, 16
    %v1921 = vrot.slane %v1919, 5
    %v1922 = vor.u32 %v1918, %v1921
    %v1923 = vrot.slane %v1922, 4
    %v1925 = vshll.u32 %v1701, 16
    %v1927 = vrot.slane %v1925, 5
    %v1928 = vsel %vm1704, %v1923, %v1927
    %s1929 = scalar_lea.vmem %s3, 4
    %v1930 = vld [vmem:[%s1929] sm:$0x3]
    %v1931 = vunpack.c.l.b16 %v1718
    %v1932 = vunpack.c.l.b16 %v1732
    %v1933 = vunpack.c.l.b16 %v1746
    %v1934 = vunpack.c.l.b16 %v1760
    %v1935 = vunpack.c.l.b16 %v1774
    %v1936 = vunpack.c.l.b16 %v1788
    %v1937 = vunpack.c.l.b16 %v1802
    %v1938 = vunpack.c.l.b16 %v1816
    %v1939 = vunpack.c.l.b16 %v1830
    %v1940 = vunpack.c.l.b16 %v1844
    %v1941 = vunpack.c.l.b16 %v1858
    %v1942 = vunpack.c.l.b16 %v1872
    %v1943 = vunpack.c.l.b16 %v1886
    %v1944 = vunpack.c.l.b16 %v1900
    %v1945 = vunpack.c.l.b16 %v1914
    %v1946 = vunpack.c.l.b16 %v1928
    %v1947 = vpack.c.b16 %v1932, %v1931
    %v1948 = vpack.c.b16 %v1934, %v1933
    %v1949 = vpack.c.b16 %v1936, %v1935
    %v1950 = vpack.c.b16 %v1938, %v1937
    %v1951 = vpack.c.b16 %v1940, %v1939
    %v1952 = vpack.c.b16 %v1942, %v1941
    %v1953 = vpack.c.b16 %v1944, %v1943
    %v1954 = vpack.c.b16 %v1946, %v1945
    %v1956 = vsel %vm1420, %v1947, 0
    %v1959 = vsel %vm1420, %v1948, 0
    %v1962 = vsel %vm1420, %v1949, 0
    %v1965 = vsel %vm1420, %v1950, 0
    %v1968 = vsel %vm1420, %v1951, 0
    %v1971 = vsel %vm1420, %v1952, 0
    %v1974 = vsel %vm1420, %v1953, 0
    %v1977 = vsel %vm1420, %v1954, 0
    %v1980 = vsel %vm1445, %v1930, 0
    %1982 = vmatprep.subr.bf16.mxu0 0
    %1983 = vmatpush1.bf16.msra.mxu0 %v1980
    %1984 = vmatprep.subr.bf16.mxu0 0
    %1985 = vmatpush1.bf16.msra.mxu0 0
    %1986 = vmatprep.subr.bf16.mxu0 0
    %1987 = vmatpush1.bf16.msra.mxu0 0
    %1988 = vmatprep.subr.bf16.mxu0 0
    %1989 = vmatpush1.bf16.msra.mxu0 0
    %1990 = vmatprep.subr.bf16.mxu0 0
    %1991 = vmatpush1.bf16.msra.mxu0 0
    %1992 = vmatprep.subr.bf16.mxu0 0
    %1993 = vmatpush1.bf16.msra.mxu0 0
    %1994 = vmatprep.subr.bf16.mxu0 0
    %1995 = vmatpush1.bf16.msra.mxu0 0
    %1996 = vmatprep.subr.bf16.mxu0 0
    %1997 = vmatpush1.bf16.msra.mxu0 0
    %1998 = vmatprep.subr.bf16.mxu0 0
    %1999 = vmatpush1.bf16.msra.mxu0 0
    %2000 = vmatprep.subr.bf16.mxu0 0
    %2001 = vmatpush1.bf16.msra.mxu0 0
    %2002 = vmatprep.subr.bf16.mxu0 0
    %2003 = vmatpush1.bf16.msra.mxu0 0
    %2004 = vmatprep.subr.bf16.mxu0 0
    %2005 = vmatpush1.bf16.msra.mxu0 0
    %2006 = vmatprep.subr.bf16.mxu0 0
    %2007 = vmatpush1.bf16.msra.mxu0 0
    %2008 = vmatprep.subr.bf16.mxu0 0
    %2009 = vmatpush1.bf16.msra.mxu0 0
    %2010 = vmatprep.subr.bf16.mxu0 0
    %2011 = vmatpush1.bf16.msra.mxu0 0
    %2012 = vmatprep.subr.bf16.mxu0 0
    %2013 = vmatpush1.bf16.msra.mxu0 0
    %2014 = vmatprep.mubr.bf16.mxu0 0
    %2015 = vmatmul.mubr.bf16.gmra.mrb[0].mxu0 %v1956
    %v2016 = vpop.f32.mrb[0].mxu0
    %v2017 = vadd.f32 0.0, %v2016
    %v2018 = vpop.f32.mrb[0].mxu0
    %v2019 = vpop.f32.mrb[0].mxu0
    %v2020 = vadd.f32 0.0, %v2019
    %v2021 = vpop.f32.mrb[0].mxu0
    %2022 = vmatprep.mubr.bf16.mxu0 0
    %2023 = vmatmul.mubr.bf16.gmra.mrb[0].mxu0 %v1959
    %v2024 = vpop.f32.mrb[0].mxu0
    %v2025 = vadd.f32 0.0, %v2024
    %v2026 = vpop.f32.mrb[0].mxu0
    %v2027 = vpop.f32.mrb[0].mxu0
    %v2028 = vadd.f32 0.0, %v2027
    %v2029 = vpop.f32.mrb[0].mxu0
    %2030 = vmatprep.mubr.bf16.mxu0 0
    %2031 = vmatmul.mubr.bf16.gmra.mrb[0].mxu0 %v1962
    %v2032 = vpop.f32.mrb[0].mxu0
    %v2033 = vadd.f32 0.0, %v2032
    %v2034 = vpop.f32.mrb[0].mxu0
    %v2035 = vpop.f32.mrb[0].mxu0
    %v2036 = vadd.f32 0.0, %v2035
    %v2037 = vpop.f32.mrb[0].mxu0
    %2038 = vmatprep.mubr.bf16.mxu0 0
    %2039 = vmatmul.mubr.bf16.gmra.mrb[0].mxu0 %v1965
    %v2040 = vpop.f32.mrb[0].mxu0
    %v2041 = vadd.f32 0.0, %v2040
    %v2042 = vpop.f32.mrb[0].mxu0
    %v2043 = vpop.f32.mrb[0].mxu0
    %v2044 = vadd.f32 0.0, %v2043
    %v2045 = vpop.f32.mrb[0].mxu0
    %2046 = vmatprep.mubr.bf16.mxu0 0
    %2047 = vmatmul.mubr.bf16.gmra.mrb[0].mxu0 %v1968
    %v2048 = vpop.f32.mrb[0].mxu0
    %v2049 = vadd.f32 0.0, %v2048
    %v2050 = vpop.f32.mrb[0].mxu0
    %v2051 = vpop.f32.mrb[0].mxu0
    %v2052 = vadd.f32 0.0, %v2051
    %v2053 = vpop.f32.mrb[0].mxu0
    %2054 = vmatprep.mubr.bf16.mxu0 0
    %2055 = vmatmul.mubr.bf16.gmra.mrb[0].mxu0 %v1971
    %v2056 = vpop.f32.mrb[0].mxu0
    %v2057 = vadd.f32 0.0, %v2056
    %v2058 = vpop.f32.mrb[0].mxu0
    %v2059 = vpop.f32.mrb[0].mxu0
    %v2060 = vadd.f32 0.0, %v2059
    %v2061 = vpop.f32.mrb[0].mxu0
    %2062 = vmatprep.mubr.bf16.mxu0 0
    %2063 = vmatmul.mubr.bf16.gmra.mrb[0].mxu0 %v1974
    %v2064 = vpop.f32.mrb[0].mxu0
    %v2065 = vadd.f32 0.0, %v2064
    %v2066 = vpop.f32.mrb[0].mxu0
    %v2067 = vpop.f32.mrb[0].mxu0
    %v2068 = vadd.f32 0.0, %v2067
    %v2069 = vpop.f32.mrb[0].mxu0
    %2070 = vmatprep.mubr.bf16.mxu0 0
    %2071 = vmatmul.mubr.bf16.gmra.mrb[0].mxu0 %v1977
    %v2072 = vpop.f32.mrb[0].mxu0
    %v2073 = vadd.f32 0.0, %v2072
    %v2074 = vpop.f32.mrb[0].mxu0
    %v2075 = vpop.f32.mrb[0].mxu0
    %v2076 = vadd.f32 0.0, %v2075
    %v2077 = vpop.f32.mrb[0].mxu0
    %2078 = vdwg.mxu0
    %v2079 = vadd.f32 %v1608, %v2017
    %v2080 = vadd.f32 %v1611, %v2020
    %v2081 = vadd.f32 %v1616, %v2025
    %v2082 = vadd.f32 %v1619, %v2028
    %v2083 = vadd.f32 %v1624, %v2033
    %v2084 = vadd.f32 %v1627, %v2036
    %v2085 = vadd.f32 %v1632, %v2041
    %v2086 = vadd.f32 %v1635, %v2044
    %v2087 = vadd.f32 %v1640, %v2049
    %v2088 = vadd.f32 %v1643, %v2052
    %v2089 = vadd.f32 %v1648, %v2057
    %v2090 = vadd.f32 %v1651, %v2060
    %v2091 = vadd.f32 %v1656, %v2065
    %v2092 = vadd.f32 %v1659, %v2068
    %v2093 = vadd.f32 %v1664, %v2073
    %v2094 = vadd.f32 %v1667, %v2076
    %v2095 = vld [vmem:[%s666] sm:$0xf]
    %v2096 = vld [vmem:[%s666 + $0x10] sm:$0xf]
    %v2097 = vld [vmem:[%s666 + $0x20] sm:$0xf]
    %v2098 = vld [vmem:[%s666 + $0x30] sm:$0xf]
    %v2099 = vld [vmem:[%s666 + $0x40] sm:$0xf]
    %v2100 = vld [vmem:[%s666 + $0x50] sm:$0xf]
    %v2101 = vld [vmem:[%s666 + $0x60] sm:$0xf]
    %v2102 = vld [vmem:[%s666 + $0x70] sm:$0xf]
    %v2103 = vld [vmem:[%s666 + $0x90] sm:$0xf]
    %v2104 = vld [vmem:[%s666 + $0xa0] sm:$0xf]
    %v2105 = vld [vmem:[%s666 + $0xb0] sm:$0xf]
    %v2106 = vld [vmem:[%s666 + $0xc0] sm:$0xf]
    %v2107 = vld [vmem:[%s666 + $0xd0] sm:$0xf]
    %v2108 = vld [vmem:[%s666 + $0xe0] sm:$0xf]
    %v2109 = vld [vmem:[%s666 + $0xf0] sm:$0xf]
    %v2110 = vld [vmem:[%s666 + $0x100] sm:$0xf]
    %s2111 = scalar_lea.vmem %s3, 6
    %v2112 = vld [vmem:[%s2111] sm:$0x3]
    %v2129 = vunpack.c.l.b16 %v2095
    %v2130 = vunpack.c.l.b16 %v2096
    %v2131 = vunpack.c.l.b16 %v2097
    %v2132 = vunpack.c.l.b16 %v2098
    %v2133 = vunpack.c.l.b16 %v2099
    %v2134 = vunpack.c.l.b16 %v2100
    %v2135 = vunpack.c.l.b16 %v2101
    %v2136 = vunpack.c.l.b16 %v2102
    %v2137 = vunpack.c.l.b16 %v2103
    %v2138 = vunpack.c.l.b16 %v2104
    %v2139 = vunpack.c.l.b16 %v2105
    %v2140 = vunpack.c.l.b16 %v2106
    %v2141 = vunpack.c.l.b16 %v2107
    %v2142 = vunpack.c.l.b16 %v2108
    %v2143 = vunpack.c.l.b16 %v2109
    %v2144 = vunpack.c.l.b16 %v2110
    %v2145 = vpack.c.b16 %v2130, %v2129
    %v2146 = vpack.c.b16 %v2132, %v2131
    %v2147 = vpack.c.b16 %v2134, %v2133
    %v2148 = vpack.c.b16 %v2136, %v2135
    %v2149 = vpack.c.b16 %v2138, %v2137
    %v2150 = vpack.c.b16 %v2140, %v2139
    %v2151 = vpack.c.b16 %v2142, %v2141
    %v2152 = vpack.c.b16 %v2144, %v2143
    %v2154 = vsel %vm1420, %v2145, 0
    %v2157 = vsel %vm1420, %v2146, 0
    %v2160 = vsel %vm1420, %v2147, 0
    %v2163 = vsel %vm1420, %v2148, 0
    %v2166 = vsel %vm1420, %v2149, 0
    %v2169 = vsel %vm1420, %v2150, 0
    %v2172 = vsel %vm1420, %v2151, 0
    %v2175 = vsel %vm1420, %v2152, 0
    %v2178 = vsel %vm1445, %v2112, 0
    %2180 = vmatprep.subr.bf16.mxu0 0
    %2181 = vmatpush1.bf16.msra.mxu0 %v2178
    %2182 = vmatprep.subr.bf16.mxu0 0
    %2183 = vmatpush1.bf16.msra.mxu0 0
    %2184 = vmatprep.subr.bf16.mxu0 0
    %2185 = vmatpush1.bf16.msra.mxu0 0
    %2186 = vmatprep.subr.bf16.mxu0 0
    %2187 = vmatpush1.bf16.msra.mxu0 0
    %2188 = vmatprep.subr.bf16.mxu0 0
    %2189 = vmatpush1.bf16.msra.mxu0 0
    %2190 = vmatprep.subr.bf16.mxu0 0
    %2191 = vmatpush1.bf16.msra.mxu0 0
    %2192 = vmatprep.subr.bf16.mxu0 0
    %2193 = vmatpush1.bf16.msra.mxu0 0
    %2194 = vmatprep.subr.bf16.mxu0 0
    %2195 = vmatpush1.bf16.msra.mxu0 0
    %2196 = vmatprep.subr.bf16.mxu0 0
    %2197 = vmatpush1.bf16.msra.mxu0 0
    %2198 = vmatprep.subr.bf16.mxu0 0
    %2199 = vmatpush1.bf16.msra.mxu0 0
    %2200 = vmatprep.subr.bf16.mxu0 0
    %2201 = vmatpush1.bf16.msra.mxu0 0
    %2202 = vmatprep.subr.bf16.mxu0 0
    %2203 = vmatpush1.bf16.msra.mxu0 0
    %2204 = vmatprep.subr.bf16.mxu0 0
    %2205 = vmatpush1.bf16.msra.mxu0 0
    %2206 = vmatprep.subr.bf16.mxu0 0
    %2207 = vmatpush1.bf16.msra.mxu0 0
    %2208 = vmatprep.subr.bf16.mxu0 0
    %2209 = vmatpush1.bf16.msra.mxu0 0
    %2210 = vmatprep.subr.bf16.mxu0 0
    %2211 = vmatpush1.bf16.msra.mxu0 0
    %2212 = vmatprep.mubr.bf16.mxu0 0
    %2213 = vmatmul.mubr.bf16.gmra.mrb[0].mxu0 %v2154
    %v2214 = vpop.f32.mrb[0].mxu0
    %v2215 = vadd.f32 0.0, %v2214
    %v2216 = vpop.f32.mrb[0].mxu0
    %v2217 = vpop.f32.mrb[0].mxu0
    %v2218 = vadd.f32 0.0, %v2217
    %v2219 = vpop.f32.mrb[0].mxu0
    %2220 = vmatprep.mubr.bf16.mxu0 0
    %2221 = vmatmul.mubr.bf16.gmra.mrb[0].mxu0 %v2157
    %v2222 = vpop.f32.mrb[0].mxu0
    %v2223 = vadd.f32 0.0, %v2222
    %v2224 = vpop.f32.mrb[0].mxu0
    %v2225 = vpop.f32.mrb[0].mxu0
    %v2226 = vadd.f32 0.0, %v2225
    %v2227 = vpop.f32.mrb[0].mxu0
    %2228 = vmatprep.mubr.bf16.mxu0 0
    %2229 = vmatmul.mubr.bf16.gmra.mrb[0].mxu0 %v2160
    %v2230 = vpop.f32.mrb[0].mxu0
    %v2231 = vadd.f32 0.0, %v2230
    %v2232 = vpop.f32.mrb[0].mxu0
    %v2233 = vpop.f32.mrb[0].mxu0
    %v2234 = vadd.f32 0.0, %v2233
    %v2235 = vpop.f32.mrb[0].mxu0
    %2236 = vmatprep.mubr.bf16.mxu0 0
    %2237 = vmatmul.mubr.bf16.gmra.mrb[0].mxu0 %v2163
    %v2238 = vpop.f32.mrb[0].mxu0
    %v2239 = vadd.f32 0.0, %v2238
    %v2240 = vpop.f32.mrb[0].mxu0
    %v2241 = vpop.f32.mrb[0].mxu0
    %v2242 = vadd.f32 0.0, %v2241
    %v2243 = vpop.f32.mrb[0].mxu0
    %2244 = vmatprep.mubr.bf16.mxu0 0
    %2245 = vmatmul.mubr.bf16.gmra.mrb[0].mxu0 %v2166
    %v2246 = vpop.f32.mrb[0].mxu0
    %v2247 = vadd.f32 0.0, %v2246
    %v2248 = vpop.f32.mrb[0].mxu0
    %v2249 = vpop.f32.mrb[0].mxu0
    %v2250 = vadd.f32 0.0, %v2249
    %v2251 = vpop.f32.mrb[0].mxu0
    %2252 = vmatprep.mubr.bf16.mxu0 0
    %2253 = vmatmul.mubr.bf16.gmra.mrb[0].mxu0 %v2169
    %v2254 = vpop.f32.mrb[0].mxu0
    %v2255 = vadd.f32 0.0, %v2254
    %v2256 = vpop.f32.mrb[0].mxu0
    %v2257 = vpop.f32.mrb[0].mxu0
    %v2258 = vadd.f32 0.0, %v2257
    %v2259 = vpop.f32.mrb[0].mxu0
    %2260 = vmatprep.mubr.bf16.mxu0 0
    %2261 = vmatmul.mubr.bf16.gmra.mrb[0].mxu0 %v2172
    %v2262 = vpop.f32.mrb[0].mxu0
    %v2263 = vadd.f32 0.0, %v2262
    %v2264 = vpop.f32.mrb[0].mxu0
    %v2265 = vpop.f32.mrb[0].mxu0
    %v2266 = vadd.f32 0.0, %v2265
    %v2267 = vpop.f32.mrb[0].mxu0
    %2268 = vmatprep.mubr.bf16.mxu0 0
    %2269 = vmatmul.mubr.bf16.gmra.mrb[0].mxu0 %v2175
    %v2270 = vpop.f32.mrb[0].mxu0
    %v2271 = vadd.f32 0.0, %v2270
    %v2272 = vpop.f32.mrb[0].mxu0
    %v2273 = vpop.f32.mrb[0].mxu0
    %v2274 = vadd.f32 0.0, %v2273
    %v2275 = vpop.f32.mrb[0].mxu0
    %2276 = vdwg.mxu0
    %v2277 = vadd.f32 %v2079, %v2215
    %v2278 = vadd.f32 %v2080, %v2218
    %v2279 = vadd.f32 %v2081, %v2223
    %v2280 = vadd.f32 %v2082, %v2226
    %v2281 = vadd.f32 %v2083, %v2231
    %v2282 = vadd.f32 %v2084, %v2234
    %v2283 = vadd.f32 %v2085, %v2239
    %v2284 = vadd.f32 %v2086, %v2242
    %v2285 = vadd.f32 %v2087, %v2247
    %v2286 = vadd.f32 %v2088, %v2250
    %v2287 = vadd.f32 %v2089, %v2255
    %v2288 = vadd.f32 %v2090, %v2258
    %v2289 = vadd.f32 %v2091, %v2263
    %v2290 = vadd.f32 %v2092, %v2266
    %v2291 = vadd.f32 %v2093, %v2271
    %v2292 = vadd.f32 %v2094, %v2274
    %s2293 = scalar_lea.vmem %s3, 8
    %v2294 = vld [vmem:[%s2293] sm:$0x3]
    %2295 = vrot.lane.b32.xlu0 %v2145, 124
    %v2296 = vpop.permute.xlu0 %2295
    %2297 = vrot.lane.b32.xlu0 %v2146, 124
    %v2298 = vpop.permute.xlu0 %2297
    %2299 = vrot.lane.b32.xlu0 %v2147, 124
    %v2300 = vpop.permute.xlu0 %2299
    %2301 = vrot.lane.b32.xlu0 %v2148, 124
    %v2302 = vpop.permute.xlu0 %2301
    %2303 = vrot.lane.b32.xlu0 %v2149, 124
    %v2304 = vpop.permute.xlu0 %2303
    %2305 = vrot.lane.b32.xlu0 %v2150, 124
    %v2306 = vpop.permute.xlu0 %2305
    %2307 = vrot.lane.b32.xlu0 %v2151, 124
    %v2308 = vpop.permute.xlu0 %2307
    %2309 = vrot.lane.b32.xlu0 %v2152, 124
    %v2310 = vpop.permute.xlu0 %2309
    %v2312 = vsel %vm1420, %v2296, 0
    %v2315 = vsel %vm1420, %v2298, 0
    %v2318 = vsel %vm1420, %v2300, 0
    %v2321 = vsel %vm1420, %v2302, 0
    %v2324 = vsel %vm1420, %v2304, 0
    %v2327 = vsel %vm1420, %v2306, 0
    %v2330 = vsel %vm1420, %v2308, 0
    %v2333 = vsel %vm1420, %v2310, 0
    %v2336 = vsel %vm1445, %v2294, 0
    %2338 = vmatprep.subr.bf16.mxu0 0
    %2339 = vmatpush1.bf16.msra.mxu0 %v2336
    %2340 = vmatprep.subr.bf16.mxu0 0
    %2341 = vmatpush1.bf16.msra.mxu0 0
    %2342 = vmatprep.subr.bf16.mxu0 0
    %2343 = vmatpush1.bf16.msra.mxu0 0
    %2344 = vmatprep.subr.bf16.mxu0 0
    %2345 = vmatpush1.bf16.msra.mxu0 0
    %2346 = vmatprep.subr.bf16.mxu0 0
    %2347 = vmatpush1.bf16.msra.mxu0 0
    %2348 = vmatprep.subr.bf16.mxu0 0
    %2349 = vmatpush1.bf16.msra.mxu0 0
    %2350 = vmatprep.subr.bf16.mxu0 0
    %2351 = vmatpush1.bf16.msra.mxu0 0
    %2352 = vmatprep.subr.bf16.mxu0 0
    %2353 = vmatpush1.bf16.msra.mxu0 0
    %2354 = vmatprep.subr.bf16.mxu0 0
    %2355 = vmatpush1.bf16.msra.mxu0 0
    %2356 = vmatprep.subr.bf16.mxu0 0
    %2357 = vmatpush1.bf16.msra.mxu0 0
    %2358 = vmatprep.subr.bf16.mxu0 0
    %2359 = vmatpush1.bf16.msra.mxu0 0
    %2360 = vmatprep.subr.bf16.mxu0 0
    %2361 = vmatpush1.bf16.msra.mxu0 0
    %2362 = vmatprep.subr.bf16.mxu0 0
    %2363 = vmatpush1.bf16.msra.mxu0 0
    %2364 = vmatprep.subr.bf16.mxu0 0
    %2365 = vmatpush1.bf16.msra.mxu0 0
    %2366 = vmatprep.subr.bf16.mxu0 0
    %2367 = vmatpush1.bf16.msra.mxu0 0
    %2368 = vmatprep.subr.bf16.mxu0 0
    %2369 = vmatpush1.bf16.msra.mxu0 0
    %2370 = vmatprep.mubr.bf16.mxu0 0
    %2371 = vmatmul.mubr.bf16.gmra.mrb[0].mxu0 %v2312
    %v2372 = vpop.f32.mrb[0].mxu0
    %v2373 = vadd.f32 0.0, %v2372
    %v2374 = vpop.f32.mrb[0].mxu0
    %v2375 = vpop.f32.mrb[0].mxu0
    %v2376 = vadd.f32 0.0, %v2375
    %v2377 = vpop.f32.mrb[0].mxu0
    %2378 = vmatprep.mubr.bf16.mxu0 0
    %2379 = vmatmul.mubr.bf16.gmra.mrb[0].mxu0 %v2315
    %v2380 = vpop.f32.mrb[0].mxu0
    %v2381 = vadd.f32 0.0, %v2380
    %v2382 = vpop.f32.mrb[0].mxu0
    %v2383 = vpop.f32.mrb[0].mxu0
    %v2384 = vadd.f32 0.0, %v2383
    %v2385 = vpop.f32.mrb[0].mxu0
    %2386 = vmatprep.mubr.bf16.mxu0 0
    %2387 = vmatmul.mubr.bf16.gmra.mrb[0].mxu0 %v2318
    %v2388 = vpop.f32.mrb[0].mxu0
    %v2389 = vadd.f32 0.0, %v2388
    %v2390 = vpop.f32.mrb[0].mxu0
    %v2391 = vpop.f32.mrb[0].mxu0
    %v2392 = vadd.f32 0.0, %v2391
    %v2393 = vpop.f32.mrb[0].mxu0
    %2394 = vmatprep.mubr.bf16.mxu0 0
    %2395 = vmatmul.mubr.bf16.gmra.mrb[0].mxu0 %v2321
    %v2396 = vpop.f32.mrb[0].mxu0
    %v2397 = vadd.f32 0.0, %v2396
    %v2398 = vpop.f32.mrb[0].mxu0
    %v2399 = vpop.f32.mrb[0].mxu0
    %v2400 = vadd.f32 0.0, %v2399
    %v2401 = vpop.f32.mrb[0].mxu0
    %2402 = vmatprep.mubr.bf16.mxu0 0
    %2403 = vmatmul.mubr.bf16.gmra.mrb[0].mxu0 %v2324
    %v2404 = vpop.f32.mrb[0].mxu0
    %v2405 = vadd.f32 0.0, %v2404
    %v2406 = vpop.f32.mrb[0].mxu0
    %v2407 = vpop.f32.mrb[0].mxu0
    %v2408 = vadd.f32 0.0, %v2407
    %v2409 = vpop.f32.mrb[0].mxu0
    %2410 = vmatprep.mubr.bf16.mxu0 0
    %2411 = vmatmul.mubr.bf16.gmra.mrb[0].mxu0 %v2327
    %v2412 = vpop.f32.mrb[0].mxu0
    %v2413 = vadd.f32 0.0, %v2412
    %v2414 = vpop.f32.mrb[0].mxu0
    %v2415 = vpop.f32.mrb[0].mxu0
    %v2416 = vadd.f32 0.0, %v2415
    %v2417 = vpop.f32.mrb[0].mxu0
    %2418 = vmatprep.mubr.bf16.mxu0 0
    %2419 = vmatmul.mubr.bf16.gmra.mrb[0].mxu0 %v2330
    %v2420 = vpop.f32.mrb[0].mxu0
    %v2421 = vadd.f32 0.0, %v2420
    %v2422 = vpop.f32.mrb[0].mxu0
    %v2423 = vpop.f32.mrb[0].mxu0
    %v2424 = vadd.f32 0.0, %v2423
    %v2425 = vpop.f32.mrb[0].mxu0
    %2426 = vmatprep.mubr.bf16.mxu0 0
    %2427 = vmatmul.mubr.bf16.gmra.mrb[0].mxu0 %v2333
    %v2428 = vpop.f32.mrb[0].mxu0
    %v2429 = vadd.f32 0.0, %v2428
    %v2430 = vpop.f32.mrb[0].mxu0
    %v2431 = vpop.f32.mrb[0].mxu0
    %v2432 = vadd.f32 0.0, %v2431
    %v2433 = vpop.f32.mrb[0].mxu0
    %2434 = vdwg.mxu0
    %v2435 = vadd.f32 %v2277, %v2373
    %v2436 = vadd.f32 %v2278, %v2376
    %v2437 = vadd.f32 %v2279, %v2381
    %v2438 = vadd.f32 %v2280, %v2384
    %v2439 = vadd.f32 %v2281, %v2389
    %v2440 = vadd.f32 %v2282, %v2392
    %v2441 = vadd.f32 %v2283, %v2397
    %v2442 = vadd.f32 %v2284, %v2400
    %v2443 = vadd.f32 %v2285, %v2405
    %v2444 = vadd.f32 %v2286, %v2408
    %v2445 = vadd.f32 %v2287, %v2413
    %v2446 = vadd.f32 %v2288, %v2416
    %v2447 = vadd.f32 %v2289, %v2421
    %v2448 = vadd.f32 %v2290, %v2424
    %v2449 = vadd.f32 %v2291, %v2429
    %v2450 = vadd.f32 %v2292, %v2432
    %v2451 = vld [vmem:[%s666] sm:$0xf]
    %v2452 = vld [vmem:[%s666 + $0x4] sm:$0x1]
    %v2453 = vld [vmem:[%s666 + $0x10] sm:$0xf]
    %v2454 = vld [vmem:[%s666 + $0x14] sm:$0x1]
    %v2455 = vld [vmem:[%s666 + $0x20] sm:$0xf]
    %v2456 = vld [vmem:[%s666 + $0x24] sm:$0x1]
    %v2457 = vld [vmem:[%s666 + $0x30] sm:$0xf]
    %v2458 = vld [vmem:[%s666 + $0x34] sm:$0x1]
    %v2459 = vld [vmem:[%s666 + $0x40] sm:$0xf]
    %v2460 = vld [vmem:[%s666 + $0x44] sm:$0x1]
    %v2461 = vld [vmem:[%s666 + $0x50] sm:$0xf]
    %v2462 = vld [vmem:[%s666 + $0x54] sm:$0x1]
    %v2463 = vld [vmem:[%s666 + $0x60] sm:$0xf]
    %v2464 = vld [vmem:[%s666 + $0x64] sm:$0x1]
    %v2465 = vld [vmem:[%s666 + $0x70] sm:$0xf]
    %v2466 = vld [vmem:[%s666 + $0x74] sm:$0x1]
    %v2467 = vld [vmem:[%s666 + $0x90] sm:$0xf]
    %v2468 = vld [vmem:[%s666 + $0x94] sm:$0x1]
    %v2469 = vld [vmem:[%s666 + $0xa0] sm:$0xf]
    %v2470 = vld [vmem:[%s666 + $0xa4] sm:$0x1]
    %v2471 = vld [vmem:[%s666 + $0xb0] sm:$0xf]
    %v2472 = vld [vmem:[%s666 + $0xb4] sm:$0x1]
    %v2473 = vld [vmem:[%s666 + $0xc0] sm:$0xf]
    %v2474 = vld [vmem:[%s666 + $0xc4] sm:$0x1]
    %v2475 = vld [vmem:[%s666 + $0xd0] sm:$0xf]
    %v2476 = vld [vmem:[%s666 + $0xd4] sm:$0x1]
    %v2477 = vld [vmem:[%s666 + $0xe0] sm:$0xf]
    %v2478 = vld [vmem:[%s666 + $0xe4] sm:$0x1]
    %v2479 = vld [vmem:[%s666 + $0xf0] sm:$0xf]
    %v2480 = vld [vmem:[%s666 + $0xf4] sm:$0x1]
    %v2481 = vld [vmem:[%s666 + $0x100] sm:$0xf]
    %v2482 = vld [vmem:[%s666 + $0x104] sm:$0x1]
    %v2484 = vshrl.u32 %v2451, 16
    %v2486 = vrot.slane %v2484, 4
    %v2487 = vshll.u32 %v2451, 16
    %v2489 = vrot.slane %v2487, 5
    %v2490 = vor.u32 %v2486, %v2489
    %v2491 = vrot.slane %v2490, 4
    %v2493 = vshll.u32 %v2452, 16
    %v2495 = vrot.slane %v2493, 5
    %v2496 = vsel %vm1704, %v2491, %v2495
    %v2498 = vshrl.u32 %v2453, 16
    %v2500 = vrot.slane %v2498, 4
    %v2501 = vshll.u32 %v2453, 16
    %v2503 = vrot.slane %v2501, 5
    %v2504 = vor.u32 %v2500, %v2503
    %v2505 = vrot.slane %v2504, 4
    %v2507 = vshll.u32 %v2454, 16
    %v2509 = vrot.slane %v2507, 5
    %v2510 = vsel %vm1704, %v2505, %v2509
    %v2512 = vshrl.u32 %v2455, 16
    %v2514 = vrot.slane %v2512, 4
    %v2515 = vshll.u32 %v2455, 16
    %v2517 = vrot.slane %v2515, 5
    %v2518 = vor.u32 %v2514, %v2517
    %v2519 = vrot.slane %v2518, 4
    %v2521 = vshll.u32 %v2456, 16
    %v2523 = vrot.slane %v2521, 5
    %v2524 = vsel %vm1704, %v2519, %v2523
    %v2526 = vshrl.u32 %v2457, 16
    %v2528 = vrot.slane %v2526, 4
    %v2529 = vshll.u32 %v2457, 16
    %v2531 = vrot.slane %v2529, 5
    %v2532 = vor.u32 %v2528, %v2531
    %v2533 = vrot.slane %v2532, 4
    %v2535 = vshll.u32 %v2458, 16
    %v2537 = vrot.slane %v2535, 5
    %v2538 = vsel %vm1704, %v2533, %v2537
    %v2540 = vshrl.u32 %v2459, 16
    %v2542 = vrot.slane %v2540, 4
    %v2543 = vshll.u32 %v2459, 16
    %v2545 = vrot.slane %v2543, 5
    %v2546 = vor.u32 %v2542, %v2545
    %v2547 = vrot.slane %v2546, 4
    %v2549 = vshll.u32 %v2460, 16
    %v2551 = vrot.slane %v2549, 5
    %v2552 = vsel %vm1704, %v2547, %v2551
    %v2554 = vshrl.u32 %v2461, 16
    %v2556 = vrot.slane %v2554, 4
    %v2557 = vshll.u32 %v2461, 16
    %v2559 = vrot.slane %v2557, 5
    %v2560 = vor.u32 %v2556, %v2559
    %v2561 = vrot.slane %v2560, 4
    %v2563 = vshll.u32 %v2462, 16
    %v2565 = vrot.slane %v2563, 5
    %v2566 = vsel %vm1704, %v2561, %v2565
    %v2568 = vshrl.u32 %v2463, 16
    %v2570 = vrot.slane %v2568, 4
    %v2571 = vshll.u32 %v2463, 16
    %v2573 = vrot.slane %v2571, 5
    %v2574 = vor.u32 %v2570, %v2573
    %v2575 = vrot.slane %v2574, 4
    %v2577 = vshll.u32 %v2464, 16
    %v2579 = vrot.slane %v2577, 5
    %v2580 = vsel %vm1704, %v2575, %v2579
    %v2582 = vshrl.u32 %v2465, 16
    %v2584 = vrot.slane %v2582, 4
    %v2585 = vshll.u32 %v2465, 16
    %v2587 = vrot.slane %v2585, 5
    %v2588 = vor.u32 %v2584, %v2587
    %v2589 = vrot.slane %v2588, 4
    %v2591 = vshll.u32 %v2466, 16
    %v2593 = vrot.slane %v2591, 5
    %v2594 = vsel %vm1704, %v2589, %v2593
    %v2596 = vshrl.u32 %v2467, 16
    %v2598 = vrot.slane %v2596, 4
    %v2599 = vshll.u32 %v2467, 16
    %v2601 = vrot.slane %v2599, 5
    %v2602 = vor.u32 %v2598, %v2601
    %v2603 = vrot.slane %v2602, 4
    %v2605 = vshll.u32 %v2468, 16
    %v2607 = vrot.slane %v2605, 5
    %v2608 = vsel %vm1704, %v2603, %v2607
    %v2610 = vshrl.u32 %v2469, 16
    %v2612 = vrot.slane %v2610, 4
    %v2613 = vshll.u32 %v2469, 16
    %v2615 = vrot.slane %v2613, 5
    %v2616 = vor.u32 %v2612, %v2615
    %v2617 = vrot.slane %v2616, 4
    %v2619 = vshll.u32 %v2470, 16
    %v2621 = vrot.slane %v2619, 5
    %v2622 = vsel %vm1704, %v2617, %v2621
    %v2624 = vshrl.u32 %v2471, 16
    %v2626 = vrot.slane %v2624, 4
    %v2627 = vshll.u32 %v2471, 16
    %v2629 = vrot.slane %v2627, 5
    %v2630 = vor.u32 %v2626, %v2629
    %v2631 = vrot.slane %v2630, 4
    %v2633 = vshll.u32 %v2472, 16
    %v2635 = vrot.slane %v2633, 5
    %v2636 = vsel %vm1704, %v2631, %v2635
    %v2638 = vshrl.u32 %v2473, 16
    %v2640 = vrot.slane %v2638, 4
    %v2641 = vshll.u32 %v2473, 16
    %v2643 = vrot.slane %v2641, 5
    %v2644 = vor.u32 %v2640, %v2643
    %v2645 = vrot.slane %v2644, 4
    %v2647 = vshll.u32 %v2474, 16
    %v2649 = vrot.slane %v2647, 5
    %v2650 = vsel %vm1704, %v2645, %v2649
    %v2652 = vshrl.u32 %v2475, 16
    %v2654 = vrot.slane %v2652, 4
    %v2655 = vshll.u32 %v2475, 16
    %v2657 = vrot.slane %v2655, 5
    %v2658 = vor.u32 %v2654, %v2657
    %v2659 = vrot.slane %v2658, 4
    %v2661 = vshll.u32 %v2476, 16
    %v2663 = vrot.slane %v2661, 5
    %v2664 = vsel %vm1704, %v2659, %v2663
    %v2666 = vshrl.u32 %v2477, 16
    %v2668 = vrot.slane %v2666, 4
    %v2669 = vshll.u32 %v2477, 16
    %v2671 = vrot.slane %v2669, 5
    %v2672 = vor.u32 %v2668, %v2671
    %v2673 = vrot.slane %v2672, 4
    %v2675 = vshll.u32 %v2478, 16
    %v2677 = vrot.slane %v2675, 5
    %v2678 = vsel %vm1704, %v2673, %v2677
    %v2680 = vshrl.u32 %v2479, 16
    %v2682 = vrot.slane %v2680, 4
    %v2683 = vshll.u32 %v2479, 16
    %v2685 = vrot.slane %v2683, 5
    %v2686 = vor.u32 %v2682, %v2685
    %v2687 = vrot.slane %v2686, 4
    %v2689 = vshll.u32 %v2480, 16
    %v2691 = vrot.slane %v2689, 5
    %v2692 = vsel %vm1704, %v2687, %v2691
    %v2694 = vshrl.u32 %v2481, 16
    %v2696 = vrot.slane %v2694, 4
    %v2697 = vshll.u32 %v2481, 16
    %v2699 = vrot.slane %v2697, 5
    %v2700 = vor.u32 %v2696, %v2699
    %v2701 = vrot.slane %v2700, 4
    %v2703 = vshll.u32 %v2482, 16
    %v2705 = vrot.slane %v2703, 5
    %v2706 = vsel %vm1704, %v2701, %v2705
    %s2707 = scalar_lea.vmem %s3, 10
    %v2708 = vld [vmem:[%s2707] sm:$0x3]
    %v2709 = vunpack.c.l.b16 %v2496
    %v2710 = vunpack.c.l.b16 %v2510
    %v2711 = vunpack.c.l.b16 %v2524
    %v2712 = vunpack.c.l.b16 %v2538
    %v2713 = vunpack.c.l.b16 %v2552
    %v2714 = vunpack.c.l.b16 %v2566
    %v2715 = vunpack.c.l.b16 %v2580
    %v2716 = vunpack.c.l.b16 %v2594
    %v2717 = vunpack.c.l.b16 %v2608
    %v2718 = vunpack.c.l.b16 %v2622
    %v2719 = vunpack.c.l.b16 %v2636
    %v2720 = vunpack.c.l.b16 %v2650
    %v2721 = vunpack.c.l.b16 %v2664
    %v2722 = vunpack.c.l.b16 %v2678
    %v2723 = vunpack.c.l.b16 %v2692
    %v2724 = vunpack.c.l.b16 %v2706
    %v2725 = vpack.c.b16 %v2710, %v2709
    %v2726 = vpack.c.b16 %v2712, %v2711
    %v2727 = vpack.c.b16 %v2714, %v2713
    %v2728 = vpack.c.b16 %v2716, %v2715
    %v2729 = vpack.c.b16 %v2718, %v2717
    %v2730 = vpack.c.b16 %v2720, %v2719
    %v2731 = vpack.c.b16 %v2722, %v2721
    %v2732 = vpack.c.b16 %v2724, %v2723
    %v2734 = vsel %vm1420, %v2725, 0
    %v2737 = vsel %vm1420, %v2726, 0
    %v2740 = vsel %vm1420, %v2727, 0
    %v2743 = vsel %vm1420, %v2728, 0
    %v2746 = vsel %vm1420, %v2729, 0
    %v2749 = vsel %vm1420, %v2730, 0
    %v2752 = vsel %vm1420, %v2731, 0
    %v2755 = vsel %vm1420, %v2732, 0
    %v2758 = vsel %vm1445, %v2708, 0
    %2760 = vmatprep.subr.bf16.mxu0 0
    %2761 = vmatpush1.bf16.msra.mxu0 %v2758
    %2762 = vmatprep.subr.bf16.mxu0 0
    %2763 = vmatpush1.bf16.msra.mxu0 0
    %2764 = vmatprep.subr.bf16.mxu0 0
    %2765 = vmatpush1.bf16.msra.mxu0 0
    %2766 = vmatprep.subr.bf16.mxu0 0
    %2767 = vmatpush1.bf16.msra.mxu0 0
    %2768 = vmatprep.subr.bf16.mxu0 0
    %2769 = vmatpush1.bf16.msra.mxu0 0
    %2770 = vmatprep.subr.bf16.mxu0 0
    %2771 = vmatpush1.bf16.msra.mxu0 0
    %2772 = vmatprep.subr.bf16.mxu0 0
    %2773 = vmatpush1.bf16.msra.mxu0 0
    %2774 = vmatprep.subr.bf16.mxu0 0
    %2775 = vmatpush1.bf16.msra.mxu0 0
    %2776 = vmatprep.subr.bf16.mxu0 0
    %2777 = vmatpush1.bf16.msra.mxu0 0
    %2778 = vmatprep.subr.bf16.mxu0 0
    %2779 = vmatpush1.bf16.msra.mxu0 0
    %2780 = vmatprep.subr.bf16.mxu0 0
    %2781 = vmatpush1.bf16.msra.mxu0 0
    %2782 = vmatprep.subr.bf16.mxu0 0
    %2783 = vmatpush1.bf16.msra.mxu0 0
    %2784 = vmatprep.subr.bf16.mxu0 0
    %2785 = vmatpush1.bf16.msra.mxu0 0
    %2786 = vmatprep.subr.bf16.mxu0 0
    %2787 = vmatpush1.bf16.msra.mxu0 0
    %2788 = vmatprep.subr.bf16.mxu0 0
    %2789 = vmatpush1.bf16.msra.mxu0 0
    %2790 = vmatprep.subr.bf16.mxu0 0
    %2791 = vmatpush1.bf16.msra.mxu0 0
    %2792 = vmatprep.mubr.bf16.mxu0 0
    %2793 = vmatmul.mubr.bf16.gmra.mrb[0].mxu0 %v2734
    %v2794 = vpop.f32.mrb[0].mxu0
    %v2795 = vadd.f32 0.0, %v2794
    %v2796 = vpop.f32.mrb[0].mxu0
    %v2797 = vpop.f32.mrb[0].mxu0
    %v2798 = vadd.f32 0.0, %v2797
    %v2799 = vpop.f32.mrb[0].mxu0
    %2800 = vmatprep.mubr.bf16.mxu0 0
    %2801 = vmatmul.mubr.bf16.gmra.mrb[0].mxu0 %v2737
    %v2802 = vpop.f32.mrb[0].mxu0
    %v2803 = vadd.f32 0.0, %v2802
    %v2804 = vpop.f32.mrb[0].mxu0
    %v2805 = vpop.f32.mrb[0].mxu0
    %v2806 = vadd.f32 0.0, %v2805
    %v2807 = vpop.f32.mrb[0].mxu0
    %2808 = vmatprep.mubr.bf16.mxu0 0
    %2809 = vmatmul.mubr.bf16.gmra.mrb[0].mxu0 %v2740
    %v2810 = vpop.f32.mrb[0].mxu0
    %v2811 = vadd.f32 0.0, %v2810
    %v2812 = vpop.f32.mrb[0].mxu0
    %v2813 = vpop.f32.mrb[0].mxu0
    %v2814 = vadd.f32 0.0, %v2813
    %v2815 = vpop.f32.mrb[0].mxu0
    %2816 = vmatprep.mubr.bf16.mxu0 0
    %2817 = vmatmul.mubr.bf16.gmra.mrb[0].mxu0 %v2743
    %v2818 = vpop.f32.mrb[0].mxu0
    %v2819 = vadd.f32 0.0, %v2818
    %v2820 = vpop.f32.mrb[0].mxu0
    %v2821 = vpop.f32.mrb[0].mxu0
    %v2822 = vadd.f32 0.0, %v2821
    %v2823 = vpop.f32.mrb[0].mxu0
    %2824 = vmatprep.mubr.bf16.mxu0 0
    %2825 = vmatmul.mubr.bf16.gmra.mrb[0].mxu0 %v2746
    %v2826 = vpop.f32.mrb[0].mxu0
    %v2827 = vadd.f32 0.0, %v2826
    %v2828 = vpop.f32.mrb[0].mxu0
    %v2829 = vpop.f32.mrb[0].mxu0
    %v2830 = vadd.f32 0.0, %v2829
    %v2831 = vpop.f32.mrb[0].mxu0
    %2832 = vmatprep.mubr.bf16.mxu0 0
    %2833 = vmatmul.mubr.bf16.gmra.mrb[0].mxu0 %v2749
    %v2834 = vpop.f32.mrb[0].mxu0
    %v2835 = vadd.f32 0.0, %v2834
    %v2836 = vpop.f32.mrb[0].mxu0
    %v2837 = vpop.f32.mrb[0].mxu0
    %v2838 = vadd.f32 0.0, %v2837
    %v2839 = vpop.f32.mrb[0].mxu0
    %2840 = vmatprep.mubr.bf16.mxu0 0
    %2841 = vmatmul.mubr.bf16.gmra.mrb[0].mxu0 %v2752
    %v2842 = vpop.f32.mrb[0].mxu0
    %v2843 = vadd.f32 0.0, %v2842
    %v2844 = vpop.f32.mrb[0].mxu0
    %v2845 = vpop.f32.mrb[0].mxu0
    %v2846 = vadd.f32 0.0, %v2845
    %v2847 = vpop.f32.mrb[0].mxu0
    %2848 = vmatprep.mubr.bf16.mxu0 0
    %2849 = vmatmul.mubr.bf16.gmra.mrb[0].mxu0 %v2755
    %v2850 = vpop.f32.mrb[0].mxu0
    %v2851 = vadd.f32 0.0, %v2850
    %v2852 = vpop.f32.mrb[0].mxu0
    %v2853 = vpop.f32.mrb[0].mxu0
    %v2854 = vadd.f32 0.0, %v2853
    %v2855 = vpop.f32.mrb[0].mxu0
    %2856 = vdwg.mxu0
    %v2857 = vadd.f32 %v2435, %v2795
    %v2858 = vadd.f32 %v2436, %v2798
    %v2859 = vadd.f32 %v2437, %v2803
    %v2860 = vadd.f32 %v2438, %v2806
    %v2861 = vadd.f32 %v2439, %v2811
    %v2862 = vadd.f32 %v2440, %v2814
    %v2863 = vadd.f32 %v2441, %v2819
    %v2864 = vadd.f32 %v2442, %v2822
    %v2865 = vadd.f32 %v2443, %v2827
    %v2866 = vadd.f32 %v2444, %v2830
    %v2867 = vadd.f32 %v2445, %v2835
    %v2868 = vadd.f32 %v2446, %v2838
    %v2869 = vadd.f32 %v2447, %v2843
    %v2870 = vadd.f32 %v2448, %v2846
    %v2871 = vadd.f32 %v2449, %v2851
    %v2872 = vadd.f32 %v2450, %v2854
    %s2873 = scalar_lea.vmem [#allocation2], 16
    %v2874 = vld [vmem:[%s2873] sm:$0xf]
    %v2875 = vld [vmem:[%s2873 + $0x10] sm:$0xf]
    %v2876 = vld [vmem:[%s2873 + $0x20] sm:$0xf]
    %v2877 = vld [vmem:[%s2873 + $0x30] sm:$0xf]
    %v2878 = vld [vmem:[%s2873 + $0x40] sm:$0xf]
    %v2879 = vld [vmem:[%s2873 + $0x50] sm:$0xf]
    %v2880 = vld [vmem:[%s2873 + $0x60] sm:$0xf]
    %v2881 = vld [vmem:[%s2873 + $0x70] sm:$0xf]
    %v2882 = vld [vmem:[%s2873 + $0x90] sm:$0xf]
    %v2883 = vld [vmem:[%s2873 + $0xa0] sm:$0xf]
    %v2884 = vld [vmem:[%s2873 + $0xb0] sm:$0xf]
    %v2885 = vld [vmem:[%s2873 + $0xc0] sm:$0xf]
    %v2886 = vld [vmem:[%s2873 + $0xd0] sm:$0xf]
    %v2887 = vld [vmem:[%s2873 + $0xe0] sm:$0xf]
    %v2888 = vld [vmem:[%s2873 + $0xf0] sm:$0xf]
    %v2889 = vld [vmem:[%s2873 + $0x100] sm:$0xf]
    %s2890 = scalar_lea.vmem %s3, 12
    %v2891 = vld [vmem:[%s2890] sm:$0x3]
    %v2908 = vunpack.c.l.b16 %v2874
    %v2909 = vunpack.c.l.b16 %v2875
    %v2910 = vunpack.c.l.b16 %v2876
    %v2911 = vunpack.c.l.b16 %v2877
    %v2912 = vunpack.c.l.b16 %v2878
    %v2913 = vunpack.c.l.b16 %v2879
    %v2914 = vunpack.c.l.b16 %v2880
    %v2915 = vunpack.c.l.b16 %v2881
    %v2916 = vunpack.c.l.b16 %v2882
    %v2917 = vunpack.c.l.b16 %v2883
    %v2918 = vunpack.c.l.b16 %v2884
    %v2919 = vunpack.c.l.b16 %v2885
    %v2920 = vunpack.c.l.b16 %v2886
    %v2921 = vunpack.c.l.b16 %v2887
    %v2922 = vunpack.c.l.b16 %v2888
    %v2923 = vunpack.c.l.b16 %v2889
    %v2924 = vpack.c.b16 %v2909, %v2908
    %v2925 = vpack.c.b16 %v2911, %v2910
    %v2926 = vpack.c.b16 %v2913, %v2912
    %v2927 = vpack.c.b16 %v2915, %v2914
    %v2928 = vpack.c.b16 %v2917, %v2916
    %v2929 = vpack.c.b16 %v2919, %v2918
    %v2930 = vpack.c.b16 %v2921, %v2920
    %v2931 = vpack.c.b16 %v2923, %v2922
    %v2933 = vsel %vm1420, %v2924, 0
    %v2936 = vsel %vm1420, %v2925, 0
    %v2939 = vsel %vm1420, %v2926, 0
    %v2942 = vsel %vm1420, %v2927, 0
    %v2945 = vsel %vm1420, %v2928, 0
    %v2948 = vsel %vm1420, %v2929, 0
    %v2951 = vsel %vm1420, %v2930, 0
    %v2954 = vsel %vm1420, %v2931, 0
    %v2957 = vsel %vm1445, %v2891, 0
    %2959 = vmatprep.subr.bf16.mxu0 0
    %2960 = vmatpush1.bf16.msra.mxu0 %v2957
    %2961 = vmatprep.subr.bf16.mxu0 0
    %2962 = vmatpush1.bf16.msra.mxu0 0
    %2963 = vmatprep.subr.bf16.mxu0 0
    %2964 = vmatpush1.bf16.msra.mxu0 0
    %2965 = vmatprep.subr.bf16.mxu0 0
    %2966 = vmatpush1.bf16.msra.mxu0 0
    %2967 = vmatprep.subr.bf16.mxu0 0
    %2968 = vmatpush1.bf16.msra.mxu0 0
    %2969 = vmatprep.subr.bf16.mxu0 0
    %2970 = vmatpush1.bf16.msra.mxu0 0
    %2971 = vmatprep.subr.bf16.mxu0 0
    %2972 = vmatpush1.bf16.msra.mxu0 0
    %2973 = vmatprep.subr.bf16.mxu0 0
    %2974 = vmatpush1.bf16.msra.mxu0 0
    %2975 = vmatprep.subr.bf16.mxu0 0
    %2976 = vmatpush1.bf16.msra.mxu0 0
    %2977 = vmatprep.subr.bf16.mxu0 0
    %2978 = vmatpush1.bf16.msra.mxu0 0
    %2979 = vmatprep.subr.bf16.mxu0 0
    %2980 = vmatpush1.bf16.msra.mxu0 0
    %2981 = vmatprep.subr.bf16.mxu0 0
    %2982 = vmatpush1.bf16.msra.mxu0 0
    %2983 = vmatprep.subr.bf16.mxu0 0
    %2984 = vmatpush1.bf16.msra.mxu0 0
    %2985 = vmatprep.subr.bf16.mxu0 0
    %2986 = vmatpush1.bf16.msra.mxu0 0
    %2987 = vmatprep.subr.bf16.mxu0 0
    %2988 = vmatpush1.bf16.msra.mxu0 0
    %2989 = vmatprep.subr.bf16.mxu0 0
    %2990 = vmatpush1.bf16.msra.mxu0 0
    %2991 = vmatprep.mubr.bf16.mxu0 0
    %2992 = vmatmul.mubr.bf16.gmra.mrb[0].mxu0 %v2933
    %v2993 = vpop.f32.mrb[0].mxu0
    %v2994 = vadd.f32 0.0, %v2993
    %v2995 = vpop.f32.mrb[0].mxu0
    %v2996 = vpop.f32.mrb[0].mxu0
    %v2997 = vadd.f32 0.0, %v2996
    %v2998 = vpop.f32.mrb[0].mxu0
    %2999 = vmatprep.mubr.bf16.mxu0 0
    %3000 = vmatmul.mubr.bf16.gmra.mrb[0].mxu0 %v2936
    %v3001 = vpop.f32.mrb[0].mxu0
    %v3002 = vadd.f32 0.0, %v3001
    %v3003 = vpop.f32.mrb[0].mxu0
    %v3004 = vpop.f32.mrb[0].mxu0
    %v3005 = vadd.f32 0.0, %v3004
    %v3006 = vpop.f32.mrb[0].mxu0
    %3007 = vmatprep.mubr.bf16.mxu0 0
    %3008 = vmatmul.mubr.bf16.gmra.mrb[0].mxu0 %v2939
    %v3009 = vpop.f32.mrb[0].mxu0
    %v3010 = vadd.f32 0.0, %v3009
    %v3011 = vpop.f32.mrb[0].mxu0
    %v3012 = vpop.f32.mrb[0].mxu0
    %v3013 = vadd.f32 0.0, %v3012
    %v3014 = vpop.f32.mrb[0].mxu0
    %3015 = vmatprep.mubr.bf16.mxu0 0
    %3016 = vmatmul.mubr.bf16.gmra.mrb[0].mxu0 %v2942
    %v3017 = vpop.f32.mrb[0].mxu0
    %v3018 = vadd.f32 0.0, %v3017
    %v3019 = vpop.f32.mrb[0].mxu0
    %v3020 = vpop.f32.mrb[0].mxu0
    %v3021 = vadd.f32 0.0, %v3020
    %v3022 = vpop.f32.mrb[0].mxu0
    %3023 = vmatprep.mubr.bf16.mxu0 0
    %3024 = vmatmul.mubr.bf16.gmra.mrb[0].mxu0 %v2945
    %v3025 = vpop.f32.mrb[0].mxu0
    %v3026 = vadd.f32 0.0, %v3025
    %v3027 = vpop.f32.mrb[0].mxu0
    %v3028 = vpop.f32.mrb[0].mxu0
    %v3029 = vadd.f32 0.0, %v3028
    %v3030 = vpop.f32.mrb[0].mxu0
    %3031 = vmatprep.mubr.bf16.mxu0 0
    %3032 = vmatmul.mubr.bf16.gmra.mrb[0].mxu0 %v2948
    %v3033 = vpop.f32.mrb[0].mxu0
    %v3034 = vadd.f32 0.0, %v3033
    %v3035 = vpop.f32.mrb[0].mxu0
    %v3036 = vpop.f32.mrb[0].mxu0
    %v3037 = vadd.f32 0.0, %v3036
    %v3038 = vpop.f32.mrb[0].mxu0
    %3039 = vmatprep.mubr.bf16.mxu0 0
    %3040 = vmatmul.mubr.bf16.gmra.mrb[0].mxu0 %v2951
    %v3041 = vpop.f32.mrb[0].mxu0
    %v3042 = vadd.f32 0.0, %v3041
    %v3043 = vpop.f32.mrb[0].mxu0
    %v3044 = vpop.f32.mrb[0].mxu0
    %v3045 = vadd.f32 0.0, %v3044
    %v3046 = vpop.f32.mrb[0].mxu0
    %3047 = vmatprep.mubr.bf16.mxu0 0
    %3048 = vmatmul.mubr.bf16.gmra.mrb[0].mxu0 %v2954
    %v3049 = vpop.f32.mrb[0].mxu0
    %v3050 = vadd.f32 0.0, %v3049
    %v3051 = vpop.f32.mrb[0].mxu0
    %v3052 = vpop.f32.mrb[0].mxu0
    %v3053 = vadd.f32 0.0, %v3052
    %v3054 = vpop.f32.mrb[0].mxu0
    %3055 = vdwg.mxu0
    %v3056 = vadd.f32 %v2857, %v2994
    %v3057 = vadd.f32 %v2858, %v2997
    %v3058 = vadd.f32 %v2859, %v3002
    %v3059 = vadd.f32 %v2860, %v3005
    %v3060 = vadd.f32 %v2861, %v3010
    %v3061 = vadd.f32 %v2862, %v3013
    %v3062 = vadd.f32 %v2863, %v3018
    %v3063 = vadd.f32 %v2864, %v3021
    %v3064 = vadd.f32 %v2865, %v3026
    %v3065 = vadd.f32 %v2866, %v3029
    %v3066 = vadd.f32 %v2867, %v3034
    %v3067 = vadd.f32 %v2868, %v3037
    %v3068 = vadd.f32 %v2869, %v3042
    %v3069 = vadd.f32 %v2870, %v3045
    %v3070 = vadd.f32 %v2871, %v3050
    %v3071 = vadd.f32 %v2872, %v3053
    %s3072 = scalar_lea.vmem %s3, 14
    %v3073 = vld [vmem:[%s3072] sm:$0x3]
    %3074 = vrot.lane.b32.xlu0 %v2924, 124
    %v3075 = vpop.permute.xlu0 %3074
    %3076 = vrot.lane.b32.xlu0 %v2925, 124
    %v3077 = vpop.permute.xlu0 %3076
    %3078 = vrot.lane.b32.xlu0 %v2926, 124
    %v3079 = vpop.permute.xlu0 %3078
    %3080 = vrot.lane.b32.xlu0 %v2927, 124
    %v3081 = vpop.permute.xlu0 %3080
    %3082 = vrot.lane.b32.xlu0 %v2928, 124
    %v3083 = vpop.permute.xlu0 %3082
    %3084 = vrot.lane.b32.xlu0 %v2929, 124
    %v3085 = vpop.permute.xlu0 %3084
    %3086 = vrot.lane.b32.xlu0 %v2930, 124
    %v3087 = vpop.permute.xlu0 %3086
    %3088 = vrot.lane.b32.xlu0 %v2931, 124
    %v3089 = vpop.permute.xlu0 %3088
    %v3091 = vsel %vm1420, %v3075, 0
    %v3094 = vsel %vm1420, %v3077, 0
    %v3097 = vsel %vm1420, %v3079, 0
    %v3100 = vsel %vm1420, %v3081, 0
    %v3103 = vsel %vm1420, %v3083, 0
    %v3106 = vsel %vm1420, %v3085, 0
    %v3109 = vsel %vm1420, %v3087, 0
    %v3112 = vsel %vm1420, %v3089, 0
    %v3115 = vsel %vm1445, %v3073, 0
    %3117 = vmatprep.subr.bf16.mxu0 0
    %3118 = vmatpush1.bf16.msra.mxu0 %v3115
    %3119 = vmatprep.subr.bf16.mxu0 0
    %3120 = vmatpush1.bf16.msra.mxu0 0
    %3121 = vmatprep.subr.bf16.mxu0 0
    %3122 = vmatpush1.bf16.msra.mxu0 0
    %3123 = vmatprep.subr.bf16.mxu0 0
    %3124 = vmatpush1.bf16.msra.mxu0 0
    %3125 = vmatprep.subr.bf16.mxu0 0
    %3126 = vmatpush1.bf16.msra.mxu0 0
    %3127 = vmatprep.subr.bf16.mxu0 0
    %3128 = vmatpush1.bf16.msra.mxu0 0
    %3129 = vmatprep.subr.bf16.mxu0 0
    %3130 = vmatpush1.bf16.msra.mxu0 0
    %3131 = vmatprep.subr.bf16.mxu0 0
    %3132 = vmatpush1.bf16.msra.mxu0 0
    %3133 = vmatprep.subr.bf16.mxu0 0
    %3134 = vmatpush1.bf16.msra.mxu0 0
    %3135 = vmatprep.subr.bf16.mxu0 0
    %3136 = vmatpush1.bf16.msra.mxu0 0
    %3137 = vmatprep.subr.bf16.mxu0 0
    %3138 = vmatpush1.bf16.msra.mxu0 0
    %3139 = vmatprep.subr.bf16.mxu0 0
    %3140 = vmatpush1.bf16.msra.mxu0 0
    %3141 = vmatprep.subr.bf16.mxu0 0
    %3142 = vmatpush1.bf16.msra.mxu0 0
    %3143 = vmatprep.subr.bf16.mxu0 0
    %3144 = vmatpush1.bf16.msra.mxu0 0
    %3145 = vmatprep.subr.bf16.mxu0 0
    %3146 = vmatpush1.bf16.msra.mxu0 0
    %3147 = vmatprep.subr.bf16.mxu0 0
    %3148 = vmatpush1.bf16.msra.mxu0 0
    %3149 = vmatprep.mubr.bf16.mxu0 0
    %3150 = vmatmul.mubr.bf16.gmra.mrb[0].mxu0 %v3091
    %v3151 = vpop.f32.mrb[0].mxu0
    %v3152 = vadd.f32 0.0, %v3151
    %v3153 = vpop.f32.mrb[0].mxu0
    %v3154 = vpop.f32.mrb[0].mxu0
    %v3155 = vadd.f32 0.0, %v3154
    %v3156 = vpop.f32.mrb[0].mxu0
    %3157 = vmatprep.mubr.bf16.mxu0 0
    %3158 = vmatmul.mubr.bf16.gmra.mrb[0].mxu0 %v3094
    %v3159 = vpop.f32.mrb[0].mxu0
    %v3160 = vadd.f32 0.0, %v3159
    %v3161 = vpop.f32.mrb[0].mxu0
    %v3162 = vpop.f32.mrb[0].mxu0
    %v3163 = vadd.f32 0.0, %v3162
    %v3164 = vpop.f32.mrb[0].mxu0
    %3165 = vmatprep.mubr.bf16.mxu0 0
    %3166 = vmatmul.mubr.bf16.gmra.mrb[0].mxu0 %v3097
    %v3167 = vpop.f32.mrb[0].mxu0
    %v3168 = vadd.f32 0.0, %v3167
    %v3169 = vpop.f32.mrb[0].mxu0
    %v3170 = vpop.f32.mrb[0].mxu0
    %v3171 = vadd.f32 0.0, %v3170
    %v3172 = vpop.f32.mrb[0].mxu0
    %3173 = vmatprep.mubr.bf16.mxu0 0
    %3174 = vmatmul.mubr.bf16.gmra.mrb[0].mxu0 %v3100
    %v3175 = vpop.f32.mrb[0].mxu0
    %v3176 = vadd.f32 0.0, %v3175
    %v3177 = vpop.f32.mrb[0].mxu0
    %v3178 = vpop.f32.mrb[0].mxu0
    %v3179 = vadd.f32 0.0, %v3178
    %v3180 = vpop.f32.mrb[0].mxu0
    %3181 = vmatprep.mubr.bf16.mxu0 0
    %3182 = vmatmul.mubr.bf16.gmra.mrb[0].mxu0 %v3103
    %v3183 = vpop.f32.mrb[0].mxu0
    %v3184 = vadd.f32 0.0, %v3183
    %v3185 = vpop.f32.mrb[0].mxu0
    %v3186 = vpop.f32.mrb[0].mxu0
    %v3187 = vadd.f32 0.0, %v3186
    %v3188 = vpop.f32.mrb[0].mxu0
    %3189 = vmatprep.mubr.bf16.mxu0 0
    %3190 = vmatmul.mubr.bf16.gmra.mrb[0].mxu0 %v3106
    %v3191 = vpop.f32.mrb[0].mxu0
    %v3192 = vadd.f32 0.0, %v3191
    %v3193 = vpop.f32.mrb[0].mxu0
    %v3194 = vpop.f32.mrb[0].mxu0
    %v3195 = vadd.f32 0.0, %v3194
    %v3196 = vpop.f32.mrb[0].mxu0
    %3197 = vmatprep.mubr.bf16.mxu0 0
    %3198 = vmatmul.mubr.bf16.gmra.mrb[0].mxu0 %v3109
    %v3199 = vpop.f32.mrb[0].mxu0
    %v3200 = vadd.f32 0.0, %v3199
    %v3201 = vpop.f32.mrb[0].mxu0
    %v3202 = vpop.f32.mrb[0].mxu0
    %v3203 = vadd.f32 0.0, %v3202
    %v3204 = vpop.f32.mrb[0].mxu0
    %3205 = vmatprep.mubr.bf16.mxu0 0
    %3206 = vmatmul.mubr.bf16.gmra.mrb[0].mxu0 %v3112
    %v3207 = vpop.f32.mrb[0].mxu0
    %v3208 = vadd.f32 0.0, %v3207
    %v3209 = vpop.f32.mrb[0].mxu0
    %v3210 = vpop.f32.mrb[0].mxu0
    %v3211 = vadd.f32 0.0, %v3210
    %v3212 = vpop.f32.mrb[0].mxu0
    %3213 = vdwg.mxu0
    %v3214 = vadd.f32 %v3056, %v3152
    %v3215 = vadd.f32 %v3057, %v3155
    %v3216 = vadd.f32 %v3058, %v3160
    %v3217 = vadd.f32 %v3059, %v3163
    %v3218 = vadd.f32 %v3060, %v3168
    %v3219 = vadd.f32 %v3061, %v3171
    %v3220 = vadd.f32 %v3062, %v3176
    %v3221 = vadd.f32 %v3063, %v3179
    %v3222 = vadd.f32 %v3064, %v3184
    %v3223 = vadd.f32 %v3065, %v3187
    %v3224 = vadd.f32 %v3066, %v3192
    %v3225 = vadd.f32 %v3067, %v3195
    %v3226 = vadd.f32 %v3068, %v3200
    %v3227 = vadd.f32 %v3069, %v3203
    %v3228 = vadd.f32 %v3070, %v3208
    %v3229 = vadd.f32 %v3071, %v3211
    %v3230 = vld [vmem:[%s2873] sm:$0xf]
    %v3231 = vld [vmem:[%s2873 + $0x4] sm:$0x1]
    %v3232 = vld [vmem:[%s2873 + $0x10] sm:$0xf]
    %v3233 = vld [vmem:[%s2873 + $0x14] sm:$0x1]
    %v3234 = vld [vmem:[%s2873 + $0x20] sm:$0xf]
    %v3235 = vld [vmem:[%s2873 + $0x24] sm:$0x1]
    %v3236 = vld [vmem:[%s2873 + $0x30] sm:$0xf]
    %v3237 = vld [vmem:[%s2873 + $0x34] sm:$0x1]
    %v3238 = vld [vmem:[%s2873 + $0x40] sm:$0xf]
    %v3239 = vld [vmem:[%s2873 + $0x44] sm:$0x1]
    %v3240 = vld [vmem:[%s2873 + $0x50] sm:$0xf]
    %v3241 = vld [vmem:[%s2873 + $0x54] sm:$0x1]
    %v3242 = vld [vmem:[%s2873 + $0x60] sm:$0xf]
    %v3243 = vld [vmem:[%s2873 + $0x64] sm:$0x1]
    %v3244 = vld [vmem:[%s2873 + $0x70] sm:$0xf]
    %v3245 = vld [vmem:[%s2873 + $0x74] sm:$0x1]
    %v3246 = vld [vmem:[%s2873 + $0x90] sm:$0xf]
    %v3247 = vld [vmem:[%s2873 + $0x94] sm:$0x1]
    %v3248 = vld [vmem:[%s2873 + $0xa0] sm:$0xf]
    %v3249 = vld [vmem:[%s2873 + $0xa4] sm:$0x1]
    %v3250 = vld [vmem:[%s2873 + $0xb0] sm:$0xf]
    %v3251 = vld [vmem:[%s2873 + $0xb4] sm:$0x1]
    %v3252 = vld [vmem:[%s2873 + $0xc0] sm:$0xf]
    %v3253 = vld [vmem:[%s2873 + $0xc4] sm:$0x1]
    %v3254 = vld [vmem:[%s2873 + $0xd0] sm:$0xf]
    %v3255 = vld [vmem:[%s2873 + $0xd4] sm:$0x1]
    %v3256 = vld [vmem:[%s2873 + $0xe0] sm:$0xf]
    %v3257 = vld [vmem:[%s2873 + $0xe4] sm:$0x1]
    %v3258 = vld [vmem:[%s2873 + $0xf0] sm:$0xf]
    %v3259 = vld [vmem:[%s2873 + $0xf4] sm:$0x1]
    %v3260 = vld [vmem:[%s2873 + $0x100] sm:$0xf]
    %v3261 = vld [vmem:[%s2873 + $0x104] sm:$0x1]
    %v3263 = vshrl.u32 %v3230, 16
    %v3265 = vrot.slane %v3263, 4
    %v3266 = vshll.u32 %v3230, 16
    %v3268 = vrot.slane %v3266, 5
    %v3269 = vor.u32 %v3265, %v3268
    %v3270 = vrot.slane %v3269, 4
    %v3272 = vshll.u32 %v3231, 16
    %v3274 = vrot.slane %v3272, 5
    %v3275 = vsel %vm1704, %v3270, %v3274
    %v3277 = vshrl.u32 %v3232, 16
    %v3279 = vrot.slane %v3277, 4
    %v3280 = vshll.u32 %v3232, 16
    %v3282 = vrot.slane %v3280, 5
    %v3283 = vor.u32 %v3279, %v3282
    %v3284 = vrot.slane %v3283, 4
    %v3286 = vshll.u32 %v3233, 16
    %v3288 = vrot.slane %v3286, 5
    %v3289 = vsel %vm1704, %v3284, %v3288
    %v3291 = vshrl.u32 %v3234, 16
    %v3293 = vrot.slane %v3291, 4
    %v3294 = vshll.u32 %v3234, 16
    %v3296 = vrot.slane %v3294, 5
    %v3297 = vor.u32 %v3293, %v3296
    %v3298 = vrot.slane %v3297, 4
    %v3300 = vshll.u32 %v3235, 16
    %v3302 = vrot.slane %v3300, 5
    %v3303 = vsel %vm1704, %v3298, %v3302
    %v3305 = vshrl.u32 %v3236, 16
    %v3307 = vrot.slane %v3305, 4
    %v3308 = vshll.u32 %v3236, 16
    %v3310 = vrot.slane %v3308, 5
    %v3311 = vor.u32 %v3307, %v3310
    %v3312 = vrot.slane %v3311, 4
    %v3314 = vshll.u32 %v3237, 16
    %v3316 = vrot.slane %v3314, 5
    %v3317 = vsel %vm1704, %v3312, %v3316
    %v3319 = vshrl.u32 %v3238, 16
    %v3321 = vrot.slane %v3319, 4
    %v3322 = vshll.u32 %v3238, 16
    %v3324 = vrot.slane %v3322, 5
    %v3325 = vor.u32 %v3321, %v3324
    %v3326 = vrot.slane %v3325, 4
    %v3328 = vshll.u32 %v3239, 16
    %v3330 = vrot.slane %v3328, 5
    %v3331 = vsel %vm1704, %v3326, %v3330
    %v3333 = vshrl.u32 %v3240, 16
    %v3335 = vrot.slane %v3333, 4
    %v3336 = vshll.u32 %v3240, 16
    %v3338 = vrot.slane %v3336, 5
    %v3339 = vor.u32 %v3335, %v3338
    %v3340 = vrot.slane %v3339, 4
    %v3342 = vshll.u32 %v3241, 16
    %v3344 = vrot.slane %v3342, 5
    %v3345 = vsel %vm1704, %v3340, %v3344
    %v3347 = vshrl.u32 %v3242, 16
    %v3349 = vrot.slane %v3347, 4
    %v3350 = vshll.u32 %v3242, 16
    %v3352 = vrot.slane %v3350, 5
    %v3353 = vor.u32 %v3349, %v3352
    %v3354 = vrot.slane %v3353, 4
    %v3356 = vshll.u32 %v3243, 16
    %v3358 = vrot.slane %v3356, 5
    %v3359 = vsel %vm1704, %v3354, %v3358
    %v3361 = vshrl.u32 %v3244, 16
    %v3363 = vrot.slane %v3361, 4
    %v3364 = vshll.u32 %v3244, 16
    %v3366 = vrot.slane %v3364, 5
    %v3367 = vor.u32 %v3363, %v3366
    %v3368 = vrot.slane %v3367, 4
    %v3370 = vshll.u32 %v3245, 16
    %v3372 = vrot.slane %v3370, 5
    %v3373 = vsel %vm1704, %v3368, %v3372
    %v3375 = vshrl.u32 %v3246, 16
    %v3377 = vrot.slane %v3375, 4
    %v3378 = vshll.u32 %v3246, 16
    %v3380 = vrot.slane %v3378, 5
    %v3381 = vor.u32 %v3377, %v3380
    %v3382 = vrot.slane %v3381, 4
    %v3384 = vshll.u32 %v3247, 16
    %v3386 = vrot.slane %v3384, 5
    %v3387 = vsel %vm1704, %v3382, %v3386
    %v3389 = vshrl.u32 %v3248, 16
    %v3391 = vrot.slane %v3389, 4
    %v3392 = vshll.u32 %v3248, 16
    %v3394 = vrot.slane %v3392, 5
    %v3395 = vor.u32 %v3391, %v3394
    %v3396 = vrot.slane %v3395, 4
    %v3398 = vshll.u32 %v3249, 16
    %v3400 = vrot.slane %v3398, 5
    %v3401 = vsel %vm1704, %v3396, %v3400
    %v3403 = vshrl.u32 %v3250, 16
    %v3405 = vrot.slane %v3403, 4
    %v3406 = vshll.u32 %v3250, 16
    %v3408 = vrot.slane %v3406, 5
    %v3409 = vor.u32 %v3405, %v3408
    %v3410 = vrot.slane %v3409, 4
    %v3412 = vshll.u32 %v3251, 16
    %v3414 = vrot.slane %v3412, 5
    %v3415 = vsel %vm1704, %v3410, %v3414
    %v3417 = vshrl.u32 %v3252, 16
    %v3419 = vrot.slane %v3417, 4
    %v3420 = vshll.u32 %v3252, 16
    %v3422 = vrot.slane %v3420, 5
    %v3423 = vor.u32 %v3419, %v3422
    %v3424 = vrot.slane %v3423, 4
    %v3426 = vshll.u32 %v3253, 16
    %v3428 = vrot.slane %v3426, 5
    %v3429 = vsel %vm1704, %v3424, %v3428
    %v3431 = vshrl.u32 %v3254, 16
    %v3433 = vrot.slane %v3431, 4
    %v3434 = vshll.u32 %v3254, 16
    %v3436 = vrot.slane %v3434, 5
    %v3437 = vor.u32 %v3433, %v3436
    %v3438 = vrot.slane %v3437, 4
    %v3440 = vshll.u32 %v3255, 16
    %v3442 = vrot.slane %v3440, 5
    %v3443 = vsel %vm1704, %v3438, %v3442
    %v3445 = vshrl.u32 %v3256, 16
    %v3447 = vrot.slane %v3445, 4
    %v3448 = vshll.u32 %v3256, 16
    %v3450 = vrot.slane %v3448, 5
    %v3451 = vor.u32 %v3447, %v3450
    %v3452 = vrot.slane %v3451, 4
    %v3454 = vshll.u32 %v3257, 16
    %v3456 = vrot.slane %v3454, 5
    %v3457 = vsel %vm1704, %v3452, %v3456
    %v3459 = vshrl.u32 %v3258, 16
    %v3461 = vrot.slane %v3459, 4
    %v3462 = vshll.u32 %v3258, 16
    %v3464 = vrot.slane %v3462, 5
    %v3465 = vor.u32 %v3461, %v3464
    %v3466 = vrot.slane %v3465, 4
    %v3468 = vshll.u32 %v3259, 16
    %v3470 = vrot.slane %v3468, 5
    %v3471 = vsel %vm1704, %v3466, %v3470
    %v3473 = vshrl.u32 %v3260, 16
    %v3475 = vrot.slane %v3473, 4
    %v3476 = vshll.u32 %v3260, 16
    %v3478 = vrot.slane %v3476, 5
    %v3479 = vor.u32 %v3475, %v3478
    %v3480 = vrot.slane %v3479, 4
    %v3482 = vshll.u32 %v3261, 16
    %v3484 = vrot.slane %v3482, 5
    %v3485 = vsel %vm1704, %v3480, %v3484
    %s3486 = scalar_lea.vmem %s3, 16
    %v3487 = vld [vmem:[%s3486] sm:$0x3]
    %v3488 = vunpack.c.l.b16 %v3275
    %v3489 = vunpack.c.l.b16 %v3289
    %v3490 = vunpack.c.l.b16 %v3303
    %v3491 = vunpack.c.l.b16 %v3317
    %v3492 = vunpack.c.l.b16 %v3331
    %v3493 = vunpack.c.l.b16 %v3345
    %v3494 = vunpack.c.l.b16 %v3359
    %v3495 = vunpack.c.l.b16 %v3373
    %v3496 = vunpack.c.l.b16 %v3387
    %v3497 = vunpack.c.l.b16 %v3401
    %v3498 = vunpack.c.l.b16 %v3415
    %v3499 = vunpack.c.l.b16 %v3429
    %v3500 = vunpack.c.l.b16 %v3443
    %v3501 = vunpack.c.l.b16 %v3457
    %v3502 = vunpack.c.l.b16 %v3471
    %v3503 = vunpack.c.l.b16 %v3485
    %v3504 = vpack.c.b16 %v3489, %v3488
    %v3505 = vpack.c.b16 %v3491, %v3490
    %v3506 = vpack.c.b16 %v3493, %v3492
    %v3507 = vpack.c.b16 %v3495, %v3494
    %v3508 = vpack.c.b16 %v3497, %v3496
    %v3509 = vpack.c.b16 %v3499, %v3498
    %v3510 = vpack.c.b16 %v3501, %v3500
    %v3511 = vpack.c.b16 %v3503, %v3502
    %v3513 = vsel %vm1420, %v3504, 0
    %v3516 = vsel %vm1420, %v3505, 0
    %v3519 = vsel %vm1420, %v3506, 0
    %v3522 = vsel %vm1420, %v3507, 0
    %v3525 = vsel %vm1420, %v3508, 0
    %v3528 = vsel %vm1420, %v3509, 0
    %v3531 = vsel %vm1420, %v3510, 0
    %v3534 = vsel %vm1420, %v3511, 0
    %v3537 = vsel %vm1445, %v3487, 0
    %3539 = vmatprep.subr.bf16.mxu0 0
    %3540 = vmatpush1.bf16.msra.mxu0 %v3537
    %3541 = vmatprep.subr.bf16.mxu0 0
    %3542 = vmatpush1.bf16.msra.mxu0 0
    %3543 = vmatprep.subr.bf16.mxu0 0
    %3544 = vmatpush1.bf16.msra.mxu0 0
    %3545 = vmatprep.subr.bf16.mxu0 0
    %3546 = vmatpush1.bf16.msra.mxu0 0
    %3547 = vmatprep.subr.bf16.mxu0 0
    %3548 = vmatpush1.bf16.msra.mxu0 0
    %3549 = vmatprep.subr.bf16.mxu0 0
    %3550 = vmatpush1.bf16.msra.mxu0 0
    %3551 = vmatprep.subr.bf16.mxu0 0
    %3552 = vmatpush1.bf16.msra.mxu0 0
    %3553 = vmatprep.subr.bf16.mxu0 0
    %3554 = vmatpush1.bf16.msra.mxu0 0
    %3555 = vmatprep.subr.bf16.mxu0 0
    %3556 = vmatpush1.bf16.msra.mxu0 0
    %3557 = vmatprep.subr.bf16.mxu0 0
    %3558 = vmatpush1.bf16.msra.mxu0 0
    %3559 = vmatprep.subr.bf16.mxu0 0
    %3560 = vmatpush1.bf16.msra.mxu0 0
    %3561 = vmatprep.subr.bf16.mxu0 0
    %3562 = vmatpush1.bf16.msra.mxu0 0
    %3563 = vmatprep.subr.bf16.mxu0 0
    %3564 = vmatpush1.bf16.msra.mxu0 0
    %3565 = vmatprep.subr.bf16.mxu0 0
    %3566 = vmatpush1.bf16.msra.mxu0 0
    %3567 = vmatprep.subr.bf16.mxu0 0
    %3568 = vmatpush1.bf16.msra.mxu0 0
    %3569 = vmatprep.subr.bf16.mxu0 0
    %3570 = vmatpush1.bf16.msra.mxu0 0
    %3571 = vmatprep.mubr.bf16.mxu0 0
    %3572 = vmatmul.mubr.bf16.gmra.mrb[0].mxu0 %v3513
    %v3573 = vpop.f32.mrb[0].mxu0
    %v3574 = vadd.f32 0.0, %v3573
    %v3575 = vpop.f32.mrb[0].mxu0
    %v3576 = vpop.f32.mrb[0].mxu0
    %v3577 = vadd.f32 0.0, %v3576
    %v3578 = vpop.f32.mrb[0].mxu0
    %3579 = vmatprep.mubr.bf16.mxu0 0
    %3580 = vmatmul.mubr.bf16.gmra.mrb[0].mxu0 %v3516
    %v3581 = vpop.f32.mrb[0].mxu0
    %v3582 = vadd.f32 0.0, %v3581
    %v3583 = vpop.f32.mrb[0].mxu0
    %v3584 = vpop.f32.mrb[0].mxu0
    %v3585 = vadd.f32 0.0, %v3584
    %v3586 = vpop.f32.mrb[0].mxu0
    %3587 = vmatprep.mubr.bf16.mxu0 0
    %3588 = vmatmul.mubr.bf16.gmra.mrb[0].mxu0 %v3519
    %v3589 = vpop.f32.mrb[0].mxu0
    %v3590 = vadd.f32 0.0, %v3589
    %v3591 = vpop.f32.mrb[0].mxu0
    %v3592 = vpop.f32.mrb[0].mxu0
    %v3593 = vadd.f32 0.0, %v3592
    %v3594 = vpop.f32.mrb[0].mxu0
    %3595 = vmatprep.mubr.bf16.mxu0 0
    %3596 = vmatmul.mubr.bf16.gmra.mrb[0].mxu0 %v3522
    %v3597 = vpop.f32.mrb[0].mxu0
    %v3598 = vadd.f32 0.0, %v3597
    %v3599 = vpop.f32.mrb[0].mxu0
    %v3600 = vpop.f32.mrb[0].mxu0
    %v3601 = vadd.f32 0.0, %v3600
    %v3602 = vpop.f32.mrb[0].mxu0
    %3603 = vmatprep.mubr.bf16.mxu0 0
    %3604 = vmatmul.mubr.bf16.gmra.mrb[0].mxu0 %v3525
    %v3605 = vpop.f32.mrb[0].mxu0
    %v3606 = vadd.f32 0.0, %v3605
    %v3607 = vpop.f32.mrb[0].mxu0
    %v3608 = vpop.f32.mrb[0].mxu0
    %v3609 = vadd.f32 0.0, %v3608
    %v3610 = vpop.f32.mrb[0].mxu0
    %3611 = vmatprep.mubr.bf16.mxu0 0
    %3612 = vmatmul.mubr.bf16.gmra.mrb[0].mxu0 %v3528
    %v3613 = vpop.f32.mrb[0].mxu0
    %v3614 = vadd.f32 0.0, %v3613
    %v3615 = vpop.f32.mrb[0].mxu0
    %v3616 = vpop.f32.mrb[0].mxu0
    %v3617 = vadd.f32 0.0, %v3616
    %v3618 = vpop.f32.mrb[0].mxu0
    %3619 = vmatprep.mubr.bf16.mxu0 0
    %3620 = vmatmul.mubr.bf16.gmra.mrb[0].mxu0 %v3531
    %v3621 = vpop.f32.mrb[0].mxu0
    %v3622 = vadd.f32 0.0, %v3621
    %v3623 = vpop.f32.mrb[0].mxu0
    %v3624 = vpop.f32.mrb[0].mxu0
    %v3625 = vadd.f32 0.0, %v3624
    %v3626 = vpop.f32.mrb[0].mxu0
    %3627 = vmatprep.mubr.bf16.mxu0 0
    %3628 = vmatmul.mubr.bf16.gmra.mrb[0].mxu0 %v3534
    %v3629 = vpop.f32.mrb[0].mxu0
    %v3630 = vadd.f32 0.0, %v3629
    %v3631 = vpop.f32.mrb[0].mxu0
    %v3632 = vpop.f32.mrb[0].mxu0
    %v3633 = vadd.f32 0.0, %v3632
    %v3634 = vpop.f32.mrb[0].mxu0
    %3635 = vdwg.mxu0
    %v3636 = vadd.f32 %v3214, %v3574
    %v3637 = vadd.f32 %v3215, %v3577
    %v3638 = vadd.f32 %v3216, %v3582
    %v3639 = vadd.f32 %v3217, %v3585
    %v3640 = vadd.f32 %v3218, %v3590
    %v3641 = vadd.f32 %v3219, %v3593
    %v3642 = vadd.f32 %v3220, %v3598
    %v3643 = vadd.f32 %v3221, %v3601
    %v3644 = vadd.f32 %v3222, %v3606
    %v3645 = vadd.f32 %v3223, %v3609
    %v3646 = vadd.f32 %v3224, %v3614
    %v3647 = vadd.f32 %v3225, %v3617
    %v3648 = vadd.f32 %v3226, %v3622
    %v3649 = vadd.f32 %v3227, %v3625
    %v3650 = vadd.f32 %v3228, %v3630
    %v3651 = vadd.f32 %v3229, %v3633
    %v3652 = vld [vmem:[%s4] sm:$0x1]
    %v3654 = vlaneseq
    %v3655 = vshrl.u32 %v3654, 7
    %v3656 = vsub.s32 0, %v3655
    %v3657 = vrot.slane %v3652, %v3656
    %v3659 = vmul.f32 %v3636, %v3657
    %v3660 = vmul.f32 %v3637, %v3657
    %v3661 = vmul.f32 %v3638, %v3657
    %v3662 = vmul.f32 %v3639, %v3657
    %v3663 = vmul.f32 %v3640, %v3657
    %v3664 = vmul.f32 %v3641, %v3657
    %v3665 = vmul.f32 %v3642, %v3657
    %v3666 = vmul.f32 %v3643, %v3657
    %v3667 = vmul.f32 %v3644, %v3657
    %v3668 = vmul.f32 %v3645, %v3657
    %v3669 = vmul.f32 %v3646, %v3657
    %v3670 = vmul.f32 %v3647, %v3657
    %v3671 = vmul.f32 %v3648, %v3657
    %v3672 = vmul.f32 %v3649, %v3657
    %v3673 = vmul.f32 %v3650, %v3657
    %v3674 = vmul.f32 %v3651, %v3657
    %v3675 = vld [vmem:[%s5] sm:$0x1]
    %v3677 = vlaneseq
    %v3678 = vshrl.u32 %v3677, 7
    %v3679 = vsub.s32 0, %v3678
    %v3680 = vrot.slane %v3675, %v3679
    %v3682 = vadd.f32 %v3659, %v3680
    %v3683 = vadd.f32 %v3660, %v3680
    %v3684 = vadd.f32 %v3661, %v3680
    %v3685 = vadd.f32 %v3662, %v3680
    %v3686 = vadd.f32 %v3663, %v3680
    %v3687 = vadd.f32 %v3664, %v3680
    %v3688 = vadd.f32 %v3665, %v3680
    %v3689 = vadd.f32 %v3666, %v3680
    %v3690 = vadd.f32 %v3667, %v3680
    %v3691 = vadd.f32 %v3668, %v3680
    %v3692 = vadd.f32 %v3669, %v3680
    %v3693 = vadd.f32 %v3670, %v3680
    %v3694 = vadd.f32 %v3671, %v3680
    %v3695 = vadd.f32 %v3672, %v3680
    %v3696 = vadd.f32 %v3673, %v3680
    %v3697 = vadd.f32 %v3674, %v3680
    %v3698 = vmax.f32 %v3682, 0.0
    %v3699 = vmax.f32 %v3683, 0.0
    %v3700 = vmax.f32 %v3684, 0.0
    %v3701 = vmax.f32 %v3685, 0.0
    %v3702 = vmax.f32 %v3686, 0.0
    %v3703 = vmax.f32 %v3687, 0.0
    %v3704 = vmax.f32 %v3688, 0.0
    %v3705 = vmax.f32 %v3689, 0.0
    %v3706 = vmax.f32 %v3690, 0.0
    %v3707 = vmax.f32 %v3691, 0.0
    %v3708 = vmax.f32 %v3692, 0.0
    %v3709 = vmax.f32 %v3693, 0.0
    %v3710 = vmax.f32 %v3694, 0.0
    %v3711 = vmax.f32 %v3695, 0.0
    %v3712 = vmax.f32 %v3696, 0.0
    %v3713 = vmax.f32 %v3697, 0.0
    %3714 = vst.msk [vmem:[#allocation3] sm:$0xf] %vm31, 0
    %vm3715 = vcmask 57344
    %3716 = vst.msk [vmem:[#allocation3 + $0x4] sm:$0x1] %vm3715, 0
    %3717 = vst.msk [vmem:[#allocation3 + $0x50] sm:$0xf] %vm31, 0
    %3718 = vst.msk [vmem:[#allocation3 + $0x54] sm:$0x1] %vm3715, 0
    %s3719 = scalar_lea.vmem [#allocation3], 72
    %3720 = vst.msk [vmem:[%s3719] sm:$0xf] %vm31, 0
    %3721 = vst.msk [vmem:[%s3719 + $0x4] sm:$0x1] %vm3715, 0
    %3722 = vst.msk [vmem:[%s3719 + $0x50] sm:$0xf] %vm31, 0
    %3723 = vst.msk [vmem:[%s3719 + $0x54] sm:$0x1] %vm3715, 0
    %v3724 = vld [vmem:[#allocation3] sm:$0x1]
    %v3725 = vsel %vm35, 0, %v3724
    %3726 = vst [vmem:[#allocation3] sm:$0x1] %v3725
    %v3727 = vld [vmem:[#allocation3 + $0x8] sm:$0x1]
    %v3728 = vsel %vm35, 0, %v3727
    %3729 = vst [vmem:[#allocation3 + $0x8] sm:$0x1] %v3728
    %v3730 = vld [vmem:[#allocation3 + $0x10] sm:$0x1]
    %v3731 = vsel %vm35, 0, %v3730
    %3732 = vst [vmem:[#allocation3 + $0x10] sm:$0x1] %v3731
    %v3733 = vld [vmem:[#allocation3 + $0x18] sm:$0x1]
    %v3734 = vsel %vm35, 0, %v3733
    %3735 = vst [vmem:[#allocation3 + $0x18] sm:$0x1] %v3734
    %v3736 = vld [vmem:[#allocation3 + $0x20] sm:$0x1]
    %v3737 = vsel %vm35, 0, %v3736
    %3738 = vst [vmem:[#allocation3 + $0x20] sm:$0x1] %v3737
    %v3739 = vld [vmem:[#allocation3 + $0x28] sm:$0x1]
    %v3740 = vsel %vm35, 0, %v3739
    %3741 = vst [vmem:[#allocation3 + $0x28] sm:$0x1] %v3740
    %v3742 = vld [vmem:[#allocation3 + $0x30] sm:$0x1]
    %v3743 = vsel %vm35, 0, %v3742
    %3744 = vst [vmem:[#allocation3 + $0x30] sm:$0x1] %v3743
    %v3745 = vld [vmem:[#allocation3 + $0x38] sm:$0x1]
    %v3746 = vsel %vm35, 0, %v3745
    %3747 = vst [vmem:[#allocation3 + $0x38] sm:$0x1] %v3746
    %v3748 = vld [vmem:[#allocation3 + $0x40] sm:$0x1]
    %v3749 = vsel %vm35, 0, %v3748
    %3750 = vst [vmem:[#allocation3 + $0x40] sm:$0x1] %v3749
    %v3751 = vld [vmem:[#allocation3 + $0x48] sm:$0x1]
    %v3752 = vsel %vm35, 0, %v3751
    %3753 = vst [vmem:[#allocation3 + $0x48] sm:$0x1] %v3752
    %v3754 = vld [vmem:[#allocation3 + $0x50] sm:$0x1]
    %v3755 = vsel %vm35, 0, %v3754
    %3756 = vst [vmem:[#allocation3 + $0x50] sm:$0x1] %v3755
    %v3757 = vld [vmem:[#allocation3 + $0x58] sm:$0x1]
    %v3758 = vsel %vm35, 0, %v3757
    %3759 = vst [vmem:[#allocation3 + $0x58] sm:$0x1] %v3758
    %v3760 = vld [vmem:[#allocation3 + $0x60] sm:$0x1]
    %v3761 = vsel %vm35, 0, %v3760
    %3762 = vst [vmem:[#allocation3 + $0x60] sm:$0x1] %v3761
    %v3763 = vld [vmem:[#allocation3 + $0x68] sm:$0x1]
    %v3764 = vsel %vm35, 0, %v3763
    %3765 = vst [vmem:[#allocation3 + $0x68] sm:$0x1] %v3764
    %v3766 = vld [vmem:[#allocation3 + $0x70] sm:$0x1]
    %v3767 = vsel %vm35, 0, %v3766
    %3768 = vst [vmem:[#allocation3 + $0x70] sm:$0x1] %v3767
    %v3769 = vld [vmem:[#allocation3 + $0x78] sm:$0x1]
    %v3770 = vsel %vm35, 0, %v3769
    %3771 = vst [vmem:[#allocation3 + $0x78] sm:$0x1] %v3770
    %v3772 = vld [vmem:[#allocation3 + $0x80] sm:$0x1]
    %v3773 = vsel %vm35, 0, %v3772
    %3774 = vst [vmem:[#allocation3 + $0x80] sm:$0x1] %v3773
    %v3775 = vld [vmem:[#allocation3 + $0x88] sm:$0x1]
    %v3776 = vsel %vm35, 0, %v3775
    %3777 = vst [vmem:[#allocation3 + $0x88] sm:$0x1] %v3776
    %v3778 = vld [vmem:[#allocation3 + $0x90] sm:$0x1]
    %v3779 = vsel %vm35, 0, %v3778
    %3780 = vst [vmem:[#allocation3 + $0x90] sm:$0x1] %v3779
    %v3781 = vld [vmem:[#allocation3 + $0x98] sm:$0x1]
    %v3782 = vsel %vm35, 0, %v3781
    %3783 = vst [vmem:[#allocation3 + $0x98] sm:$0x1] %v3782
    %vm3784 = vmand %vm33, %vm1149
    %v3785 = vld [vmem:[#allocation3 + $0x4] sm:$0x1]
    %v3786 = vsel %vm3784, 0, %v3785
    %3787 = vst [vmem:[#allocation3 + $0x4] sm:$0x1] %v3786
    %v3788 = vld [vmem:[#allocation3 + $0xc] sm:$0x1]
    %v3789 = vsel %vm3784, 0, %v3788
    %3790 = vst [vmem:[#allocation3 + $0xc] sm:$0x1] %v3789
    %v3791 = vld [vmem:[#allocation3 + $0x14] sm:$0x1]
    %v3792 = vsel %vm3784, 0, %v3791
    %3793 = vst [vmem:[#allocation3 + $0x14] sm:$0x1] %v3792
    %v3794 = vld [vmem:[#allocation3 + $0x1c] sm:$0x1]
    %v3795 = vsel %vm3784, 0, %v3794
    %3796 = vst [vmem:[#allocation3 + $0x1c] sm:$0x1] %v3795
    %v3797 = vld [vmem:[#allocation3 + $0x24] sm:$0x1]
    %v3798 = vsel %vm3784, 0, %v3797
    %3799 = vst [vmem:[#allocation3 + $0x24] sm:$0x1] %v3798
    %v3800 = vld [vmem:[#allocation3 + $0x2c] sm:$0x1]
    %v3801 = vsel %vm3784, 0, %v3800
    %3802 = vst [vmem:[#allocation3 + $0x2c] sm:$0x1] %v3801
    %v3803 = vld [vmem:[#allocation3 + $0x34] sm:$0x1]
    %v3804 = vsel %vm3784, 0, %v3803
    %3805 = vst [vmem:[#allocation3 + $0x34] sm:$0x1] %v3804
    %v3806 = vld [vmem:[#allocation3 + $0x3c] sm:$0x1]
    %v3807 = vsel %vm3784, 0, %v3806
    %3808 = vst [vmem:[#allocation3 + $0x3c] sm:$0x1] %v3807
    %v3809 = vld [vmem:[#allocation3 + $0x44] sm:$0x1]
    %v3810 = vsel %vm3784, 0, %v3809
    %3811 = vst [vmem:[#allocation3 + $0x44] sm:$0x1] %v3810
    %v3812 = vld [vmem:[#allocation3 + $0x4c] sm:$0x1]
    %v3813 = vsel %vm3784, 0, %v3812
    %3814 = vst [vmem:[#allocation3 + $0x4c] sm:$0x1] %v3813
    %v3815 = vld [vmem:[#allocation3 + $0x54] sm:$0x1]
    %v3816 = vsel %vm3784, 0, %v3815
    %3817 = vst [vmem:[#allocation3 + $0x54] sm:$0x1] %v3816
    %v3818 = vld [vmem:[#allocation3 + $0x5c] sm:$0x1]
    %v3819 = vsel %vm3784, 0, %v3818
    %3820 = vst [vmem:[#allocation3 + $0x5c] sm:$0x1] %v3819
    %v3821 = vld [vmem:[#allocation3 + $0x64] sm:$0x1]
    %v3822 = vsel %vm3784, 0, %v3821
    %3823 = vst [vmem:[#allocation3 + $0x64] sm:$0x1] %v3822
    %v3824 = vld [vmem:[#allocation3 + $0x6c] sm:$0x1]
    %v3825 = vsel %vm3784, 0, %v3824
    %3826 = vst [vmem:[#allocation3 + $0x6c] sm:$0x1] %v3825
    %v3827 = vld [vmem:[#allocation3 + $0x74] sm:$0x1]
    %v3828 = vsel %vm3784, 0, %v3827
    %3829 = vst [vmem:[#allocation3 + $0x74] sm:$0x1] %v3828
    %v3830 = vld [vmem:[#allocation3 + $0x7c] sm:$0x1]
    %v3831 = vsel %vm3784, 0, %v3830
    %3832 = vst [vmem:[#allocation3 + $0x7c] sm:$0x1] %v3831
    %v3833 = vld [vmem:[#allocation3 + $0x84] sm:$0x1]
    %v3834 = vsel %vm3784, 0, %v3833
    %3835 = vst [vmem:[#allocation3 + $0x84] sm:$0x1] %v3834
    %v3836 = vld [vmem:[#allocation3 + $0x8c] sm:$0x1]
    %v3837 = vsel %vm3784, 0, %v3836
    %3838 = vst [vmem:[#allocation3 + $0x8c] sm:$0x1] %v3837
    %v3839 = vld [vmem:[#allocation3 + $0x94] sm:$0x1]
    %v3840 = vsel %vm3784, 0, %v3839
    %3841 = vst [vmem:[#allocation3 + $0x94] sm:$0x1] %v3840
    %v3842 = vld [vmem:[#allocation3 + $0x9c] sm:$0x1]
    %v3843 = vsel %vm3784, 0, %v3842
    %3844 = vst [vmem:[#allocation3 + $0x9c] sm:$0x1] %v3843
    %v3845 = vpack.c.bf16 %v3698, %v3698
    %v3846 = vpack.c.bf16 %v3699, %v3699
    %v3847 = vpack.c.bf16 %v3700, %v3700
    %v3848 = vpack.c.bf16 %v3701, %v3701
    %v3849 = vpack.c.bf16 %v3702, %v3702
    %v3850 = vpack.c.bf16 %v3703, %v3703
    %v3851 = vpack.c.bf16 %v3704, %v3704
    %v3852 = vpack.c.bf16 %v3705, %v3705
    %v3853 = vpack.c.bf16 %v3706, %v3706
    %v3854 = vpack.c.bf16 %v3707, %v3707
    %v3855 = vpack.c.bf16 %v3708, %v3708
    %v3856 = vpack.c.bf16 %v3709, %v3709
    %v3857 = vpack.c.bf16 %v3710, %v3710
    %v3858 = vpack.c.bf16 %v3711, %v3711
    %v3859 = vpack.c.bf16 %v3712, %v3712
    %v3860 = vpack.c.bf16 %v3713, %v3713
    %v3877 = vunpack.c.l.b16 %v3845
    %v3878 = vunpack.c.l.b16 %v3846
    %v3879 = vunpack.c.l.b16 %v3847
    %v3880 = vunpack.c.l.b16 %v3848
    %v3881 = vunpack.c.l.b16 %v3849
    %v3882 = vunpack.c.l.b16 %v3850
    %v3883 = vunpack.c.l.b16 %v3851
    %v3884 = vunpack.c.l.b16 %v3852
    %v3885 = vunpack.c.l.b16 %v3853
    %v3886 = vunpack.c.l.b16 %v3854
    %v3887 = vunpack.c.l.b16 %v3855
    %v3888 = vunpack.c.l.b16 %v3856
    %v3889 = vunpack.c.l.b16 %v3857
    %v3890 = vunpack.c.l.b16 %v3858
    %v3891 = vunpack.c.l.b16 %v3859
    %v3892 = vunpack.c.l.b16 %v3860
    %v3893 = vpack.c.b16 %v3877, %v3877
    %v3894 = vpack.c.b16 %v3878, %v3878
    %v3895 = vpack.c.b16 %v3879, %v3879
    %v3896 = vpack.c.b16 %v3880, %v3880
    %v3897 = vpack.c.b16 %v3881, %v3881
    %v3898 = vpack.c.b16 %v3882, %v3882
    %v3899 = vpack.c.b16 %v3883, %v3883
    %v3900 = vpack.c.b16 %v3884, %v3884
    %v3901 = vpack.c.b16 %v3885, %v3885
    %v3902 = vpack.c.b16 %v3886, %v3886
    %v3903 = vpack.c.b16 %v3887, %v3887
    %v3904 = vpack.c.b16 %v3888, %v3888
    %v3905 = vpack.c.b16 %v3889, %v3889
    %v3906 = vpack.c.b16 %v3890, %v3890
    %v3907 = vpack.c.b16 %v3891, %v3891
    %v3908 = vpack.c.b16 %v3892, %v3892
    %v3910 = vshrl.u32 %v3893, 16
    %v3912 = vrot.slane %v3910, 7
    %v3913 = vshll.u32 %v3893, 16
    %v3915 = vor.u32 %v3912, %v3913
    %v3916 = vrot.slane %v3912, 4
    %v3918 = vshrl.u32 %v3894, 16
    %v3920 = vrot.slane %v3918, 7
    %v3921 = vshll.u32 %v3894, 16
    %v3923 = vor.u32 %v3920, %v3921
    %v3924 = vrot.slane %v3920, 4
    %v3926 = vshrl.u32 %v3895, 16
    %v3928 = vrot.slane %v3926, 7
    %v3929 = vshll.u32 %v3895, 16
    %v3931 = vor.u32 %v3928, %v3929
    %v3932 = vrot.slane %v3928, 4
    %v3934 = vshrl.u32 %v3896, 16
    %v3936 = vrot.slane %v3934, 7
    %v3937 = vshll.u32 %v3896, 16
    %v3939 = vor.u32 %v3936, %v3937
    %v3940 = vrot.slane %v3936, 4
    %v3942 = vshrl.u32 %v3897, 16
    %v3944 = vrot.slane %v3942, 7
    %v3945 = vshll.u32 %v3897, 16
    %v3947 = vor.u32 %v3944, %v3945
    %v3948 = vrot.slane %v3944, 4
    %v3950 = vshrl.u32 %v3898, 16
    %v3952 = vrot.slane %v3950, 7
    %v3953 = vshll.u32 %v3898, 16
    %v3955 = vor.u32 %v3952, %v3953
    %v3956 = vrot.slane %v3952, 4
    %v3958 = vshrl.u32 %v3899, 16
    %v3960 = vrot.slane %v3958, 7
    %v3961 = vshll.u32 %v3899, 16
    %v3963 = vor.u32 %v3960, %v3961
    %v3964 = vrot.slane %v3960, 4
    %v3966 = vshrl.u32 %v3900, 16
    %v3968 = vrot.slane %v3966, 7
    %v3969 = vshll.u32 %v3900, 16
    %v3971 = vor.u32 %v3968, %v3969
    %v3972 = vrot.slane %v3968, 4
    %v3974 = vshrl.u32 %v3901, 16
    %v3976 = vrot.slane %v3974, 7
    %v3977 = vshll.u32 %v3901, 16
    %v3979 = vor.u32 %v3976, %v3977
    %v3980 = vrot.slane %v3976, 4
    %v3982 = vshrl.u32 %v3902, 16
    %v3984 = vrot.slane %v3982, 7
    %v3985 = vshll.u32 %v3902, 16
    %v3987 = vor.u32 %v3984, %v3985
    %v3988 = vrot.slane %v3984, 4
    %v3990 = vshrl.u32 %v3903, 16
    %v3992 = vrot.slane %v3990, 7
    %v3993 = vshll.u32 %v3903, 16
    %v3995 = vor.u32 %v3992, %v3993
    %v3996 = vrot.slane %v3992, 4
    %v3998 = vshrl.u32 %v3904, 16
    %v4000 = vrot.slane %v3998, 7
    %v4001 = vshll.u32 %v3904, 16
    %v4003 = vor.u32 %v4000, %v4001
    %v4004 = vrot.slane %v4000, 4
    %v4006 = vshrl.u32 %v3905, 16
    %v4008 = vrot.slane %v4006, 7
    %v4009 = vshll.u32 %v3905, 16
    %v4011 = vor.u32 %v4008, %v4009
    %v4012 = vrot.slane %v4008, 4
    %v4014 = vshrl.u32 %v3906, 16
    %v4016 = vrot.slane %v4014, 7
    %v4017 = vshll.u32 %v3906, 16
    %v4019 = vor.u32 %v4016, %v4017
    %v4020 = vrot.slane %v4016, 4
    %v4022 = vshrl.u32 %v3907, 16
    %v4024 = vrot.slane %v4022, 7
    %v4025 = vshll.u32 %v3907, 16
    %v4027 = vor.u32 %v4024, %v4025
    %v4028 = vrot.slane %v4024, 4
    %v4030 = vshrl.u32 %v3908, 16
    %v4032 = vrot.slane %v4030, 7
    %v4033 = vshll.u32 %v3908, 16
    %v4035 = vor.u32 %v4032, %v4033
    %v4036 = vrot.slane %v4032, 4
    %s4069 = scalar_lea.vmem [#allocation3], 8
    %vm4070 = vcmask 60416
    %vm4071 = vmand %vm4070, %vm1149
    %v4072 = vld [vmem:[%s4069] sm:$0xf]
    %v4073 = vsel %vm4071, %v3915, %v4072
    %4074 = vst [vmem:[%s4069] sm:$0xf] %v4073
    %v4075 = vld [vmem:[%s4069 + $0x4] sm:$0x1]
    %v4076 = vsel %vm35, %v3916, %v4075
    %4077 = vst [vmem:[%s4069 + $0x4] sm:$0x1] %v4076
    %v4078 = vld [vmem:[%s4069 + $0x8] sm:$0xf]
    %v4079 = vsel %vm4071, %v3923, %v4078
    %4080 = vst [vmem:[%s4069 + $0x8] sm:$0xf] %v4079
    %v4081 = vld [vmem:[%s4069 + $0xc] sm:$0x1]
    %v4082 = vsel %vm35, %v3924, %v4081
    %4083 = vst [vmem:[%s4069 + $0xc] sm:$0x1] %v4082
    %v4084 = vld [vmem:[%s4069 + $0x10] sm:$0xf]
    %v4085 = vsel %vm4071, %v3931, %v4084
    %4086 = vst [vmem:[%s4069 + $0x10] sm:$0xf] %v4085
    %v4087 = vld [vmem:[%s4069 + $0x14] sm:$0x1]
    %v4088 = vsel %vm35, %v3932, %v4087
    %4089 = vst [vmem:[%s4069 + $0x14] sm:$0x1] %v4088
    %v4090 = vld [vmem:[%s4069 + $0x18] sm:$0xf]
    %v4091 = vsel %vm4071, %v3939, %v4090
    %4092 = vst [vmem:[%s4069 + $0x18] sm:$0xf] %v4091
    %v4093 = vld [vmem:[%s4069 + $0x1c] sm:$0x1]
    %v4094 = vsel %vm35, %v3940, %v4093
    %4095 = vst [vmem:[%s4069 + $0x1c] sm:$0x1] %v4094
    %v4096 = vld [vmem:[%s4069 + $0x20] sm:$0xf]
    %v4097 = vsel %vm4071, %v3947, %v4096
    %4098 = vst [vmem:[%s4069 + $0x20] sm:$0xf] %v4097
    %v4099 = vld [vmem:[%s4069 + $0x24] sm:$0x1]
    %v4100 = vsel %vm35, %v3948, %v4099
    %4101 = vst [vmem:[%s4069 + $0x24] sm:$0x1] %v4100
    %v4102 = vld [vmem:[%s4069 + $0x28] sm:$0xf]
    %v4103 = vsel %vm4071, %v3955, %v4102
    %4104 = vst [vmem:[%s4069 + $0x28] sm:$0xf] %v4103
    %v4105 = vld [vmem:[%s4069 + $0x2c] sm:$0x1]
    %v4106 = vsel %vm35, %v3956, %v4105
    %4107 = vst [vmem:[%s4069 + $0x2c] sm:$0x1] %v4106
    %v4108 = vld [vmem:[%s4069 + $0x30] sm:$0xf]
    %v4109 = vsel %vm4071, %v3963, %v4108
    %4110 = vst [vmem:[%s4069 + $0x30] sm:$0xf] %v4109
    %v4111 = vld [vmem:[%s4069 + $0x34] sm:$0x1]
    %v4112 = vsel %vm35, %v3964, %v4111
    %4113 = vst [vmem:[%s4069 + $0x34] sm:$0x1] %v4112
    %v4114 = vld [vmem:[%s4069 + $0x38] sm:$0xf]
    %v4115 = vsel %vm4071, %v3971, %v4114
    %4116 = vst [vmem:[%s4069 + $0x38] sm:$0xf] %v4115
    %v4117 = vld [vmem:[%s4069 + $0x3c] sm:$0x1]
    %v4118 = vsel %vm35, %v3972, %v4117
    %4119 = vst [vmem:[%s4069 + $0x3c] sm:$0x1] %v4118
    %v4120 = vld [vmem:[%s4069 + $0x50] sm:$0xf]
    %v4121 = vsel %vm4071, %v3979, %v4120
    %4122 = vst [vmem:[%s4069 + $0x50] sm:$0xf] %v4121
    %v4123 = vld [vmem:[%s4069 + $0x54] sm:$0x1]
    %v4124 = vsel %vm35, %v3980, %v4123
    %4125 = vst [vmem:[%s4069 + $0x54] sm:$0x1] %v4124
    %v4126 = vld [vmem:[%s4069 + $0x58] sm:$0xf]
    %v4127 = vsel %vm4071, %v3987, %v4126
    %4128 = vst [vmem:[%s4069 + $0x58] sm:$0xf] %v4127
    %v4129 = vld [vmem:[%s4069 + $0x5c] sm:$0x1]
    %v4130 = vsel %vm35, %v3988, %v4129
    %4131 = vst [vmem:[%s4069 + $0x5c] sm:$0x1] %v4130
    %v4132 = vld [vmem:[%s4069 + $0x60] sm:$0xf]
    %v4133 = vsel %vm4071, %v3995, %v4132
    %4134 = vst [vmem:[%s4069 + $0x60] sm:$0xf] %v4133
    %v4135 = vld [vmem:[%s4069 + $0x64] sm:$0x1]
    %v4136 = vsel %vm35, %v3996, %v4135
    %4137 = vst [vmem:[%s4069 + $0x64] sm:$0x1] %v4136
    %v4138 = vld [vmem:[%s4069 + $0x68] sm:$0xf]
    %v4139 = vsel %vm4071, %v4003, %v4138
    %4140 = vst [vmem:[%s4069 + $0x68] sm:$0xf] %v4139
    %v4141 = vld [vmem:[%s4069 + $0x6c] sm:$0x1]
    %v4142 = vsel %vm35, %v4004, %v4141
    %4143 = vst [vmem:[%s4069 + $0x6c] sm:$0x1] %v4142
    %v4144 = vld [vmem:[%s4069 + $0x70] sm:$0xf]
    %v4145 = vsel %vm4071, %v4011, %v4144
    %4146 = vst [vmem:[%s4069 + $0x70] sm:$0xf] %v4145
    %v4147 = vld [vmem:[%s4069 + $0x74] sm:$0x1]
    %v4148 = vsel %vm35, %v4012, %v4147
    %4149 = vst [vmem:[%s4069 + $0x74] sm:$0x1] %v4148
    %v4150 = vld [vmem:[%s4069 + $0x78] sm:$0xf]
    %v4151 = vsel %vm4071, %v4019, %v4150
    %4152 = vst [vmem:[%s4069 + $0x78] sm:$0xf] %v4151
    %v4153 = vld [vmem:[%s4069 + $0x7c] sm:$0x1]
    %v4154 = vsel %vm35, %v4020, %v4153
    %4155 = vst [vmem:[%s4069 + $0x7c] sm:$0x1] %v4154
    %v4156 = vld [vmem:[%s4069 + $0x80] sm:$0xf]
    %v4157 = vsel %vm4071, %v4027, %v4156
    %4158 = vst [vmem:[%s4069 + $0x80] sm:$0xf] %v4157
    %v4159 = vld [vmem:[%s4069 + $0x84] sm:$0x1]
    %v4160 = vsel %vm35, %v4028, %v4159
    %4161 = vst [vmem:[%s4069 + $0x84] sm:$0x1] %v4160
    %v4162 = vld [vmem:[%s4069 + $0x88] sm:$0xf]
    %v4163 = vsel %vm4071, %v4035, %v4162
    %4164 = vst [vmem:[%s4069 + $0x88] sm:$0xf] %v4163
    %v4165 = vld [vmem:[%s4069 + $0x8c] sm:$0x1]
    %v4166 = vsel %vm35, %v4036, %v4165
    %4167 = vst [vmem:[%s4069 + $0x8c] sm:$0x1] %v4166
    %v4168 = vld [vmem:[#allocation3] sm:$0xf]
    %v4169 = vld [vmem:[#allocation3 + $0x8] sm:$0xf]
    %v4170 = vld [vmem:[#allocation3 + $0x10] sm:$0xf]
    %v4171 = vld [vmem:[#allocation3 + $0x18] sm:$0xf]
    %v4172 = vld [vmem:[#allocation3 + $0x20] sm:$0xf]
    %v4173 = vld [vmem:[#allocation3 + $0x28] sm:$0xf]
    %v4174 = vld [vmem:[#allocation3 + $0x30] sm:$0xf]
    %v4175 = vld [vmem:[#allocation3 + $0x38] sm:$0xf]
    %v4176 = vld [vmem:[#allocation3 + $0x50] sm:$0xf]
    %v4177 = vld [vmem:[#allocation3 + $0x58] sm:$0xf]
    %v4178 = vld [vmem:[#allocation3 + $0x60] sm:$0xf]
    %v4179 = vld [vmem:[#allocation3 + $0x68] sm:$0xf]
    %v4180 = vld [vmem:[#allocation3 + $0x70] sm:$0xf]
    %v4181 = vld [vmem:[#allocation3 + $0x78] sm:$0xf]
    %v4182 = vld [vmem:[#allocation3 + $0x80] sm:$0xf]
    %v4183 = vld [vmem:[#allocation3 + $0x88] sm:$0xf]
    %v4184 = vld [vmem:[%s6] sm:$0xf]
    %v4185 = vld [vmem:[#allocation3 + $0x4] sm:$0x1]
    %v4186 = vld [vmem:[#allocation3 + $0xc] sm:$0x1]
    %v4187 = vld [vmem:[#allocation3 + $0x14] sm:$0x1]
    %v4188 = vld [vmem:[#allocation3 + $0x1c] sm:$0x1]
    %v4189 = vld [vmem:[#allocation3 + $0x24] sm:$0x1]
    %v4190 = vld [vmem:[#allocation3 + $0x2c] sm:$0x1]
    %v4191 = vld [vmem:[#allocation3 + $0x34] sm:$0x1]
    %v4192 = vld [vmem:[#allocation3 + $0x3c] sm:$0x1]
    %v4193 = vld [vmem:[#allocation3 + $0x54] sm:$0x1]
    %v4194 = vld [vmem:[#allocation3 + $0x5c] sm:$0x1]
    %v4195 = vld [vmem:[#allocation3 + $0x64] sm:$0x1]
    %v4196 = vld [vmem:[#allocation3 + $0x6c] sm:$0x1]
    %v4197 = vld [vmem:[#allocation3 + $0x74] sm:$0x1]
    %v4198 = vld [vmem:[#allocation3 + $0x7c] sm:$0x1]
    %v4199 = vld [vmem:[#allocation3 + $0x84] sm:$0x1]
    %v4200 = vld [vmem:[#allocation3 + $0x8c] sm:$0x1]
    %v4202 = vshrl.u32 %v4168, 16
    %v4204 = vrot.slane %v4202, 4
    %v4205 = vshll.u32 %v4168, 16
    %v4207 = vrot.slane %v4205, 5
    %v4208 = vor.u32 %v4204, %v4207
    %v4209 = vrot.slane %v4208, 4
    %v4211 = vshll.u32 %v4185, 16
    %v4213 = vrot.slane %v4211, 5
    %v4214 = vsel %vm1704, %v4209, %v4213
    %v4216 = vshrl.u32 %v4169, 16
    %v4218 = vrot.slane %v4216, 4
    %v4219 = vshll.u32 %v4169, 16
    %v4221 = vrot.slane %v4219, 5
    %v4222 = vor.u32 %v4218, %v4221
    %v4223 = vrot.slane %v4222, 4
    %v4225 = vshll.u32 %v4186, 16
    %v4227 = vrot.slane %v4225, 5
    %v4228 = vsel %vm1704, %v4223, %v4227
    %v4230 = vshrl.u32 %v4170, 16
    %v4232 = vrot.slane %v4230, 4
    %v4233 = vshll.u32 %v4170, 16
    %v4235 = vrot.slane %v4233, 5
    %v4236 = vor.u32 %v4232, %v4235
    %v4237 = vrot.slane %v4236, 4
    %v4239 = vshll.u32 %v4187, 16
    %v4241 = vrot.slane %v4239, 5
    %v4242 = vsel %vm1704, %v4237, %v4241
    %v4244 = vshrl.u32 %v4171, 16
    %v4246 = vrot.slane %v4244, 4
    %v4247 = vshll.u32 %v4171, 16
    %v4249 = vrot.slane %v4247, 5
    %v4250 = vor.u32 %v4246, %v4249
    %v4251 = vrot.slane %v4250, 4
    %v4253 = vshll.u32 %v4188, 16
    %v4255 = vrot.slane %v4253, 5
    %v4256 = vsel %vm1704, %v4251, %v4255
    %v4258 = vshrl.u32 %v4172, 16
    %v4260 = vrot.slane %v4258, 4
    %v4261 = vshll.u32 %v4172, 16
    %v4263 = vrot.slane %v4261, 5
    %v4264 = vor.u32 %v4260, %v4263
    %v4265 = vrot.slane %v4264, 4
    %v4267 = vshll.u32 %v4189, 16
    %v4269 = vrot.slane %v4267, 5
    %v4270 = vsel %vm1704, %v4265, %v4269
    %v4272 = vshrl.u32 %v4173, 16
    %v4274 = vrot.slane %v4272, 4
    %v4275 = vshll.u32 %v4173, 16
    %v4277 = vrot.slane %v4275, 5
    %v4278 = vor.u32 %v4274, %v4277
    %v4279 = vrot.slane %v4278, 4
    %v4281 = vshll.u32 %v4190, 16
    %v4283 = vrot.slane %v4281, 5
    %v4284 = vsel %vm1704, %v4279, %v4283
    %v4286 = vshrl.u32 %v4174, 16
    %v4288 = vrot.slane %v4286, 4
    %v4289 = vshll.u32 %v4174, 16
    %v4291 = vrot.slane %v4289, 5
    %v4292 = vor.u32 %v4288, %v4291
    %v4293 = vrot.slane %v4292, 4
    %v4295 = vshll.u32 %v4191, 16
    %v4297 = vrot.slane %v4295, 5
    %v4298 = vsel %vm1704, %v4293, %v4297
    %v4300 = vshrl.u32 %v4175, 16
    %v4302 = vrot.slane %v4300, 4
    %v4303 = vshll.u32 %v4175, 16
    %v4305 = vrot.slane %v4303, 5
    %v4306 = vor.u32 %v4302, %v4305
    %v4307 = vrot.slane %v4306, 4
    %v4309 = vshll.u32 %v4192, 16
    %v4311 = vrot.slane %v4309, 5
    %v4312 = vsel %vm1704, %v4307, %v4311
    %v4314 = vshrl.u32 %v4176, 16
    %v4316 = vrot.slane %v4314, 4
    %v4317 = vshll.u32 %v4176, 16
    %v4319 = vrot.slane %v4317, 5
    %v4320 = vor.u32 %v4316, %v4319
    %v4321 = vrot.slane %v4320, 4
    %v4323 = vshll.u32 %v4193, 16
    %v4325 = vrot.slane %v4323, 5
    %v4326 = vsel %vm1704, %v4321, %v4325
    %v4328 = vshrl.u32 %v4177, 16
    %v4330 = vrot.slane %v4328, 4
    %v4331 = vshll.u32 %v4177, 16
    %v4333 = vrot.slane %v4331, 5
    %v4334 = vor.u32 %v4330, %v4333
    %v4335 = vrot.slane %v4334, 4
    %v4337 = vshll.u32 %v4194, 16
    %v4339 = vrot.slane %v4337, 5
    %v4340 = vsel %vm1704, %v4335, %v4339
    %v4342 = vshrl.u32 %v4178, 16
    %v4344 = vrot.slane %v4342, 4
    %v4345 = vshll.u32 %v4178, 16
    %v4347 = vrot.slane %v4345, 5
    %v4348 = vor.u32 %v4344, %v4347
    %v4349 = vrot.slane %v4348, 4
    %v4351 = vshll.u32 %v4195, 16
    %v4353 = vrot.slane %v4351, 5
    %v4354 = vsel %vm1704, %v4349, %v4353
    %v4356 = vshrl.u32 %v4179, 16
    %v4358 = vrot.slane %v4356, 4
    %v4359 = vshll.u32 %v4179, 16
    %v4361 = vrot.slane %v4359, 5
    %v4362 = vor.u32 %v4358, %v4361
    %v4363 = vrot.slane %v4362, 4
    %v4365 = vshll.u32 %v4196, 16
    %v4367 = vrot.slane %v4365, 5
    %v4368 = vsel %vm1704, %v4363, %v4367
    %v4370 = vshrl.u32 %v4180, 16
    %v4372 = vrot.slane %v4370, 4
    %v4373 = vshll.u32 %v4180, 16
    %v4375 = vrot.slane %v4373, 5
    %v4376 = vor.u32 %v4372, %v4375
    %v4377 = vrot.slane %v4376, 4
    %v4379 = vshll.u32 %v4197, 16
    %v4381 = vrot.slane %v4379, 5
    %v4382 = vsel %vm1704, %v4377, %v4381
    %v4384 = vshrl.u32 %v4181, 16
    %v4386 = vrot.slane %v4384, 4
    %v4387 = vshll.u32 %v4181, 16
    %v4389 = vrot.slane %v4387, 5
    %v4390 = vor.u32 %v4386, %v4389
    %v4391 = vrot.slane %v4390, 4
    %v4393 = vshll.u32 %v4198, 16
    %v4395 = vrot.slane %v4393, 5
    %v4396 = vsel %vm1704, %v4391, %v4395
    %v4398 = vshrl.u32 %v4182, 16
    %v4400 = vrot.slane %v4398, 4
    %v4401 = vshll.u32 %v4182, 16
    %v4403 = vrot.slane %v4401, 5
    %v4404 = vor.u32 %v4400, %v4403
    %v4405 = vrot.slane %v4404, 4
    %v4407 = vshll.u32 %v4199, 16
    %v4409 = vrot.slane %v4407, 5
    %v4410 = vsel %vm1704, %v4405, %v4409
    %v4412 = vshrl.u32 %v4183, 16
    %v4414 = vrot.slane %v4412, 4
    %v4415 = vshll.u32 %v4183, 16
    %v4417 = vrot.slane %v4415, 5
    %v4418 = vor.u32 %v4414, %v4417
    %v4419 = vrot.slane %v4418, 4
    %v4421 = vshll.u32 %v4200, 16
    %v4423 = vrot.slane %v4421, 5
    %v4424 = vsel %vm1704, %v4419, %v4423
    %s4425 = scalar_lea.vmem %s6, 4
    %v4426 = vld [vmem:[%s4425] sm:$0xf]
    %v4427 = vunpack.c.l.b16 %v4214
    %v4428 = vunpack.c.l.b16 %v4228
    %v4429 = vunpack.c.l.b16 %v4242
    %v4430 = vunpack.c.l.b16 %v4256
    %v4431 = vunpack.c.l.b16 %v4270
    %v4432 = vunpack.c.l.b16 %v4284
    %v4433 = vunpack.c.l.b16 %v4298
    %v4434 = vunpack.c.l.b16 %v4312
    %v4435 = vunpack.c.l.b16 %v4326
    %v4436 = vunpack.c.l.b16 %v4340
    %v4437 = vunpack.c.l.b16 %v4354
    %v4438 = vunpack.c.l.b16 %v4368
    %v4439 = vunpack.c.l.b16 %v4382
    %v4440 = vunpack.c.l.b16 %v4396
    %v4441 = vunpack.c.l.b16 %v4410
    %v4442 = vunpack.c.l.b16 %v4424
    %v4443 = vpack.c.b16 %v4428, %v4427
    %v4444 = vpack.c.b16 %v4430, %v4429
    %v4445 = vpack.c.b16 %v4432, %v4431
    %v4446 = vpack.c.b16 %v4434, %v4433
    %v4447 = vpack.c.b16 %v4436, %v4435
    %v4448 = vpack.c.b16 %v4438, %v4437
    %v4449 = vpack.c.b16 %v4440, %v4439
    %v4450 = vpack.c.b16 %v4442, %v4441
    %vm4451 = vcmask 64512
    %v4453 = vsel %vm4451, %v4443, 0
    %v4456 = vsel %vm4451, %v4444, 0
    %v4459 = vsel %vm4451, %v4445, 0
    %v4462 = vsel %vm4451, %v4446, 0
    %v4465 = vsel %vm4451, %v4447, 0
    %v4468 = vsel %vm4451, %v4448, 0
    %v4471 = vsel %vm4451, %v4449, 0
    %v4474 = vsel %vm4451, %v4450, 0
    %vm4476 = vcmask 1043456
    %v4478 = vsel %vm4476, %v4426, 0
    %4480 = vmatprep.subr.bf16.mxu0 0
    %4481 = vmatpush1.bf16.msra.mxu0 %v4478
    %4482 = vmatprep.subr.bf16.mxu0 0
    %4483 = vmatpush1.bf16.msra.mxu0 0
    %4484 = vmatprep.subr.bf16.mxu0 0
    %4485 = vmatpush1.bf16.msra.mxu0 0
    %4486 = vmatprep.subr.bf16.mxu0 0
    %4487 = vmatpush1.bf16.msra.mxu0 0
    %4488 = vmatprep.subr.bf16.mxu0 0
    %4489 = vmatpush1.bf16.msra.mxu0 0
    %4490 = vmatprep.subr.bf16.mxu0 0
    %4491 = vmatpush1.bf16.msra.mxu0 0
    %4492 = vmatprep.subr.bf16.mxu0 0
    %4493 = vmatpush1.bf16.msra.mxu0 0
    %4494 = vmatprep.subr.bf16.mxu0 0
    %4495 = vmatpush1.bf16.msra.mxu0 0
    %4496 = vmatprep.subr.bf16.mxu0 0
    %4497 = vmatpush1.bf16.msra.mxu0 0
    %4498 = vmatprep.subr.bf16.mxu0 0
    %4499 = vmatpush1.bf16.msra.mxu0 0
    %4500 = vmatprep.subr.bf16.mxu0 0
    %4501 = vmatpush1.bf16.msra.mxu0 0
    %4502 = vmatprep.subr.bf16.mxu0 0
    %4503 = vmatpush1.bf16.msra.mxu0 0
    %4504 = vmatprep.subr.bf16.mxu0 0
    %4505 = vmatpush1.bf16.msra.mxu0 0
    %4506 = vmatprep.subr.bf16.mxu0 0
    %4507 = vmatpush1.bf16.msra.mxu0 0
    %4508 = vmatprep.subr.bf16.mxu0 0
    %4509 = vmatpush1.bf16.msra.mxu0 0
    %4510 = vmatprep.subr.bf16.mxu0 0
    %4511 = vmatpush1.bf16.msra.mxu0 0
    %4512 = vmatprep.mubr.bf16.mxu0 0
    %4513 = vmatmul.mubr.bf16.gmra.mrb[0].mxu0 %v4453
    %v4514 = vpop.f32.mrb[0].mxu0
    %v4515 = vadd.f32 0.0, %v4514
    %v4516 = vpop.f32.mrb[0].mxu0
    %v4517 = vpop.f32.mrb[0].mxu0
    %v4518 = vadd.f32 0.0, %v4517
    %v4519 = vpop.f32.mrb[0].mxu0
    %4520 = vmatprep.mubr.bf16.mxu0 0
    %4521 = vmatmul.mubr.bf16.gmra.mrb[0].mxu0 %v4456
    %v4522 = vpop.f32.mrb[0].mxu0
    %v4523 = vadd.f32 0.0, %v4522
    %v4524 = vpop.f32.mrb[0].mxu0
    %v4525 = vpop.f32.mrb[0].mxu0
    %v4526 = vadd.f32 0.0, %v4525
    %v4527 = vpop.f32.mrb[0].mxu0
    %4528 = vmatprep.mubr.bf16.mxu0 0
    %4529 = vmatmul.mubr.bf16.gmra.mrb[0].mxu0 %v4459
    %v4530 = vpop.f32.mrb[0].mxu0
    %v4531 = vadd.f32 0.0, %v4530
    %v4532 = vpop.f32.mrb[0].mxu0
    %v4533 = vpop.f32.mrb[0].mxu0
    %v4534 = vadd.f32 0.0, %v4533
    %v4535 = vpop.f32.mrb[0].mxu0
    %4536 = vmatprep.mubr.bf16.mxu0 0
    %4537 = vmatmul.mubr.bf16.gmra.mrb[0].mxu0 %v4462
    %v4538 = vpop.f32.mrb[0].mxu0
    %v4539 = vadd.f32 0.0, %v4538
    %v4540 = vpop.f32.mrb[0].mxu0
    %v4541 = vpop.f32.mrb[0].mxu0
    %v4542 = vadd.f32 0.0, %v4541
    %v4543 = vpop.f32.mrb[0].mxu0
    %4544 = vmatprep.mubr.bf16.mxu0 0
    %4545 = vmatmul.mubr.bf16.gmra.mrb[0].mxu0 %v4465
    %v4546 = vpop.f32.mrb[0].mxu0
    %v4547 = vadd.f32 0.0, %v4546
    %v4548 = vpop.f32.mrb[0].mxu0
    %v4549 = vpop.f32.mrb[0].mxu0
    %v4550 = vadd.f32 0.0, %v4549
    %v4551 = vpop.f32.mrb[0].mxu0
    %4552 = vmatprep.mubr.bf16.mxu0 0
    %4553 = vmatmul.mubr.bf16.gmra.mrb[0].mxu0 %v4468
    %v4554 = vpop.f32.mrb[0].mxu0
    %v4555 = vadd.f32 0.0, %v4554
    %v4556 = vpop.f32.mrb[0].mxu0
    %v4557 = vpop.f32.mrb[0].mxu0
    %v4558 = vadd.f32 0.0, %v4557
    %v4559 = vpop.f32.mrb[0].mxu0
    %4560 = vmatprep.mubr.bf16.mxu0 0
    %4561 = vmatmul.mubr.bf16.gmra.mrb[0].mxu0 %v4471
    %v4562 = vpop.f32.mrb[0].mxu0
    %v4563 = vadd.f32 0.0, %v4562
    %v4564 = vpop.f32.mrb[0].mxu0
    %v4565 = vpop.f32.mrb[0].mxu0
    %v4566 = vadd.f32 0.0, %v4565
    %v4567 = vpop.f32.mrb[0].mxu0
    %4568 = vmatprep.mubr.bf16.mxu0 0
    %4569 = vmatmul.mubr.bf16.gmra.mrb[0].mxu0 %v4474
    %v4570 = vpop.f32.mrb[0].mxu0
    %v4571 = vadd.f32 0.0, %v4570
    %v4572 = vpop.f32.mrb[0].mxu0
    %v4573 = vpop.f32.mrb[0].mxu0
    %v4574 = vadd.f32 0.0, %v4573
    %v4575 = vpop.f32.mrb[0].mxu0
    %4576 = vdwg.mxu0
    %v4593 = vunpack.c.l.b16 %v4168
    %v4594 = vunpack.c.l.b16 %v4169
    %v4595 = vunpack.c.l.b16 %v4170
    %v4596 = vunpack.c.l.b16 %v4171
    %v4597 = vunpack.c.l.b16 %v4172
    %v4598 = vunpack.c.l.b16 %v4173
    %v4599 = vunpack.c.l.b16 %v4174
    %v4600 = vunpack.c.l.b16 %v4175
    %v4601 = vunpack.c.l.b16 %v4176
    %v4602 = vunpack.c.l.b16 %v4177
    %v4603 = vunpack.c.l.b16 %v4178
    %v4604 = vunpack.c.l.b16 %v4179
    %v4605 = vunpack.c.l.b16 %v4180
    %v4606 = vunpack.c.l.b16 %v4181
    %v4607 = vunpack.c.l.b16 %v4182
    %v4608 = vunpack.c.l.b16 %v4183
    %v4609 = vpack.c.b16 %v4594, %v4593
    %v4610 = vpack.c.b16 %v4596, %v4595
    %v4611 = vpack.c.b16 %v4598, %v4597
    %v4612 = vpack.c.b16 %v4600, %v4599
    %v4613 = vpack.c.b16 %v4602, %v4601
    %v4614 = vpack.c.b16 %v4604, %v4603
    %v4615 = vpack.c.b16 %v4606, %v4605
    %v4616 = vpack.c.b16 %v4608, %v4607
    %v4618 = vsel %vm4451, %v4609, 0
    %v4621 = vsel %vm4451, %v4610, 0
    %v4624 = vsel %vm4451, %v4611, 0
    %v4627 = vsel %vm4451, %v4612, 0
    %v4630 = vsel %vm4451, %v4613, 0
    %v4633 = vsel %vm4451, %v4614, 0
    %v4636 = vsel %vm4451, %v4615, 0
    %v4639 = vsel %vm4451, %v4616, 0
    %v4642 = vsel %vm4476, %v4184, 0
    %4644 = vmatprep.subr.bf16.mxu0 0
    %4645 = vmatpush1.bf16.msra.mxu0 %v4642
    %4646 = vmatprep.subr.bf16.mxu0 0
    %4647 = vmatpush1.bf16.msra.mxu0 0
    %4648 = vmatprep.subr.bf16.mxu0 0
    %4649 = vmatpush1.bf16.msra.mxu0 0
    %4650 = vmatprep.subr.bf16.mxu0 0
    %4651 = vmatpush1.bf16.msra.mxu0 0
    %4652 = vmatprep.subr.bf16.mxu0 0
    %4653 = vmatpush1.bf16.msra.mxu0 0
    %4654 = vmatprep.subr.bf16.mxu0 0
    %4655 = vmatpush1.bf16.msra.mxu0 0
    %4656 = vmatprep.subr.bf16.mxu0 0
    %4657 = vmatpush1.bf16.msra.mxu0 0
    %4658 = vmatprep.subr.bf16.mxu0 0
    %4659 = vmatpush1.bf16.msra.mxu0 0
    %4660 = vmatprep.subr.bf16.mxu0 0
    %4661 = vmatpush1.bf16.msra.mxu0 0
    %4662 = vmatprep.subr.bf16.mxu0 0
    %4663 = vmatpush1.bf16.msra.mxu0 0
    %4664 = vmatprep.subr.bf16.mxu0 0
    %4665 = vmatpush1.bf16.msra.mxu0 0
    %4666 = vmatprep.subr.bf16.mxu0 0
    %4667 = vmatpush1.bf16.msra.mxu0 0
    %4668 = vmatprep.subr.bf16.mxu0 0
    %4669 = vmatpush1.bf16.msra.mxu0 0
    %4670 = vmatprep.subr.bf16.mxu0 0
    %4671 = vmatpush1.bf16.msra.mxu0 0
    %4672 = vmatprep.subr.bf16.mxu0 0
    %4673 = vmatpush1.bf16.msra.mxu0 0
    %4674 = vmatprep.subr.bf16.mxu0 0
    %4675 = vmatpush1.bf16.msra.mxu0 0
    %4676 = vmatprep.mubr.bf16.mxu0 0
    %4677 = vmatmul.mubr.bf16.gmra.mrb[0].mxu0 %v4618
    %v4678 = vpop.f32.mrb[0].mxu0
    %v4679 = vadd.f32 %v4515, %v4678
    %v4680 = vpop.f32.mrb[0].mxu0
    %v4681 = vpop.f32.mrb[0].mxu0
    %v4682 = vadd.f32 %v4518, %v4681
    %v4683 = vpop.f32.mrb[0].mxu0
    %4684 = vmatprep.mubr.bf16.mxu0 0
    %4685 = vmatmul.mubr.bf16.gmra.mrb[0].mxu0 %v4621
    %v4686 = vpop.f32.mrb[0].mxu0
    %v4687 = vadd.f32 %v4523, %v4686
    %v4688 = vpop.f32.mrb[0].mxu0
    %v4689 = vpop.f32.mrb[0].mxu0
    %v4690 = vadd.f32 %v4526, %v4689
    %v4691 = vpop.f32.mrb[0].mxu0
    %4692 = vmatprep.mubr.bf16.mxu0 0
    %4693 = vmatmul.mubr.bf16.gmra.mrb[0].mxu0 %v4624
    %v4694 = vpop.f32.mrb[0].mxu0
    %v4695 = vadd.f32 %v4531, %v4694
    %v4696 = vpop.f32.mrb[0].mxu0
    %v4697 = vpop.f32.mrb[0].mxu0
    %v4698 = vadd.f32 %v4534, %v4697
    %v4699 = vpop.f32.mrb[0].mxu0
    %4700 = vmatprep.mubr.bf16.mxu0 0
    %4701 = vmatmul.mubr.bf16.gmra.mrb[0].mxu0 %v4627
    %v4702 = vpop.f32.mrb[0].mxu0
    %v4703 = vadd.f32 %v4539, %v4702
    %v4704 = vpop.f32.mrb[0].mxu0
    %v4705 = vpop.f32.mrb[0].mxu0
    %v4706 = vadd.f32 %v4542, %v4705
    %v4707 = vpop.f32.mrb[0].mxu0
    %4708 = vmatprep.mubr.bf16.mxu0 0
    %4709 = vmatmul.mubr.bf16.gmra.mrb[0].mxu0 %v4630
    %v4710 = vpop.f32.mrb[0].mxu0
    %v4711 = vadd.f32 %v4547, %v4710
    %v4712 = vpop.f32.mrb[0].mxu0
    %v4713 = vpop.f32.mrb[0].mxu0
    %v4714 = vadd.f32 %v4550, %v4713
    %v4715 = vpop.f32.mrb[0].mxu0
    %4716 = vmatprep.mubr.bf16.mxu0 0
    %4717 = vmatmul.mubr.bf16.gmra.mrb[0].mxu0 %v4633
    %v4718 = vpop.f32.mrb[0].mxu0
    %v4719 = vadd.f32 %v4555, %v4718
    %v4720 = vpop.f32.mrb[0].mxu0
    %v4721 = vpop.f32.mrb[0].mxu0
    %v4722 = vadd.f32 %v4558, %v4721
    %v4723 = vpop.f32.mrb[0].mxu0
    %4724 = vmatprep.mubr.bf16.mxu0 0
    %4725 = vmatmul.mubr.bf16.gmra.mrb[0].mxu0 %v4636
    %v4726 = vpop.f32.mrb[0].mxu0
    %v4727 = vadd.f32 %v4563, %v4726
    %v4728 = vpop.f32.mrb[0].mxu0
    %v4729 = vpop.f32.mrb[0].mxu0
    %v4730 = vadd.f32 %v4566, %v4729
    %v4731 = vpop.f32.mrb[0].mxu0
    %4732 = vmatprep.mubr.bf16.mxu0 0
    %4733 = vmatmul.mubr.bf16.gmra.mrb[0].mxu0 %v4639
    %v4734 = vpop.f32.mrb[0].mxu0
    %v4735 = vadd.f32 %v4571, %v4734
    %v4736 = vpop.f32.mrb[0].mxu0
    %v4737 = vpop.f32.mrb[0].mxu0
    %v4738 = vadd.f32 %v4574, %v4737
    %v4739 = vpop.f32.mrb[0].mxu0
    %4740 = vdwg.mxu0
    %v4741 = vld [vmem:[#allocation3] sm:$0xe]
    %v4742 = vld [vmem:[#allocation3 + $0x8] sm:$0xe]
    %v4743 = vld [vmem:[#allocation3 + $0x10] sm:$0xe]
    %v4744 = vld [vmem:[#allocation3 + $0x18] sm:$0xe]
    %v4745 = vld [vmem:[#allocation3 + $0x20] sm:$0xe]
    %v4746 = vld [vmem:[#allocation3 + $0x28] sm:$0xe]
    %v4747 = vld [vmem:[#allocation3 + $0x30] sm:$0xe]
    %v4748 = vld [vmem:[#allocation3 + $0x38] sm:$0xe]
    %v4749 = vld [vmem:[#allocation3 + $0x50] sm:$0xe]
    %v4750 = vld [vmem:[#allocation3 + $0x58] sm:$0xe]
    %v4751 = vld [vmem:[#allocation3 + $0x60] sm:$0xe]
    %v4752 = vld [vmem:[#allocation3 + $0x68] sm:$0xe]
    %v4753 = vld [vmem:[#allocation3 + $0x70] sm:$0xe]
    %v4754 = vld [vmem:[#allocation3 + $0x78] sm:$0xe]
    %v4755 = vld [vmem:[#allocation3 + $0x80] sm:$0xe]
    %v4756 = vld [vmem:[#allocation3 + $0x88] sm:$0xe]
    %vm4789 = vcmask 1042432
    %vm4790 = vcmask 1046532
    %vm4791 = vmor %vm4789, %vm4790
    %v4792 = vrot.slane %v4741, 5
    %v4793 = vrot.slane %v4792, 4
    %v4794 = vrot.slane %v4185, 5
    %v4795 = vsel %vm4791, %v4793, %v4794
    %v4796 = vrot.slane %v4742, 5
    %v4797 = vrot.slane %v4796, 4
    %v4798 = vrot.slane %v4186, 5
    %v4799 = vsel %vm4791, %v4797, %v4798
    %v4800 = vrot.slane %v4743, 5
    %v4801 = vrot.slane %v4800, 4
    %v4802 = vrot.slane %v4187, 5
    %v4803 = vsel %vm4791, %v4801, %v4802
    %v4804 = vrot.slane %v4744, 5
    %v4805 = vrot.slane %v4804, 4
    %v4806 = vrot.slane %v4188, 5
    %v4807 = vsel %vm4791, %v4805, %v4806
    %v4808 = vrot.slane %v4745, 5
    %v4809 = vrot.slane %v4808, 4
    %v4810 = vrot.slane %v4189, 5
    %v4811 = vsel %vm4791, %v4809, %v4810
    %v4812 = vrot.slane %v4746, 5
    %v4813 = vrot.slane %v4812, 4
    %v4814 = vrot.slane %v4190, 5
    %v4815 = vsel %vm4791, %v4813, %v4814
    %v4816 = vrot.slane %v4747, 5
    %v4817 = vrot.slane %v4816, 4
    %v4818 = vrot.slane %v4191, 5
    %v4819 = vsel %vm4791, %v4817, %v4818
    %v4820 = vrot.slane %v4748, 5
    %v4821 = vrot.slane %v4820, 4
    %v4822 = vrot.slane %v4192, 5
    %v4823 = vsel %vm4791, %v4821, %v4822
    %v4824 = vrot.slane %v4749, 5
    %v4825 = vrot.slane %v4824, 4
    %v4826 = vrot.slane %v4193, 5
    %v4827 = vsel %vm4791, %v4825, %v4826
    %v4828 = vrot.slane %v4750, 5
    %v4829 = vrot.slane %v4828, 4
    %v4830 = vrot.slane %v4194, 5
    %v4831 = vsel %vm4791, %v4829, %v4830
    %v4832 = vrot.slane %v4751, 5
    %v4833 = vrot.slane %v4832, 4
    %v4834 = vrot.slane %v4195, 5
    %v4835 = vsel %vm4791, %v4833, %v4834
    %v4836 = vrot.slane %v4752, 5
    %v4837 = vrot.slane %v4836, 4
    %v4838 = vrot.slane %v4196, 5
    %v4839 = vsel %vm4791, %v4837, %v4838
    %v4840 = vrot.slane %v4753, 5
    %v4841 = vrot.slane %v4840, 4
    %v4842 = vrot.slane %v4197, 5
    %v4843 = vsel %vm4791, %v4841, %v4842
    %v4844 = vrot.slane %v4754, 5
    %v4845 = vrot.slane %v4844, 4
    %v4846 = vrot.slane %v4198, 5
    %v4847 = vsel %vm4791, %v4845, %v4846
    %v4848 = vrot.slane %v4755, 5
    %v4849 = vrot.slane %v4848, 4
    %v4850 = vrot.slane %v4199, 5
    %v4851 = vsel %vm4791, %v4849, %v4850
    %v4852 = vrot.slane %v4756, 5
    %v4853 = vrot.slane %v4852, 4
    %v4854 = vrot.slane %v4200, 5
    %v4855 = vsel %vm4791, %v4853, %v4854
    %s4856 = scalar_lea.vmem %s6, 8
    %v4857 = vld [vmem:[%s4856] sm:$0xf]
    %v4858 = vunpack.c.l.b16 %v4795
    %v4859 = vunpack.c.l.b16 %v4799
    %v4860 = vunpack.c.l.b16 %v4803
    %v4861 = vunpack.c.l.b16 %v4807
    %v4862 = vunpack.c.l.b16 %v4811
    %v4863 = vunpack.c.l.b16 %v4815
    %v4864 = vunpack.c.l.b16 %v4819
    %v4865 = vunpack.c.l.b16 %v4823
    %v4866 = vunpack.c.l.b16 %v4827
    %v4867 = vunpack.c.l.b16 %v4831
    %v4868 = vunpack.c.l.b16 %v4835
    %v4869 = vunpack.c.l.b16 %v4839
    %v4870 = vunpack.c.l.b16 %v4843
    %v4871 = vunpack.c.l.b16 %v4847
    %v4872 = vunpack.c.l.b16 %v4851
    %v4873 = vunpack.c.l.b16 %v4855
    %v4874 = vpack.c.b16 %v4859, %v4858
    %v4875 = vpack.c.b16 %v4861, %v4860
    %v4876 = vpack.c.b16 %v4863, %v4862
    %v4877 = vpack.c.b16 %v4865, %v4864
    %v4878 = vpack.c.b16 %v4867, %v4866
    %v4879 = vpack.c.b16 %v4869, %v4868
    %v4880 = vpack.c.b16 %v4871, %v4870
    %v4881 = vpack.c.b16 %v4873, %v4872
    %v4883 = vsel %vm4451, %v4874, 0
    %v4886 = vsel %vm4451, %v4875, 0
    %v4889 = vsel %vm4451, %v4876, 0
    %v4892 = vsel %vm4451, %v4877, 0
    %v4895 = vsel %vm4451, %v4878, 0
    %v4898 = vsel %vm4451, %v4879, 0
    %v4901 = vsel %vm4451, %v4880, 0
    %v4904 = vsel %vm4451, %v4881, 0
    %v4907 = vsel %vm4476, %v4857, 0
    %4909 = vmatprep.subr.bf16.mxu0 0
    %4910 = vmatpush1.bf16.msra.mxu0 %v4907
    %4911 = vmatprep.subr.bf16.mxu0 0
    %4912 = vmatpush1.bf16.msra.mxu0 0
    %4913 = vmatprep.subr.bf16.mxu0 0
    %4914 = vmatpush1.bf16.msra.mxu0 0
    %4915 = vmatprep.subr.bf16.mxu0 0
    %4916 = vmatpush1.bf16.msra.mxu0 0
    %4917 = vmatprep.subr.bf16.mxu0 0
    %4918 = vmatpush1.bf16.msra.mxu0 0
    %4919 = vmatprep.subr.bf16.mxu0 0
    %4920 = vmatpush1.bf16.msra.mxu0 0
    %4921 = vmatprep.subr.bf16.mxu0 0
    %4922 = vmatpush1.bf16.msra.mxu0 0
    %4923 = vmatprep.subr.bf16.mxu0 0
    %4924 = vmatpush1.bf16.msra.mxu0 0
    %4925 = vmatprep.subr.bf16.mxu0 0
    %4926 = vmatpush1.bf16.msra.mxu0 0
    %4927 = vmatprep.subr.bf16.mxu0 0
    %4928 = vmatpush1.bf16.msra.mxu0 0
    %4929 = vmatprep.subr.bf16.mxu0 0
    %4930 = vmatpush1.bf16.msra.mxu0 0
    %4931 = vmatprep.subr.bf16.mxu0 0
    %4932 = vmatpush1.bf16.msra.mxu0 0
    %4933 = vmatprep.subr.bf16.mxu0 0
    %4934 = vmatpush1.bf16.msra.mxu0 0
    %4935 = vmatprep.subr.bf16.mxu0 0
    %4936 = vmatpush1.bf16.msra.mxu0 0
    %4937 = vmatprep.subr.bf16.mxu0 0
    %4938 = vmatpush1.bf16.msra.mxu0 0
    %4939 = vmatprep.subr.bf16.mxu0 0
    %4940 = vmatpush1.bf16.msra.mxu0 0
    %4941 = vmatprep.mubr.bf16.mxu0 0
    %4942 = vmatmul.mubr.bf16.gmra.mrb[0].mxu0 %v4883
    %v4943 = vpop.f32.mrb[0].mxu0
    %v4944 = vadd.f32 0.0, %v4943
    %v4945 = vpop.f32.mrb[0].mxu0
    %v4946 = vpop.f32.mrb[0].mxu0
    %v4947 = vadd.f32 0.0, %v4946
    %v4948 = vpop.f32.mrb[0].mxu0
    %4949 = vmatprep.mubr.bf16.mxu0 0
    %4950 = vmatmul.mubr.bf16.gmra.mrb[0].mxu0 %v4886
    %v4951 = vpop.f32.mrb[0].mxu0
    %v4952 = vadd.f32 0.0, %v4951
    %v4953 = vpop.f32.mrb[0].mxu0
    %v4954 = vpop.f32.mrb[0].mxu0
    %v4955 = vadd.f32 0.0, %v4954
    %v4956 = vpop.f32.mrb[0].mxu0
    %4957 = vmatprep.mubr.bf16.mxu0 0
    %4958 = vmatmul.mubr.bf16.gmra.mrb[0].mxu0 %v4889
    %v4959 = vpop.f32.mrb[0].mxu0
    %v4960 = vadd.f32 0.0, %v4959
    %v4961 = vpop.f32.mrb[0].mxu0
    %v4962 = vpop.f32.mrb[0].mxu0
    %v4963 = vadd.f32 0.0, %v4962
    %v4964 = vpop.f32.mrb[0].mxu0
    %4965 = vmatprep.mubr.bf16.mxu0 0
    %4966 = vmatmul.mubr.bf16.gmra.mrb[0].mxu0 %v4892
    %v4967 = vpop.f32.mrb[0].mxu0
    %v4968 = vadd.f32 0.0, %v4967
    %v4969 = vpop.f32.mrb[0].mxu0
    %v4970 = vpop.f32.mrb[0].mxu0
    %v4971 = vadd.f32 0.0, %v4970
    %v4972 = vpop.f32.mrb[0].mxu0
    %4973 = vmatprep.mubr.bf16.mxu0 0
    %4974 = vmatmul.mubr.bf16.gmra.mrb[0].mxu0 %v4895
    %v4975 = vpop.f32.mrb[0].mxu0
    %v4976 = vadd.f32 0.0, %v4975
    %v4977 = vpop.f32.mrb[0].mxu0
    %v4978 = vpop.f32.mrb[0].mxu0
    %v4979 = vadd.f32 0.0, %v4978
    %v4980 = vpop.f32.mrb[0].mxu0
    %4981 = vmatprep.mubr.bf16.mxu0 0
    %4982 = vmatmul.mubr.bf16.gmra.mrb[0].mxu0 %v4898
    %v4983 = vpop.f32.mrb[0].mxu0
    %v4984 = vadd.f32 0.0, %v4983
    %v4985 = vpop.f32.mrb[0].mxu0
    %v4986 = vpop.f32.mrb[0].mxu0
    %v4987 = vadd.f32 0.0, %v4986
    %v4988 = vpop.f32.mrb[0].mxu0
    %4989 = vmatprep.mubr.bf16.mxu0 0
    %4990 = vmatmul.mubr.bf16.gmra.mrb[0].mxu0 %v4901
    %v4991 = vpop.f32.mrb[0].mxu0
    %v4992 = vadd.f32 0.0, %v4991
    %v4993 = vpop.f32.mrb[0].mxu0
    %v4994 = vpop.f32.mrb[0].mxu0
    %v4995 = vadd.f32 0.0, %v4994
    %v4996 = vpop.f32.mrb[0].mxu0
    %4997 = vmatprep.mubr.bf16.mxu0 0
    %4998 = vmatmul.mubr.bf16.gmra.mrb[0].mxu0 %v4904
    %v4999 = vpop.f32.mrb[0].mxu0
    %v5000 = vadd.f32 0.0, %v4999
    %v5001 = vpop.f32.mrb[0].mxu0
    %v5002 = vpop.f32.mrb[0].mxu0
    %v5003 = vadd.f32 0.0, %v5002
    %v5004 = vpop.f32.mrb[0].mxu0
    %5005 = vdwg.mxu0
    %v5006 = vadd.f32 %v4679, %v4944
    %v5007 = vadd.f32 %v4682, %v4947
    %v5008 = vadd.f32 %v4687, %v4952
    %v5009 = vadd.f32 %v4690, %v4955
    %v5010 = vadd.f32 %v4695, %v4960
    %v5011 = vadd.f32 %v4698, %v4963
    %v5012 = vadd.f32 %v4703, %v4968
    %v5013 = vadd.f32 %v4706, %v4971
    %v5014 = vadd.f32 %v4711, %v4976
    %v5015 = vadd.f32 %v4714, %v4979
    %v5016 = vadd.f32 %v4719, %v4984
    %v5017 = vadd.f32 %v4722, %v4987
    %v5018 = vadd.f32 %v4727, %v4992
    %v5019 = vadd.f32 %v4730, %v4995
    %v5020 = vadd.f32 %v4735, %v5000
    %v5021 = vadd.f32 %v4738, %v5003
    %v5022 = vld [vmem:[%s4069] sm:$0xf]
    %v5023 = vld [vmem:[%s4069 + $0x8] sm:$0xf]
    %v5024 = vld [vmem:[%s4069 + $0x10] sm:$0xf]
    %v5025 = vld [vmem:[%s4069 + $0x18] sm:$0xf]
    %v5026 = vld [vmem:[%s4069 + $0x20] sm:$0xf]
    %v5027 = vld [vmem:[%s4069 + $0x28] sm:$0xf]
    %v5028 = vld [vmem:[%s4069 + $0x30] sm:$0xf]
    %v5029 = vld [vmem:[%s4069 + $0x38] sm:$0xf]
    %v5030 = vld [vmem:[%s4069 + $0x50] sm:$0xf]
    %v5031 = vld [vmem:[%s4069 + $0x58] sm:$0xf]
    %v5032 = vld [vmem:[%s4069 + $0x60] sm:$0xf]
    %v5033 = vld [vmem:[%s4069 + $0x68] sm:$0xf]
    %v5034 = vld [vmem:[%s4069 + $0x70] sm:$0xf]
    %v5035 = vld [vmem:[%s4069 + $0x78] sm:$0xf]
    %v5036 = vld [vmem:[%s4069 + $0x80] sm:$0xf]
    %v5037 = vld [vmem:[%s4069 + $0x88] sm:$0xf]
    %s5038 = scalar_lea.vmem %s6, 12
    %v5039 = vld [vmem:[%s5038] sm:$0xf]
    %v5056 = vunpack.c.l.b16 %v5022
    %v5057 = vunpack.c.l.b16 %v5023
    %v5058 = vunpack.c.l.b16 %v5024
    %v5059 = vunpack.c.l.b16 %v5025
    %v5060 = vunpack.c.l.b16 %v5026
    %v5061 = vunpack.c.l.b16 %v5027
    %v5062 = vunpack.c.l.b16 %v5028
    %v5063 = vunpack.c.l.b16 %v5029
    %v5064 = vunpack.c.l.b16 %v5030
    %v5065 = vunpack.c.l.b16 %v5031
    %v5066 = vunpack.c.l.b16 %v5032
    %v5067 = vunpack.c.l.b16 %v5033
    %v5068 = vunpack.c.l.b16 %v5034
    %v5069 = vunpack.c.l.b16 %v5035
    %v5070 = vunpack.c.l.b16 %v5036
    %v5071 = vunpack.c.l.b16 %v5037
    %v5072 = vpack.c.b16 %v5057, %v5056
    %v5073 = vpack.c.b16 %v5059, %v5058
    %v5074 = vpack.c.b16 %v5061, %v5060
    %v5075 = vpack.c.b16 %v5063, %v5062
    %v5076 = vpack.c.b16 %v5065, %v5064
    %v5077 = vpack.c.b16 %v5067, %v5066
    %v5078 = vpack.c.b16 %v5069, %v5068
    %v5079 = vpack.c.b16 %v5071, %v5070
    %v5081 = vsel %vm4451, %v5072, 0
    %v5084 = vsel %vm4451, %v5073, 0
    %v5087 = vsel %vm4451, %v5074, 0
    %v5090 = vsel %vm4451, %v5075, 0
    %v5093 = vsel %vm4451, %v5076, 0
    %v5096 = vsel %vm4451, %v5077, 0
    %v5099 = vsel %vm4451, %v5078, 0
    %v5102 = vsel %vm4451, %v5079, 0
    %v5105 = vsel %vm4476, %v5039, 0
    %5107 = vmatprep.subr.bf16.mxu0 0
    %5108 = vmatpush1.bf16.msra.mxu0 %v5105
    %5109 = vmatprep.subr.bf16.mxu0 0
    %5110 = vmatpush1.bf16.msra.mxu0 0
    %5111 = vmatprep.subr.bf16.mxu0 0
    %5112 = vmatpush1.bf16.msra.mxu0 0
    %5113 = vmatprep.subr.bf16.mxu0 0
    %5114 = vmatpush1.bf16.msra.mxu0 0
    %5115 = vmatprep.subr.bf16.mxu0 0
    %5116 = vmatpush1.bf16.msra.mxu0 0
    %5117 = vmatprep.subr.bf16.mxu0 0
    %5118 = vmatpush1.bf16.msra.mxu0 0
    %5119 = vmatprep.subr.bf16.mxu0 0
    %5120 = vmatpush1.bf16.msra.mxu0 0
    %5121 = vmatprep.subr.bf16.mxu0 0
    %5122 = vmatpush1.bf16.msra.mxu0 0
    %5123 = vmatprep.subr.bf16.mxu0 0
    %5124 = vmatpush1.bf16.msra.mxu0 0
    %5125 = vmatprep.subr.bf16.mxu0 0
    %5126 = vmatpush1.bf16.msra.mxu0 0
    %5127 = vmatprep.subr.bf16.mxu0 0
    %5128 = vmatpush1.bf16.msra.mxu0 0
    %5129 = vmatprep.subr.bf16.mxu0 0
    %5130 = vmatpush1.bf16.msra.mxu0 0
    %5131 = vmatprep.subr.bf16.mxu0 0
    %5132 = vmatpush1.bf16.msra.mxu0 0
    %5133 = vmatprep.subr.bf16.mxu0 0
    %5134 = vmatpush1.bf16.msra.mxu0 0
    %5135 = vmatprep.subr.bf16.mxu0 0
    %5136 = vmatpush1.bf16.msra.mxu0 0
    %5137 = vmatprep.subr.bf16.mxu0 0
    %5138 = vmatpush1.bf16.msra.mxu0 0
    %5139 = vmatprep.mubr.bf16.mxu0 0
    %5140 = vmatmul.mubr.bf16.gmra.mrb[0].mxu0 %v5081
    %v5141 = vpop.f32.mrb[0].mxu0
    %v5142 = vadd.f32 0.0, %v5141
    %v5143 = vpop.f32.mrb[0].mxu0
    %v5144 = vpop.f32.mrb[0].mxu0
    %v5145 = vadd.f32 0.0, %v5144
    %v5146 = vpop.f32.mrb[0].mxu0
    %5147 = vmatprep.mubr.bf16.mxu0 0
    %5148 = vmatmul.mubr.bf16.gmra.mrb[0].mxu0 %v5084
    %v5149 = vpop.f32.mrb[0].mxu0
    %v5150 = vadd.f32 0.0, %v5149
    %v5151 = vpop.f32.mrb[0].mxu0
    %v5152 = vpop.f32.mrb[0].mxu0
    %v5153 = vadd.f32 0.0, %v5152
    %v5154 = vpop.f32.mrb[0].mxu0
    %5155 = vmatprep.mubr.bf16.mxu0 0
    %5156 = vmatmul.mubr.bf16.gmra.mrb[0].mxu0 %v5087
    %v5157 = vpop.f32.mrb[0].mxu0
    %v5158 = vadd.f32 0.0, %v5157
    %v5159 = vpop.f32.mrb[0].mxu0
    %v5160 = vpop.f32.mrb[0].mxu0
    %v5161 = vadd.f32 0.0, %v5160
    %v5162 = vpop.f32.mrb[0].mxu0
    %5163 = vmatprep.mubr.bf16.mxu0 0
    %5164 = vmatmul.mubr.bf16.gmra.mrb[0].mxu0 %v5090
    %v5165 = vpop.f32.mrb[0].mxu0
    %v5166 = vadd.f32 0.0, %v5165
    %v5167 = vpop.f32.mrb[0].mxu0
    %v5168 = vpop.f32.mrb[0].mxu0
    %v5169 = vadd.f32 0.0, %v5168
    %v5170 = vpop.f32.mrb[0].mxu0
    %5171 = vmatprep.mubr.bf16.mxu0 0
    %5172 = vmatmul.mubr.bf16.gmra.mrb[0].mxu0 %v5093
    %v5173 = vpop.f32.mrb[0].mxu0
    %v5174 = vadd.f32 0.0, %v5173
    %v5175 = vpop.f32.mrb[0].mxu0
    %v5176 = vpop.f32.mrb[0].mxu0
    %v5177 = vadd.f32 0.0, %v5176
    %v5178 = vpop.f32.mrb[0].mxu0
    %5179 = vmatprep.mubr.bf16.mxu0 0
    %5180 = vmatmul.mubr.bf16.gmra.mrb[0].mxu0 %v5096
    %v5181 = vpop.f32.mrb[0].mxu0
    %v5182 = vadd.f32 0.0, %v5181
    %v5183 = vpop.f32.mrb[0].mxu0
    %v5184 = vpop.f32.mrb[0].mxu0
    %v5185 = vadd.f32 0.0, %v5184
    %v5186 = vpop.f32.mrb[0].mxu0
    %5187 = vmatprep.mubr.bf16.mxu0 0
    %5188 = vmatmul.mubr.bf16.gmra.mrb[0].mxu0 %v5099
    %v5189 = vpop.f32.mrb[0].mxu0
    %v5190 = vadd.f32 0.0, %v5189
    %v5191 = vpop.f32.mrb[0].mxu0
    %v5192 = vpop.f32.mrb[0].mxu0
    %v5193 = vadd.f32 0.0, %v5192
    %v5194 = vpop.f32.mrb[0].mxu0
    %5195 = vmatprep.mubr.bf16.mxu0 0
    %5196 = vmatmul.mubr.bf16.gmra.mrb[0].mxu0 %v5102
    %v5197 = vpop.f32.mrb[0].mxu0
    %v5198 = vadd.f32 0.0, %v5197
    %v5199 = vpop.f32.mrb[0].mxu0
    %v5200 = vpop.f32.mrb[0].mxu0
    %v5201 = vadd.f32 0.0, %v5200
    %v5202 = vpop.f32.mrb[0].mxu0
    %5203 = vdwg.mxu0
    %v5204 = vadd.f32 %v5006, %v5142
    %v5205 = vadd.f32 %v5007, %v5145
    %v5206 = vadd.f32 %v5008, %v5150
    %v5207 = vadd.f32 %v5009, %v5153
    %v5208 = vadd.f32 %v5010, %v5158
    %v5209 = vadd.f32 %v5011, %v5161
    %v5210 = vadd.f32 %v5012, %v5166
    %v5211 = vadd.f32 %v5013, %v5169
    %v5212 = vadd.f32 %v5014, %v5174
    %v5213 = vadd.f32 %v5015, %v5177
    %v5214 = vadd.f32 %v5016, %v5182
    %v5215 = vadd.f32 %v5017, %v5185
    %v5216 = vadd.f32 %v5018, %v5190
    %v5217 = vadd.f32 %v5019, %v5193
    %v5218 = vadd.f32 %v5020, %v5198
    %v5219 = vadd.f32 %v5021, %v5201
    %v5220 = vld [vmem:[%s4069] sm:$0xf]
    %v5221 = vld [vmem:[%s4069 + $0x4] sm:$0x1]
    %v5222 = vld [vmem:[%s4069 + $0x8] sm:$0xf]
    %v5223 = vld [vmem:[%s4069 + $0xc] sm:$0x1]
    %v5224 = vld [vmem:[%s4069 + $0x10] sm:$0xf]
    %v5225 = vld [vmem:[%s4069 + $0x14] sm:$0x1]
    %v5226 = vld [vmem:[%s4069 + $0x18] sm:$0xf]
    %v5227 = vld [vmem:[%s4069 + $0x1c] sm:$0x1]
    %v5228 = vld [vmem:[%s4069 + $0x20] sm:$0xf]
    %v5229 = vld [vmem:[%s4069 + $0x24] sm:$0x1]
    %v5230 = vld [vmem:[%s4069 + $0x28] sm:$0xf]
    %v5231 = vld [vmem:[%s4069 + $0x2c] sm:$0x1]
    %v5232 = vld [vmem:[%s4069 + $0x30] sm:$0xf]
    %v5233 = vld [vmem:[%s4069 + $0x34] sm:$0x1]
    %v5234 = vld [vmem:[%s4069 + $0x38] sm:$0xf]
    %v5235 = vld [vmem:[%s4069 + $0x3c] sm:$0x1]
    %v5236 = vld [vmem:[%s4069 + $0x50] sm:$0xf]
    %v5237 = vld [vmem:[%s4069 + $0x54] sm:$0x1]
    %v5238 = vld [vmem:[%s4069 + $0x58] sm:$0xf]
    %v5239 = vld [vmem:[%s4069 + $0x5c] sm:$0x1]
    %v5240 = vld [vmem:[%s4069 + $0x60] sm:$0xf]
    %v5241 = vld [vmem:[%s4069 + $0x64] sm:$0x1]
    %v5242 = vld [vmem:[%s4069 + $0x68] sm:$0xf]
    %v5243 = vld [vmem:[%s4069 + $0x6c] sm:$0x1]
    %v5244 = vld [vmem:[%s4069 + $0x70] sm:$0xf]
    %v5245 = vld [vmem:[%s4069 + $0x74] sm:$0x1]
    %v5246 = vld [vmem:[%s4069 + $0x78] sm:$0xf]
    %v5247 = vld [vmem:[%s4069 + $0x7c] sm:$0x1]
    %v5248 = vld [vmem:[%s4069 + $0x80] sm:$0xf]
    %v5249 = vld [vmem:[%s4069 + $0x84] sm:$0x1]
    %v5250 = vld [vmem:[%s4069 + $0x88] sm:$0xf]
    %v5251 = vld [vmem:[%s4069 + $0x8c] sm:$0x1]
    %v5253 = vshrl.u32 %v5220, 16
    %v5255 = vrot.slane %v5253, 4
    %v5256 = vshll.u32 %v5220, 16
    %v5258 = vrot.slane %v5256, 5
    %v5259 = vor.u32 %v5255, %v5258
    %v5260 = vrot.slane %v5259, 4
    %v5262 = vshll.u32 %v5221, 16
    %v5264 = vrot.slane %v5262, 5
    %v5265 = vsel %vm1704, %v5260, %v5264
    %v5267 = vshrl.u32 %v5222, 16
    %v5269 = vrot.slane %v5267, 4
    %v5270 = vshll.u32 %v5222, 16
    %v5272 = vrot.slane %v5270, 5
    %v5273 = vor.u32 %v5269, %v5272
    %v5274 = vrot.slane %v5273, 4
    %v5276 = vshll.u32 %v5223, 16
    %v5278 = vrot.slane %v5276, 5
    %v5279 = vsel %vm1704, %v5274, %v5278
    %v5281 = vshrl.u32 %v5224, 16
    %v5283 = vrot.slane %v5281, 4
    %v5284 = vshll.u32 %v5224, 16
    %v5286 = vrot.slane %v5284, 5
    %v5287 = vor.u32 %v5283, %v5286
    %v5288 = vrot.slane %v5287, 4
    %v5290 = vshll.u32 %v5225, 16
    %v5292 = vrot.slane %v5290, 5
    %v5293 = vsel %vm1704, %v5288, %v5292
    %v5295 = vshrl.u32 %v5226, 16
    %v5297 = vrot.slane %v5295, 4
    %v5298 = vshll.u32 %v5226, 16
    %v5300 = vrot.slane %v5298, 5
    %v5301 = vor.u32 %v5297, %v5300
    %v5302 = vrot.slane %v5301, 4
    %v5304 = vshll.u32 %v5227, 16
    %v5306 = vrot.slane %v5304, 5
    %v5307 = vsel %vm1704, %v5302, %v5306
    %v5309 = vshrl.u32 %v5228, 16
    %v5311 = vrot.slane %v5309, 4
    %v5312 = vshll.u32 %v5228, 16
    %v5314 = vrot.slane %v5312, 5
    %v5315 = vor.u32 %v5311, %v5314
    %v5316 = vrot.slane %v5315, 4
    %v5318 = vshll.u32 %v5229, 16
    %v5320 = vrot.slane %v5318, 5
    %v5321 = vsel %vm1704, %v5316, %v5320
    %v5323 = vshrl.u32 %v5230, 16
    %v5325 = vrot.slane %v5323, 4
    %v5326 = vshll.u32 %v5230, 16
    %v5328 = vrot.slane %v5326, 5
    %v5329 = vor.u32 %v5325, %v5328
    %v5330 = vrot.slane %v5329, 4
    %v5332 = vshll.u32 %v5231, 16
    %v5334 = vrot.slane %v5332, 5
    %v5335 = vsel %vm1704, %v5330, %v5334
    %v5337 = vshrl.u32 %v5232, 16
    %v5339 = vrot.slane %v5337, 4
    %v5340 = vshll.u32 %v5232, 16
    %v5342 = vrot.slane %v5340, 5
    %v5343 = vor.u32 %v5339, %v5342
    %v5344 = vrot.slane %v5343, 4
    %v5346 = vshll.u32 %v5233, 16
    %v5348 = vrot.slane %v5346, 5
    %v5349 = vsel %vm1704, %v5344, %v5348
    %v5351 = vshrl.u32 %v5234, 16
    %v5353 = vrot.slane %v5351, 4
    %v5354 = vshll.u32 %v5234, 16
    %v5356 = vrot.slane %v5354, 5
    %v5357 = vor.u32 %v5353, %v5356
    %v5358 = vrot.slane %v5357, 4
    %v5360 = vshll.u32 %v5235, 16
    %v5362 = vrot.slane %v5360, 5
    %v5363 = vsel %vm1704, %v5358, %v5362
    %v5365 = vshrl.u32 %v5236, 16
    %v5367 = vrot.slane %v5365, 4
    %v5368 = vshll.u32 %v5236, 16
    %v5370 = vrot.slane %v5368, 5
    %v5371 = vor.u32 %v5367, %v5370
    %v5372 = vrot.slane %v5371, 4
    %v5374 = vshll.u32 %v5237, 16
    %v5376 = vrot.slane %v5374, 5
    %v5377 = vsel %vm1704, %v5372, %v5376
    %v5379 = vshrl.u32 %v5238, 16
    %v5381 = vrot.slane %v5379, 4
    %v5382 = vshll.u32 %v5238, 16
    %v5384 = vrot.slane %v5382, 5
    %v5385 = vor.u32 %v5381, %v5384
    %v5386 = vrot.slane %v5385, 4
    %v5388 = vshll.u32 %v5239, 16
    %v5390 = vrot.slane %v5388, 5
    %v5391 = vsel %vm1704, %v5386, %v5390
    %v5393 = vshrl.u32 %v5240, 16
    %v5395 = vrot.slane %v5393, 4
    %v5396 = vshll.u32 %v5240, 16
    %v5398 = vrot.slane %v5396, 5
    %v5399 = vor.u32 %v5395, %v5398
    %v5400 = vrot.slane %v5399, 4
    %v5402 = vshll.u32 %v5241, 16
    %v5404 = vrot.slane %v5402, 5
    %v5405 = vsel %vm1704, %v5400, %v5404
    %v5407 = vshrl.u32 %v5242, 16
    %v5409 = vrot.slane %v5407, 4
    %v5410 = vshll.u32 %v5242, 16
    %v5412 = vrot.slane %v5410, 5
    %v5413 = vor.u32 %v5409, %v5412
    %v5414 = vrot.slane %v5413, 4
    %v5416 = vshll.u32 %v5243, 16
    %v5418 = vrot.slane %v5416, 5
    %v5419 = vsel %vm1704, %v5414, %v5418
    %v5421 = vshrl.u32 %v5244, 16
    %v5423 = vrot.slane %v5421, 4
    %v5424 = vshll.u32 %v5244, 16
    %v5426 = vrot.slane %v5424, 5
    %v5427 = vor.u32 %v5423, %v5426
    %v5428 = vrot.slane %v5427, 4
    %v5430 = vshll.u32 %v5245, 16
    %v5432 = vrot.slane %v5430, 5
    %v5433 = vsel %vm1704, %v5428, %v5432
    %v5435 = vshrl.u32 %v5246, 16
    %v5437 = vrot.slane %v5435, 4
    %v5438 = vshll.u32 %v5246, 16
    %v5440 = vrot.slane %v5438, 5
    %v5441 = vor.u32 %v5437, %v5440
    %v5442 = vrot.slane %v5441, 4
    %v5444 = vshll.u32 %v5247, 16
    %v5446 = vrot.slane %v5444, 5
    %v5447 = vsel %vm1704, %v5442, %v5446
    %v5449 = vshrl.u32 %v5248, 16
    %v5451 = vrot.slane %v5449, 4
    %v5452 = vshll.u32 %v5248, 16
    %v5454 = vrot.slane %v5452, 5
    %v5455 = vor.u32 %v5451, %v5454
    %v5456 = vrot.slane %v5455, 4
    %v5458 = vshll.u32 %v5249, 16
    %v5460 = vrot.slane %v5458, 5
    %v5461 = vsel %vm1704, %v5456, %v5460
    %v5463 = vshrl.u32 %v5250, 16
    %v5465 = vrot.slane %v5463, 4
    %v5466 = vshll.u32 %v5250, 16
    %v5468 = vrot.slane %v5466, 5
    %v5469 = vor.u32 %v5465, %v5468
    %v5470 = vrot.slane %v5469, 4
    %v5472 = vshll.u32 %v5251, 16
    %v5474 = vrot.slane %v5472, 5
    %v5475 = vsel %vm1704, %v5470, %v5474
    %s5476 = scalar_lea.vmem %s6, 16
    %v5477 = vld [vmem:[%s5476] sm:$0xf]
    %v5478 = vunpack.c.l.b16 %v5265
    %v5479 = vunpack.c.l.b16 %v5279
    %v5480 = vunpack.c.l.b16 %v5293
    %v5481 = vunpack.c.l.b16 %v5307
    %v5482 = vunpack.c.l.b16 %v5321
    %v5483 = vunpack.c.l.b16 %v5335
    %v5484 = vunpack.c.l.b16 %v5349
    %v5485 = vunpack.c.l.b16 %v5363
    %v5486 = vunpack.c.l.b16 %v5377
    %v5487 = vunpack.c.l.b16 %v5391
    %v5488 = vunpack.c.l.b16 %v5405
    %v5489 = vunpack.c.l.b16 %v5419
    %v5490 = vunpack.c.l.b16 %v5433
    %v5491 = vunpack.c.l.b16 %v5447
    %v5492 = vunpack.c.l.b16 %v5461
    %v5493 = vunpack.c.l.b16 %v5475
    %v5494 = vpack.c.b16 %v5479, %v5478
    %v5495 = vpack.c.b16 %v5481, %v5480
    %v5496 = vpack.c.b16 %v5483, %v5482
    %v5497 = vpack.c.b16 %v5485, %v5484
    %v5498 = vpack.c.b16 %v5487, %v5486
    %v5499 = vpack.c.b16 %v5489, %v5488
    %v5500 = vpack.c.b16 %v5491, %v5490
    %v5501 = vpack.c.b16 %v5493, %v5492
    %v5503 = vsel %vm4451, %v5494, 0
    %v5506 = vsel %vm4451, %v5495, 0
    %v5509 = vsel %vm4451, %v5496, 0
    %v5512 = vsel %vm4451, %v5497, 0
    %v5515 = vsel %vm4451, %v5498, 0
    %v5518 = vsel %vm4451, %v5499, 0
    %v5521 = vsel %vm4451, %v5500, 0
    %v5524 = vsel %vm4451, %v5501, 0
    %v5527 = vsel %vm4476, %v5477, 0
    %5529 = vmatprep.subr.bf16.mxu0 0
    %5530 = vmatpush1.bf16.msra.mxu0 %v5527
    %5531 = vmatprep.subr.bf16.mxu0 0
    %5532 = vmatpush1.bf16.msra.mxu0 0
    %5533 = vmatprep.subr.bf16.mxu0 0
    %5534 = vmatpush1.bf16.msra.mxu0 0
    %5535 = vmatprep.subr.bf16.mxu0 0
    %5536 = vmatpush1.bf16.msra.mxu0 0
    %5537 = vmatprep.subr.bf16.mxu0 0
    %5538 = vmatpush1.bf16.msra.mxu0 0
    %5539 = vmatprep.subr.bf16.mxu0 0
    %5540 = vmatpush1.bf16.msra.mxu0 0
    %5541 = vmatprep.subr.bf16.mxu0 0
    %5542 = vmatpush1.bf16.msra.mxu0 0
    %5543 = vmatprep.subr.bf16.mxu0 0
    %5544 = vmatpush1.bf16.msra.mxu0 0
    %5545 = vmatprep.subr.bf16.mxu0 0
    %5546 = vmatpush1.bf16.msra.mxu0 0
    %5547 = vmatprep.subr.bf16.mxu0 0
    %5548 = vmatpush1.bf16.msra.mxu0 0
    %5549 = vmatprep.subr.bf16.mxu0 0
    %5550 = vmatpush1.bf16.msra.mxu0 0
    %5551 = vmatprep.subr.bf16.mxu0 0
    %5552 = vmatpush1.bf16.msra.mxu0 0
    %5553 = vmatprep.subr.bf16.mxu0 0
    %5554 = vmatpush1.bf16.msra.mxu0 0
    %5555 = vmatprep.subr.bf16.mxu0 0
    %5556 = vmatpush1.bf16.msra.mxu0 0
    %5557 = vmatprep.subr.bf16.mxu0 0
    %5558 = vmatpush1.bf16.msra.mxu0 0
    %5559 = vmatprep.subr.bf16.mxu0 0
    %5560 = vmatpush1.bf16.msra.mxu0 0
    %5561 = vmatprep.mubr.bf16.mxu0 0
    %5562 = vmatmul.mubr.bf16.gmra.mrb[0].mxu0 %v5503
    %v5563 = vpop.f32.mrb[0].mxu0
    %v5564 = vadd.f32 0.0, %v5563
    %v5565 = vpop.f32.mrb[0].mxu0
    %v5566 = vpop.f32.mrb[0].mxu0
    %v5567 = vadd.f32 0.0, %v5566
    %v5568 = vpop.f32.mrb[0].mxu0
    %5569 = vmatprep.mubr.bf16.mxu0 0
    %5570 = vmatmul.mubr.bf16.gmra.mrb[0].mxu0 %v5506
    %v5571 = vpop.f32.mrb[0].mxu0
    %v5572 = vadd.f32 0.0, %v5571
    %v5573 = vpop.f32.mrb[0].mxu0
    %v5574 = vpop.f32.mrb[0].mxu0
    %v5575 = vadd.f32 0.0, %v5574
    %v5576 = vpop.f32.mrb[0].mxu0
    %5577 = vmatprep.mubr.bf16.mxu0 0
    %5578 = vmatmul.mubr.bf16.gmra.mrb[0].mxu0 %v5509
    %v5579 = vpop.f32.mrb[0].mxu0
    %v5580 = vadd.f32 0.0, %v5579
    %v5581 = vpop.f32.mrb[0].mxu0
    %v5582 = vpop.f32.mrb[0].mxu0
    %v5583 = vadd.f32 0.0, %v5582
    %v5584 = vpop.f32.mrb[0].mxu0
    %5585 = vmatprep.mubr.bf16.mxu0 0
    %5586 = vmatmul.mubr.bf16.gmra.mrb[0].mxu0 %v5512
    %v5587 = vpop.f32.mrb[0].mxu0
    %v5588 = vadd.f32 0.0, %v5587
    %v5589 = vpop.f32.mrb[0].mxu0
    %v5590 = vpop.f32.mrb[0].mxu0
    %v5591 = vadd.f32 0.0, %v5590
    %v5592 = vpop.f32.mrb[0].mxu0
    %5593 = vmatprep.mubr.bf16.mxu0 0
    %5594 = vmatmul.mubr.bf16.gmra.mrb[0].mxu0 %v5515
    %v5595 = vpop.f32.mrb[0].mxu0
    %v5596 = vadd.f32 0.0, %v5595
    %v5597 = vpop.f32.mrb[0].mxu0
    %v5598 = vpop.f32.mrb[0].mxu0
    %v5599 = vadd.f32 0.0, %v5598
    %v5600 = vpop.f32.mrb[0].mxu0
    %5601 = vmatprep.mubr.bf16.mxu0 0
    %5602 = vmatmul.mubr.bf16.gmra.mrb[0].mxu0 %v5518
    %v5603 = vpop.f32.mrb[0].mxu0
    %v5604 = vadd.f32 0.0, %v5603
    %v5605 = vpop.f32.mrb[0].mxu0
    %v5606 = vpop.f32.mrb[0].mxu0
    %v5607 = vadd.f32 0.0, %v5606
    %v5608 = vpop.f32.mrb[0].mxu0
    %5609 = vmatprep.mubr.bf16.mxu0 0
    %5610 = vmatmul.mubr.bf16.gmra.mrb[0].mxu0 %v5521
    %v5611 = vpop.f32.mrb[0].mxu0
    %v5612 = vadd.f32 0.0, %v5611
    %v5613 = vpop.f32.mrb[0].mxu0
    %v5614 = vpop.f32.mrb[0].mxu0
    %v5615 = vadd.f32 0.0, %v5614
    %v5616 = vpop.f32.mrb[0].mxu0
    %5617 = vmatprep.mubr.bf16.mxu0 0
    %5618 = vmatmul.mubr.bf16.gmra.mrb[0].mxu0 %v5524
    %v5619 = vpop.f32.mrb[0].mxu0
    %v5620 = vadd.f32 0.0, %v5619
    %v5621 = vpop.f32.mrb[0].mxu0
    %v5622 = vpop.f32.mrb[0].mxu0
    %v5623 = vadd.f32 0.0, %v5622
    %v5624 = vpop.f32.mrb[0].mxu0
    %5625 = vdwg.mxu0
    %v5626 = vadd.f32 %v5204, %v5564
    %v5627 = vadd.f32 %v5205, %v5567
    %v5628 = vadd.f32 %v5206, %v5572
    %v5629 = vadd.f32 %v5207, %v5575
    %v5630 = vadd.f32 %v5208, %v5580
    %v5631 = vadd.f32 %v5209, %v5583
    %v5632 = vadd.f32 %v5210, %v5588
    %v5633 = vadd.f32 %v5211, %v5591
    %v5634 = vadd.f32 %v5212, %v5596
    %v5635 = vadd.f32 %v5213, %v5599
    %v5636 = vadd.f32 %v5214, %v5604
    %v5637 = vadd.f32 %v5215, %v5607
    %v5638 = vadd.f32 %v5216, %v5612
    %v5639 = vadd.f32 %v5217, %v5615
    %v5640 = vadd.f32 %v5218, %v5620
    %v5641 = vadd.f32 %v5219, %v5623
    %v5642 = vld [vmem:[%s4069] sm:$0xe]
    %v5643 = vld [vmem:[%s4069 + $0x8] sm:$0xe]
    %v5644 = vld [vmem:[%s4069 + $0x10] sm:$0xe]
    %v5645 = vld [vmem:[%s4069 + $0x18] sm:$0xe]
    %v5646 = vld [vmem:[%s4069 + $0x20] sm:$0xe]
    %v5647 = vld [vmem:[%s4069 + $0x28] sm:$0xe]
    %v5648 = vld [vmem:[%s4069 + $0x30] sm:$0xe]
    %v5649 = vld [vmem:[%s4069 + $0x38] sm:$0xe]
    %v5650 = vld [vmem:[%s4069 + $0x50] sm:$0xe]
    %v5651 = vld [vmem:[%s4069 + $0x58] sm:$0xe]
    %v5652 = vld [vmem:[%s4069 + $0x60] sm:$0xe]
    %v5653 = vld [vmem:[%s4069 + $0x68] sm:$0xe]
    %v5654 = vld [vmem:[%s4069 + $0x70] sm:$0xe]
    %v5655 = vld [vmem:[%s4069 + $0x78] sm:$0xe]
    %v5656 = vld [vmem:[%s4069 + $0x80] sm:$0xe]
    %v5657 = vld [vmem:[%s4069 + $0x88] sm:$0xe]
    %v5690 = vrot.slane %v5642, 5
    %v5691 = vrot.slane %v5690, 4
    %v5692 = vrot.slane %v5221, 5
    %v5693 = vsel %vm4791, %v5691, %v5692
    %v5694 = vrot.slane %v5643, 5
    %v5695 = vrot.slane %v5694, 4
    %v5696 = vrot.slane %v5223, 5
    %v5697 = vsel %vm4791, %v5695, %v5696
    %v5698 = vrot.slane %v5644, 5
    %v5699 = vrot.slane %v5698, 4
    %v5700 = vrot.slane %v5225, 5
    %v5701 = vsel %vm4791, %v5699, %v5700
    %v5702 = vrot.slane %v5645, 5
    %v5703 = vrot.slane %v5702, 4
    %v5704 = vrot.slane %v5227, 5
    %v5705 = vsel %vm4791, %v5703, %v5704
    %v5706 = vrot.slane %v5646, 5
    %v5707 = vrot.slane %v5706, 4
    %v5708 = vrot.slane %v5229, 5
    %v5709 = vsel %vm4791, %v5707, %v5708
    %v5710 = vrot.slane %v5647, 5
    %v5711 = vrot.slane %v5710, 4
    %v5712 = vrot.slane %v5231, 5
    %v5713 = vsel %vm4791, %v5711, %v5712
    %v5714 = vrot.slane %v5648, 5
    %v5715 = vrot.slane %v5714, 4
    %v5716 = vrot.slane %v5233, 5
    %v5717 = vsel %vm4791, %v5715, %v5716
    %v5718 = vrot.slane %v5649, 5
    %v5719 = vrot.slane %v5718, 4
    %v5720 = vrot.slane %v5235, 5
    %v5721 = vsel %vm4791, %v5719, %v5720
    %v5722 = vrot.slane %v5650, 5
    %v5723 = vrot.slane %v5722, 4
    %v5724 = vrot.slane %v5237, 5
    %v5725 = vsel %vm4791, %v5723, %v5724
    %v5726 = vrot.slane %v5651, 5
    %v5727 = vrot.slane %v5726, 4
    %v5728 = vrot.slane %v5239, 5
    %v5729 = vsel %vm4791, %v5727, %v5728
    %v5730 = vrot.slane %v5652, 5
    %v5731 = vrot.slane %v5730, 4
    %v5732 = vrot.slane %v5241, 5
    %v5733 = vsel %vm4791, %v5731, %v5732
    %v5734 = vrot.slane %v5653, 5
    %v5735 = vrot.slane %v5734, 4
    %v5736 = vrot.slane %v5243, 5
    %v5737 = vsel %vm4791, %v5735, %v5736
    %v5738 = vrot.slane %v5654, 5
    %v5739 = vrot.slane %v5738, 4
    %v5740 = vrot.slane %v5245, 5
    %v5741 = vsel %vm4791, %v5739, %v5740
    %v5742 = vrot.slane %v5655, 5
    %v5743 = vrot.slane %v5742, 4
    %v5744 = vrot.slane %v5247, 5
    %v5745 = vsel %vm4791, %v5743, %v5744
    %v5746 = vrot.slane %v5656, 5
    %v5747 = vrot.slane %v5746, 4
    %v5748 = vrot.slane %v5249, 5
    %v5749 = vsel %vm4791, %v5747, %v5748
    %v5750 = vrot.slane %v5657, 5
    %v5751 = vrot.slane %v5750, 4
    %v5752 = vrot.slane %v5251, 5
    %v5753 = vsel %vm4791, %v5751, %v5752
    %s5754 = scalar_lea.vmem %s6, 20
    %v5755 = vld [vmem:[%s5754] sm:$0xf]
    %v5756 = vunpack.c.l.b16 %v5693
    %v5757 = vunpack.c.l.b16 %v5697
    %v5758 = vunpack.c.l.b16 %v5701
    %v5759 = vunpack.c.l.b16 %v5705
    %v5760 = vunpack.c.l.b16 %v5709
    %v5761 = vunpack.c.l.b16 %v5713
    %v5762 = vunpack.c.l.b16 %v5717
    %v5763 = vunpack.c.l.b16 %v5721
    %v5764 = vunpack.c.l.b16 %v5725
    %v5765 = vunpack.c.l.b16 %v5729
    %v5766 = vunpack.c.l.b16 %v5733
    %v5767 = vunpack.c.l.b16 %v5737
    %v5768 = vunpack.c.l.b16 %v5741
    %v5769 = vunpack.c.l.b16 %v5745
    %v5770 = vunpack.c.l.b16 %v5749
    %v5771 = vunpack.c.l.b16 %v5753
    %v5772 = vpack.c.b16 %v5757, %v5756
    %v5773 = vpack.c.b16 %v5759, %v5758
    %v5774 = vpack.c.b16 %v5761, %v5760
    %v5775 = vpack.c.b16 %v5763, %v5762
    %v5776 = vpack.c.b16 %v5765, %v5764
    %v5777 = vpack.c.b16 %v5767, %v5766
    %v5778 = vpack.c.b16 %v5769, %v5768
    %v5779 = vpack.c.b16 %v5771, %v5770
    %v5781 = vsel %vm4451, %v5772, 0
    %v5784 = vsel %vm4451, %v5773, 0
    %v5787 = vsel %vm4451, %v5774, 0
    %v5790 = vsel %vm4451, %v5775, 0
    %v5793 = vsel %vm4451, %v5776, 0
    %v5796 = vsel %vm4451, %v5777, 0
    %v5799 = vsel %vm4451, %v5778, 0
    %v5802 = vsel %vm4451, %v5779, 0
    %v5805 = vsel %vm4476, %v5755, 0
    %5807 = vmatprep.subr.bf16.mxu0 0
    %5808 = vmatpush1.bf16.msra.mxu0 %v5805
    %5809 = vmatprep.subr.bf16.mxu0 0
    %5810 = vmatpush1.bf16.msra.mxu0 0
    %5811 = vmatprep.subr.bf16.mxu0 0
    %5812 = vmatpush1.bf16.msra.mxu0 0
    %5813 = vmatprep.subr.bf16.mxu0 0
    %5814 = vmatpush1.bf16.msra.mxu0 0
    %5815 = vmatprep.subr.bf16.mxu0 0
    %5816 = vmatpush1.bf16.msra.mxu0 0
    %5817 = vmatprep.subr.bf16.mxu0 0
    %5818 = vmatpush1.bf16.msra.mxu0 0
    %5819 = vmatprep.subr.bf16.mxu0 0
    %5820 = vmatpush1.bf16.msra.mxu0 0
    %5821 = vmatprep.subr.bf16.mxu0 0
    %5822 = vmatpush1.bf16.msra.mxu0 0
    %5823 = vmatprep.subr.bf16.mxu0 0
    %5824 = vmatpush1.bf16.msra.mxu0 0
    %5825 = vmatprep.subr.bf16.mxu0 0
    %5826 = vmatpush1.bf16.msra.mxu0 0
    %5827 = vmatprep.subr.bf16.mxu0 0
    %5828 = vmatpush1.bf16.msra.mxu0 0
    %5829 = vmatprep.subr.bf16.mxu0 0
    %5830 = vmatpush1.bf16.msra.mxu0 0
    %5831 = vmatprep.subr.bf16.mxu0 0
    %5832 = vmatpush1.bf16.msra.mxu0 0
    %5833 = vmatprep.subr.bf16.mxu0 0
    %5834 = vmatpush1.bf16.msra.mxu0 0
    %5835 = vmatprep.subr.bf16.mxu0 0
    %5836 = vmatpush1.bf16.msra.mxu0 0
    %5837 = vmatprep.subr.bf16.mxu0 0
    %5838 = vmatpush1.bf16.msra.mxu0 0
    %5839 = vmatprep.mubr.bf16.mxu0 0
    %5840 = vmatmul.mubr.bf16.gmra.mrb[0].mxu0 %v5781
    %v5841 = vpop.f32.mrb[0].mxu0
    %v5842 = vadd.f32 0.0, %v5841
    %v5843 = vpop.f32.mrb[0].mxu0
    %v5844 = vpop.f32.mrb[0].mxu0
    %v5845 = vadd.f32 0.0, %v5844
    %v5846 = vpop.f32.mrb[0].mxu0
    %5847 = vmatprep.mubr.bf16.mxu0 0
    %5848 = vmatmul.mubr.bf16.gmra.mrb[0].mxu0 %v5784
    %v5849 = vpop.f32.mrb[0].mxu0
    %v5850 = vadd.f32 0.0, %v5849
    %v5851 = vpop.f32.mrb[0].mxu0
    %v5852 = vpop.f32.mrb[0].mxu0
    %v5853 = vadd.f32 0.0, %v5852
    %v5854 = vpop.f32.mrb[0].mxu0
    %5855 = vmatprep.mubr.bf16.mxu0 0
    %5856 = vmatmul.mubr.bf16.gmra.mrb[0].mxu0 %v5787
    %v5857 = vpop.f32.mrb[0].mxu0
    %v5858 = vadd.f32 0.0, %v5857
    %v5859 = vpop.f32.mrb[0].mxu0
    %v5860 = vpop.f32.mrb[0].mxu0
    %v5861 = vadd.f32 0.0, %v5860
    %v5862 = vpop.f32.mrb[0].mxu0
    %5863 = vmatprep.mubr.bf16.mxu0 0
    %5864 = vmatmul.mubr.bf16.gmra.mrb[0].mxu0 %v5790
    %v5865 = vpop.f32.mrb[0].mxu0
    %v5866 = vadd.f32 0.0, %v5865
    %v5867 = vpop.f32.mrb[0].mxu0
    %v5868 = vpop.f32.mrb[0].mxu0
    %v5869 = vadd.f32 0.0, %v5868
    %v5870 = vpop.f32.mrb[0].mxu0
    %5871 = vmatprep.mubr.bf16.mxu0 0
    %5872 = vmatmul.mubr.bf16.gmra.mrb[0].mxu0 %v5793
    %v5873 = vpop.f32.mrb[0].mxu0
    %v5874 = vadd.f32 0.0, %v5873
    %v5875 = vpop.f32.mrb[0].mxu0
    %v5876 = vpop.f32.mrb[0].mxu0
    %v5877 = vadd.f32 0.0, %v5876
    %v5878 = vpop.f32.mrb[0].mxu0
    %5879 = vmatprep.mubr.bf16.mxu0 0
    %5880 = vmatmul.mubr.bf16.gmra.mrb[0].mxu0 %v5796
    %v5881 = vpop.f32.mrb[0].mxu0
    %v5882 = vadd.f32 0.0, %v5881
    %v5883 = vpop.f32.mrb[0].mxu0
    %v5884 = vpop.f32.mrb[0].mxu0
    %v5885 = vadd.f32 0.0, %v5884
    %v5886 = vpop.f32.mrb[0].mxu0
    %5887 = vmatprep.mubr.bf16.mxu0 0
    %5888 = vmatmul.mubr.bf16.gmra.mrb[0].mxu0 %v5799
    %v5889 = vpop.f32.mrb[0].mxu0
    %v5890 = vadd.f32 0.0, %v5889
    %v5891 = vpop.f32.mrb[0].mxu0
    %v5892 = vpop.f32.mrb[0].mxu0
    %v5893 = vadd.f32 0.0, %v5892
    %v5894 = vpop.f32.mrb[0].mxu0
    %5895 = vmatprep.mubr.bf16.mxu0 0
    %5896 = vmatmul.mubr.bf16.gmra.mrb[0].mxu0 %v5802
    %v5897 = vpop.f32.mrb[0].mxu0
    %v5898 = vadd.f32 0.0, %v5897
    %v5899 = vpop.f32.mrb[0].mxu0
    %v5900 = vpop.f32.mrb[0].mxu0
    %v5901 = vadd.f32 0.0, %v5900
    %v5902 = vpop.f32.mrb[0].mxu0
    %5903 = vdwg.mxu0
    %v5904 = vadd.f32 %v5626, %v5842
    %v5905 = vadd.f32 %v5627, %v5845
    %v5906 = vadd.f32 %v5628, %v5850
    %v5907 = vadd.f32 %v5629, %v5853
    %v5908 = vadd.f32 %v5630, %v5858
    %v5909 = vadd.f32 %v5631, %v5861
    %v5910 = vadd.f32 %v5632, %v5866
    %v5911 = vadd.f32 %v5633, %v5869
    %v5912 = vadd.f32 %v5634, %v5874
    %v5913 = vadd.f32 %v5635, %v5877
    %v5914 = vadd.f32 %v5636, %v5882
    %v5915 = vadd.f32 %v5637, %v5885
    %v5916 = vadd.f32 %v5638, %v5890
    %v5917 = vadd.f32 %v5639, %v5893
    %v5918 = vadd.f32 %v5640, %v5898
    %v5919 = vadd.f32 %v5641, %v5901
    %s5920 = scalar_lea.vmem [#allocation3], 16
    %v5921 = vld [vmem:[%s5920] sm:$0xf]
    %v5922 = vld [vmem:[%s5920 + $0x8] sm:$0xf]
    %v5923 = vld [vmem:[%s5920 + $0x10] sm:$0xf]
    %v5924 = vld [vmem:[%s5920 + $0x18] sm:$0xf]
    %v5925 = vld [vmem:[%s5920 + $0x20] sm:$0xf]
    %v5926 = vld [vmem:[%s5920 + $0x28] sm:$0xf]
    %v5927 = vld [vmem:[%s5920 + $0x30] sm:$0xf]
    %v5928 = vld [vmem:[%s5920 + $0x38] sm:$0xf]
    %v5929 = vld [vmem:[%s5920 + $0x50] sm:$0xf]
    %v5930 = vld [vmem:[%s5920 + $0x58] sm:$0xf]
    %v5931 = vld [vmem:[%s5920 + $0x60] sm:$0xf]
    %v5932 = vld [vmem:[%s5920 + $0x68] sm:$0xf]
    %v5933 = vld [vmem:[%s5920 + $0x70] sm:$0xf]
    %v5934 = vld [vmem:[%s5920 + $0x78] sm:$0xf]
    %v5935 = vld [vmem:[%s5920 + $0x80] sm:$0xf]
    %v5936 = vld [vmem:[%s5920 + $0x88] sm:$0xf]
    %s5937 = scalar_lea.vmem %s6, 24
    %v5938 = vld [vmem:[%s5937] sm:$0xf]
    %v5955 = vunpack.c.l.b16 %v5921
    %v5956 = vunpack.c.l.b16 %v5922
    %v5957 = vunpack.c.l.b16 %v5923
    %v5958 = vunpack.c.l.b16 %v5924
    %v5959 = vunpack.c.l.b16 %v5925
    %v5960 = vunpack.c.l.b16 %v5926
    %v5961 = vunpack.c.l.b16 %v5927
    %v5962 = vunpack.c.l.b16 %v5928
    %v5963 = vunpack.c.l.b16 %v5929
    %v5964 = vunpack.c.l.b16 %v5930
    %v5965 = vunpack.c.l.b16 %v5931
    %v5966 = vunpack.c.l.b16 %v5932
    %v5967 = vunpack.c.l.b16 %v5933
    %v5968 = vunpack.c.l.b16 %v5934
    %v5969 = vunpack.c.l.b16 %v5935
    %v5970 = vunpack.c.l.b16 %v5936
    %v5971 = vpack.c.b16 %v5956, %v5955
    %v5972 = vpack.c.b16 %v5958, %v5957
    %v5973 = vpack.c.b16 %v5960, %v5959
    %v5974 = vpack.c.b16 %v5962, %v5961
    %v5975 = vpack.c.b16 %v5964, %v5963
    %v5976 = vpack.c.b16 %v5966, %v5965
    %v5977 = vpack.c.b16 %v5968, %v5967
    %v5978 = vpack.c.b16 %v5970, %v5969
    %v5980 = vsel %vm4451, %v5971, 0
    %v5983 = vsel %vm4451, %v5972, 0
    %v5986 = vsel %vm4451, %v5973, 0
    %v5989 = vsel %vm4451, %v5974, 0
    %v5992 = vsel %vm4451, %v5975, 0
    %v5995 = vsel %vm4451, %v5976, 0
    %v5998 = vsel %vm4451, %v5977, 0
    %v6001 = vsel %vm4451, %v5978, 0
    %v6004 = vsel %vm4476, %v5938, 0
    %6006 = vmatprep.subr.bf16.mxu0 0
    %6007 = vmatpush1.bf16.msra.mxu0 %v6004
    %6008 = vmatprep.subr.bf16.mxu0 0
    %6009 = vmatpush1.bf16.msra.mxu0 0
    %6010 = vmatprep.subr.bf16.mxu0 0
    %6011 = vmatpush1.bf16.msra.mxu0 0
    %6012 = vmatprep.subr.bf16.mxu0 0
    %6013 = vmatpush1.bf16.msra.mxu0 0
    %6014 = vmatprep.subr.bf16.mxu0 0
    %6015 = vmatpush1.bf16.msra.mxu0 0
    %6016 = vmatprep.subr.bf16.mxu0 0
    %6017 = vmatpush1.bf16.msra.mxu0 0
    %6018 = vmatprep.subr.bf16.mxu0 0
    %6019 = vmatpush1.bf16.msra.mxu0 0
    %6020 = vmatprep.subr.bf16.mxu0 0
    %6021 = vmatpush1.bf16.msra.mxu0 0
    %6022 = vmatprep.subr.bf16.mxu0 0
    %6023 = vmatpush1.bf16.msra.mxu0 0
    %6024 = vmatprep.subr.bf16.mxu0 0
    %6025 = vmatpush1.bf16.msra.mxu0 0
    %6026 = vmatprep.subr.bf16.mxu0 0
    %6027 = vmatpush1.bf16.msra.mxu0 0
    %6028 = vmatprep.subr.bf16.mxu0 0
    %6029 = vmatpush1.bf16.msra.mxu0 0
    %6030 = vmatprep.subr.bf16.mxu0 0
    %6031 = vmatpush1.bf16.msra.mxu0 0
    %6032 = vmatprep.subr.bf16.mxu0 0
    %6033 = vmatpush1.bf16.msra.mxu0 0
    %6034 = vmatprep.subr.bf16.mxu0 0
    %6035 = vmatpush1.bf16.msra.mxu0 0
    %6036 = vmatprep.subr.bf16.mxu0 0
    %6037 = vmatpush1.bf16.msra.mxu0 0
    %6038 = vmatprep.mubr.bf16.mxu0 0
    %6039 = vmatmul.mubr.bf16.gmra.mrb[0].mxu0 %v5980
    %v6040 = vpop.f32.mrb[0].mxu0
    %v6041 = vadd.f32 0.0, %v6040
    %v6042 = vpop.f32.mrb[0].mxu0
    %v6043 = vpop.f32.mrb[0].mxu0
    %v6044 = vadd.f32 0.0, %v6043
    %v6045 = vpop.f32.mrb[0].mxu0
    %6046 = vmatprep.mubr.bf16.mxu0 0
    %6047 = vmatmul.mubr.bf16.gmra.mrb[0].mxu0 %v5983
    %v6048 = vpop.f32.mrb[0].mxu0
    %v6049 = vadd.f32 0.0, %v6048
    %v6050 = vpop.f32.mrb[0].mxu0
    %v6051 = vpop.f32.mrb[0].mxu0
    %v6052 = vadd.f32 0.0, %v6051
    %v6053 = vpop.f32.mrb[0].mxu0
    %6054 = vmatprep.mubr.bf16.mxu0 0
    %6055 = vmatmul.mubr.bf16.gmra.mrb[0].mxu0 %v5986
    %v6056 = vpop.f32.mrb[0].mxu0
    %v6057 = vadd.f32 0.0, %v6056
    %v6058 = vpop.f32.mrb[0].mxu0
    %v6059 = vpop.f32.mrb[0].mxu0
    %v6060 = vadd.f32 0.0, %v6059
    %v6061 = vpop.f32.mrb[0].mxu0
    %6062 = vmatprep.mubr.bf16.mxu0 0
    %6063 = vmatmul.mubr.bf16.gmra.mrb[0].mxu0 %v5989
    %v6064 = vpop.f32.mrb[0].mxu0
    %v6065 = vadd.f32 0.0, %v6064
    %v6066 = vpop.f32.mrb[0].mxu0
    %v6067 = vpop.f32.mrb[0].mxu0
    %v6068 = vadd.f32 0.0, %v6067
    %v6069 = vpop.f32.mrb[0].mxu0
    %6070 = vmatprep.mubr.bf16.mxu0 0
    %6071 = vmatmul.mubr.bf16.gmra.mrb[0].mxu0 %v5992
    %v6072 = vpop.f32.mrb[0].mxu0
    %v6073 = vadd.f32 0.0, %v6072
    %v6074 = vpop.f32.mrb[0].mxu0
    %v6075 = vpop.f32.mrb[0].mxu0
    %v6076 = vadd.f32 0.0, %v6075
    %v6077 = vpop.f32.mrb[0].mxu0
    %6078 = vmatprep.mubr.bf16.mxu0 0
    %6079 = vmatmul.mubr.bf16.gmra.mrb[0].mxu0 %v5995
    %v6080 = vpop.f32.mrb[0].mxu0
    %v6081 = vadd.f32 0.0, %v6080
    %v6082 = vpop.f32.mrb[0].mxu0
    %v6083 = vpop.f32.mrb[0].mxu0
    %v6084 = vadd.f32 0.0, %v6083
    %v6085 = vpop.f32.mrb[0].mxu0
    %6086 = vmatprep.mubr.bf16.mxu0 0
    %6087 = vmatmul.mubr.bf16.gmra.mrb[0].mxu0 %v5998
    %v6088 = vpop.f32.mrb[0].mxu0
    %v6089 = vadd.f32 0.0, %v6088
    %v6090 = vpop.f32.mrb[0].mxu0
    %v6091 = vpop.f32.mrb[0].mxu0
    %v6092 = vadd.f32 0.0, %v6091
    %v6093 = vpop.f32.mrb[0].mxu0
    %6094 = vmatprep.mubr.bf16.mxu0 0
    %6095 = vmatmul.mubr.bf16.gmra.mrb[0].mxu0 %v6001
    %v6096 = vpop.f32.mrb[0].mxu0
    %v6097 = vadd.f32 0.0, %v6096
    %v6098 = vpop.f32.mrb[0].mxu0
    %v6099 = vpop.f32.mrb[0].mxu0
    %v6100 = vadd.f32 0.0, %v6099
    %v6101 = vpop.f32.mrb[0].mxu0
    %6102 = vdwg.mxu0
    %v6103 = vadd.f32 %v5904, %v6041
    %v6104 = vadd.f32 %v5905, %v6044
    %v6105 = vadd.f32 %v5906, %v6049
    %v6106 = vadd.f32 %v5907, %v6052
    %v6107 = vadd.f32 %v5908, %v6057
    %v6108 = vadd.f32 %v5909, %v6060
    %v6109 = vadd.f32 %v5910, %v6065
    %v6110 = vadd.f32 %v5911, %v6068
    %v6111 = vadd.f32 %v5912, %v6073
    %v6112 = vadd.f32 %v5913, %v6076
    %v6113 = vadd.f32 %v5914, %v6081
    %v6114 = vadd.f32 %v5915, %v6084
    %v6115 = vadd.f32 %v5916, %v6089
    %v6116 = vadd.f32 %v5917, %v6092
    %v6117 = vadd.f32 %v5918, %v6097
    %v6118 = vadd.f32 %v5919, %v6100
    %v6119 = vld [vmem:[%s5920] sm:$0xf]
    %v6120 = vld [vmem:[%s5920 + $0x4] sm:$0x1]
    %v6121 = vld [vmem:[%s5920 + $0x8] sm:$0xf]
    %v6122 = vld [vmem:[%s5920 + $0xc] sm:$0x1]
    %v6123 = vld [vmem:[%s5920 + $0x10] sm:$0xf]
    %v6124 = vld [vmem:[%s5920 + $0x14] sm:$0x1]
    %v6125 = vld [vmem:[%s5920 + $0x18] sm:$0xf]
    %v6126 = vld [vmem:[%s5920 + $0x1c] sm:$0x1]
    %v6127 = vld [vmem:[%s5920 + $0x20] sm:$0xf]
    %v6128 = vld [vmem:[%s5920 + $0x24] sm:$0x1]
    %v6129 = vld [vmem:[%s5920 + $0x28] sm:$0xf]
    %v6130 = vld [vmem:[%s5920 + $0x2c] sm:$0x1]
    %v6131 = vld [vmem:[%s5920 + $0x30] sm:$0xf]
    %v6132 = vld [vmem:[%s5920 + $0x34] sm:$0x1]
    %v6133 = vld [vmem:[%s5920 + $0x38] sm:$0xf]
    %v6134 = vld [vmem:[%s5920 + $0x3c] sm:$0x1]
    %v6135 = vld [vmem:[%s5920 + $0x50] sm:$0xf]
    %v6136 = vld [vmem:[%s5920 + $0x54] sm:$0x1]
    %v6137 = vld [vmem:[%s5920 + $0x58] sm:$0xf]
    %v6138 = vld [vmem:[%s5920 + $0x5c] sm:$0x1]
    %v6139 = vld [vmem:[%s5920 + $0x60] sm:$0xf]
    %v6140 = vld [vmem:[%s5920 + $0x64] sm:$0x1]
    %v6141 = vld [vmem:[%s5920 + $0x68] sm:$0xf]
    %v6142 = vld [vmem:[%s5920 + $0x6c] sm:$0x1]
    %v6143 = vld [vmem:[%s5920 + $0x70] sm:$0xf]
    %v6144 = vld [vmem:[%s5920 + $0x74] sm:$0x1]
    %v6145 = vld [vmem:[%s5920 + $0x78] sm:$0xf]
    %v6146 = vld [vmem:[%s5920 + $0x7c] sm:$0x1]
    %v6147 = vld [vmem:[%s5920 + $0x80] sm:$0xf]
    %v6148 = vld [vmem:[%s5920 + $0x84] sm:$0x1]
    %v6149 = vld [vmem:[%s5920 + $0x88] sm:$0xf]
    %v6150 = vld [vmem:[%s5920 + $0x8c] sm:$0x1]
    %v6152 = vshrl.u32 %v6119, 16
    %v6154 = vrot.slane %v6152, 4
    %v6155 = vshll.u32 %v6119, 16
    %v6157 = vrot.slane %v6155, 5
    %v6158 = vor.u32 %v6154, %v6157
    %v6159 = vrot.slane %v6158, 4
    %v6161 = vshll.u32 %v6120, 16
    %v6163 = vrot.slane %v6161, 5
    %v6164 = vsel %vm1704, %v6159, %v6163
    %v6166 = vshrl.u32 %v6121, 16
    %v6168 = vrot.slane %v6166, 4
    %v6169 = vshll.u32 %v6121, 16
    %v6171 = vrot.slane %v6169, 5
    %v6172 = vor.u32 %v6168, %v6171
    %v6173 = vrot.slane %v6172, 4
    %v6175 = vshll.u32 %v6122, 16
    %v6177 = vrot.slane %v6175, 5
    %v6178 = vsel %vm1704, %v6173, %v6177
    %v6180 = vshrl.u32 %v6123, 16
    %v6182 = vrot.slane %v6180, 4
    %v6183 = vshll.u32 %v6123, 16
    %v6185 = vrot.slane %v6183, 5
    %v6186 = vor.u32 %v6182, %v6185
    %v6187 = vrot.slane %v6186, 4
    %v6189 = vshll.u32 %v6124, 16
    %v6191 = vrot.slane %v6189, 5
    %v6192 = vsel %vm1704, %v6187, %v6191
    %v6194 = vshrl.u32 %v6125, 16
    %v6196 = vrot.slane %v6194, 4
    %v6197 = vshll.u32 %v6125, 16
    %v6199 = vrot.slane %v6197, 5
    %v6200 = vor.u32 %v6196, %v6199
    %v6201 = vrot.slane %v6200, 4
    %v6203 = vshll.u32 %v6126, 16
    %v6205 = vrot.slane %v6203, 5
    %v6206 = vsel %vm1704, %v6201, %v6205
    %v6208 = vshrl.u32 %v6127, 16
    %v6210 = vrot.slane %v6208, 4
    %v6211 = vshll.u32 %v6127, 16
    %v6213 = vrot.slane %v6211, 5
    %v6214 = vor.u32 %v6210, %v6213
    %v6215 = vrot.slane %v6214, 4
    %v6217 = vshll.u32 %v6128, 16
    %v6219 = vrot.slane %v6217, 5
    %v6220 = vsel %vm1704, %v6215, %v6219
    %v6222 = vshrl.u32 %v6129, 16
    %v6224 = vrot.slane %v6222, 4
    %v6225 = vshll.u32 %v6129, 16
    %v6227 = vrot.slane %v6225, 5
    %v6228 = vor.u32 %v6224, %v6227
    %v6229 = vrot.slane %v6228, 4
    %v6231 = vshll.u32 %v6130, 16
    %v6233 = vrot.slane %v6231, 5
    %v6234 = vsel %vm1704, %v6229, %v6233
    %v6236 = vshrl.u32 %v6131, 16
    %v6238 = vrot.slane %v6236, 4
    %v6239 = vshll.u32 %v6131, 16
    %v6241 = vrot.slane %v6239, 5
    %v6242 = vor.u32 %v6238, %v6241
    %v6243 = vrot.slane %v6242, 4
    %v6245 = vshll.u32 %v6132, 16
    %v6247 = vrot.slane %v6245, 5
    %v6248 = vsel %vm1704, %v6243, %v6247
    %v6250 = vshrl.u32 %v6133, 16
    %v6252 = vrot.slane %v6250, 4
    %v6253 = vshll.u32 %v6133, 16
    %v6255 = vrot.slane %v6253, 5
    %v6256 = vor.u32 %v6252, %v6255
    %v6257 = vrot.slane %v6256, 4
    %v6259 = vshll.u32 %v6134, 16
    %v6261 = vrot.slane %v6259, 5
    %v6262 = vsel %vm1704, %v6257, %v6261
    %v6264 = vshrl.u32 %v6135, 16
    %v6266 = vrot.slane %v6264, 4
    %v6267 = vshll.u32 %v6135, 16
    %v6269 = vrot.slane %v6267, 5
    %v6270 = vor.u32 %v6266, %v6269
    %v6271 = vrot.slane %v6270, 4
    %v6273 = vshll.u32 %v6136, 16
    %v6275 = vrot.slane %v6273, 5
    %v6276 = vsel %vm1704, %v6271, %v6275
    %v6278 = vshrl.u32 %v6137, 16
    %v6280 = vrot.slane %v6278, 4
    %v6281 = vshll.u32 %v6137, 16
    %v6283 = vrot.slane %v6281, 5
    %v6284 = vor.u32 %v6280, %v6283
    %v6285 = vrot.slane %v6284, 4
    %v6287 = vshll.u32 %v6138, 16
    %v6289 = vrot.slane %v6287, 5
    %v6290 = vsel %vm1704, %v6285, %v6289
    %v6292 = vshrl.u32 %v6139, 16
    %v6294 = vrot.slane %v6292, 4
    %v6295 = vshll.u32 %v6139, 16
    %v6297 = vrot.slane %v6295, 5
    %v6298 = vor.u32 %v6294, %v6297
    %v6299 = vrot.slane %v6298, 4
    %v6301 = vshll.u32 %v6140, 16
    %v6303 = vrot.slane %v6301, 5
    %v6304 = vsel %vm1704, %v6299, %v6303
    %v6306 = vshrl.u32 %v6141, 16
    %v6308 = vrot.slane %v6306, 4
    %v6309 = vshll.u32 %v6141, 16
    %v6311 = vrot.slane %v6309, 5
    %v6312 = vor.u32 %v6308, %v6311
    %v6313 = vrot.slane %v6312, 4
    %v6315 = vshll.u32 %v6142, 16
    %v6317 = vrot.slane %v6315, 5
    %v6318 = vsel %vm1704, %v6313, %v6317
    %v6320 = vshrl.u32 %v6143, 16
    %v6322 = vrot.slane %v6320, 4
    %v6323 = vshll.u32 %v6143, 16
    %v6325 = vrot.slane %v6323, 5
    %v6326 = vor.u32 %v6322, %v6325
    %v6327 = vrot.slane %v6326, 4
    %v6329 = vshll.u32 %v6144, 16
    %v6331 = vrot.slane %v6329, 5
    %v6332 = vsel %vm1704, %v6327, %v6331
    %v6334 = vshrl.u32 %v6145, 16
    %v6336 = vrot.slane %v6334, 4
    %v6337 = vshll.u32 %v6145, 16
    %v6339 = vrot.slane %v6337, 5
    %v6340 = vor.u32 %v6336, %v6339
    %v6341 = vrot.slane %v6340, 4
    %v6343 = vshll.u32 %v6146, 16
    %v6345 = vrot.slane %v6343, 5
    %v6346 = vsel %vm1704, %v6341, %v6345
    %v6348 = vshrl.u32 %v6147, 16
    %v6350 = vrot.slane %v6348, 4
    %v6351 = vshll.u32 %v6147, 16
    %v6353 = vrot.slane %v6351, 5
    %v6354 = vor.u32 %v6350, %v6353
    %v6355 = vrot.slane %v6354, 4
    %v6357 = vshll.u32 %v6148, 16
    %v6359 = vrot.slane %v6357, 5
    %v6360 = vsel %vm1704, %v6355, %v6359
    %v6362 = vshrl.u32 %v6149, 16
    %v6364 = vrot.slane %v6362, 4
    %v6365 = vshll.u32 %v6149, 16
    %v6367 = vrot.slane %v6365, 5
    %v6368 = vor.u32 %v6364, %v6367
    %v6369 = vrot.slane %v6368, 4
    %v6371 = vshll.u32 %v6150, 16
    %v6373 = vrot.slane %v6371, 5
    %v6374 = vsel %vm1704, %v6369, %v6373
    %s6375 = scalar_lea.vmem %s6, 28
    %v6376 = vld [vmem:[%s6375] sm:$0xf]
    %v6377 = vunpack.c.l.b16 %v6164
    %v6378 = vunpack.c.l.b16 %v6178
    %v6379 = vunpack.c.l.b16 %v6192
    %v6380 = vunpack.c.l.b16 %v6206
    %v6381 = vunpack.c.l.b16 %v6220
    %v6382 = vunpack.c.l.b16 %v6234
    %v6383 = vunpack.c.l.b16 %v6248
    %v6384 = vunpack.c.l.b16 %v6262
    %v6385 = vunpack.c.l.b16 %v6276
    %v6386 = vunpack.c.l.b16 %v6290
    %v6387 = vunpack.c.l.b16 %v6304
    %v6388 = vunpack.c.l.b16 %v6318
    %v6389 = vunpack.c.l.b16 %v6332
    %v6390 = vunpack.c.l.b16 %v6346
    %v6391 = vunpack.c.l.b16 %v6360
    %v6392 = vunpack.c.l.b16 %v6374
    %v6393 = vpack.c.b16 %v6378, %v6377
    %v6394 = vpack.c.b16 %v6380, %v6379
    %v6395 = vpack.c.b16 %v6382, %v6381
    %v6396 = vpack.c.b16 %v6384, %v6383
    %v6397 = vpack.c.b16 %v6386, %v6385
    %v6398 = vpack.c.b16 %v6388, %v6387
    %v6399 = vpack.c.b16 %v6390, %v6389
    %v6400 = vpack.c.b16 %v6392, %v6391
    %v6402 = vsel %vm4451, %v6393, 0
    %v6405 = vsel %vm4451, %v6394, 0
    %v6408 = vsel %vm4451, %v6395, 0
    %v6411 = vsel %vm4451, %v6396, 0
    %v6414 = vsel %vm4451, %v6397, 0
    %v6417 = vsel %vm4451, %v6398, 0
    %v6420 = vsel %vm4451, %v6399, 0
    %v6423 = vsel %vm4451, %v6400, 0
    %v6426 = vsel %vm4476, %v6376, 0
    %6428 = vmatprep.subr.bf16.mxu0 0
    %6429 = vmatpush1.bf16.msra.mxu0 %v6426
    %6430 = vmatprep.subr.bf16.mxu0 0
    %6431 = vmatpush1.bf16.msra.mxu0 0
    %6432 = vmatprep.subr.bf16.mxu0 0
    %6433 = vmatpush1.bf16.msra.mxu0 0
    %6434 = vmatprep.subr.bf16.mxu0 0
    %6435 = vmatpush1.bf16.msra.mxu0 0
    %6436 = vmatprep.subr.bf16.mxu0 0
    %6437 = vmatpush1.bf16.msra.mxu0 0
    %6438 = vmatprep.subr.bf16.mxu0 0
    %6439 = vmatpush1.bf16.msra.mxu0 0
    %6440 = vmatprep.subr.bf16.mxu0 0
    %6441 = vmatpush1.bf16.msra.mxu0 0
    %6442 = vmatprep.subr.bf16.mxu0 0
    %6443 = vmatpush1.bf16.msra.mxu0 0
    %6444 = vmatprep.subr.bf16.mxu0 0
    %6445 = vmatpush1.bf16.msra.mxu0 0
    %6446 = vmatprep.subr.bf16.mxu0 0
    %6447 = vmatpush1.bf16.msra.mxu0 0
    %6448 = vmatprep.subr.bf16.mxu0 0
    %6449 = vmatpush1.bf16.msra.mxu0 0
    %6450 = vmatprep.subr.bf16.mxu0 0
    %6451 = vmatpush1.bf16.msra.mxu0 0
    %6452 = vmatprep.subr.bf16.mxu0 0
    %6453 = vmatpush1.bf16.msra.mxu0 0
    %6454 = vmatprep.subr.bf16.mxu0 0
    %6455 = vmatpush1.bf16.msra.mxu0 0
    %6456 = vmatprep.subr.bf16.mxu0 0
    %6457 = vmatpush1.bf16.msra.mxu0 0
    %6458 = vmatprep.subr.bf16.mxu0 0
    %6459 = vmatpush1.bf16.msra.mxu0 0
    %6460 = vmatprep.mubr.bf16.mxu0 0
    %6461 = vmatmul.mubr.bf16.gmra.mrb[0].mxu0 %v6402
    %v6462 = vpop.f32.mrb[0].mxu0
    %v6463 = vadd.f32 0.0, %v6462
    %v6464 = vpop.f32.mrb[0].mxu0
    %v6465 = vpop.f32.mrb[0].mxu0
    %v6466 = vadd.f32 0.0, %v6465
    %v6467 = vpop.f32.mrb[0].mxu0
    %6468 = vmatprep.mubr.bf16.mxu0 0
    %6469 = vmatmul.mubr.bf16.gmra.mrb[0].mxu0 %v6405
    %v6470 = vpop.f32.mrb[0].mxu0
    %v6471 = vadd.f32 0.0, %v6470
    %v6472 = vpop.f32.mrb[0].mxu0
    %v6473 = vpop.f32.mrb[0].mxu0
    %v6474 = vadd.f32 0.0, %v6473
    %v6475 = vpop.f32.mrb[0].mxu0
    %6476 = vmatprep.mubr.bf16.mxu0 0
    %6477 = vmatmul.mubr.bf16.gmra.mrb[0].mxu0 %v6408
    %v6478 = vpop.f32.mrb[0].mxu0
    %v6479 = vadd.f32 0.0, %v6478
    %v6480 = vpop.f32.mrb[0].mxu0
    %v6481 = vpop.f32.mrb[0].mxu0
    %v6482 = vadd.f32 0.0, %v6481
    %v6483 = vpop.f32.mrb[0].mxu0
    %6484 = vmatprep.mubr.bf16.mxu0 0
    %6485 = vmatmul.mubr.bf16.gmra.mrb[0].mxu0 %v6411
    %v6486 = vpop.f32.mrb[0].mxu0
    %v6487 = vadd.f32 0.0, %v6486
    %v6488 = vpop.f32.mrb[0].mxu0
    %v6489 = vpop.f32.mrb[0].mxu0
    %v6490 = vadd.f32 0.0, %v6489
    %v6491 = vpop.f32.mrb[0].mxu0
    %6492 = vmatprep.mubr.bf16.mxu0 0
    %6493 = vmatmul.mubr.bf16.gmra.mrb[0].mxu0 %v6414
    %v6494 = vpop.f32.mrb[0].mxu0
    %v6495 = vadd.f32 0.0, %v6494
    %v6496 = vpop.f32.mrb[0].mxu0
    %v6497 = vpop.f32.mrb[0].mxu0
    %v6498 = vadd.f32 0.0, %v6497
    %v6499 = vpop.f32.mrb[0].mxu0
    %6500 = vmatprep.mubr.bf16.mxu0 0
    %6501 = vmatmul.mubr.bf16.gmra.mrb[0].mxu0 %v6417
    %v6502 = vpop.f32.mrb[0].mxu0
    %v6503 = vadd.f32 0.0, %v6502
    %v6504 = vpop.f32.mrb[0].mxu0
    %v6505 = vpop.f32.mrb[0].mxu0
    %v6506 = vadd.f32 0.0, %v6505
    %v6507 = vpop.f32.mrb[0].mxu0
    %6508 = vmatprep.mubr.bf16.mxu0 0
    %6509 = vmatmul.mubr.bf16.gmra.mrb[0].mxu0 %v6420
    %v6510 = vpop.f32.mrb[0].mxu0
    %v6511 = vadd.f32 0.0, %v6510
    %v6512 = vpop.f32.mrb[0].mxu0
    %v6513 = vpop.f32.mrb[0].mxu0
    %v6514 = vadd.f32 0.0, %v6513
    %v6515 = vpop.f32.mrb[0].mxu0
    %6516 = vmatprep.mubr.bf16.mxu0 0
    %6517 = vmatmul.mubr.bf16.gmra.mrb[0].mxu0 %v6423
    %v6518 = vpop.f32.mrb[0].mxu0
    %v6519 = vadd.f32 0.0, %v6518
    %v6520 = vpop.f32.mrb[0].mxu0
    %v6521 = vpop.f32.mrb[0].mxu0
    %v6522 = vadd.f32 0.0, %v6521
    %v6523 = vpop.f32.mrb[0].mxu0
    %6524 = vdwg.mxu0
    %v6525 = vadd.f32 %v6103, %v6463
    %v6526 = vadd.f32 %v6104, %v6466
    %v6527 = vadd.f32 %v6105, %v6471
    %v6528 = vadd.f32 %v6106, %v6474
    %v6529 = vadd.f32 %v6107, %v6479
    %v6530 = vadd.f32 %v6108, %v6482
    %v6531 = vadd.f32 %v6109, %v6487
    %v6532 = vadd.f32 %v6110, %v6490
    %v6533 = vadd.f32 %v6111, %v6495
    %v6534 = vadd.f32 %v6112, %v6498
    %v6535 = vadd.f32 %v6113, %v6503
    %v6536 = vadd.f32 %v6114, %v6506
    %v6537 = vadd.f32 %v6115, %v6511
    %v6538 = vadd.f32 %v6116, %v6514
    %v6539 = vadd.f32 %v6117, %v6519
    %v6540 = vadd.f32 %v6118, %v6522
    %v6541 = vld [vmem:[%s5920] sm:$0xe]
    %v6542 = vld [vmem:[%s5920 + $0x8] sm:$0xe]
    %v6543 = vld [vmem:[%s5920 + $0x10] sm:$0xe]
    %v6544 = vld [vmem:[%s5920 + $0x18] sm:$0xe]
    %v6545 = vld [vmem:[%s5920 + $0x20] sm:$0xe]
    %v6546 = vld [vmem:[%s5920 + $0x28] sm:$0xe]
    %v6547 = vld [vmem:[%s5920 + $0x30] sm:$0xe]
    %v6548 = vld [vmem:[%s5920 + $0x38] sm:$0xe]
    %v6549 = vld [vmem:[%s5920 + $0x50] sm:$0xe]
    %v6550 = vld [vmem:[%s5920 + $0x58] sm:$0xe]
    %v6551 = vld [vmem:[%s5920 + $0x60] sm:$0xe]
    %v6552 = vld [vmem:[%s5920 + $0x68] sm:$0xe]
    %v6553 = vld [vmem:[%s5920 + $0x70] sm:$0xe]
    %v6554 = vld [vmem:[%s5920 + $0x78] sm:$0xe]
    %v6555 = vld [vmem:[%s5920 + $0x80] sm:$0xe]
    %v6556 = vld [vmem:[%s5920 + $0x88] sm:$0xe]
    %v6589 = vrot.slane %v6541, 5
    %v6590 = vrot.slane %v6589, 4
    %v6591 = vrot.slane %v6120, 5
    %v6592 = vsel %vm4791, %v6590, %v6591
    %v6593 = vrot.slane %v6542, 5
    %v6594 = vrot.slane %v6593, 4
    %v6595 = vrot.slane %v6122, 5
    %v6596 = vsel %vm4791, %v6594, %v6595
    %v6597 = vrot.slane %v6543, 5
    %v6598 = vrot.slane %v6597, 4
    %v6599 = vrot.slane %v6124, 5
    %v6600 = vsel %vm4791, %v6598, %v6599
    %v6601 = vrot.slane %v6544, 5
    %v6602 = vrot.slane %v6601, 4
    %v6603 = vrot.slane %v6126, 5
    %v6604 = vsel %vm4791, %v6602, %v6603
    %v6605 = vrot.slane %v6545, 5
    %v6606 = vrot.slane %v6605, 4
    %v6607 = vrot.slane %v6128, 5
    %v6608 = vsel %vm4791, %v6606, %v6607
    %v6609 = vrot.slane %v6546, 5
    %v6610 = vrot.slane %v6609, 4
    %v6611 = vrot.slane %v6130, 5
    %v6612 = vsel %vm4791, %v6610, %v6611
    %v6613 = vrot.slane %v6547, 5
    %v6614 = vrot.slane %v6613, 4
    %v6615 = vrot.slane %v6132, 5
    %v6616 = vsel %vm4791, %v6614, %v6615
    %v6617 = vrot.slane %v6548, 5
    %v6618 = vrot.slane %v6617, 4
    %v6619 = vrot.slane %v6134, 5
    %v6620 = vsel %vm4791, %v6618, %v6619
    %v6621 = vrot.slane %v6549, 5
    %v6622 = vrot.slane %v6621, 4
    %v6623 = vrot.slane %v6136, 5
    %v6624 = vsel %vm4791, %v6622, %v6623
    %v6625 = vrot.slane %v6550, 5
    %v6626 = vrot.slane %v6625, 4
    %v6627 = vrot.slane %v6138, 5
    %v6628 = vsel %vm4791, %v6626, %v6627
    %v6629 = vrot.slane %v6551, 5
    %v6630 = vrot.slane %v6629, 4
    %v6631 = vrot.slane %v6140, 5
    %v6632 = vsel %vm4791, %v6630, %v6631
    %v6633 = vrot.slane %v6552, 5
    %v6634 = vrot.slane %v6633, 4
    %v6635 = vrot.slane %v6142, 5
    %v6636 = vsel %vm4791, %v6634, %v6635
    %v6637 = vrot.slane %v6553, 5
    %v6638 = vrot.slane %v6637, 4
    %v6639 = vrot.slane %v6144, 5
    %v6640 = vsel %vm4791, %v6638, %v6639
    %v6641 = vrot.slane %v6554, 5
    %v6642 = vrot.slane %v6641, 4
    %v6643 = vrot.slane %v6146, 5
    %v6644 = vsel %vm4791, %v6642, %v6643
    %v6645 = vrot.slane %v6555, 5
    %v6646 = vrot.slane %v6645, 4
    %v6647 = vrot.slane %v6148, 5
    %v6648 = vsel %vm4791, %v6646, %v6647
    %v6649 = vrot.slane %v6556, 5
    %v6650 = vrot.slane %v6649, 4
    %v6651 = vrot.slane %v6150, 5
    %v6652 = vsel %vm4791, %v6650, %v6651
    %s6653 = scalar_lea.vmem %s6, 32
    %v6654 = vld [vmem:[%s6653] sm:$0xf]
    %v6655 = vunpack.c.l.b16 %v6592
    %v6656 = vunpack.c.l.b16 %v6596
    %v6657 = vunpack.c.l.b16 %v6600
    %v6658 = vunpack.c.l.b16 %v6604
    %v6659 = vunpack.c.l.b16 %v6608
    %v6660 = vunpack.c.l.b16 %v6612
    %v6661 = vunpack.c.l.b16 %v6616
    %v6662 = vunpack.c.l.b16 %v6620
    %v6663 = vunpack.c.l.b16 %v6624
    %v6664 = vunpack.c.l.b16 %v6628
    %v6665 = vunpack.c.l.b16 %v6632
    %v6666 = vunpack.c.l.b16 %v6636
    %v6667 = vunpack.c.l.b16 %v6640
    %v6668 = vunpack.c.l.b16 %v6644
    %v6669 = vunpack.c.l.b16 %v6648
    %v6670 = vunpack.c.l.b16 %v6652
    %v6671 = vpack.c.b16 %v6656, %v6655
    %v6672 = vpack.c.b16 %v6658, %v6657
    %v6673 = vpack.c.b16 %v6660, %v6659
    %v6674 = vpack.c.b16 %v6662, %v6661
    %v6675 = vpack.c.b16 %v6664, %v6663
    %v6676 = vpack.c.b16 %v6666, %v6665
    %v6677 = vpack.c.b16 %v6668, %v6667
    %v6678 = vpack.c.b16 %v6670, %v6669
    %v6680 = vsel %vm4451, %v6671, 0
    %v6683 = vsel %vm4451, %v6672, 0
    %v6686 = vsel %vm4451, %v6673, 0
    %v6689 = vsel %vm4451, %v6674, 0
    %v6692 = vsel %vm4451, %v6675, 0
    %v6695 = vsel %vm4451, %v6676, 0
    %v6698 = vsel %vm4451, %v6677, 0
    %v6701 = vsel %vm4451, %v6678, 0
    %v6704 = vsel %vm4476, %v6654, 0
    %6706 = vmatprep.subr.bf16.mxu0 0
    %6707 = vmatpush1.bf16.msra.mxu0 %v6704
    %6708 = vmatprep.subr.bf16.mxu0 0
    %6709 = vmatpush1.bf16.msra.mxu0 0
    %6710 = vmatprep.subr.bf16.mxu0 0
    %6711 = vmatpush1.bf16.msra.mxu0 0
    %6712 = vmatprep.subr.bf16.mxu0 0
    %6713 = vmatpush1.bf16.msra.mxu0 0
    %6714 = vmatprep.subr.bf16.mxu0 0
    %6715 = vmatpush1.bf16.msra.mxu0 0
    %6716 = vmatprep.subr.bf16.mxu0 0
    %6717 = vmatpush1.bf16.msra.mxu0 0
    %6718 = vmatprep.subr.bf16.mxu0 0
    %6719 = vmatpush1.bf16.msra.mxu0 0
    %6720 = vmatprep.subr.bf16.mxu0 0
    %6721 = vmatpush1.bf16.msra.mxu0 0
    %6722 = vmatprep.subr.bf16.mxu0 0
    %6723 = vmatpush1.bf16.msra.mxu0 0
    %6724 = vmatprep.subr.bf16.mxu0 0
    %6725 = vmatpush1.bf16.msra.mxu0 0
    %6726 = vmatprep.subr.bf16.mxu0 0
    %6727 = vmatpush1.bf16.msra.mxu0 0
    %6728 = vmatprep.subr.bf16.mxu0 0
    %6729 = vmatpush1.bf16.msra.mxu0 0
    %6730 = vmatprep.subr.bf16.mxu0 0
    %6731 = vmatpush1.bf16.msra.mxu0 0
    %6732 = vmatprep.subr.bf16.mxu0 0
    %6733 = vmatpush1.bf16.msra.mxu0 0
    %6734 = vmatprep.subr.bf16.mxu0 0
    %6735 = vmatpush1.bf16.msra.mxu0 0
    %6736 = vmatprep.subr.bf16.mxu0 0
    %6737 = vmatpush1.bf16.msra.mxu0 0
    %6738 = vmatprep.mubr.bf16.mxu0 0
    %6739 = vmatmul.mubr.bf16.gmra.mrb[0].mxu0 %v6680
    %v6740 = vpop.f32.mrb[0].mxu0
    %v6741 = vadd.f32 0.0, %v6740
    %v6742 = vpop.f32.mrb[0].mxu0
    %v6743 = vpop.f32.mrb[0].mxu0
    %v6744 = vadd.f32 0.0, %v6743
    %v6745 = vpop.f32.mrb[0].mxu0
    %6746 = vmatprep.mubr.bf16.mxu0 0
    %6747 = vmatmul.mubr.bf16.gmra.mrb[0].mxu0 %v6683
    %v6748 = vpop.f32.mrb[0].mxu0
    %v6749 = vadd.f32 0.0, %v6748
    %v6750 = vpop.f32.mrb[0].mxu0
    %v6751 = vpop.f32.mrb[0].mxu0
    %v6752 = vadd.f32 0.0, %v6751
    %v6753 = vpop.f32.mrb[0].mxu0
    %6754 = vmatprep.mubr.bf16.mxu0 0
    %6755 = vmatmul.mubr.bf16.gmra.mrb[0].mxu0 %v6686
    %v6756 = vpop.f32.mrb[0].mxu0
    %v6757 = vadd.f32 0.0, %v6756
    %v6758 = vpop.f32.mrb[0].mxu0
    %v6759 = vpop.f32.mrb[0].mxu0
    %v6760 = vadd.f32 0.0, %v6759
    %v6761 = vpop.f32.mrb[0].mxu0
    %6762 = vmatprep.mubr.bf16.mxu0 0
    %6763 = vmatmul.mubr.bf16.gmra.mrb[0].mxu0 %v6689
    %v6764 = vpop.f32.mrb[0].mxu0
    %v6765 = vadd.f32 0.0, %v6764
    %v6766 = vpop.f32.mrb[0].mxu0
    %v6767 = vpop.f32.mrb[0].mxu0
    %v6768 = vadd.f32 0.0, %v6767
    %v6769 = vpop.f32.mrb[0].mxu0
    %6770 = vmatprep.mubr.bf16.mxu0 0
    %6771 = vmatmul.mubr.bf16.gmra.mrb[0].mxu0 %v6692
    %v6772 = vpop.f32.mrb[0].mxu0
    %v6773 = vadd.f32 0.0, %v6772
    %v6774 = vpop.f32.mrb[0].mxu0
    %v6775 = vpop.f32.mrb[0].mxu0
    %v6776 = vadd.f32 0.0, %v6775
    %v6777 = vpop.f32.mrb[0].mxu0
    %6778 = vmatprep.mubr.bf16.mxu0 0
    %6779 = vmatmul.mubr.bf16.gmra.mrb[0].mxu0 %v6695
    %v6780 = vpop.f32.mrb[0].mxu0
    %v6781 = vadd.f32 0.0, %v6780
    %v6782 = vpop.f32.mrb[0].mxu0
    %v6783 = vpop.f32.mrb[0].mxu0
    %v6784 = vadd.f32 0.0, %v6783
    %v6785 = vpop.f32.mrb[0].mxu0
    %6786 = vmatprep.mubr.bf16.mxu0 0
    %6787 = vmatmul.mubr.bf16.gmra.mrb[0].mxu0 %v6698
    %v6788 = vpop.f32.mrb[0].mxu0
    %v6789 = vadd.f32 0.0, %v6788
    %v6790 = vpop.f32.mrb[0].mxu0
    %v6791 = vpop.f32.mrb[0].mxu0
    %v6792 = vadd.f32 0.0, %v6791
    %v6793 = vpop.f32.mrb[0].mxu0
    %6794 = vmatprep.mubr.bf16.mxu0 0
    %6795 = vmatmul.mubr.bf16.gmra.mrb[0].mxu0 %v6701
    %v6796 = vpop.f32.mrb[0].mxu0
    %v6797 = vadd.f32 0.0, %v6796
    %v6798 = vpop.f32.mrb[0].mxu0
    %v6799 = vpop.f32.mrb[0].mxu0
    %v6800 = vadd.f32 0.0, %v6799
    %v6801 = vpop.f32.mrb[0].mxu0
    %6802 = vdwg.mxu0
    %v6803 = vadd.f32 %v6525, %v6741
    %v6804 = vadd.f32 %v6526, %v6744
    %v6805 = vadd.f32 %v6527, %v6749
    %v6806 = vadd.f32 %v6528, %v6752
    %v6807 = vadd.f32 %v6529, %v6757
    %v6808 = vadd.f32 %v6530, %v6760
    %v6809 = vadd.f32 %v6531, %v6765
    %v6810 = vadd.f32 %v6532, %v6768
    %v6811 = vadd.f32 %v6533, %v6773
    %v6812 = vadd.f32 %v6534, %v6776
    %v6813 = vadd.f32 %v6535, %v6781
    %v6814 = vadd.f32 %v6536, %v6784
    %v6815 = vadd.f32 %v6537, %v6789
    %v6816 = vadd.f32 %v6538, %v6792
    %v6817 = vadd.f32 %v6539, %v6797
    %v6818 = vadd.f32 %v6540, %v6800
    %v6819 = vld [vmem:[%s666] sm:$0xf]
    %v6820 = vld [vmem:[%s666 + $0x10] sm:$0xf]
    %v6821 = vld [vmem:[%s666 + $0x20] sm:$0xf]
    %v6822 = vld [vmem:[%s666 + $0x30] sm:$0xf]
    %v6823 = vld [vmem:[%s666 + $0x40] sm:$0xf]
    %v6824 = vld [vmem:[%s666 + $0x50] sm:$0xf]
    %v6825 = vld [vmem:[%s666 + $0x60] sm:$0xf]
    %v6826 = vld [vmem:[%s666 + $0x70] sm:$0xf]
    %v6827 = vld [vmem:[%s666 + $0x90] sm:$0xf]
    %v6828 = vld [vmem:[%s666 + $0xa0] sm:$0xf]
    %v6829 = vld [vmem:[%s666 + $0xb0] sm:$0xf]
    %v6830 = vld [vmem:[%s666 + $0xc0] sm:$0xf]
    %v6831 = vld [vmem:[%s666 + $0xd0] sm:$0xf]
    %v6832 = vld [vmem:[%s666 + $0xe0] sm:$0xf]
    %v6833 = vld [vmem:[%s666 + $0xf0] sm:$0xf]
    %v6834 = vld [vmem:[%s666 + $0x100] sm:$0xf]
    %v6835 = vld [vmem:[%s7] sm:$0x3]
    %v6852 = vunpack.c.l.b16 %v6819
    %v6853 = vunpack.c.l.b16 %v6820
    %v6854 = vunpack.c.l.b16 %v6821
    %v6855 = vunpack.c.l.b16 %v6822
    %v6856 = vunpack.c.l.b16 %v6823
    %v6857 = vunpack.c.l.b16 %v6824
    %v6858 = vunpack.c.l.b16 %v6825
    %v6859 = vunpack.c.l.b16 %v6826
    %v6860 = vunpack.c.l.b16 %v6827
    %v6861 = vunpack.c.l.b16 %v6828
    %v6862 = vunpack.c.l.b16 %v6829
    %v6863 = vunpack.c.l.b16 %v6830
    %v6864 = vunpack.c.l.b16 %v6831
    %v6865 = vunpack.c.l.b16 %v6832
    %v6866 = vunpack.c.l.b16 %v6833
    %v6867 = vunpack.c.l.b16 %v6834
    %v6868 = vpack.c.b16 %v6853, %v6852
    %v6869 = vpack.c.b16 %v6855, %v6854
    %v6870 = vpack.c.b16 %v6857, %v6856
    %v6871 = vpack.c.b16 %v6859, %v6858
    %v6872 = vpack.c.b16 %v6861, %v6860
    %v6873 = vpack.c.b16 %v6863, %v6862
    %v6874 = vpack.c.b16 %v6865, %v6864
    %v6875 = vpack.c.b16 %v6867, %v6866
    %6876 = vrot.lane.b32.xlu0 %v6868, 124
    %v6877 = vpop.permute.xlu0 %6876
    %6878 = vrot.lane.b32.xlu0 %v6869, 124
    %v6879 = vpop.permute.xlu0 %6878
    %6880 = vrot.lane.b32.xlu0 %v6870, 124
    %v6881 = vpop.permute.xlu0 %6880
    %6882 = vrot.lane.b32.xlu0 %v6871, 124
    %v6883 = vpop.permute.xlu0 %6882
    %6884 = vrot.lane.b32.xlu0 %v6872, 124
    %v6885 = vpop.permute.xlu0 %6884
    %6886 = vrot.lane.b32.xlu0 %v6873, 124
    %v6887 = vpop.permute.xlu0 %6886
    %6888 = vrot.lane.b32.xlu0 %v6874, 124
    %v6889 = vpop.permute.xlu0 %6888
    %6890 = vrot.lane.b32.xlu0 %v6875, 124
    %v6891 = vpop.permute.xlu0 %6890
    %v6893 = vsel %vm1420, %v6877, 0
    %v6896 = vsel %vm1420, %v6879, 0
    %v6899 = vsel %vm1420, %v6881, 0
    %v6902 = vsel %vm1420, %v6883, 0
    %v6905 = vsel %vm1420, %v6885, 0
    %v6908 = vsel %vm1420, %v6887, 0
    %v6911 = vsel %vm1420, %v6889, 0
    %v6914 = vsel %vm1420, %v6891, 0
    %v6917 = vsel %vm1445, %v6835, 0
    %6919 = vmatprep.subr.bf16.mxu0 0
    %6920 = vmatpush1.bf16.msra.mxu0 %v6917
    %6921 = vmatprep.subr.bf16.mxu0 0
    %6922 = vmatpush1.bf16.msra.mxu0 0
    %6923 = vmatprep.subr.bf16.mxu0 0
    %6924 = vmatpush1.bf16.msra.mxu0 0
    %6925 = vmatprep.subr.bf16.mxu0 0
    %6926 = vmatpush1.bf16.msra.mxu0 0
    %6927 = vmatprep.subr.bf16.mxu0 0
    %6928 = vmatpush1.bf16.msra.mxu0 0
    %6929 = vmatprep.subr.bf16.mxu0 0
    %6930 = vmatpush1.bf16.msra.mxu0 0
    %6931 = vmatprep.subr.bf16.mxu0 0
    %6932 = vmatpush1.bf16.msra.mxu0 0
    %6933 = vmatprep.subr.bf16.mxu0 0
    %6934 = vmatpush1.bf16.msra.mxu0 0
    %6935 = vmatprep.subr.bf16.mxu0 0
    %6936 = vmatpush1.bf16.msra.mxu0 0
    %6937 = vmatprep.subr.bf16.mxu0 0
    %6938 = vmatpush1.bf16.msra.mxu0 0
    %6939 = vmatprep.subr.bf16.mxu0 0
    %6940 = vmatpush1.bf16.msra.mxu0 0
    %6941 = vmatprep.subr.bf16.mxu0 0
    %6942 = vmatpush1.bf16.msra.mxu0 0
    %6943 = vmatprep.subr.bf16.mxu0 0
    %6944 = vmatpush1.bf16.msra.mxu0 0
    %6945 = vmatprep.subr.bf16.mxu0 0
    %6946 = vmatpush1.bf16.msra.mxu0 0
    %6947 = vmatprep.subr.bf16.mxu0 0
    %6948 = vmatpush1.bf16.msra.mxu0 0
    %6949 = vmatprep.subr.bf16.mxu0 0
    %6950 = vmatpush1.bf16.msra.mxu0 0
    %6951 = vmatprep.mubr.bf16.mxu0 0
    %6952 = vmatmul.mubr.bf16.gmra.mrb[0].mxu0 %v6893
    %v6953 = vpop.f32.mrb[0].mxu0
    %v6954 = vadd.f32 0.0, %v6953
    %v6955 = vpop.f32.mrb[0].mxu0
    %v6956 = vpop.f32.mrb[0].mxu0
    %v6957 = vadd.f32 0.0, %v6956
    %v6958 = vpop.f32.mrb[0].mxu0
    %6959 = vmatprep.mubr.bf16.mxu0 0
    %6960 = vmatmul.mubr.bf16.gmra.mrb[0].mxu0 %v6896
    %v6961 = vpop.f32.mrb[0].mxu0
    %v6962 = vadd.f32 0.0, %v6961
    %v6963 = vpop.f32.mrb[0].mxu0
    %v6964 = vpop.f32.mrb[0].mxu0
    %v6965 = vadd.f32 0.0, %v6964
    %v6966 = vpop.f32.mrb[0].mxu0
    %6967 = vmatprep.mubr.bf16.mxu0 0
    %6968 = vmatmul.mubr.bf16.gmra.mrb[0].mxu0 %v6899
    %v6969 = vpop.f32.mrb[0].mxu0
    %v6970 = vadd.f32 0.0, %v6969
    %v6971 = vpop.f32.mrb[0].mxu0
    %v6972 = vpop.f32.mrb[0].mxu0
    %v6973 = vadd.f32 0.0, %v6972
    %v6974 = vpop.f32.mrb[0].mxu0
    %6975 = vmatprep.mubr.bf16.mxu0 0
    %6976 = vmatmul.mubr.bf16.gmra.mrb[0].mxu0 %v6902
    %v6977 = vpop.f32.mrb[0].mxu0
    %v6978 = vadd.f32 0.0, %v6977
    %v6979 = vpop.f32.mrb[0].mxu0
    %v6980 = vpop.f32.mrb[0].mxu0
    %v6981 = vadd.f32 0.0, %v6980
    %v6982 = vpop.f32.mrb[0].mxu0
    %6983 = vmatprep.mubr.bf16.mxu0 0
    %6984 = vmatmul.mubr.bf16.gmra.mrb[0].mxu0 %v6905
    %v6985 = vpop.f32.mrb[0].mxu0
    %v6986 = vadd.f32 0.0, %v6985
    %v6987 = vpop.f32.mrb[0].mxu0
    %v6988 = vpop.f32.mrb[0].mxu0
    %v6989 = vadd.f32 0.0, %v6988
    %v6990 = vpop.f32.mrb[0].mxu0
    %6991 = vmatprep.mubr.bf16.mxu0 0
    %6992 = vmatmul.mubr.bf16.gmra.mrb[0].mxu0 %v6908
    %v6993 = vpop.f32.mrb[0].mxu0
    %v6994 = vadd.f32 0.0, %v6993
    %v6995 = vpop.f32.mrb[0].mxu0
    %v6996 = vpop.f32.mrb[0].mxu0
    %v6997 = vadd.f32 0.0, %v6996
    %v6998 = vpop.f32.mrb[0].mxu0
    %6999 = vmatprep.mubr.bf16.mxu0 0
    %7000 = vmatmul.mubr.bf16.gmra.mrb[0].mxu0 %v6911
    %v7001 = vpop.f32.mrb[0].mxu0
    %v7002 = vadd.f32 0.0, %v7001
    %v7003 = vpop.f32.mrb[0].mxu0
    %v7004 = vpop.f32.mrb[0].mxu0
    %v7005 = vadd.f32 0.0, %v7004
    %v7006 = vpop.f32.mrb[0].mxu0
    %7007 = vmatprep.mubr.bf16.mxu0 0
    %7008 = vmatmul.mubr.bf16.gmra.mrb[0].mxu0 %v6914
    %v7009 = vpop.f32.mrb[0].mxu0
    %v7010 = vadd.f32 0.0, %v7009
    %v7011 = vpop.f32.mrb[0].mxu0
    %v7012 = vpop.f32.mrb[0].mxu0
    %v7013 = vadd.f32 0.0, %v7012
    %v7014 = vpop.f32.mrb[0].mxu0
    %7015 = vdwg.mxu0
    %v7016 = vadd.f32 %v6803, %v6954
    %v7017 = vadd.f32 %v6804, %v6957
    %v7018 = vadd.f32 %v6805, %v6962
    %v7019 = vadd.f32 %v6806, %v6965
    %v7020 = vadd.f32 %v6807, %v6970
    %v7021 = vadd.f32 %v6808, %v6973
    %v7022 = vadd.f32 %v6809, %v6978
    %v7023 = vadd.f32 %v6810, %v6981
    %v7024 = vadd.f32 %v6811, %v6986
    %v7025 = vadd.f32 %v6812, %v6989
    %v7026 = vadd.f32 %v6813, %v6994
    %v7027 = vadd.f32 %v6814, %v6997
    %v7028 = vadd.f32 %v6815, %v7002
    %v7029 = vadd.f32 %v6816, %v7005
    %v7030 = vadd.f32 %v6817, %v7010
    %v7031 = vadd.f32 %v6818, %v7013
    %7032 = vst.msk [vmem:[#allocation4] sm:$0xff] %vm4451, %v7016
    %7033 = vst.msk [vmem:[#allocation4 + $0x8] sm:$0xff] %vm4451, %v7017
    %7034 = vst.msk [vmem:[#allocation4 + $0x10] sm:$0xff] %vm4451, %v7018
    %7035 = vst.msk [vmem:[#allocation4 + $0x18] sm:$0xff] %vm4451, %v7019
    %7036 = vst.msk [vmem:[#allocation4 + $0x20] sm:$0xff] %vm4451, %v7020
    %7037 = vst.msk [vmem:[#allocation4 + $0x28] sm:$0xff] %vm4451, %v7021
    %7038 = vst.msk [vmem:[#allocation4 + $0x30] sm:$0xff] %vm4451, %v7022
    %7039 = vst.msk [vmem:[#allocation4 + $0x38] sm:$0xff] %vm4451, %v7023
    %7040 = vst.msk [vmem:[#allocation4 + $0x40] sm:$0xff] %vm4451, %v7024
    %7041 = vst.msk [vmem:[#allocation4 + $0x48] sm:$0xff] %vm4451, %v7025
    %7042 = vst.msk [vmem:[#allocation4 + $0x50] sm:$0xff] %vm4451, %v7026
    %7043 = vst.msk [vmem:[#allocation4 + $0x58] sm:$0xff] %vm4451, %v7027
    %7044 = vst.msk [vmem:[#allocation4 + $0x60] sm:$0xff] %vm4451, %v7028
    %7045 = vst.msk [vmem:[#allocation4 + $0x68] sm:$0xff] %vm4451, %v7029
    %7046 = vst.msk [vmem:[#allocation4 + $0x70] sm:$0xff] %vm4451, %v7030
    %7047 = vst.msk [vmem:[#allocation4 + $0x78] sm:$0xff] %vm4451, %v7031
    // Predicated region
    $region34: #{tpu_custom_call.1} parent=1 // pred_check
      _
    $region35: #{tpu_custom_call.1} parent=1 // pred_check_branch
      %7049 = sbr.rel (0) target = $region37
    $region36: #{tpu_custom_call.1} parent=1 // pred_region
      %s7051 = ssub.s32 2048, 2048
      %7052 = vsyncadd [#allocation5], %s7051
      %s7053 = sshll.u32 [#allocation4], 4
      %s7054 = int_to_ptr.vmem [resolvable:$true] %s7053
      %7059 = dma.vmem_to_hbm [thread:$0]  %s7054, 2048, %s8, [#allocation5], 128, 128, 8
    $region37: #{tpu_custom_call.1} parent=1 // pred_fallthru
      _
    // Predicated region
    $region38: #{tpu_custom_call.1} parent=1 // pred_check
      _
    $region39: #{tpu_custom_call.1} parent=1 // pred_check_branch
      %7061 = sbr.rel (0) target = $region41
    $region40: #{tpu_custom_call.1} parent=1 // pred_region
      %7062 = dma.done [#allocation5], 2048
    $region41: #{tpu_custom_call.1} parent=1 // pred_fallthru
      _
    %7063 = vsyncpa [#allocation5], 1

</llo_original>
